<compile_context>
chip_gen: v6e
topology: v6e:2x2x1
jax: 0.10.0
libtpu: 0.0.40
codegen_flags: <defaults>
</compile_context>

<pallas_src>
import functools

import jax
import jax.numpy as jnp
from jax.experimental import pallas as pl
from jax.experimental.pallas import tpu as pltpu


# ----------------------------------------------------------------------------
# Kernel 1: conv1 -> relu -> pool1 -> conv2 -> relu -> pool2 (fully fused)
# ----------------------------------------------------------------------------
def _features_kernel(x_ref, w1_ref, b1_ref, w2_ref, b2_ref, o_ref,
                     p1_ref, p2_ref, *, LP1, LZ1, LP2, L0):
    """Flat-lane fused feature extractor.

    x_ref : (3, LX)    x[c, b*1024 + h*32 + w], zero padded on lanes
    w1_ref: (8, 80)    conv1 weights, column = (di*5+dj)*3 + c, zero padded
    b1_ref: (8, 1)
    w2_ref: (16, 160)  conv2 weights, column = (di*5+dj)*6 + c, zero padded
    b2_ref: (16, 1)
    o_ref : (16, L0)   pooled conv2 output; valid at lanes b*1024 + 128*i + 4*j
    p1_ref: (80, LP1)  im2col scratch for conv1
    p2_ref: (160, LP2) im2col scratch for conv2
    """
    # ---- conv1: in-kernel im2col (25 shifted lane slices) + one transposed GEMM.
    for idx in range(25):
        di, dj = idx // 5, idx % 5
        s = di * 32 + dj
        p1_ref[idx * 3:(idx + 1) * 3, :] = x_ref[:, s:s + LP1]
    p1_ref[75:80, :] = jnp.zeros((5, LP1), jnp.float32)   # keep pad rows finite
    y1 = jnp.dot(w1_ref[...], p1_ref[...], preferred_element_type=jnp.float32)
    y1 = jnp.maximum(y1 + b1_ref[...], 0.0)               # (8, LP1); rows 6,7 = 0

    # ---- 2x2 max-pool on conv1 output: max over flat shifts {0, 1, 32, 33}.
    z1 = jnp.maximum(jnp.maximum(y1[:, 0:LZ1], y1[:, 1:1 + LZ1]),
                     jnp.maximum(y1[:, 32:32 + LZ1], y1[:, 33:33 + LZ1]))

    # ---- conv2: pooled grid lives at stride (64, 2) in the flat index space.
    for idx in range(25):
        di, dj = idx // 5, idx % 5
        s = 64 * di + 2 * dj
        p2_ref[idx * 6:(idx + 1) * 6, :] = z1[0:6, s:s + LP2]
    p2_ref[150:160, :] = jnp.zeros((10, LP2), jnp.float32)
    y2 = jnp.dot(w2_ref[...], p2_ref[...], preferred_element_type=jnp.float32)
    y2 = jnp.maximum(y2 + b2_ref[...], 0.0)               # (16, LP2)

    # ---- 2x2 max-pool on conv2 output: max over flat shifts {0, 2, 64, 66}.
    o_ref[...] = jnp.maximum(jnp.maximum(y2[:, 0:L0], y2[:, 2:2 + L0]),
                             jnp.maximum(y2[:, 64:64 + L0], y2[:, 66:66 + L0]))


# ----------------------------------------------------------------------------
# Kernel 2: fc1 -> relu -> fc2 -> relu -> fc3 (fully fused, N padded to 128)
# ----------------------------------------------------------------------------
def _fc_kernel(x_ref, w1_ref, b1_ref, w2_ref, b2_ref, w3_ref, b3_ref, o_ref):
    h = jnp.dot(x_ref[...], w1_ref[...], preferred_element_type=jnp.float32)
    h = jnp.maximum(h + b1_ref[...], 0.0)
    h = jnp.dot(h, w2_ref[...], preferred_element_type=jnp.float32)
    h = jnp.maximum(h + b2_ref[...], 0.0)
    o_ref[...] = (jnp.dot(h, w3_ref[...], preferred_element_type=jnp.float32)
                  + b3_ref[...])


# ----------------------------------------------------------------------------
# Parameters
# ----------------------------------------------------------------------------
def make_params(key):
    """Deterministic PyTorch-style uniform(-1/sqrt(fan_in), 1/sqrt(fan_in)) init."""
    keys = jax.random.split(key, 10)

    def uinit(k, shape, fan_in):
        bound = 1.0 / float(fan_in) ** 0.5
        return jax.random.uniform(k, shape, jnp.float32, -bound, bound)

    return dict(
        conv1_w=uinit(keys[0], (6, 3, 5, 5), 3 * 5 * 5),
        conv1_b=uinit(keys[1], (6,), 3 * 5 * 5),
        conv2_w=uinit(keys[2], (16, 6, 5, 5), 6 * 5 * 5),
        conv2_b=uinit(keys[3], (16,), 6 * 5 * 5),
        fc1_w=uinit(keys[4], (120, 400), 400),
        fc1_b=uinit(keys[5], (120,), 400),
        fc2_w=uinit(keys[6], (84, 120), 120),
        fc2_b=uinit(keys[7], (84,), 120),
        fc3_w=uinit(keys[8], (10, 84), 84),
        fc3_b=uinit(keys[9], (10,), 84),
    )


def prepare_params(p):
    """One-time re-layout of the PyTorch-style params into kernel layout."""
    f32 = jnp.float32
    # conv weights: (OC, C, k, k) -> (OC, (di*5+dj)*C + c), zero padded.
    w1 = p["conv1_w"].transpose(0, 2, 3, 1).reshape(6, 75)
    w1p = jnp.zeros((8, 80), f32).at[:6, :75].set(w1)
    b1p = jnp.zeros((8, 1), f32).at[:6, 0].set(p["conv1_b"])
    w2 = p["conv2_w"].transpose(0, 2, 3, 1).reshape(16, 150)
    w2p = jnp.zeros((16, 160), f32).at[:, :150].set(w2)
    b2p = p["conv2_b"].reshape(16, 1)
    # fc weights: pre-transposed, output width padded to 128 lanes.
    fc1_wt = jnp.zeros((400, 128), f32).at[:, :120].set(p["fc1_w"].T)
    fc1_bp = jnp.zeros((1, 128), f32).at[0, :120].set(p["fc1_b"])
    fc2_wt = jnp.zeros((128, 128), f32).at[:120, :84].set(p["fc2_w"].T)
    fc2_bp = jnp.zeros((1, 128), f32).at[0, :84].set(p["fc2_b"])
    fc3_wt = jnp.zeros((128, 128), f32).at[:84, :10].set(p["fc3_w"].T)
    fc3_bp = jnp.zeros((1, 128), f32).at[0, :10].set(p["fc3_b"])
    return dict(w1p=w1p, b1p=b1p, w2p=w2p, b2p=b2p,
                fc1_wt=fc1_wt, fc1_b=fc1_bp,
                fc2_wt=fc2_wt, fc2_b=fc2_bp,
                fc3_wt=fc3_wt, fc3_b=fc3_bp)


# ----------------------------------------------------------------------------
# Forward
# ----------------------------------------------------------------------------
def lenet_forward(prep, x):
    B = x.shape[0]
    L0 = B * 1024                       # flat pixel lanes (b*1024 + h*32 + w)
    LX = L0 + 896                       # input width  (>= LP1 + 132)
    LP1 = L0 + 640                      # conv1 compute width (>= LZ1 + 33)
    LZ1 = L0 + 512                      # pool1 width  (>= LP2 + 264)
    LP2 = L0 + 128                      # conv2 compute width (>= L0 + 66)

    # Boundary conversion only: NCHW -> (C, B*H*W) flat lanes, zero pad tail.
    xt = x.transpose(1, 0, 2, 3).reshape(3, L0)
    xt = jnp.pad(xt, ((0, 0), (0, LX - L0)))

    z2 = pl.pallas_call(
        functools.partial(_features_kernel, LP1=LP1, LZ1=LZ1, LP2=LP2, L0=L0),
        out_shape=jax.ShapeDtypeStruct((16, L0), jnp.float32),
        grid=(1,),
        in_specs=[
            pl.BlockSpec((3, LX), lambda i: (0, 0)),
            pl.BlockSpec((8, 80), lambda i: (0, 0)),
            pl.BlockSpec((8, 1), lambda i: (0, 0)),
            pl.BlockSpec((16, 160), lambda i: (0, 0)),
            pl.BlockSpec((16, 1), lambda i: (0, 0)),
        ],
        out_specs=pl.BlockSpec((16, L0), lambda i: (0, 0)),
        scratch_shapes=[pltpu.VMEM((80, LP1), jnp.float32),
                        pltpu.VMEM((160, LP2), jnp.float32)],
    )(xt, prep["w1p"], prep["b1p"], prep["w2p"], prep["b2p"])

    # Valid pooled-conv2 pixels sit at flat lane b*1024 + 128*i + 4*j.
    # Gather them and flatten channel-major, matching torch .view(B, -1).
    feat = z2.reshape(16, B, 32, 32)[:, :, 0:20:4, 0:20:4]       # (16, B, 5, 5)
    feat = feat.transpose(1, 0, 2, 3).reshape(B, 400)            # (B, 400)

    logits = pl.pallas_call(
        _fc_kernel,
        out_shape=jax.ShapeDtypeStruct((B, 128), jnp.float32),
        grid=(1,),
        in_specs=[
            pl.BlockSpec((B, 400), lambda i: (0, 0)),
            pl.BlockSpec((400, 128), lambda i: (0, 0)),
            pl.BlockSpec((1, 128), lambda i: (0, 0)),
            pl.BlockSpec((128, 128), lambda i: (0, 0)),
            pl.BlockSpec((1, 128), lambda i: (0, 0)),
            pl.BlockSpec((128, 128), lambda i: (0, 0)),
            pl.BlockSpec((1, 128), lambda i: (0, 0)),
        ],
        out_specs=pl.BlockSpec((B, 128), lambda i: (0, 0)),
    )(feat, prep["fc1_wt"], prep["fc1_b"], prep["fc2_wt"], prep["fc2_b"],
      prep["fc3_wt"], prep["fc3_b"])

    return logits[:, :10]


if __name__ == "__main__":
    key = jax.random.PRNGKey(0)
    pkey, xkey = jax.random.split(key)
    params = make_params(pkey)
    prep = prepare_params(params)          # one-time weight re-layout
    # LeNet-5 geometry requires 3x32x32 spatial input (16*5*5 = 400 into fc1).
    x = jax.random.normal(xkey, (2, 3, 32, 32), jnp.float32)

    out = jax.jit(lambda a: lenet_forward(prep, a))(x)
    jax.block_until_ready(out)
    assert out.shape == (2, 10) and out.dtype == jnp.float32
    print("KERNEL_OK")
</pallas_src>

<mosaic_0001>
module attributes {stable_mosaic.version = 11 : i64} {
  func.func @_features_kernel(%arg0: i32, %arg1: memref<3x2944xf32, #tpu.memory_space<vmem>>, %arg2: memref<8x80xf32, #tpu.memory_space<vmem>>, %arg3: memref<8x1xf32, #tpu.memory_space<vmem>>, %arg4: memref<16x160xf32, #tpu.memory_space<vmem>>, %arg5: memref<16x1xf32, #tpu.memory_space<vmem>>, %arg6: memref<16x2048xf32, #tpu.memory_space<vmem>>, %arg7: memref<80x2688xf32, #tpu.memory_space<vmem>>, %arg8: memref<160x2176xf32, #tpu.memory_space<vmem>>) attributes {dimension_semantics = [#tpu.dimension_semantics<arbitrary>], iteration_bounds = array<i64: 1>, scalar_prefetch = 0 : i64, scratch_operands = 2 : i64, tpu.core_type = #tpu.core_type<tc>, window_params = [{pipeline_mode = #tpu.pipeline_mode<synchronous>, transform_indices = @transform_0, window_bounds = array<i64: 3, 2944>}, {pipeline_mode = #tpu.pipeline_mode<synchronous>, transform_indices = @transform_1, window_bounds = array<i64: 8, 80>}, {pipeline_mode = #tpu.pipeline_mode<synchronous>, transform_indices = @transform_2, window_bounds = array<i64: 8, 1>}, {pipeline_mode = #tpu.pipeline_mode<synchronous>, transform_indices = @transform_3, window_bounds = array<i64: 16, 160>}, {pipeline_mode = #tpu.pipeline_mode<synchronous>, transform_indices = @transform_4, window_bounds = array<i64: 16, 1>}, {pipeline_mode = #tpu.pipeline_mode<synchronous>, transform_indices = @transform_5, window_bounds = array<i64: 16, 2048>}]} {
    %c0 = arith.constant 0 : index
    %c0_0 = arith.constant 0 : index
    %0 = vector.load %arg1[%c0, %c0_0] : memref<3x2944xf32, #tpu.memory_space<vmem>>, vector<3x2688xf32>
    %c0_1 = arith.constant 0 : index
    %c0_2 = arith.constant 0 : index
    %1 = vector.load %arg7[%c0_1, %c0_2] : memref<80x2688xf32, #tpu.memory_space<vmem>>, vector<3x2688xf32>
    tpu.vector_store %arg7[%c0_1, %c0_2], %0 {strides = array<i32>} : memref<80x2688xf32, #tpu.memory_space<vmem>>, vector<3x2688xf32>,
    %c0_3 = arith.constant 0 : index
    %c1 = arith.constant 1 : index
    %2 = vector.load %arg1[%c0_3, %c1] : memref<3x2944xf32, #tpu.memory_space<vmem>>, vector<3x2688xf32>
    %c3 = arith.constant 3 : index
    %c0_4 = arith.constant 0 : index
    %3 = vector.load %arg7[%c3, %c0_4] : memref<80x2688xf32, #tpu.memory_space<vmem>>, vector<3x2688xf32>
    tpu.vector_store %arg7[%c3, %c0_4], %2 {strides = array<i32>} : memref<80x2688xf32, #tpu.memory_space<vmem>>, vector<3x2688xf32>,
    %c0_5 = arith.constant 0 : index
    %c2 = arith.constant 2 : index
    %4 = vector.load %arg1[%c0_5, %c2] : memref<3x2944xf32, #tpu.memory_space<vmem>>, vector<3x2688xf32>
    %c6 = arith.constant 6 : index
    %c0_6 = arith.constant 0 : index
    %5 = vector.load %arg7[%c6, %c0_6] : memref<80x2688xf32, #tpu.memory_space<vmem>>, vector<3x2688xf32>
    tpu.vector_store %arg7[%c6, %c0_6], %4 {strides = array<i32>} : memref<80x2688xf32, #tpu.memory_space<vmem>>, vector<3x2688xf32>,
    %c0_7 = arith.constant 0 : index
    %c3_8 = arith.constant 3 : index
    %6 = vector.load %arg1[%c0_7, %c3_8] : memref<3x2944xf32, #tpu.memory_space<vmem>>, vector<3x2688xf32>
    %c9 = arith.constant 9 : index
    %c0_9 = arith.constant 0 : index
    %7 = vector.load %arg7[%c9, %c0_9] : memref<80x2688xf32, #tpu.memory_space<vmem>>, vector<3x2688xf32>
    tpu.vector_store %arg7[%c9, %c0_9], %6 {strides = array<i32>} : memref<80x2688xf32, #tpu.memory_space<vmem>>, vector<3x2688xf32>,
    %c0_10 = arith.constant 0 : index
    %c4 = arith.constant 4 : index
    %8 = vector.load %arg1[%c0_10, %c4] : memref<3x2944xf32, #tpu.memory_space<vmem>>, vector<3x2688xf32>
    %c12 = arith.constant 12 : index
    %c0_11 = arith.constant 0 : index
    %9 = vector.load %arg7[%c12, %c0_11] : memref<80x2688xf32, #tpu.memory_space<vmem>>, vector<3x2688xf32>
    tpu.vector_store %arg7[%c12, %c0_11], %8 {strides = array<i32>} : memref<80x2688xf32, #tpu.memory_space<vmem>>, vector<3x2688xf32>,
    %c0_12 = arith.constant 0 : index
    %c32 = arith.constant 32 : index
    %10 = vector.load %arg1[%c0_12, %c32] : memref<3x2944xf32, #tpu.memory_space<vmem>>, vector<3x2688xf32>
    %c15 = arith.constant 15 : index
    %c0_13 = arith.constant 0 : index
    %11 = vector.load %arg7[%c15, %c0_13] : memref<80x2688xf32, #tpu.memory_space<vmem>>, vector<3x2688xf32>
    tpu.vector_store %arg7[%c15, %c0_13], %10 {strides = array<i32>} : memref<80x2688xf32, #tpu.memory_space<vmem>>, vector<3x2688xf32>,
    %c0_14 = arith.constant 0 : index
    %c33 = arith.constant 33 : index
    %12 = vector.load %arg1[%c0_14, %c33] : memref<3x2944xf32, #tpu.memory_space<vmem>>, vector<3x2688xf32>
    %c18 = arith.constant 18 : index
    %c0_15 = arith.constant 0 : index
    %13 = vector.load %arg7[%c18, %c0_15] : memref<80x2688xf32, #tpu.memory_space<vmem>>, vector<3x2688xf32>
    tpu.vector_store %arg7[%c18, %c0_15], %12 {strides = array<i32>} : memref<80x2688xf32, #tpu.memory_space<vmem>>, vector<3x2688xf32>,
    %c0_16 = arith.constant 0 : index
    %c34 = arith.constant 34 : index
    %14 = vector.load %arg1[%c0_16, %c34] : memref<3x2944xf32, #tpu.memory_space<vmem>>, vector<3x2688xf32>
    %c21 = arith.constant 21 : index
    %c0_17 = arith.constant 0 : index
    %15 = vector.load %arg7[%c21, %c0_17] : memref<80x2688xf32, #tpu.memory_space<vmem>>, vector<3x2688xf32>
    tpu.vector_store %arg7[%c21, %c0_17], %14 {strides = array<i32>} : memref<80x2688xf32, #tpu.memory_space<vmem>>, vector<3x2688xf32>,
    %c0_18 = arith.constant 0 : index
    %c35 = arith.constant 35 : index
    %16 = vector.load %arg1[%c0_18, %c35] : memref<3x2944xf32, #tpu.memory_space<vmem>>, vector<3x2688xf32>
    %c24 = arith.constant 24 : index
    %c0_19 = arith.constant 0 : index
    %17 = vector.load %arg7[%c24, %c0_19] : memref<80x2688xf32, #tpu.memory_space<vmem>>, vector<3x2688xf32>
    tpu.vector_store %arg7[%c24, %c0_19], %16 {strides = array<i32>} : memref<80x2688xf32, #tpu.memory_space<vmem>>, vector<3x2688xf32>,
    %c0_20 = arith.constant 0 : index
    %c36 = arith.constant 36 : index
    %18 = vector.load %arg1[%c0_20, %c36] : memref<3x2944xf32, #tpu.memory_space<vmem>>, vector<3x2688xf32>
    %c27 = arith.constant 27 : index
    %c0_21 = arith.constant 0 : index
    %19 = vector.load %arg7[%c27, %c0_21] : memref<80x2688xf32, #tpu.memory_space<vmem>>, vector<3x2688xf32>
    tpu.vector_store %arg7[%c27, %c0_21], %18 {strides = array<i32>} : memref<80x2688xf32, #tpu.memory_space<vmem>>, vector<3x2688xf32>,
    %c0_22 = arith.constant 0 : index
    %c64 = arith.constant 64 : index
    %20 = vector.load %arg1[%c0_22, %c64] : memref<3x2944xf32, #tpu.memory_space<vmem>>, vector<3x2688xf32>
    %c30 = arith.constant 30 : index
    %c0_23 = arith.constant 0 : index
    %21 = vector.load %arg7[%c30, %c0_23] : memref<80x2688xf32, #tpu.memory_space<vmem>>, vector<3x2688xf32>
    tpu.vector_store %arg7[%c30, %c0_23], %20 {strides = array<i32>} : memref<80x2688xf32, #tpu.memory_space<vmem>>, vector<3x2688xf32>,
    %c0_24 = arith.constant 0 : index
    %c65 = arith.constant 65 : index
    %22 = vector.load %arg1[%c0_24, %c65] : memref<3x2944xf32, #tpu.memory_space<vmem>>, vector<3x2688xf32>
    %c33_25 = arith.constant 33 : index
    %c0_26 = arith.constant 0 : index
    %23 = vector.load %arg7[%c33_25, %c0_26] : memref<80x2688xf32, #tpu.memory_space<vmem>>, vector<3x2688xf32>
    tpu.vector_store %arg7[%c33_25, %c0_26], %22 {strides = array<i32>} : memref<80x2688xf32, #tpu.memory_space<vmem>>, vector<3x2688xf32>,
    %c0_27 = arith.constant 0 : index
    %c66 = arith.constant 66 : index
    %24 = vector.load %arg1[%c0_27, %c66] : memref<3x2944xf32, #tpu.memory_space<vmem>>, vector<3x2688xf32>
    %c36_28 = arith.constant 36 : index
    %c0_29 = arith.constant 0 : index
    %25 = vector.load %arg7[%c36_28, %c0_29] : memref<80x2688xf32, #tpu.memory_space<vmem>>, vector<3x2688xf32>
    tpu.vector_store %arg7[%c36_28, %c0_29], %24 {strides = array<i32>} : memref<80x2688xf32, #tpu.memory_space<vmem>>, vector<3x2688xf32>,
    %c0_30 = arith.constant 0 : index
    %c67 = arith.constant 67 : index
    %26 = vector.load %arg1[%c0_30, %c67] : memref<3x2944xf32, #tpu.memory_space<vmem>>, vector<3x2688xf32>
    %c39 = arith.constant 39 : index
    %c0_31 = arith.constant 0 : index
    %27 = vector.load %arg7[%c39, %c0_31] : memref<80x2688xf32, #tpu.memory_space<vmem>>, vector<3x2688xf32>
    tpu.vector_store %arg7[%c39, %c0_31], %26 {strides = array<i32>} : memref<80x2688xf32, #tpu.memory_space<vmem>>, vector<3x2688xf32>,
    %c0_32 = arith.constant 0 : index
    %c68 = arith.constant 68 : index
    %28 = vector.load %arg1[%c0_32, %c68] : memref<3x2944xf32, #tpu.memory_space<vmem>>, vector<3x2688xf32>
    %c42 = arith.constant 42 : index
    %c0_33 = arith.constant 0 : index
    %29 = vector.load %arg7[%c42, %c0_33] : memref<80x2688xf32, #tpu.memory_space<vmem>>, vector<3x2688xf32>
    tpu.vector_store %arg7[%c42, %c0_33], %28 {strides = array<i32>} : memref<80x2688xf32, #tpu.memory_space<vmem>>, vector<3x2688xf32>,
    %c0_34 = arith.constant 0 : index
    %c96 = arith.constant 96 : index
    %30 = vector.load %arg1[%c0_34, %c96] : memref<3x2944xf32, #tpu.memory_space<vmem>>, vector<3x2688xf32>
    %c45 = arith.constant 45 : index
    %c0_35 = arith.constant 0 : index
    %31 = vector.load %arg7[%c45, %c0_35] : memref<80x2688xf32, #tpu.memory_space<vmem>>, vector<3x2688xf32>
    tpu.vector_store %arg7[%c45, %c0_35], %30 {strides = array<i32>} : memref<80x2688xf32, #tpu.memory_space<vmem>>, vector<3x2688xf32>,
    %c0_36 = arith.constant 0 : index
    %c97 = arith.constant 97 : index
    %32 = vector.load %arg1[%c0_36, %c97] : memref<3x2944xf32, #tpu.memory_space<vmem>>, vector<3x2688xf32>
    %c48 = arith.constant 48 : index
    %c0_37 = arith.constant 0 : index
    %33 = vector.load %arg7[%c48, %c0_37] : memref<80x2688xf32, #tpu.memory_space<vmem>>, vector<3x2688xf32>
    tpu.vector_store %arg7[%c48, %c0_37], %32 {strides = array<i32>} : memref<80x2688xf32, #tpu.memory_space<vmem>>, vector<3x2688xf32>,
    %c0_38 = arith.constant 0 : index
    %c98 = arith.constant 98 : index
    %34 = vector.load %arg1[%c0_38, %c98] : memref<3x2944xf32, #tpu.memory_space<vmem>>, vector<3x2688xf32>
    %c51 = arith.constant 51 : index
    %c0_39 = arith.constant 0 : index
    %35 = vector.load %arg7[%c51, %c0_39] : memref<80x2688xf32, #tpu.memory_space<vmem>>, vector<3x2688xf32>
    tpu.vector_store %arg7[%c51, %c0_39], %34 {strides = array<i32>} : memref<80x2688xf32, #tpu.memory_space<vmem>>, vector<3x2688xf32>,
    %c0_40 = arith.constant 0 : index
    %c99 = arith.constant 99 : index
    %36 = vector.load %arg1[%c0_40, %c99] : memref<3x2944xf32, #tpu.memory_space<vmem>>, vector<3x2688xf32>
    %c54 = arith.constant 54 : index
    %c0_41 = arith.constant 0 : index
    %37 = vector.load %arg7[%c54, %c0_41] : memref<80x2688xf32, #tpu.memory_space<vmem>>, vector<3x2688xf32>
    tpu.vector_store %arg7[%c54, %c0_41], %36 {strides = array<i32>} : memref<80x2688xf32, #tpu.memory_space<vmem>>, vector<3x2688xf32>,
    %c0_42 = arith.constant 0 : index
    %c100 = arith.constant 100 : index
    %38 = vector.load %arg1[%c0_42, %c100] : memref<3x2944xf32, #tpu.memory_space<vmem>>, vector<3x2688xf32>
    %c57 = arith.constant 57 : index
    %c0_43 = arith.constant 0 : index
    %39 = vector.load %arg7[%c57, %c0_43] : memref<80x2688xf32, #tpu.memory_space<vmem>>, vector<3x2688xf32>
    tpu.vector_store %arg7[%c57, %c0_43], %38 {strides = array<i32>} : memref<80x2688xf32, #tpu.memory_space<vmem>>, vector<3x2688xf32>,
    %c0_44 = arith.constant 0 : index
    %c128 = arith.constant 128 : index
    %40 = vector.load %arg1[%c0_44, %c128] : memref<3x2944xf32, #tpu.memory_space<vmem>>, vector<3x2688xf32>
    %c60 = arith.constant 60 : index
    %c0_45 = arith.constant 0 : index
    %41 = vector.load %arg7[%c60, %c0_45] : memref<80x2688xf32, #tpu.memory_space<vmem>>, vector<3x2688xf32>
    tpu.vector_store %arg7[%c60, %c0_45], %40 {strides = array<i32>} : memref<80x2688xf32, #tpu.memory_space<vmem>>, vector<3x2688xf32>,
    %c0_46 = arith.constant 0 : index
    %c129 = arith.constant 129 : index
    %42 = vector.load %arg1[%c0_46, %c129] : memref<3x2944xf32, #tpu.memory_space<vmem>>, vector<3x2688xf32>
    %c63 = arith.constant 63 : index
    %c0_47 = arith.constant 0 : index
    %43 = vector.load %arg7[%c63, %c0_47] : memref<80x2688xf32, #tpu.memory_space<vmem>>, vector<3x2688xf32>
    tpu.vector_store %arg7[%c63, %c0_47], %42 {strides = array<i32>} : memref<80x2688xf32, #tpu.memory_space<vmem>>, vector<3x2688xf32>,
    %c0_48 = arith.constant 0 : index
    %c130 = arith.constant 130 : index
    %44 = vector.load %arg1[%c0_48, %c130] : memref<3x2944xf32, #tpu.memory_space<vmem>>, vector<3x2688xf32>
    %c66_49 = arith.constant 66 : index
    %c0_50 = arith.constant 0 : index
    %45 = vector.load %arg7[%c66_49, %c0_50] : memref<80x2688xf32, #tpu.memory_space<vmem>>, vector<3x2688xf32>
    tpu.vector_store %arg7[%c66_49, %c0_50], %44 {strides = array<i32>} : memref<80x2688xf32, #tpu.memory_space<vmem>>, vector<3x2688xf32>,
    %c0_51 = arith.constant 0 : index
    %c131 = arith.constant 131 : index
    %46 = vector.load %arg1[%c0_51, %c131] : memref<3x2944xf32, #tpu.memory_space<vmem>>, vector<3x2688xf32>
    %c69 = arith.constant 69 : index
    %c0_52 = arith.constant 0 : index
    %47 = vector.load %arg7[%c69, %c0_52] : memref<80x2688xf32, #tpu.memory_space<vmem>>, vector<3x2688xf32>
    tpu.vector_store %arg7[%c69, %c0_52], %46 {strides = array<i32>} : memref<80x2688xf32, #tpu.memory_space<vmem>>, vector<3x2688xf32>,
    %c0_53 = arith.constant 0 : index
    %c132 = arith.constant 132 : index
    %48 = vector.load %arg1[%c0_53, %c132] : memref<3x2944xf32, #tpu.memory_space<vmem>>, vector<3x2688xf32>
    %c72 = arith.constant 72 : index
    %c0_54 = arith.constant 0 : index
    %49 = vector.load %arg7[%c72, %c0_54] : memref<80x2688xf32, #tpu.memory_space<vmem>>, vector<3x2688xf32>
    tpu.vector_store %arg7[%c72, %c0_54], %48 {strides = array<i32>} : memref<80x2688xf32, #tpu.memory_space<vmem>>, vector<3x2688xf32>,
    %cst = arith.constant 0.000000e+00 : f32
    %50 = vector.broadcast %cst : f32 to vector<5x2688xf32>
    %c75 = arith.constant 75 : index
    %c0_55 = arith.constant 0 : index
    %51 = vector.load %arg7[%c75, %c0_55] : memref<80x2688xf32, #tpu.memory_space<vmem>>, vector<5x2688xf32>
    tpu.vector_store %arg7[%c75, %c0_55], %50 {strides = array<i32>} : memref<80x2688xf32, #tpu.memory_space<vmem>>, vector<5x2688xf32>,
    %c0_56 = arith.constant 0 : index
    %c0_57 = arith.constant 0 : index
    %52 = vector.load %arg2[%c0_56, %c0_57] : memref<8x80xf32, #tpu.memory_space<vmem>>, vector<8x80xf32>
    %c0_58 = arith.constant 0 : index
    %c0_59 = arith.constant 0 : index
    %53 = vector.load %arg7[%c0_58, %c0_59] : memref<80x2688xf32, #tpu.memory_space<vmem>>, vector<80x2688xf32>
    %cst_60 = arith.constant dense<0.000000e+00> : vector<8x2688xf32>
    %54 = tpu.matmul %52, %53, %cst_60 {dimension_numbers = #tpu.dot_dimension_numbers<[1], [0], [0], [1], [0, 0, 1, 1], [], []>} : vector<8x80xf32>, vector<80x2688xf32>, vector<8x2688xf32> -> vector<8x2688xf32>
    %c0_61 = arith.constant 0 : index
    %c0_62 = arith.constant 0 : index
    %55 = vector.load %arg3[%c0_61, %c0_62] : memref<8x1xf32, #tpu.memory_space<vmem>>, vector<8x1xf32>
    %56 = vector.broadcast %55 : vector<8x1xf32> to vector<8x2688xf32>
    %57 = arith.addf %54, %56 : vector<8x2688xf32>
    %cst_63 = arith.constant 0.000000e+00 : f32
    %58 = vector.broadcast %cst_63 : f32 to vector<8x2688xf32>
    %59 = arith.maximumf %57, %58 : vector<8x2688xf32>
    %60 = vector.extract_strided_slice %59 {offsets = [0, 0], sizes = [8, 2560], strides = [1, 1]} : vector<8x2688xf32> to vector<8x2560xf32>
    %61 = vector.extract_strided_slice %59 {offsets = [0, 1], sizes = [8, 2560], strides = [1, 1]} : vector<8x2688xf32> to vector<8x2560xf32>
    %62 = arith.maximumf %60, %61 : vector<8x2560xf32>
    %63 = vector.extract_strided_slice %59 {offsets = [0, 32], sizes = [8, 2560], strides = [1, 1]} : vector<8x2688xf32> to vector<8x2560xf32>
    %64 = vector.extract_strided_slice %59 {offsets = [0, 33], sizes = [8, 2560], strides = [1, 1]} : vector<8x2688xf32> to vector<8x2560xf32>
    %65 = arith.maximumf %63, %64 : vector<8x2560xf32>
    %66 = arith.maximumf %62, %65 : vector<8x2560xf32>
    %67 = vector.extract_strided_slice %66 {offsets = [0, 0], sizes = [6, 2176], strides = [1, 1]} : vector<8x2560xf32> to vector<6x2176xf32>
    %c0_64 = arith.constant 0 : index
    %c0_65 = arith.constant 0 : index
    %68 = vector.load %arg8[%c0_64, %c0_65] : memref<160x2176xf32, #tpu.memory_space<vmem>>, vector<6x2176xf32>
    tpu.vector_store %arg8[%c0_64, %c0_65], %67 {strides = array<i32>} : memref<160x2176xf32, #tpu.memory_space<vmem>>, vector<6x2176xf32>,
    %69 = vector.extract_strided_slice %66 {offsets = [0, 2], sizes = [6, 2176], strides = [1, 1]} : vector<8x2560xf32> to vector<6x2176xf32>
    %c6_66 = arith.constant 6 : index
    %c0_67 = arith.constant 0 : index
    %70 = vector.load %arg8[%c6_66, %c0_67] : memref<160x2176xf32, #tpu.memory_space<vmem>>, vector<6x2176xf32>
    tpu.vector_store %arg8[%c6_66, %c0_67], %69 {strides = array<i32>} : memref<160x2176xf32, #tpu.memory_space<vmem>>, vector<6x2176xf32>,
    %71 = vector.extract_strided_slice %66 {offsets = [0, 4], sizes = [6, 2176], strides = [1, 1]} : vector<8x2560xf32> to vector<6x2176xf32>
    %c12_68 = arith.constant 12 : index
    %c0_69 = arith.constant 0 : index
    %72 = vector.load %arg8[%c12_68, %c0_69] : memref<160x2176xf32, #tpu.memory_space<vmem>>, vector<6x2176xf32>
    tpu.vector_store %arg8[%c12_68, %c0_69], %71 {strides = array<i32>} : memref<160x2176xf32, #tpu.memory_space<vmem>>, vector<6x2176xf32>,
    %73 = vector.extract_strided_slice %66 {offsets = [0, 6], sizes = [6, 2176], strides = [1, 1]} : vector<8x2560xf32> to vector<6x2176xf32>
    %c18_70 = arith.constant 18 : index
    %c0_71 = arith.constant 0 : index
    %74 = vector.load %arg8[%c18_70, %c0_71] : memref<160x2176xf32, #tpu.memory_space<vmem>>, vector<6x2176xf32>
    tpu.vector_store %arg8[%c18_70, %c0_71], %73 {strides = array<i32>} : memref<160x2176xf32, #tpu.memory_space<vmem>>, vector<6x2176xf32>,
    %75 = vector.extract_strided_slice %66 {offsets = [0, 8], sizes = [6, 2176], strides = [1, 1]} : vector<8x2560xf32> to vector<6x2176xf32>
    %c24_72 = arith.constant 24 : index
    %c0_73 = arith.constant 0 : index
    %76 = vector.load %arg8[%c24_72, %c0_73] : memref<160x2176xf32, #tpu.memory_space<vmem>>, vector<6x2176xf32>
    tpu.vector_store %arg8[%c24_72, %c0_73], %75 {strides = array<i32>} : memref<160x2176xf32, #tpu.memory_space<vmem>>, vector<6x2176xf32>,
    %77 = vector.extract_strided_slice %66 {offsets = [0, 64], sizes = [6, 2176], strides = [1, 1]} : vector<8x2560xf32> to vector<6x2176xf32>
    %c30_74 = arith.constant 30 : index
    %c0_75 = arith.constant 0 : index
    %78 = vector.load %arg8[%c30_74, %c0_75] : memref<160x2176xf32, #tpu.memory_space<vmem>>, vector<6x2176xf32>
    tpu.vector_store %arg8[%c30_74, %c0_75], %77 {strides = array<i32>} : memref<160x2176xf32, #tpu.memory_space<vmem>>, vector<6x2176xf32>,
    %79 = vector.extract_strided_slice %66 {offsets = [0, 66], sizes = [6, 2176], strides = [1, 1]} : vector<8x2560xf32> to vector<6x2176xf32>
    %c36_76 = arith.constant 36 : index
    %c0_77 = arith.constant 0 : index
    %80 = vector.load %arg8[%c36_76, %c0_77] : memref<160x2176xf32, #tpu.memory_space<vmem>>, vector<6x2176xf32>
    tpu.vector_store %arg8[%c36_76, %c0_77], %79 {strides = array<i32>} : memref<160x2176xf32, #tpu.memory_space<vmem>>, vector<6x2176xf32>,
    %81 = vector.extract_strided_slice %66 {offsets = [0, 68], sizes = [6, 2176], strides = [1, 1]} : vector<8x2560xf32> to vector<6x2176xf32>
    %c42_78 = arith.constant 42 : index
    %c0_79 = arith.constant 0 : index
    %82 = vector.load %arg8[%c42_78, %c0_79] : memref<160x2176xf32, #tpu.memory_space<vmem>>, vector<6x2176xf32>
    tpu.vector_store %arg8[%c42_78, %c0_79], %81 {strides = array<i32>} : memref<160x2176xf32, #tpu.memory_space<vmem>>, vector<6x2176xf32>,
    %83 = vector.extract_strided_slice %66 {offsets = [0, 70], sizes = [6, 2176], strides = [1, 1]} : vector<8x2560xf32> to vector<6x2176xf32>
    %c48_80 = arith.constant 48 : index
    %c0_81 = arith.constant 0 : index
    %84 = vector.load %arg8[%c48_80, %c0_81] : memref<160x2176xf32, #tpu.memory_space<vmem>>, vector<6x2176xf32>
    tpu.vector_store %arg8[%c48_80, %c0_81], %83 {strides = array<i32>} : memref<160x2176xf32, #tpu.memory_space<vmem>>, vector<6x2176xf32>,
    %85 = vector.extract_strided_slice %66 {offsets = [0, 72], sizes = [6, 2176], strides = [1, 1]} : vector<8x2560xf32> to vector<6x2176xf32>
    %c54_82 = arith.constant 54 : index
    %c0_83 = arith.constant 0 : index
    %86 = vector.load %arg8[%c54_82, %c0_83] : memref<160x2176xf32, #tpu.memory_space<vmem>>, vector<6x2176xf32>
    tpu.vector_store %arg8[%c54_82, %c0_83], %85 {strides = array<i32>} : memref<160x2176xf32, #tpu.memory_space<vmem>>, vector<6x2176xf32>,
    %87 = vector.extract_strided_slice %66 {offsets = [0, 128], sizes = [6, 2176], strides = [1, 1]} : vector<8x2560xf32> to vector<6x2176xf32>
    %c60_84 = arith.constant 60 : index
    %c0_85 = arith.constant 0 : index
    %88 = vector.load %arg8[%c60_84, %c0_85] : memref<160x2176xf32, #tpu.memory_space<vmem>>, vector<6x2176xf32>
    tpu.vector_store %arg8[%c60_84, %c0_85], %87 {strides = array<i32>} : memref<160x2176xf32, #tpu.memory_space<vmem>>, vector<6x2176xf32>,
    %89 = vector.extract_strided_slice %66 {offsets = [0, 130], sizes = [6, 2176], strides = [1, 1]} : vector<8x2560xf32> to vector<6x2176xf32>
    %c66_86 = arith.constant 66 : index
    %c0_87 = arith.constant 0 : index
    %90 = vector.load %arg8[%c66_86, %c0_87] : memref<160x2176xf32, #tpu.memory_space<vmem>>, vector<6x2176xf32>
    tpu.vector_store %arg8[%c66_86, %c0_87], %89 {strides = array<i32>} : memref<160x2176xf32, #tpu.memory_space<vmem>>, vector<6x2176xf32>,
    %91 = vector.extract_strided_slice %66 {offsets = [0, 132], sizes = [6, 2176], strides = [1, 1]} : vector<8x2560xf32> to vector<6x2176xf32>
    %c72_88 = arith.constant 72 : index
    %c0_89 = arith.constant 0 : index
    %92 = vector.load %arg8[%c72_88, %c0_89] : memref<160x2176xf32, #tpu.memory_space<vmem>>, vector<6x2176xf32>
    tpu.vector_store %arg8[%c72_88, %c0_89], %91 {strides = array<i32>} : memref<160x2176xf32, #tpu.memory_space<vmem>>, vector<6x2176xf32>,
    %93 = vector.extract_strided_slice %66 {offsets = [0, 134], sizes = [6, 2176], strides = [1, 1]} : vector<8x2560xf32> to vector<6x2176xf32>
    %c78 = arith.constant 78 : index
    %c0_90 = arith.constant 0 : index
    %94 = vector.load %arg8[%c78, %c0_90] : memref<160x2176xf32, #tpu.memory_space<vmem>>, vector<6x2176xf32>
    tpu.vector_store %arg8[%c78, %c0_90], %93 {strides = array<i32>} : memref<160x2176xf32, #tpu.memory_space<vmem>>, vector<6x2176xf32>,
    %95 = vector.extract_strided_slice %66 {offsets = [0, 136], sizes = [6, 2176], strides = [1, 1]} : vector<8x2560xf32> to vector<6x2176xf32>
    %c84 = arith.constant 84 : index
    %c0_91 = arith.constant 0 : index
    %96 = vector.load %arg8[%c84, %c0_91] : memref<160x2176xf32, #tpu.memory_space<vmem>>, vector<6x2176xf32>
    tpu.vector_store %arg8[%c84, %c0_91], %95 {strides = array<i32>} : memref<160x2176xf32, #tpu.memory_space<vmem>>, vector<6x2176xf32>,
    %97 = vector.extract_strided_slice %66 {offsets = [0, 192], sizes = [6, 2176], strides = [1, 1]} : vector<8x2560xf32> to vector<6x2176xf32>
    %c90 = arith.constant 90 : index
    %c0_92 = arith.constant 0 : index
    %98 = vector.load %arg8[%c90, %c0_92] : memref<160x2176xf32, #tpu.memory_space<vmem>>, vector<6x2176xf32>
    tpu.vector_store %arg8[%c90, %c0_92], %97 {strides = array<i32>} : memref<160x2176xf32, #tpu.memory_space<vmem>>, vector<6x2176xf32>,
    %99 = vector.extract_strided_slice %66 {offsets = [0, 194], sizes = [6, 2176], strides = [1, 1]} : vector<8x2560xf32> to vector<6x2176xf32>
    %c96_93 = arith.constant 96 : index
    %c0_94 = arith.constant 0 : index
    %100 = vector.load %arg8[%c96_93, %c0_94] : memref<160x2176xf32, #tpu.memory_space<vmem>>, vector<6x2176xf32>
    tpu.vector_store %arg8[%c96_93, %c0_94], %99 {strides = array<i32>} : memref<160x2176xf32, #tpu.memory_space<vmem>>, vector<6x2176xf32>,
    %101 = vector.extract_strided_slice %66 {offsets = [0, 196], sizes = [6, 2176], strides = [1, 1]} : vector<8x2560xf32> to vector<6x2176xf32>
    %c102 = arith.constant 102 : index
    %c0_95 = arith.constant 0 : index
    %102 = vector.load %arg8[%c102, %c0_95] : memref<160x2176xf32, #tpu.memory_space<vmem>>, vector<6x2176xf32>
    tpu.vector_store %arg8[%c102, %c0_95], %101 {strides = array<i32>} : memref<160x2176xf32, #tpu.memory_space<vmem>>, vector<6x2176xf32>,
    %103 = vector.extract_strided_slice %66 {offsets = [0, 198], sizes = [6, 2176], strides = [1, 1]} : vector<8x2560xf32> to vector<6x2176xf32>
    %c108 = arith.constant 108 : index
    %c0_96 = arith.constant 0 : index
    %104 = vector.load %arg8[%c108, %c0_96] : memref<160x2176xf32, #tpu.memory_space<vmem>>, vector<6x2176xf32>
    tpu.vector_store %arg8[%c108, %c0_96], %103 {strides = array<i32>} : memref<160x2176xf32, #tpu.memory_space<vmem>>, vector<6x2176xf32>,
    %105 = vector.extract_strided_slice %66 {offsets = [0, 200], sizes = [6, 2176], strides = [1, 1]} : vector<8x2560xf32> to vector<6x2176xf32>
    %c114 = arith.constant 114 : index
    %c0_97 = arith.constant 0 : index
    %106 = vector.load %arg8[%c114, %c0_97] : memref<160x2176xf32, #tpu.memory_space<vmem>>, vector<6x2176xf32>
    tpu.vector_store %arg8[%c114, %c0_97], %105 {strides = array<i32>} : memref<160x2176xf32, #tpu.memory_space<vmem>>, vector<6x2176xf32>,
    %107 = vector.extract_strided_slice %66 {offsets = [0, 256], sizes = [6, 2176], strides = [1, 1]} : vector<8x2560xf32> to vector<6x2176xf32>
    %c120 = arith.constant 120 : index
    %c0_98 = arith.constant 0 : index
    %108 = vector.load %arg8[%c120, %c0_98] : memref<160x2176xf32, #tpu.memory_space<vmem>>, vector<6x2176xf32>
    tpu.vector_store %arg8[%c120, %c0_98], %107 {strides = array<i32>} : memref<160x2176xf32, #tpu.memory_space<vmem>>, vector<6x2176xf32>,
    %109 = vector.extract_strided_slice %66 {offsets = [0, 258], sizes = [6, 2176], strides = [1, 1]} : vector<8x2560xf32> to vector<6x2176xf32>
    %c126 = arith.constant 126 : index
    %c0_99 = arith.constant 0 : index
    %110 = vector.load %arg8[%c126, %c0_99] : memref<160x2176xf32, #tpu.memory_space<vmem>>, vector<6x2176xf32>
    tpu.vector_store %arg8[%c126, %c0_99], %109 {strides = array<i32>} : memref<160x2176xf32, #tpu.memory_space<vmem>>, vector<6x2176xf32>,
    %111 = vector.extract_strided_slice %66 {offsets = [0, 260], sizes = [6, 2176], strides = [1, 1]} : vector<8x2560xf32> to vector<6x2176xf32>
    %c132_100 = arith.constant 132 : index
    %c0_101 = arith.constant 0 : index
    %112 = vector.load %arg8[%c132_100, %c0_101] : memref<160x2176xf32, #tpu.memory_space<vmem>>, vector<6x2176xf32>
    tpu.vector_store %arg8[%c132_100, %c0_101], %111 {strides = array<i32>} : memref<160x2176xf32, #tpu.memory_space<vmem>>, vector<6x2176xf32>,
    %113 = vector.extract_strided_slice %66 {offsets = [0, 262], sizes = [6, 2176], strides = [1, 1]} : vector<8x2560xf32> to vector<6x2176xf32>
    %c138 = arith.constant 138 : index
    %c0_102 = arith.constant 0 : index
    %114 = vector.load %arg8[%c138, %c0_102] : memref<160x2176xf32, #tpu.memory_space<vmem>>, vector<6x2176xf32>
    tpu.vector_store %arg8[%c138, %c0_102], %113 {strides = array<i32>} : memref<160x2176xf32, #tpu.memory_space<vmem>>, vector<6x2176xf32>,
    %115 = vector.extract_strided_slice %66 {offsets = [0, 264], sizes = [6, 2176], strides = [1, 1]} : vector<8x2560xf32> to vector<6x2176xf32>
    %c144 = arith.constant 144 : index
    %c0_103 = arith.constant 0 : index
    %116 = vector.load %arg8[%c144, %c0_103] : memref<160x2176xf32, #tpu.memory_space<vmem>>, vector<6x2176xf32>
    tpu.vector_store %arg8[%c144, %c0_103], %115 {strides = array<i32>} : memref<160x2176xf32, #tpu.memory_space<vmem>>, vector<6x2176xf32>,
    %cst_104 = arith.constant 0.000000e+00 : f32
    %117 = vector.broadcast %cst_104 : f32 to vector<10x2176xf32>
    %c150 = arith.constant 150 : index
    %c0_105 = arith.constant 0 : index
    %118 = vector.load %arg8[%c150, %c0_105] : memref<160x2176xf32, #tpu.memory_space<vmem>>, vector<10x2176xf32>
    tpu.vector_store %arg8[%c150, %c0_105], %117 {strides = array<i32>} : memref<160x2176xf32, #tpu.memory_space<vmem>>, vector<10x2176xf32>,
    %c0_106 = arith.constant 0 : index
    %c0_107 = arith.constant 0 : index
    %119 = vector.load %arg4[%c0_106, %c0_107] : memref<16x160xf32, #tpu.memory_space<vmem>>, vector<16x160xf32>
    %c0_108 = arith.constant 0 : index
    %c0_109 = arith.constant 0 : index
    %120 = vector.load %arg8[%c0_108, %c0_109] : memref<160x2176xf32, #tpu.memory_space<vmem>>, vector<160x2176xf32>
    %cst_110 = arith.constant dense<0.000000e+00> : vector<16x2176xf32>
    %121 = tpu.matmul %119, %120, %cst_110 {dimension_numbers = #tpu.dot_dimension_numbers<[1], [0], [0], [1], [0, 0, 1, 1], [], []>} : vector<16x160xf32>, vector<160x2176xf32>, vector<16x2176xf32> -> vector<16x2176xf32>
    %c0_111 = arith.constant 0 : index
    %c0_112 = arith.constant 0 : index
    %122 = vector.load %arg5[%c0_111, %c0_112] : memref<16x1xf32, #tpu.memory_space<vmem>>, vector<16x1xf32>
    %123 = vector.broadcast %122 : vector<16x1xf32> to vector<16x2176xf32>
    %124 = arith.addf %121, %123 : vector<16x2176xf32>
    %cst_113 = arith.constant 0.000000e+00 : f32
    %125 = vector.broadcast %cst_113 : f32 to vector<16x2176xf32>
    %126 = arith.maximumf %124, %125 : vector<16x2176xf32>
    %127 = vector.extract_strided_slice %126 {offsets = [0, 0], sizes = [16, 2048], strides = [1, 1]} : vector<16x2176xf32> to vector<16x2048xf32>
    %128 = vector.extract_strided_slice %126 {offsets = [0, 2], sizes = [16, 2048], strides = [1, 1]} : vector<16x2176xf32> to vector<16x2048xf32>
    %129 = arith.maximumf %127, %128 : vector<16x2048xf32>
    %130 = vector.extract_strided_slice %126 {offsets = [0, 64], sizes = [16, 2048], strides = [1, 1]} : vector<16x2176xf32> to vector<16x2048xf32>
    %131 = vector.extract_strided_slice %126 {offsets = [0, 66], sizes = [16, 2048], strides = [1, 1]} : vector<16x2176xf32> to vector<16x2048xf32>
    %132 = arith.maximumf %130, %131 : vector<16x2048xf32>
    %133 = arith.maximumf %129, %132 : vector<16x2048xf32>
    %c0_114 = arith.constant 0 : index
    %c0_115 = arith.constant 0 : index
    %134 = vector.load %arg6[%c0_114, %c0_115] : memref<16x2048xf32, #tpu.memory_space<vmem>>, vector<16x2048xf32>
    tpu.vector_store %arg6[%c0_114, %c0_115], %133 {strides = array<i32>} : memref<16x2048xf32, #tpu.memory_space<vmem>>, vector<16x2048xf32>,
    return
  }
  func.func @transform_0(%arg0: i32) -> (i32, i32) {
    %c0_i32 = arith.constant 0 : i32
    %c0_i32_0 = arith.constant 0 : i32
    %c0_i32_1 = arith.constant 0 : i32
    return %c0_i32, %c0_i32_0 : i32, i32
  }
  func.func @transform_1(%arg0: i32) -> (i32, i32) {
    %c0_i32 = arith.constant 0 : i32
    %c0_i32_0 = arith.constant 0 : i32
    %c0_i32_1 = arith.constant 0 : i32
    return %c0_i32, %c0_i32_0 : i32, i32
  }
  func.func @transform_2(%arg0: i32) -> (i32, i32) {
    %c0_i32 = arith.constant 0 : i32
    %c0_i32_0 = arith.constant 0 : i32
    %c0_i32_1 = arith.constant 0 : i32
    return %c0_i32, %c0_i32_0 : i32, i32
  }
  func.func @transform_3(%arg0: i32) -> (i32, i32) {
    %c0_i32 = arith.constant 0 : i32
    %c0_i32_0 = arith.constant 0 : i32
    %c0_i32_1 = arith.constant 0 : i32
    return %c0_i32, %c0_i32_0 : i32, i32
  }
  func.func @transform_4(%arg0: i32) -> (i32, i32) {
    %c0_i32 = arith.constant 0 : i32
    %c0_i32_0 = arith.constant 0 : i32
    %c0_i32_1 = arith.constant 0 : i32
    return %c0_i32, %c0_i32_0 : i32, i32
  }
  func.func @transform_5(%arg0: i32) -> (i32, i32) {
    %c0_i32 = arith.constant 0 : i32
    %c0_i32_0 = arith.constant 0 : i32
    %c0_i32_1 = arith.constant 0 : i32
    return %c0_i32, %c0_i32_0 : i32, i32
  }
}

module attributes {stable_mosaic.version = 11 : i64} {
  func.func @_fc_kernel(%arg0: i32, %arg1: memref<2x400xf32, #tpu.memory_space<vmem>>, %arg2: memref<400x128xf32, #tpu.memory_space<vmem>>, %arg3: memref<1x128xf32, #tpu.memory_space<vmem>>, %arg4: memref<128x128xf32, #tpu.memory_space<vmem>>, %arg5: memref<1x128xf32, #tpu.memory_space<vmem>>, %arg6: memref<128x128xf32, #tpu.memory_space<vmem>>, %arg7: memref<1x128xf32, #tpu.memory_space<vmem>>, %arg8: memref<2x128xf32, #tpu.memory_space<vmem>>) attributes {dimension_semantics = [#tpu.dimension_semantics<arbitrary>], iteration_bounds = array<i64: 1>, scalar_prefetch = 0 : i64, scratch_operands = 0 : i64, tpu.core_type = #tpu.core_type<tc>, window_params = [{pipeline_mode = #tpu.pipeline_mode<synchronous>, transform_indices = @transform_0, window_bounds = array<i64: 2, 400>}, {pipeline_mode = #tpu.pipeline_mode<synchronous>, transform_indices = @transform_1, window_bounds = array<i64: 400, 128>}, {pipeline_mode = #tpu.pipeline_mode<synchronous>, transform_indices = @transform_2, window_bounds = array<i64: 1, 128>}, {pipeline_mode = #tpu.pipeline_mode<synchronous>, transform_indices = @transform_3, window_bounds = array<i64: 128, 128>}, {pipeline_mode = #tpu.pipeline_mode<synchronous>, transform_indices = @transform_4, window_bounds = array<i64: 1, 128>}, {pipeline_mode = #tpu.pipeline_mode<synchronous>, transform_indices = @transform_5, window_bounds = array<i64: 128, 128>}, {pipeline_mode = #tpu.pipeline_mode<synchronous>, transform_indices = @transform_6, window_bounds = array<i64: 1, 128>}, {pipeline_mode = #tpu.pipeline_mode<synchronous>, transform_indices = @transform_7, window_bounds = array<i64: 2, 128>}]} {
    %c0 = arith.constant 0 : index
    %c0_0 = arith.constant 0 : index
    %0 = vector.load %arg1[%c0, %c0_0] : memref<2x400xf32, #tpu.memory_space<vmem>>, vector<2x400xf32>
    %c0_1 = arith.constant 0 : index
    %c0_2 = arith.constant 0 : index
    %1 = vector.load %arg2[%c0_1, %c0_2] : memref<400x128xf32, #tpu.memory_space<vmem>>, vector<400x128xf32>
    %cst = arith.constant dense<0.000000e+00> : vector<2x128xf32>
    %2 = tpu.matmul %0, %1, %cst {dimension_numbers = #tpu.dot_dimension_numbers<[1], [0], [0], [1], [0, 0, 1, 1], [], []>} : vector<2x400xf32>, vector<400x128xf32>, vector<2x128xf32> -> vector<2x128xf32>
    %c0_3 = arith.constant 0 : index
    %c0_4 = arith.constant 0 : index
    %3 = vector.load %arg3[%c0_3, %c0_4] : memref<1x128xf32, #tpu.memory_space<vmem>>, vector<1x128xf32>
    %4 = vector.broadcast %3 : vector<1x128xf32> to vector<2x128xf32>
    %5 = arith.addf %2, %4 : vector<2x128xf32>
    %cst_5 = arith.constant 0.000000e+00 : f32
    %6 = vector.broadcast %cst_5 : f32 to vector<2x128xf32>
    %7 = arith.maximumf %5, %6 : vector<2x128xf32>
    %c0_6 = arith.constant 0 : index
    %c0_7 = arith.constant 0 : index
    %8 = vector.load %arg4[%c0_6, %c0_7] : memref<128x128xf32, #tpu.memory_space<vmem>>, vector<128x128xf32>
    %cst_8 = arith.constant dense<0.000000e+00> : vector<2x128xf32>
    %9 = tpu.matmul %7, %8, %cst_8 {dimension_numbers = #tpu.dot_dimension_numbers<[1], [0], [0], [1], [0, 0, 1, 1], [], []>} : vector<2x128xf32>, vector<128x128xf32>, vector<2x128xf32> -> vector<2x128xf32>
    %c0_9 = arith.constant 0 : index
    %c0_10 = arith.constant 0 : index
    %10 = vector.load %arg5[%c0_9, %c0_10] : memref<1x128xf32, #tpu.memory_space<vmem>>, vector<1x128xf32>
    %11 = vector.broadcast %10 : vector<1x128xf32> to vector<2x128xf32>
    %12 = arith.addf %9, %11 : vector<2x128xf32>
    %cst_11 = arith.constant 0.000000e+00 : f32
    %13 = vector.broadcast %cst_11 : f32 to vector<2x128xf32>
    %14 = arith.maximumf %12, %13 : vector<2x128xf32>
    %c0_12 = arith.constant 0 : index
    %c0_13 = arith.constant 0 : index
    %15 = vector.load %arg6[%c0_12, %c0_13] : memref<128x128xf32, #tpu.memory_space<vmem>>, vector<128x128xf32>
    %cst_14 = arith.constant dense<0.000000e+00> : vector<2x128xf32>
    %16 = tpu.matmul %14, %15, %cst_14 {dimension_numbers = #tpu.dot_dimension_numbers<[1], [0], [0], [1], [0, 0, 1, 1], [], []>} : vector<2x128xf32>, vector<128x128xf32>, vector<2x128xf32> -> vector<2x128xf32>
    %c0_15 = arith.constant 0 : index
    %c0_16 = arith.constant 0 : index
    %17 = vector.load %arg7[%c0_15, %c0_16] : memref<1x128xf32, #tpu.memory_space<vmem>>, vector<1x128xf32>
    %18 = vector.broadcast %17 : vector<1x128xf32> to vector<2x128xf32>
    %19 = arith.addf %16, %18 : vector<2x128xf32>
    %c0_17 = arith.constant 0 : index
    %c0_18 = arith.constant 0 : index
    %20 = vector.load %arg8[%c0_17, %c0_18] : memref<2x128xf32, #tpu.memory_space<vmem>>, vector<2x128xf32>
    tpu.vector_store %arg8[%c0_17, %c0_18], %19 {strides = array<i32>} : memref<2x128xf32, #tpu.memory_space<vmem>>, vector<2x128xf32>,
    return
  }
  func.func @transform_0(%arg0: i32) -> (i32, i32) {
    %c0_i32 = arith.constant 0 : i32
    %c0_i32_0 = arith.constant 0 : i32
    %c0_i32_1 = arith.constant 0 : i32
    return %c0_i32, %c0_i32_0 : i32, i32
  }
  func.func @transform_1(%arg0: i32) -> (i32, i32) {
    %c0_i32 = arith.constant 0 : i32
    %c0_i32_0 = arith.constant 0 : i32
    %c0_i32_1 = arith.constant 0 : i32
    return %c0_i32, %c0_i32_0 : i32, i32
  }
  func.func @transform_2(%arg0: i32) -> (i32, i32) {
    %c0_i32 = arith.constant 0 : i32
    %c0_i32_0 = arith.constant 0 : i32
    %c0_i32_1 = arith.constant 0 : i32
    return %c0_i32, %c0_i32_0 : i32, i32
  }
  func.func @transform_3(%arg0: i32) -> (i32, i32) {
    %c0_i32 = arith.constant 0 : i32
    %c0_i32_0 = arith.constant 0 : i32
    %c0_i32_1 = arith.constant 0 : i32
    return %c0_i32, %c0_i32_0 : i32, i32
  }
  func.func @transform_4(%arg0: i32) -> (i32, i32) {
    %c0_i32 = arith.constant 0 : i32
    %c0_i32_0 = arith.constant 0 : i32
    %c0_i32_1 = arith.constant 0 : i32
    return %c0_i32, %c0_i32_0 : i32, i32
  }
  func.func @transform_5(%arg0: i32) -> (i32, i32) {
    %c0_i32 = arith.constant 0 : i32
    %c0_i32_0 = arith.constant 0 : i32
    %c0_i32_1 = arith.constant 0 : i32
    return %c0_i32, %c0_i32_0 : i32, i32
  }
  func.func @transform_6(%arg0: i32) -> (i32, i32) {
    %c0_i32 = arith.constant 0 : i32
    %c0_i32_0 = arith.constant 0 : i32
    %c0_i32_1 = arith.constant 0 : i32
    return %c0_i32, %c0_i32_0 : i32, i32
  }
  func.func @transform_7(%arg0: i32) -> (i32, i32) {
    %c0_i32 = arith.constant 0 : i32
    %c0_i32_0 = arith.constant 0 : i32
    %c0_i32_1 = arith.constant 0 : i32
    return %c0_i32, %c0_i32_0 : i32, i32
  }
}

</mosaic_0001>

<llo_original>
// kernel: _lambda_.3
$region0: #{_lambda_.3}
  #allocation0 [shape = 'u32[]', space=smem, size = 0x4, offset = 0x4, fixed_abs, tag = 'smem constant byte address 0x4 - core index']
  #allocation1 [shape = 'u32[144,128]{1,0:T(1,128)}', space=vmem, size = 0x12000, scoped, tag = 'internal scratch']
  %s0 = inlined_call_operand.vmem [shape: f32[2,400], index: 0, kind: input, shape index: {}]
  %s1 = inlined_call_operand.vmem [shape: f32[400,128], index: 1, kind: input, shape index: {}]
  %s2 = inlined_call_operand.vmem [shape: f32[1,128], index: 2, kind: input, shape index: {}]
  %s3 = inlined_call_operand.vmem [shape: f32[128,128], index: 3, kind: input, shape index: {}]
  %s4 = inlined_call_operand.vmem [shape: f32[1,128], index: 4, kind: input, shape index: {}]
  %s5 = inlined_call_operand.vmem [shape: f32[128,128], index: 5, kind: input, shape index: {}]
  %s6 = inlined_call_operand.vmem [shape: f32[1,128], index: 6, kind: input, shape index: {}]
  %s7 = inlined_call_operand.hbm [shape: f32[2,128], index: 7, kind: output, shape index: {}]
  %s8 = sld [smem:[#allocation0]]
  $region38: #{_lambda_.3} parent=0
    _
  %s10 = ssub.s32 1, %s8
  %s11 = scalar_select 0, %s10, %s8
  $region1: #{_lambda_.3} parent=0
    #allocation2 [shape = 'u8[1024]{0}', space=vmem, size = 0x400, scoped, tag = 'output window, operand 0, single buffered']
    #allocation3 [shape = 's32[1]{0}', space=sflag, size = 0x4, scoped, tag = 'scoped memory for _lambda_.3']
    %12 = vsyncpa [#allocation3], 0
    // Predicated region
    $region2: #{_lambda_.3} parent=1 // pred_check
      _
    $region3: #{_lambda_.3} parent=1 // pred_check_branch
      %14 = sbr.rel (0) target = $region5
    $region4: #{_lambda_.3} parent=1 // pred_region
      _
    $region5: #{_lambda_.3} parent=1 // pred_fallthru
      _
    // Predicated region
    $region6: #{_lambda_.3} parent=1 // pred_check
      _
    $region7: #{_lambda_.3} parent=1 // pred_check_branch
      %16 = sbr.rel (0) target = $region9
    $region8: #{_lambda_.3} parent=1 // pred_region
      _
    $region9: #{_lambda_.3} parent=1 // pred_fallthru
      _
    // Predicated region
    $region10: #{_lambda_.3} parent=1 // pred_check
      _
    $region11: #{_lambda_.3} parent=1 // pred_check_branch
      %18 = sbr.rel (0) target = $region13
    $region12: #{_lambda_.3} parent=1 // pred_region
      _
    $region13: #{_lambda_.3} parent=1 // pred_fallthru
      _
    // Predicated region
    $region14: #{_lambda_.3} parent=1 // pred_check
      _
    $region15: #{_lambda_.3} parent=1 // pred_check_branch
      %20 = sbr.rel (0) target = $region17
    $region16: #{_lambda_.3} parent=1 // pred_region
      _
    $region17: #{_lambda_.3} parent=1 // pred_fallthru
      _
    // Predicated region
    $region18: #{_lambda_.3} parent=1 // pred_check
      _
    $region19: #{_lambda_.3} parent=1 // pred_check_branch
      %22 = sbr.rel (0) target = $region21
    $region20: #{_lambda_.3} parent=1 // pred_region
      _
    $region21: #{_lambda_.3} parent=1 // pred_fallthru
      _
    // Predicated region
    $region22: #{_lambda_.3} parent=1 // pred_check
      _
    $region23: #{_lambda_.3} parent=1 // pred_check_branch
      %24 = sbr.rel (0) target = $region25
    $region24: #{_lambda_.3} parent=1 // pred_region
      _
    $region25: #{_lambda_.3} parent=1 // pred_fallthru
      _
    // Predicated region
    $region26: #{_lambda_.3} parent=1 // pred_check
      _
    $region27: #{_lambda_.3} parent=1 // pred_check_branch
      %26 = sbr.rel (0) target = $region29
    $region28: #{_lambda_.3} parent=1 // pred_region
      _
    $region29: #{_lambda_.3} parent=1 // pred_fallthru
      _
    %v27 = vld [vmem:[%s0] sm:$0xff]
    %v28 = vld [vmem:[%s1] sm:$0xff]
    %v29 = vld [vmem:[%s1 + $0x8] sm:$0xff]
    %v30 = vld [vmem:[%s1 + $0x10] sm:$0xff]
    %v31 = vld [vmem:[%s1 + $0x18] sm:$0xff]
    %v32 = vld [vmem:[%s1 + $0x20] sm:$0xff]
    %v33 = vld [vmem:[%s1 + $0x28] sm:$0xff]
    %v34 = vld [vmem:[%s1 + $0x30] sm:$0xff]
    %v35 = vld [vmem:[%s1 + $0x38] sm:$0xff]
    %v36 = vld [vmem:[%s1 + $0x40] sm:$0xff]
    %v37 = vld [vmem:[%s1 + $0x48] sm:$0xff]
    %v38 = vld [vmem:[%s1 + $0x50] sm:$0xff]
    %v39 = vld [vmem:[%s1 + $0x58] sm:$0xff]
    %v40 = vld [vmem:[%s1 + $0x60] sm:$0xff]
    %v41 = vld [vmem:[%s1 + $0x68] sm:$0xff]
    %v42 = vld [vmem:[%s1 + $0x70] sm:$0xff]
    %v43 = vld [vmem:[%s1 + $0x78] sm:$0xff]
    %v44 = vld [vmem:[%s1 + $0x80] sm:$0xff]
    %v45 = vld [vmem:[%s1 + $0x88] sm:$0xff]
    %v46 = vld [vmem:[%s1 + $0x90] sm:$0xff]
    %v47 = vld [vmem:[%s1 + $0x98] sm:$0xff]
    %v48 = vld [vmem:[%s1 + $0xa0] sm:$0xff]
    %v49 = vld [vmem:[%s1 + $0xa8] sm:$0xff]
    %v50 = vld [vmem:[%s1 + $0xb0] sm:$0xff]
    %v51 = vld [vmem:[%s1 + $0xb8] sm:$0xff]
    %v52 = vld [vmem:[%s1 + $0xc0] sm:$0xff]
    %v53 = vld [vmem:[%s1 + $0xc8] sm:$0xff]
    %v54 = vld [vmem:[%s1 + $0xd0] sm:$0xff]
    %v55 = vld [vmem:[%s1 + $0xd8] sm:$0xff]
    %v56 = vld [vmem:[%s1 + $0xe0] sm:$0xff]
    %v57 = vld [vmem:[%s1 + $0xe8] sm:$0xff]
    %v58 = vld [vmem:[%s1 + $0xf0] sm:$0xff]
    %v59 = vld [vmem:[%s1 + $0xf8] sm:$0xff]
    %v60 = vld [vmem:[%s1 + $0x100] sm:$0xff]
    %v61 = vld [vmem:[%s1 + $0x108] sm:$0xff]
    %v62 = vld [vmem:[%s1 + $0x110] sm:$0xff]
    %v63 = vld [vmem:[%s1 + $0x118] sm:$0xff]
    %v64 = vld [vmem:[%s1 + $0x120] sm:$0xff]
    %v65 = vld [vmem:[%s1 + $0x128] sm:$0xff]
    %v66 = vld [vmem:[%s1 + $0x130] sm:$0xff]
    %v67 = vld [vmem:[%s1 + $0x138] sm:$0xff]
    %v68 = vld [vmem:[%s1 + $0x140] sm:$0xff]
    %v69 = vld [vmem:[%s1 + $0x148] sm:$0xff]
    %v70 = vld [vmem:[%s1 + $0x150] sm:$0xff]
    %v71 = vld [vmem:[%s1 + $0x158] sm:$0xff]
    %v72 = vld [vmem:[%s1 + $0x160] sm:$0xff]
    %v73 = vld [vmem:[%s1 + $0x168] sm:$0xff]
    %v74 = vld [vmem:[%s1 + $0x170] sm:$0xff]
    %v75 = vld [vmem:[%s1 + $0x178] sm:$0xff]
    %v76 = vld [vmem:[%s1 + $0x180] sm:$0xff]
    %v77 = vld [vmem:[%s1 + $0x188] sm:$0xff]
    %v78 = vld [vmem:[%s2] sm:$0x1]
    %v80 = vlaneseq
    %v81 = vshrl.u32 %v80, 7
    %v82 = vsub.s32 0, %v81
    %v83 = vrot.slane %v78, %v82
    %v86 = vcombine.high %v27, %v27
    %v88 = vunpack.c.l.s4 1983009808
    %v89 = vunpack.c.0.s8 %v88
    %v90 = vlaneseq
    %v91 = vshrl.u32 %v90, 7
    %v92 = vsub.s32 %v89, %v91
    %v93 = vrot.slane %v27, %v92
    %v95 = vunpack.c.l.s4 1983009808
    %v96 = vunpack.c.0.s8 %v95
    %v97 = vlaneseq
    %v98 = vshrl.u32 %v97, 7
    %v99 = vsub.s32 %v96, %v98
    %v100 = vrot.slane %v86, %v99
    %v101 = vcombine.high %v93, %v93
    %v102 = vcombine.high %v100, %v100
    %vm106 = vcmask 130048
    %v107 = vsel %vm106, %v102, 0
    %109 = vmatprep.subr.mxu0 0.0
    %110 = vmatpush1.msra.mxu0 %v43
    %111 = vmatprep.subr.mxu0 0.0
    %112 = vmatpush1.msra.mxu0 %v42
    %113 = vmatprep.subr.mxu0 0.0
    %114 = vmatpush1.msra.mxu0 %v41
    %115 = vmatprep.subr.mxu0 0.0
    %116 = vmatpush1.msra.mxu0 %v40
    %117 = vmatprep.subr.mxu0 0.0
    %118 = vmatpush1.msra.mxu0 %v39
    %119 = vmatprep.subr.mxu0 0.0
    %120 = vmatpush1.msra.mxu0 %v38
    %121 = vmatprep.subr.mxu0 0.0
    %122 = vmatpush1.msra.mxu0 %v37
    %123 = vmatprep.subr.mxu0 0.0
    %124 = vmatpush1.msra.mxu0 %v36
    %125 = vmatprep.subr.mxu0 0.0
    %126 = vmatpush1.msra.mxu0 %v35
    %127 = vmatprep.subr.mxu0 0.0
    %128 = vmatpush1.msra.mxu0 %v34
    %129 = vmatprep.subr.mxu0 0.0
    %130 = vmatpush1.msra.mxu0 %v33
    %131 = vmatprep.subr.mxu0 0.0
    %132 = vmatpush1.msra.mxu0 %v32
    %133 = vmatprep.subr.mxu0 0.0
    %134 = vmatpush1.msra.mxu0 %v31
    %135 = vmatprep.subr.mxu0 0.0
    %136 = vmatpush1.msra.mxu0 %v30
    %137 = vmatprep.subr.mxu0 0.0
    %138 = vmatpush1.msra.mxu0 %v29
    %139 = vmatprep.subr.mxu0 0.0
    %140 = vmatpush1.msra.mxu0 %v28
    %141 = vmatprep.subr.mxu0 0.0
    %142 = vmatpush2.msra.mxu0 %v59
    %143 = vmatprep.subr.mxu0 0.0
    %144 = vmatpush2.msra.mxu0 %v58
    %145 = vmatprep.subr.mxu0 0.0
    %146 = vmatpush2.msra.mxu0 %v57
    %147 = vmatprep.subr.mxu0 0.0
    %148 = vmatpush2.msra.mxu0 %v56
    %149 = vmatprep.subr.mxu0 0.0
    %150 = vmatpush2.msra.mxu0 %v55
    %151 = vmatprep.subr.mxu0 0.0
    %152 = vmatpush2.msra.mxu0 %v54
    %153 = vmatprep.subr.mxu0 0.0
    %154 = vmatpush2.msra.mxu0 %v53
    %155 = vmatprep.subr.mxu0 0.0
    %156 = vmatpush2.msra.mxu0 %v52
    %157 = vmatprep.subr.mxu0 0.0
    %158 = vmatpush2.msra.mxu0 %v51
    %159 = vmatprep.subr.mxu0 0.0
    %160 = vmatpush2.msra.mxu0 %v50
    %161 = vmatprep.subr.mxu0 0.0
    %162 = vmatpush2.msra.mxu0 %v49
    %163 = vmatprep.subr.mxu0 0.0
    %164 = vmatpush2.msra.mxu0 %v48
    %165 = vmatprep.subr.mxu0 0.0
    %166 = vmatpush2.msra.mxu0 %v47
    %167 = vmatprep.subr.mxu0 0.0
    %168 = vmatpush2.msra.mxu0 %v46
    %169 = vmatprep.subr.mxu0 0.0
    %170 = vmatpush2.msra.mxu0 %v45
    %171 = vmatprep.subr.mxu0 0.0
    %172 = vmatpush2.msra.mxu0 %v44
    %173 = vmatprep.mubr.f32.mxu0 %v101
    %174 = vmatmul.mubr.f32.gmra.mxu0 %v93
    %v175 = vpop.f32.mrf.mxu0
    %v176 = vadd.f32 %v83, %v175
    %v177 = vpop.f32.mrf.mxu0
    %178 = vdwg.mxu0
    %179 = vmatprep.subr.mxu0 0.0
    %180 = vmatpush1.msra.mxu0 %v75
    %181 = vmatprep.subr.mxu0 0.0
    %182 = vmatpush1.msra.mxu0 %v74
    %183 = vmatprep.subr.mxu0 0.0
    %184 = vmatpush1.msra.mxu0 %v73
    %185 = vmatprep.subr.mxu0 0.0
    %186 = vmatpush1.msra.mxu0 %v72
    %187 = vmatprep.subr.mxu0 0.0
    %188 = vmatpush1.msra.mxu0 %v71
    %189 = vmatprep.subr.mxu0 0.0
    %190 = vmatpush1.msra.mxu0 %v70
    %191 = vmatprep.subr.mxu0 0.0
    %192 = vmatpush1.msra.mxu0 %v69
    %193 = vmatprep.subr.mxu0 0.0
    %194 = vmatpush1.msra.mxu0 %v68
    %195 = vmatprep.subr.mxu0 0.0
    %196 = vmatpush1.msra.mxu0 %v67
    %197 = vmatprep.subr.mxu0 0.0
    %198 = vmatpush1.msra.mxu0 %v66
    %199 = vmatprep.subr.mxu0 0.0
    %200 = vmatpush1.msra.mxu0 %v65
    %201 = vmatprep.subr.mxu0 0.0
    %202 = vmatpush1.msra.mxu0 %v64
    %203 = vmatprep.subr.mxu0 0.0
    %204 = vmatpush1.msra.mxu0 %v63
    %205 = vmatprep.subr.mxu0 0.0
    %206 = vmatpush1.msra.mxu0 %v62
    %207 = vmatprep.subr.mxu0 0.0
    %208 = vmatpush1.msra.mxu0 %v61
    %209 = vmatprep.subr.mxu0 0.0
    %210 = vmatpush1.msra.mxu0 %v60
    %211 = vmatprep.subr.mxu0 0.0
    %212 = vmatpush2.msra.mxu0 0.0
    %213 = vmatprep.subr.mxu0 0.0
    %214 = vmatpush2.msra.mxu0 0.0
    %215 = vmatprep.subr.mxu0 0.0
    %216 = vmatpush2.msra.mxu0 0.0
    %217 = vmatprep.subr.mxu0 0.0
    %218 = vmatpush2.msra.mxu0 0.0
    %219 = vmatprep.subr.mxu0 0.0
    %220 = vmatpush2.msra.mxu0 0.0
    %221 = vmatprep.subr.mxu0 0.0
    %222 = vmatpush2.msra.mxu0 0.0
    %223 = vmatprep.subr.mxu0 0.0
    %224 = vmatpush2.msra.mxu0 0.0
    %225 = vmatprep.subr.mxu0 0.0
    %226 = vmatpush2.msra.mxu0 0.0
    %227 = vmatprep.subr.mxu0 0.0
    %228 = vmatpush2.msra.mxu0 0.0
    %229 = vmatprep.subr.mxu0 0.0
    %230 = vmatpush2.msra.mxu0 0.0
    %231 = vmatprep.subr.mxu0 0.0
    %232 = vmatpush2.msra.mxu0 0.0
    %233 = vmatprep.subr.mxu0 0.0
    %234 = vmatpush2.msra.mxu0 0.0
    %235 = vmatprep.subr.mxu0 0.0
    %236 = vmatpush2.msra.mxu0 0.0
    %237 = vmatprep.subr.mxu0 0.0
    %238 = vmatpush2.msra.mxu0 0.0
    %239 = vmatprep.subr.mxu0 0.0
    %240 = vmatpush2.msra.mxu0 %v77
    %241 = vmatprep.subr.mxu0 0.0
    %242 = vmatpush2.msra.mxu0 %v76
    %243 = vmatprep.mubr.f32.mxu0 %v107
    %244 = vmatmul.mubr.f32.gmra.mxu0 %v100
    %v245 = vpop.f32.mrf.mxu0
    %v246 = vadd.f32 %v176, %v245
    %v247 = vpop.f32.mrf.mxu0
    %248 = vdwg.mxu0
    %v249 = vmax.f32 %v246, 0.0
    %v250 = vld [vmem:[%s3] sm:$0xff]
    %v251 = vld [vmem:[%s3 + $0x8] sm:$0xff]
    %v252 = vld [vmem:[%s3 + $0x10] sm:$0xff]
    %v253 = vld [vmem:[%s3 + $0x18] sm:$0xff]
    %v254 = vld [vmem:[%s3 + $0x20] sm:$0xff]
    %v255 = vld [vmem:[%s3 + $0x28] sm:$0xff]
    %v256 = vld [vmem:[%s3 + $0x30] sm:$0xff]
    %v257 = vld [vmem:[%s3 + $0x38] sm:$0xff]
    %v258 = vld [vmem:[%s3 + $0x40] sm:$0xff]
    %v259 = vld [vmem:[%s3 + $0x48] sm:$0xff]
    %v260 = vld [vmem:[%s3 + $0x50] sm:$0xff]
    %v261 = vld [vmem:[%s3 + $0x58] sm:$0xff]
    %v262 = vld [vmem:[%s3 + $0x60] sm:$0xff]
    %v263 = vld [vmem:[%s3 + $0x68] sm:$0xff]
    %v264 = vld [vmem:[%s3 + $0x70] sm:$0xff]
    %v265 = vld [vmem:[%s3 + $0x78] sm:$0xff]
    %v266 = vld [vmem:[%s4] sm:$0x1]
    %v268 = vlaneseq
    %v269 = vshrl.u32 %v268, 7
    %v270 = vsub.s32 0, %v269
    %v271 = vrot.slane %v266, %v270
    %273 = vmatprep.subr.mxu0 0.0
    %274 = vmatpush1.msra.mxu0 %v265
    %275 = vmatprep.subr.mxu0 0.0
    %276 = vmatpush1.msra.mxu0 %v264
    %277 = vmatprep.subr.mxu0 0.0
    %278 = vmatpush1.msra.mxu0 %v263
    %279 = vmatprep.subr.mxu0 0.0
    %280 = vmatpush1.msra.mxu0 %v262
    %281 = vmatprep.subr.mxu0 0.0
    %282 = vmatpush1.msra.mxu0 %v261
    %283 = vmatprep.subr.mxu0 0.0
    %284 = vmatpush1.msra.mxu0 %v260
    %285 = vmatprep.subr.mxu0 0.0
    %286 = vmatpush1.msra.mxu0 %v259
    %287 = vmatprep.subr.mxu0 0.0
    %288 = vmatpush1.msra.mxu0 %v258
    %289 = vmatprep.subr.mxu0 0.0
    %290 = vmatpush1.msra.mxu0 %v257
    %291 = vmatprep.subr.mxu0 0.0
    %292 = vmatpush1.msra.mxu0 %v256
    %293 = vmatprep.subr.mxu0 0.0
    %294 = vmatpush1.msra.mxu0 %v255
    %295 = vmatprep.subr.mxu0 0.0
    %296 = vmatpush1.msra.mxu0 %v254
    %297 = vmatprep.subr.mxu0 0.0
    %298 = vmatpush1.msra.mxu0 %v253
    %299 = vmatprep.subr.mxu0 0.0
    %300 = vmatpush1.msra.mxu0 %v252
    %301 = vmatprep.subr.mxu0 0.0
    %302 = vmatpush1.msra.mxu0 %v251
    %303 = vmatprep.subr.mxu0 0.0
    %304 = vmatpush1.msra.mxu0 %v250
    %305 = vmatprep.subr.mxu0 0.0
    %306 = vmatpush2.msra.mxu0 0.0
    %307 = vmatprep.subr.mxu0 0.0
    %308 = vmatpush2.msra.mxu0 0.0
    %309 = vmatprep.subr.mxu0 0.0
    %310 = vmatpush2.msra.mxu0 0.0
    %311 = vmatprep.subr.mxu0 0.0
    %312 = vmatpush2.msra.mxu0 0.0
    %313 = vmatprep.subr.mxu0 0.0
    %314 = vmatpush2.msra.mxu0 0.0
    %315 = vmatprep.subr.mxu0 0.0
    %316 = vmatpush2.msra.mxu0 0.0
    %317 = vmatprep.subr.mxu0 0.0
    %318 = vmatpush2.msra.mxu0 0.0
    %319 = vmatprep.subr.mxu0 0.0
    %320 = vmatpush2.msra.mxu0 0.0
    %321 = vmatprep.subr.mxu0 0.0
    %322 = vmatpush2.msra.mxu0 0.0
    %323 = vmatprep.subr.mxu0 0.0
    %324 = vmatpush2.msra.mxu0 0.0
    %325 = vmatprep.subr.mxu0 0.0
    %326 = vmatpush2.msra.mxu0 0.0
    %327 = vmatprep.subr.mxu0 0.0
    %328 = vmatpush2.msra.mxu0 0.0
    %329 = vmatprep.subr.mxu0 0.0
    %330 = vmatpush2.msra.mxu0 0.0
    %331 = vmatprep.subr.mxu0 0.0
    %332 = vmatpush2.msra.mxu0 0.0
    %333 = vmatprep.subr.mxu0 0.0
    %334 = vmatpush2.msra.mxu0 0.0
    %335 = vmatprep.subr.mxu0 0.0
    %336 = vmatpush2.msra.mxu0 0.0
    %337 = vmatprep.mubr.f32.mxu0 0.0
    %338 = vmatmul.mubr.f32.gmra.mxu0 %v249
    %v339 = vpop.f32.mrf.mxu0
    %v340 = vadd.f32 %v271, %v339
    %v341 = vpop.f32.mrf.mxu0
    %342 = vdwg.mxu0
    %v343 = vmax.f32 %v340, 0.0
    %v344 = vld [vmem:[%s5] sm:$0xff]
    %v345 = vld [vmem:[%s5 + $0x8] sm:$0xff]
    %v346 = vld [vmem:[%s5 + $0x10] sm:$0xff]
    %v347 = vld [vmem:[%s5 + $0x18] sm:$0xff]
    %v348 = vld [vmem:[%s5 + $0x20] sm:$0xff]
    %v349 = vld [vmem:[%s5 + $0x28] sm:$0xff]
    %v350 = vld [vmem:[%s5 + $0x30] sm:$0xff]
    %v351 = vld [vmem:[%s5 + $0x38] sm:$0xff]
    %v352 = vld [vmem:[%s5 + $0x40] sm:$0xff]
    %v353 = vld [vmem:[%s5 + $0x48] sm:$0xff]
    %v354 = vld [vmem:[%s5 + $0x50] sm:$0xff]
    %v355 = vld [vmem:[%s5 + $0x58] sm:$0xff]
    %v356 = vld [vmem:[%s5 + $0x60] sm:$0xff]
    %v357 = vld [vmem:[%s5 + $0x68] sm:$0xff]
    %v358 = vld [vmem:[%s5 + $0x70] sm:$0xff]
    %v359 = vld [vmem:[%s5 + $0x78] sm:$0xff]
    %v360 = vld [vmem:[%s6] sm:$0x1]
    %v362 = vlaneseq
    %v363 = vshrl.u32 %v362, 7
    %v364 = vsub.s32 0, %v363
    %v365 = vrot.slane %v360, %v364
    %367 = vmatprep.subr.mxu0 0.0
    %368 = vmatpush1.msra.mxu0 %v359
    %369 = vmatprep.subr.mxu0 0.0
    %370 = vmatpush1.msra.mxu0 %v358
    %371 = vmatprep.subr.mxu0 0.0
    %372 = vmatpush1.msra.mxu0 %v357
    %373 = vmatprep.subr.mxu0 0.0
    %374 = vmatpush1.msra.mxu0 %v356
    %375 = vmatprep.subr.mxu0 0.0
    %376 = vmatpush1.msra.mxu0 %v355
    %377 = vmatprep.subr.mxu0 0.0
    %378 = vmatpush1.msra.mxu0 %v354
    %379 = vmatprep.subr.mxu0 0.0
    %380 = vmatpush1.msra.mxu0 %v353
    %381 = vmatprep.subr.mxu0 0.0
    %382 = vmatpush1.msra.mxu0 %v352
    %383 = vmatprep.subr.mxu0 0.0
    %384 = vmatpush1.msra.mxu0 %v351
    %385 = vmatprep.subr.mxu0 0.0
    %386 = vmatpush1.msra.mxu0 %v350
    %387 = vmatprep.subr.mxu0 0.0
    %388 = vmatpush1.msra.mxu0 %v349
    %389 = vmatprep.subr.mxu0 0.0
    %390 = vmatpush1.msra.mxu0 %v348
    %391 = vmatprep.subr.mxu0 0.0
    %392 = vmatpush1.msra.mxu0 %v347
    %393 = vmatprep.subr.mxu0 0.0
    %394 = vmatpush1.msra.mxu0 %v346
    %395 = vmatprep.subr.mxu0 0.0
    %396 = vmatpush1.msra.mxu0 %v345
    %397 = vmatprep.subr.mxu0 0.0
    %398 = vmatpush1.msra.mxu0 %v344
    %399 = vmatprep.subr.mxu0 0.0
    %400 = vmatpush2.msra.mxu0 0.0
    %401 = vmatprep.subr.mxu0 0.0
    %402 = vmatpush2.msra.mxu0 0.0
    %403 = vmatprep.subr.mxu0 0.0
    %404 = vmatpush2.msra.mxu0 0.0
    %405 = vmatprep.subr.mxu0 0.0
    %406 = vmatpush2.msra.mxu0 0.0
    %407 = vmatprep.subr.mxu0 0.0
    %408 = vmatpush2.msra.mxu0 0.0
    %409 = vmatprep.subr.mxu0 0.0
    %410 = vmatpush2.msra.mxu0 0.0
    %411 = vmatprep.subr.mxu0 0.0
    %412 = vmatpush2.msra.mxu0 0.0
    %413 = vmatprep.subr.mxu0 0.0
    %414 = vmatpush2.msra.mxu0 0.0
    %415 = vmatprep.subr.mxu0 0.0
    %416 = vmatpush2.msra.mxu0 0.0
    %417 = vmatprep.subr.mxu0 0.0
    %418 = vmatpush2.msra.mxu0 0.0
    %419 = vmatprep.subr.mxu0 0.0
    %420 = vmatpush2.msra.mxu0 0.0
    %421 = vmatprep.subr.mxu0 0.0
    %422 = vmatpush2.msra.mxu0 0.0
    %423 = vmatprep.subr.mxu0 0.0
    %424 = vmatpush2.msra.mxu0 0.0
    %425 = vmatprep.subr.mxu0 0.0
    %426 = vmatpush2.msra.mxu0 0.0
    %427 = vmatprep.subr.mxu0 0.0
    %428 = vmatpush2.msra.mxu0 0.0
    %429 = vmatprep.subr.mxu0 0.0
    %430 = vmatpush2.msra.mxu0 0.0
    %431 = vmatprep.mubr.f32.mxu0 0.0
    %432 = vmatmul.mubr.f32.gmra.mxu0 %v343
    %v433 = vpop.f32.mrf.mxu0
    %v434 = vadd.f32 %v365, %v433
    %v435 = vpop.f32.mrf.mxu0
    %436 = vdwg.mxu0
    %437 = vst [vmem:[#allocation2] sm:$0x3] %v434
    // Predicated region
    $region30: #{_lambda_.3} parent=1 // pred_check
      _
    $region31: #{_lambda_.3} parent=1 // pred_check_branch
      %439 = sbr.rel (0) target = $region33
    $region32: #{_lambda_.3} parent=1 // pred_region
      %s441 = ssub.s32 32, 32
      %442 = vsyncadd [#allocation3], %s441
      %s444 = sshll.u32 [#allocation2], 4
      %s445 = int_to_ptr.vmem [resolvable:$true] %s444
      %447 = dma.vmem_to_hbm [thread:$0]  %s445, 32, %s7, [#allocation3]
    $region33: #{_lambda_.3} parent=1 // pred_fallthru
      _
    // Predicated region
    $region34: #{_lambda_.3} parent=1 // pred_check
      _
    $region35: #{_lambda_.3} parent=1 // pred_check_branch
      %449 = sbr.rel (0) target = $region37
    $region36: #{_lambda_.3} parent=1 // pred_region
      %450 = dma.done [#allocation3], 32
    $region37: #{_lambda_.3} parent=1 // pred_fallthru
      _
    %451 = vsyncpa [#allocation3], 1

// kernel: _lambda_.2
$region0: #{_lambda_.2}
  #allocation0 [shape = 'u32[]', space=smem, size = 0x4, offset = 0x4, fixed_abs, tag = 'smem constant byte address 0x4 - core index']
  #allocation1 [shape = 'u32[144,128]{1,0:T(1,128)}', space=vmem, size = 0x12000, scoped, tag = 'internal scratch']
  #allocation2 [shape = 'f32[80,2688]{1,0:T(8,128)}', space=vmem, size = 0xd2000, scoped, tag = 'scratch operand']
  #allocation3 [shape = 'f32[160,2176]{1,0:T(8,128)}', space=vmem, size = 0x154000, scoped, tag = 'scratch operand']
  %s0 = inlined_call_operand.vmem [shape: f32[3,2944], index: 0, kind: input, shape index: {}]
  %s1 = inlined_call_operand.vmem [shape: f32[8,80], index: 1, kind: input, shape index: {}]
  %s2 = inlined_call_operand.vmem [shape: f32[8,1], index: 2, kind: input, shape index: {}]
  %s3 = inlined_call_operand.vmem [shape: f32[16,160], index: 3, kind: input, shape index: {}]
  %s4 = inlined_call_operand.vmem [shape: f32[16,1], index: 4, kind: input, shape index: {}]
  %s5 = inlined_call_operand.vmem [shape: f32[16,2048], index: 5, kind: output, shape index: {}]
  %s6 = sld [smem:[#allocation0]]
  $region30: #{_lambda_.2} parent=0
    _
  %s8 = ssub.s32 1, %s6
  %s9 = scalar_select 0, %s8, %s6
  // Predicated region
  $region2: #{_lambda_.2} parent=0 // pred_check
    _
  $region3: #{_lambda_.2} parent=0 // pred_check_branch
    %11 = sbr.rel (0) target = $region5
  $region4: #{_lambda_.2} parent=0 // pred_region
    _
  $region5: #{_lambda_.2} parent=0 // pred_fallthru
    _
  // Predicated region
  $region6: #{_lambda_.2} parent=0 // pred_check
    _
  $region7: #{_lambda_.2} parent=0 // pred_check_branch
    %13 = sbr.rel (0) target = $region9
  $region8: #{_lambda_.2} parent=0 // pred_region
    _
  $region9: #{_lambda_.2} parent=0 // pred_fallthru
    _
  // Predicated region
  $region10: #{_lambda_.2} parent=0 // pred_check
    _
  $region11: #{_lambda_.2} parent=0 // pred_check_branch
    %15 = sbr.rel (0) target = $region13
  $region12: #{_lambda_.2} parent=0 // pred_region
    _
  $region13: #{_lambda_.2} parent=0 // pred_fallthru
    _
  // Predicated region
  $region14: #{_lambda_.2} parent=0 // pred_check
    _
  $region15: #{_lambda_.2} parent=0 // pred_check_branch
    %17 = sbr.rel (0) target = $region17
  $region16: #{_lambda_.2} parent=0 // pred_region
    _
  $region17: #{_lambda_.2} parent=0 // pred_fallthru
    _
  // Predicated region
  $region18: #{_lambda_.2} parent=0 // pred_check
    _
  $region19: #{_lambda_.2} parent=0 // pred_check_branch
    %19 = sbr.rel (0) target = $region21
  $region20: #{_lambda_.2} parent=0 // pred_region
    _
  $region21: #{_lambda_.2} parent=0 // pred_fallthru
    _
  %v20 = vld [vmem:[%s0] sm:$0x77]
  %v21 = vld [vmem:[%s0 + $0x8] sm:$0x77]
  %v22 = vld [vmem:[%s0 + $0x10] sm:$0x77]
  %v23 = vld [vmem:[%s0 + $0x18] sm:$0x77]
  %v24 = vld [vmem:[%s0 + $0x20] sm:$0x77]
  %v25 = vld [vmem:[%s0 + $0x28] sm:$0x77]
  %v26 = vld [vmem:[%s0 + $0x30] sm:$0x77]
  %v27 = vld [vmem:[%s0 + $0x38] sm:$0x77]
  %v28 = vld [vmem:[%s0 + $0x40] sm:$0x77]
  %v29 = vld [vmem:[%s0 + $0x48] sm:$0x77]
  %v30 = vld [vmem:[%s0 + $0x50] sm:$0x7]
  %v41 = vcombine.high %v20, %v20
  %v42 = vcombine.high %v21, %v21
  %v43 = vcombine.high %v22, %v22
  %v44 = vcombine.high %v23, %v23
  %v45 = vcombine.high %v24, %v24
  %v46 = vcombine.high %v25, %v25
  %v47 = vcombine.high %v26, %v26
  %v48 = vcombine.high %v27, %v27
  %v49 = vcombine.high %v28, %v28
  %v50 = vcombine.high %v29, %v29
  %61 = vst [vmem:[#allocation2] sm:$0x7] %v20
  %62 = vst [vmem:[#allocation2 + $0x8] sm:$0x7] %v41
  %63 = vst [vmem:[#allocation2 + $0x10] sm:$0x7] %v21
  %64 = vst [vmem:[#allocation2 + $0x18] sm:$0x7] %v42
  %65 = vst [vmem:[#allocation2 + $0x20] sm:$0x7] %v22
  %66 = vst [vmem:[#allocation2 + $0x28] sm:$0x7] %v43
  %67 = vst [vmem:[#allocation2 + $0x30] sm:$0x7] %v23
  %68 = vst [vmem:[#allocation2 + $0x38] sm:$0x7] %v44
  %69 = vst [vmem:[#allocation2 + $0x40] sm:$0x7] %v24
  %70 = vst [vmem:[#allocation2 + $0x48] sm:$0x7] %v45
  %71 = vst [vmem:[#allocation2 + $0x50] sm:$0x7] %v25
  %72 = vst [vmem:[#allocation2 + $0x58] sm:$0x7] %v46
  %73 = vst [vmem:[#allocation2 + $0x60] sm:$0x7] %v26
  %74 = vst [vmem:[#allocation2 + $0x68] sm:$0x7] %v47
  %75 = vst [vmem:[#allocation2 + $0x70] sm:$0x7] %v27
  %76 = vst [vmem:[#allocation2 + $0x78] sm:$0x7] %v48
  %77 = vst [vmem:[#allocation2 + $0x80] sm:$0x7] %v28
  %78 = vst [vmem:[#allocation2 + $0x88] sm:$0x7] %v49
  %79 = vst [vmem:[#allocation2 + $0x90] sm:$0x7] %v29
  %80 = vst [vmem:[#allocation2 + $0x98] sm:$0x7] %v50
  %81 = vst [vmem:[#allocation2 + $0xa0] sm:$0x7] %v30
  %v82 = vld [vmem:[%s0] sm:$0x77]
  %v83 = vld [vmem:[%s0 + $0x8] sm:$0x77]
  %v84 = vld [vmem:[%s0 + $0x10] sm:$0x77]
  %v85 = vld [vmem:[%s0 + $0x18] sm:$0x77]
  %v86 = vld [vmem:[%s0 + $0x20] sm:$0x77]
  %v87 = vld [vmem:[%s0 + $0x28] sm:$0x77]
  %v88 = vld [vmem:[%s0 + $0x30] sm:$0x77]
  %v89 = vld [vmem:[%s0 + $0x38] sm:$0x77]
  %v90 = vld [vmem:[%s0 + $0x40] sm:$0x77]
  %v91 = vld [vmem:[%s0 + $0x48] sm:$0x77]
  %v92 = vld [vmem:[%s0 + $0x50] sm:$0x77]
  %v104 = vcombine.high %v82, %v82
  %v105 = vcombine.high %v83, %v83
  %v106 = vcombine.high %v84, %v84
  %v107 = vcombine.high %v85, %v85
  %v108 = vcombine.high %v86, %v86
  %v109 = vcombine.high %v87, %v87
  %v110 = vcombine.high %v88, %v88
  %v111 = vcombine.high %v89, %v89
  %v112 = vcombine.high %v90, %v90
  %v113 = vcombine.high %v91, %v91
  %v114 = vcombine.high %v92, %v92
  %v115 = vrot.slane %v82, 5
  %v116 = vrot.slane %v104, 5
  %v117 = vrot.slane %v83, 5
  %v118 = vrot.slane %v105, 5
  %v119 = vrot.slane %v84, 5
  %v120 = vrot.slane %v106, 5
  %v121 = vrot.slane %v85, 5
  %v122 = vrot.slane %v107, 5
  %v123 = vrot.slane %v86, 5
  %v124 = vrot.slane %v108, 5
  %v125 = vrot.slane %v87, 5
  %v126 = vrot.slane %v109, 5
  %v127 = vrot.slane %v88, 5
  %v128 = vrot.slane %v110, 5
  %v129 = vrot.slane %v89, 5
  %v130 = vrot.slane %v111, 5
  %v131 = vrot.slane %v90, 5
  %v132 = vrot.slane %v112, 5
  %v133 = vrot.slane %v91, 5
  %v134 = vrot.slane %v113, 5
  %v135 = vrot.slane %v92, 5
  %v136 = vrot.slane %v114, 5
  %137 = vrot.lane.b32.xlu0 %v115, 127
  %v138 = vpop.permute.xlu0 %137
  %139 = vrot.lane.b32.xlu0 %v116, 127
  %v140 = vpop.permute.xlu0 %139
  %141 = vrot.lane.b32.xlu0 %v117, 127
  %v142 = vpop.permute.xlu0 %141
  %143 = vrot.lane.b32.xlu0 %v118, 127
  %v144 = vpop.permute.xlu0 %143
  %145 = vrot.lane.b32.xlu0 %v119, 127
  %v146 = vpop.permute.xlu0 %145
  %147 = vrot.lane.b32.xlu0 %v120, 127
  %v148 = vpop.permute.xlu0 %147
  %149 = vrot.lane.b32.xlu0 %v121, 127
  %v150 = vpop.permute.xlu0 %149
  %151 = vrot.lane.b32.xlu0 %v122, 127
  %v152 = vpop.permute.xlu0 %151
  %153 = vrot.lane.b32.xlu0 %v123, 127
  %v154 = vpop.permute.xlu0 %153
  %155 = vrot.lane.b32.xlu0 %v124, 127
  %v156 = vpop.permute.xlu0 %155
  %157 = vrot.lane.b32.xlu0 %v125, 127
  %v158 = vpop.permute.xlu0 %157
  %159 = vrot.lane.b32.xlu0 %v126, 127
  %v160 = vpop.permute.xlu0 %159
  %161 = vrot.lane.b32.xlu0 %v127, 127
  %v162 = vpop.permute.xlu0 %161
  %163 = vrot.lane.b32.xlu0 %v128, 127
  %v164 = vpop.permute.xlu0 %163
  %165 = vrot.lane.b32.xlu0 %v129, 127
  %v166 = vpop.permute.xlu0 %165
  %167 = vrot.lane.b32.xlu0 %v130, 127
  %v168 = vpop.permute.xlu0 %167
  %169 = vrot.lane.b32.xlu0 %v131, 127
  %v170 = vpop.permute.xlu0 %169
  %171 = vrot.lane.b32.xlu0 %v132, 127
  %v172 = vpop.permute.xlu0 %171
  %173 = vrot.lane.b32.xlu0 %v133, 127
  %v174 = vpop.permute.xlu0 %173
  %175 = vrot.lane.b32.xlu0 %v134, 127
  %v176 = vpop.permute.xlu0 %175
  %177 = vrot.lane.b32.xlu0 %v135, 127
  %v178 = vpop.permute.xlu0 %177
  %179 = vrot.lane.b32.xlu0 %v136, 127
  %v180 = vpop.permute.xlu0 %179
  %vm181 = vcmask 1039360
  %v182 = vsel %vm181, %v138, %v140
  %v183 = vsel %vm181, %v140, %v142
  %v184 = vsel %vm181, %v142, %v144
  %v185 = vsel %vm181, %v144, %v146
  %v186 = vsel %vm181, %v146, %v148
  %v187 = vsel %vm181, %v148, %v150
  %v188 = vsel %vm181, %v150, %v152
  %v189 = vsel %vm181, %v152, %v154
  %v190 = vsel %vm181, %v154, %v156
  %v191 = vsel %vm181, %v156, %v158
  %v192 = vsel %vm181, %v158, %v160
  %v193 = vsel %vm181, %v160, %v162
  %v194 = vsel %vm181, %v162, %v164
  %v195 = vsel %vm181, %v164, %v166
  %v196 = vsel %vm181, %v166, %v168
  %v197 = vsel %vm181, %v168, %v170
  %v198 = vsel %vm181, %v170, %v172
  %v199 = vsel %vm181, %v172, %v174
  %v200 = vsel %vm181, %v174, %v176
  %v201 = vsel %vm181, %v176, %v178
  %v202 = vsel %vm181, %v178, %v180
  %224 = vst [vmem:[#allocation2] sm:$0x38] %v182
  %225 = vst [vmem:[#allocation2 + $0x8] sm:$0x38] %v183
  %226 = vst [vmem:[#allocation2 + $0x10] sm:$0x38] %v184
  %227 = vst [vmem:[#allocation2 + $0x18] sm:$0x38] %v185
  %228 = vst [vmem:[#allocation2 + $0x20] sm:$0x38] %v186
  %229 = vst [vmem:[#allocation2 + $0x28] sm:$0x38] %v187
  %230 = vst [vmem:[#allocation2 + $0x30] sm:$0x38] %v188
  %231 = vst [vmem:[#allocation2 + $0x38] sm:$0x38] %v189
  %232 = vst [vmem:[#allocation2 + $0x40] sm:$0x38] %v190
  %233 = vst [vmem:[#allocation2 + $0x48] sm:$0x38] %v191
  %234 = vst [vmem:[#allocation2 + $0x50] sm:$0x38] %v192
  %235 = vst [vmem:[#allocation2 + $0x58] sm:$0x38] %v193
  %236 = vst [vmem:[#allocation2 + $0x60] sm:$0x38] %v194
  %237 = vst [vmem:[#allocation2 + $0x68] sm:$0x38] %v195
  %238 = vst [vmem:[#allocation2 + $0x70] sm:$0x38] %v196
  %239 = vst [vmem:[#allocation2 + $0x78] sm:$0x38] %v197
  %240 = vst [vmem:[#allocation2 + $0x80] sm:$0x38] %v198
  %241 = vst [vmem:[#allocation2 + $0x88] sm:$0x38] %v199
  %242 = vst [vmem:[#allocation2 + $0x90] sm:$0x38] %v200
  %243 = vst [vmem:[#allocation2 + $0x98] sm:$0x38] %v201
  %244 = vst [vmem:[#allocation2 + $0xa0] sm:$0x38] %v202
  %v245 = vld [vmem:[%s0] sm:$0x77]
  %v246 = vld [vmem:[%s0 + $0x8] sm:$0x77]
  %v247 = vld [vmem:[%s0 + $0x10] sm:$0x77]
  %v248 = vld [vmem:[%s0 + $0x18] sm:$0x77]
  %v249 = vld [vmem:[%s0 + $0x20] sm:$0x77]
  %v250 = vld [vmem:[%s0 + $0x28] sm:$0x77]
  %v251 = vld [vmem:[%s0 + $0x30] sm:$0x77]
  %v252 = vld [vmem:[%s0 + $0x38] sm:$0x77]
  %v253 = vld [vmem:[%s0 + $0x40] sm:$0x77]
  %v254 = vld [vmem:[%s0 + $0x48] sm:$0x77]
  %v255 = vld [vmem:[%s0 + $0x50] sm:$0x77]
  %v267 = vcombine.high %v245, %v245
  %v268 = vcombine.high %v246, %v246
  %v269 = vcombine.high %v247, %v247
  %v270 = vcombine.high %v248, %v248
  %v271 = vcombine.high %v249, %v249
  %v272 = vcombine.high %v250, %v250
  %v273 = vcombine.high %v251, %v251
  %v274 = vcombine.high %v252, %v252
  %v275 = vcombine.high %v253, %v253
  %v276 = vcombine.high %v254, %v254
  %v277 = vcombine.high %v255, %v255
  %v278 = vrot.slane %v245, 2
  %v279 = vrot.slane %v267, 2
  %v280 = vrot.slane %v246, 2
  %v281 = vrot.slane %v268, 2
  %v282 = vrot.slane %v247, 2
  %v283 = vrot.slane %v269, 2
  %v284 = vrot.slane %v248, 2
  %v285 = vrot.slane %v270, 2
  %v286 = vrot.slane %v249, 2
  %v287 = vrot.slane %v271, 2
  %v288 = vrot.slane %v250, 2
  %v289 = vrot.slane %v272, 2
  %v290 = vrot.slane %v251, 2
  %v291 = vrot.slane %v273, 2
  %v292 = vrot.slane %v252, 2
  %v293 = vrot.slane %v274, 2
  %v294 = vrot.slane %v253, 2
  %v295 = vrot.slane %v275, 2
  %v296 = vrot.slane %v254, 2
  %v297 = vrot.slane %v276, 2
  %v298 = vrot.slane %v255, 2
  %v299 = vrot.slane %v277, 2
  %300 = vrot.lane.b32.xlu0 %v278, 126
  %v301 = vpop.permute.xlu0 %300
  %302 = vrot.lane.b32.xlu0 %v279, 126
  %v303 = vpop.permute.xlu0 %302
  %304 = vrot.lane.b32.xlu0 %v280, 126
  %v305 = vpop.permute.xlu0 %304
  %306 = vrot.lane.b32.xlu0 %v281, 126
  %v307 = vpop.permute.xlu0 %306
  %308 = vrot.lane.b32.xlu0 %v282, 126
  %v309 = vpop.permute.xlu0 %308
  %310 = vrot.lane.b32.xlu0 %v283, 126
  %v311 = vpop.permute.xlu0 %310
  %312 = vrot.lane.b32.xlu0 %v284, 126
  %v313 = vpop.permute.xlu0 %312
  %314 = vrot.lane.b32.xlu0 %v285, 126
  %v315 = vpop.permute.xlu0 %314
  %316 = vrot.lane.b32.xlu0 %v286, 126
  %v317 = vpop.permute.xlu0 %316
  %318 = vrot.lane.b32.xlu0 %v287, 126
  %v319 = vpop.permute.xlu0 %318
  %320 = vrot.lane.b32.xlu0 %v288, 126
  %v321 = vpop.permute.xlu0 %320
  %322 = vrot.lane.b32.xlu0 %v289, 126
  %v323 = vpop.permute.xlu0 %322
  %324 = vrot.lane.b32.xlu0 %v290, 126
  %v325 = vpop.permute.xlu0 %324
  %326 = vrot.lane.b32.xlu0 %v291, 126
  %v327 = vpop.permute.xlu0 %326
  %328 = vrot.lane.b32.xlu0 %v292, 126
  %v329 = vpop.permute.xlu0 %328
  %330 = vrot.lane.b32.xlu0 %v293, 126
  %v331 = vpop.permute.xlu0 %330
  %332 = vrot.lane.b32.xlu0 %v294, 126
  %v333 = vpop.permute.xlu0 %332
  %334 = vrot.lane.b32.xlu0 %v295, 126
  %v335 = vpop.permute.xlu0 %334
  %336 = vrot.lane.b32.xlu0 %v296, 126
  %v337 = vpop.permute.xlu0 %336
  %338 = vrot.lane.b32.xlu0 %v297, 126
  %v339 = vpop.permute.xlu0 %338
  %340 = vrot.lane.b32.xlu0 %v298, 126
  %v341 = vpop.permute.xlu0 %340
  %342 = vrot.lane.b32.xlu0 %v299, 126
  %v343 = vpop.permute.xlu0 %342
  %vm344 = vcmask 1031168
  %v345 = vsel %vm344, %v301, %v303
  %v346 = vsel %vm344, %v303, %v305
  %v347 = vsel %vm344, %v305, %v307
  %v348 = vsel %vm344, %v307, %v309
  %v349 = vsel %vm344, %v309, %v311
  %v350 = vsel %vm344, %v311, %v313
  %v351 = vsel %vm344, %v313, %v315
  %v352 = vsel %vm344, %v315, %v317
  %v353 = vsel %vm344, %v317, %v319
  %v354 = vsel %vm344, %v319, %v321
  %v355 = vsel %vm344, %v321, %v323
  %v356 = vsel %vm344, %v323, %v325
  %v357 = vsel %vm344, %v325, %v327
  %v358 = vsel %vm344, %v327, %v329
  %v359 = vsel %vm344, %v329, %v331
  %v360 = vsel %vm344, %v331, %v333
  %v361 = vsel %vm344, %v333, %v335
  %v362 = vsel %vm344, %v335, %v337
  %v363 = vsel %vm344, %v337, %v339
  %v364 = vsel %vm344, %v339, %v341
  %v365 = vsel %vm344, %v341, %v343
  %387 = vst [vmem:[#allocation2] sm:$0xc0] %v345
  %388 = vst [vmem:[#allocation2 + $0x8] sm:$0xc0] %v346
  %389 = vst [vmem:[#allocation2 + $0x10] sm:$0xc0] %v347
  %390 = vst [vmem:[#allocation2 + $0x18] sm:$0xc0] %v348
  %391 = vst [vmem:[#allocation2 + $0x20] sm:$0xc0] %v349
  %392 = vst [vmem:[#allocation2 + $0x28] sm:$0xc0] %v350
  %393 = vst [vmem:[#allocation2 + $0x30] sm:$0xc0] %v351
  %394 = vst [vmem:[#allocation2 + $0x38] sm:$0xc0] %v352
  %395 = vst [vmem:[#allocation2 + $0x40] sm:$0xc0] %v353
  %396 = vst [vmem:[#allocation2 + $0x48] sm:$0xc0] %v354
  %397 = vst [vmem:[#allocation2 + $0x50] sm:$0xc0] %v355
  %398 = vst [vmem:[#allocation2 + $0x58] sm:$0xc0] %v356
  %399 = vst [vmem:[#allocation2 + $0x60] sm:$0xc0] %v357
  %400 = vst [vmem:[#allocation2 + $0x68] sm:$0xc0] %v358
  %401 = vst [vmem:[#allocation2 + $0x70] sm:$0xc0] %v359
  %402 = vst [vmem:[#allocation2 + $0x78] sm:$0xc0] %v360
  %403 = vst [vmem:[#allocation2 + $0x80] sm:$0xc0] %v361
  %404 = vst [vmem:[#allocation2 + $0x88] sm:$0xc0] %v362
  %405 = vst [vmem:[#allocation2 + $0x90] sm:$0xc0] %v363
  %406 = vst [vmem:[#allocation2 + $0x98] sm:$0xc0] %v364
  %407 = vst [vmem:[#allocation2 + $0xa0] sm:$0xc0] %v365
  %408 = vst [vmem:[#allocation2 + $0xa8] sm:$0x1] %v345
  %409 = vst [vmem:[#allocation2 + $0xb0] sm:$0x1] %v346
  %410 = vst [vmem:[#allocation2 + $0xb8] sm:$0x1] %v347
  %411 = vst [vmem:[#allocation2 + $0xc0] sm:$0x1] %v348
  %412 = vst [vmem:[#allocation2 + $0xc8] sm:$0x1] %v349
  %413 = vst [vmem:[#allocation2 + $0xd0] sm:$0x1] %v350
  %414 = vst [vmem:[#allocation2 + $0xd8] sm:$0x1] %v351
  %415 = vst [vmem:[#allocation2 + $0xe0] sm:$0x1] %v352
  %416 = vst [vmem:[#allocation2 + $0xe8] sm:$0x1] %v353
  %417 = vst [vmem:[#allocation2 + $0xf0] sm:$0x1] %v354
  %418 = vst [vmem:[#allocation2 + $0xf8] sm:$0x1] %v355
  %419 = vst [vmem:[#allocation2 + $0x100] sm:$0x1] %v356
  %420 = vst [vmem:[#allocation2 + $0x108] sm:$0x1] %v357
  %421 = vst [vmem:[#allocation2 + $0x110] sm:$0x1] %v358
  %422 = vst [vmem:[#allocation2 + $0x118] sm:$0x1] %v359
  %423 = vst [vmem:[#allocation2 + $0x120] sm:$0x1] %v360
  %424 = vst [vmem:[#allocation2 + $0x128] sm:$0x1] %v361
  %425 = vst [vmem:[#allocation2 + $0x130] sm:$0x1] %v362
  %426 = vst [vmem:[#allocation2 + $0x138] sm:$0x1] %v363
  %427 = vst [vmem:[#allocation2 + $0x140] sm:$0x1] %v364
  %428 = vst [vmem:[#allocation2 + $0x148] sm:$0x1] %v365
  %v429 = vld [vmem:[%s0] sm:$0x77]
  %v430 = vld [vmem:[%s0 + $0x8] sm:$0x77]
  %v431 = vld [vmem:[%s0 + $0x10] sm:$0x77]
  %v432 = vld [vmem:[%s0 + $0x18] sm:$0x77]
  %v433 = vld [vmem:[%s0 + $0x20] sm:$0x77]
  %v434 = vld [vmem:[%s0 + $0x28] sm:$0x77]
  %v435 = vld [vmem:[%s0 + $0x30] sm:$0x77]
  %v436 = vld [vmem:[%s0 + $0x38] sm:$0x77]
  %v437 = vld [vmem:[%s0 + $0x40] sm:$0x77]
  %v438 = vld [vmem:[%s0 + $0x48] sm:$0x77]
  %v439 = vld [vmem:[%s0 + $0x50] sm:$0x77]
  %v451 = vcombine.high %v429, %v429
  %v452 = vcombine.high %v430, %v430
  %v453 = vcombine.high %v431, %v431
  %v454 = vcombine.high %v432, %v432
  %v455 = vcombine.high %v433, %v433
  %v456 = vcombine.high %v434, %v434
  %v457 = vcombine.high %v435, %v435
  %v458 = vcombine.high %v436, %v436
  %v459 = vcombine.high %v437, %v437
  %v460 = vcombine.high %v438, %v438
  %v461 = vcombine.high %v439, %v439
  %v462 = vrot.slane %v429, 7
  %v463 = vrot.slane %v451, 7
  %v464 = vrot.slane %v430, 7
  %v465 = vrot.slane %v452, 7
  %v466 = vrot.slane %v431, 7
  %v467 = vrot.slane %v453, 7
  %v468 = vrot.slane %v432, 7
  %v469 = vrot.slane %v454, 7
  %v470 = vrot.slane %v433, 7
  %v471 = vrot.slane %v455, 7
  %v472 = vrot.slane %v434, 7
  %v473 = vrot.slane %v456, 7
  %v474 = vrot.slane %v435, 7
  %v475 = vrot.slane %v457, 7
  %v476 = vrot.slane %v436, 7
  %v477 = vrot.slane %v458, 7
  %v478 = vrot.slane %v437, 7
  %v479 = vrot.slane %v459, 7
  %v480 = vrot.slane %v438, 7
  %v481 = vrot.slane %v460, 7
  %v482 = vrot.slane %v439, 7
  %v483 = vrot.slane %v461, 7
  %484 = vrot.lane.b32.xlu0 %v462, 125
  %v485 = vpop.permute.xlu0 %484
  %486 = vrot.lane.b32.xlu0 %v463, 125
  %v487 = vpop.permute.xlu0 %486
  %488 = vrot.lane.b32.xlu0 %v464, 125
  %v489 = vpop.permute.xlu0 %488
  %490 = vrot.lane.b32.xlu0 %v465, 125
  %v491 = vpop.permute.xlu0 %490
  %492 = vrot.lane.b32.xlu0 %v466, 125
  %v493 = vpop.permute.xlu0 %492
  %494 = vrot.lane.b32.xlu0 %v467, 125
  %v495 = vpop.permute.xlu0 %494
  %496 = vrot.lane.b32.xlu0 %v468, 125
  %v497 = vpop.permute.xlu0 %496
  %498 = vrot.lane.b32.xlu0 %v469, 125
  %v499 = vpop.permute.xlu0 %498
  %500 = vrot.lane.b32.xlu0 %v470, 125
  %v501 = vpop.permute.xlu0 %500
  %502 = vrot.lane.b32.xlu0 %v471, 125
  %v503 = vpop.permute.xlu0 %502
  %504 = vrot.lane.b32.xlu0 %v472, 125
  %v505 = vpop.permute.xlu0 %504
  %506 = vrot.lane.b32.xlu0 %v473, 125
  %v507 = vpop.permute.xlu0 %506
  %508 = vrot.lane.b32.xlu0 %v474, 125
  %v509 = vpop.permute.xlu0 %508
  %510 = vrot.lane.b32.xlu0 %v475, 125
  %v511 = vpop.permute.xlu0 %510
  %512 = vrot.lane.b32.xlu0 %v476, 125
  %v513 = vpop.permute.xlu0 %512
  %514 = vrot.lane.b32.xlu0 %v477, 125
  %v515 = vpop.permute.xlu0 %514
  %516 = vrot.lane.b32.xlu0 %v478, 125
  %v517 = vpop.permute.xlu0 %516
  %518 = vrot.lane.b32.xlu0 %v479, 125
  %v519 = vpop.permute.xlu0 %518
  %520 = vrot.lane.b32.xlu0 %v480, 125
  %v521 = vpop.permute.xlu0 %520
  %522 = vrot.lane.b32.xlu0 %v481, 125
  %v523 = vpop.permute.xlu0 %522
  %524 = vrot.lane.b32.xlu0 %v482, 125
  %v525 = vpop.permute.xlu0 %524
  %526 = vrot.lane.b32.xlu0 %v483, 125
  %v527 = vpop.permute.xlu0 %526
  %vm528 = vcmask 1022976
  %v529 = vsel %vm528, %v485, %v487
  %v530 = vsel %vm528, %v487, %v489
  %v531 = vsel %vm528, %v489, %v491
  %v532 = vsel %vm528, %v491, %v493
  %v533 = vsel %vm528, %v493, %v495
  %v534 = vsel %vm528, %v495, %v497
  %v535 = vsel %vm528, %v497, %v499
  %v536 = vsel %vm528, %v499, %v501
  %v537 = vsel %vm528, %v501, %v503
  %v538 = vsel %vm528, %v503, %v505
  %v539 = vsel %vm528, %v505, %v507
  %v540 = vsel %vm528, %v507, %v509
  %v541 = vsel %vm528, %v509, %v511
  %v542 = vsel %vm528, %v511, %v513
  %v543 = vsel %vm528, %v513, %v515
  %v544 = vsel %vm528, %v515, %v517
  %v545 = vsel %vm528, %v517, %v519
  %v546 = vsel %vm528, %v519, %v521
  %v547 = vsel %vm528, %v521, %v523
  %v548 = vsel %vm528, %v523, %v525
  %v549 = vsel %vm528, %v525, %v527
  %571 = vst [vmem:[#allocation2 + $0xa8] sm:$0xe] %v529
  %572 = vst [vmem:[#allocation2 + $0xb0] sm:$0xe] %v530
  %573 = vst [vmem:[#allocation2 + $0xb8] sm:$0xe] %v531
  %574 = vst [vmem:[#allocation2 + $0xc0] sm:$0xe] %v532
  %575 = vst [vmem:[#allocation2 + $0xc8] sm:$0xe] %v533
  %576 = vst [vmem:[#allocation2 + $0xd0] sm:$0xe] %v534
  %577 = vst [vmem:[#allocation2 + $0xd8] sm:$0xe] %v535
  %578 = vst [vmem:[#allocation2 + $0xe0] sm:$0xe] %v536
  %579 = vst [vmem:[#allocation2 + $0xe8] sm:$0xe] %v537
  %580 = vst [vmem:[#allocation2 + $0xf0] sm:$0xe] %v538
  %581 = vst [vmem:[#allocation2 + $0xf8] sm:$0xe] %v539
  %582 = vst [vmem:[#allocation2 + $0x100] sm:$0xe] %v540
  %583 = vst [vmem:[#allocation2 + $0x108] sm:$0xe] %v541
  %584 = vst [vmem:[#allocation2 + $0x110] sm:$0xe] %v542
  %585 = vst [vmem:[#allocation2 + $0x118] sm:$0xe] %v543
  %586 = vst [vmem:[#allocation2 + $0x120] sm:$0xe] %v544
  %587 = vst [vmem:[#allocation2 + $0x128] sm:$0xe] %v545
  %588 = vst [vmem:[#allocation2 + $0x130] sm:$0xe] %v546
  %589 = vst [vmem:[#allocation2 + $0x138] sm:$0xe] %v547
  %590 = vst [vmem:[#allocation2 + $0x140] sm:$0xe] %v548
  %591 = vst [vmem:[#allocation2 + $0x148] sm:$0xe] %v549
  %v592 = vld [vmem:[%s0] sm:$0x77]
  %v593 = vld [vmem:[%s0 + $0x8] sm:$0x77]
  %v594 = vld [vmem:[%s0 + $0x10] sm:$0x77]
  %v595 = vld [vmem:[%s0 + $0x18] sm:$0x77]
  %v596 = vld [vmem:[%s0 + $0x20] sm:$0x77]
  %v597 = vld [vmem:[%s0 + $0x28] sm:$0x77]
  %v598 = vld [vmem:[%s0 + $0x30] sm:$0x77]
  %v599 = vld [vmem:[%s0 + $0x38] sm:$0x77]
  %v600 = vld [vmem:[%s0 + $0x40] sm:$0x77]
  %v601 = vld [vmem:[%s0 + $0x48] sm:$0x77]
  %v602 = vld [vmem:[%s0 + $0x50] sm:$0x77]
  %v614 = vcombine.low %v592, %v592
  %v615 = vcombine.low %v593, %v593
  %v616 = vcombine.low %v594, %v594
  %v617 = vcombine.low %v595, %v595
  %v618 = vcombine.low %v596, %v596
  %v619 = vcombine.low %v597, %v597
  %v620 = vcombine.low %v598, %v598
  %v621 = vcombine.low %v599, %v599
  %v622 = vcombine.low %v600, %v600
  %v623 = vcombine.low %v601, %v601
  %v624 = vcombine.low %v602, %v602
  %625 = vrot.lane.b32.xlu0 %v614, 124
  %v626 = vpop.permute.xlu0 %625
  %627 = vrot.lane.b32.xlu0 %v592, 124
  %v628 = vpop.permute.xlu0 %627
  %629 = vrot.lane.b32.xlu0 %v615, 124
  %v630 = vpop.permute.xlu0 %629
  %631 = vrot.lane.b32.xlu0 %v593, 124
  %v632 = vpop.permute.xlu0 %631
  %633 = vrot.lane.b32.xlu0 %v616, 124
  %v634 = vpop.permute.xlu0 %633
  %635 = vrot.lane.b32.xlu0 %v594, 124
  %v636 = vpop.permute.xlu0 %635
  %637 = vrot.lane.b32.xlu0 %v617, 124
  %v638 = vpop.permute.xlu0 %637
  %639 = vrot.lane.b32.xlu0 %v595, 124
  %v640 = vpop.permute.xlu0 %639
  %641 = vrot.lane.b32.xlu0 %v618, 124
  %v642 = vpop.permute.xlu0 %641
  %643 = vrot.lane.b32.xlu0 %v596, 124
  %v644 = vpop.permute.xlu0 %643
  %645 = vrot.lane.b32.xlu0 %v619, 124
  %v646 = vpop.permute.xlu0 %645
  %647 = vrot.lane.b32.xlu0 %v597, 124
  %v648 = vpop.permute.xlu0 %647
  %649 = vrot.lane.b32.xlu0 %v620, 124
  %v650 = vpop.permute.xlu0 %649
  %651 = vrot.lane.b32.xlu0 %v598, 124
  %v652 = vpop.permute.xlu0 %651
  %653 = vrot.lane.b32.xlu0 %v621, 124
  %v654 = vpop.permute.xlu0 %653
  %655 = vrot.lane.b32.xlu0 %v599, 124
  %v656 = vpop.permute.xlu0 %655
  %657 = vrot.lane.b32.xlu0 %v622, 124
  %v658 = vpop.permute.xlu0 %657
  %659 = vrot.lane.b32.xlu0 %v600, 124
  %v660 = vpop.permute.xlu0 %659
  %661 = vrot.lane.b32.xlu0 %v623, 124
  %v662 = vpop.permute.xlu0 %661
  %663 = vrot.lane.b32.xlu0 %v601, 124
  %v664 = vpop.permute.xlu0 %663
  %665 = vrot.lane.b32.xlu0 %v624, 124
  %v666 = vpop.permute.xlu0 %665
  %667 = vrot.lane.b32.xlu0 %v602, 124
  %v668 = vpop.permute.xlu0 %667
  %vm669 = vcmask 1014784
  %v670 = vsel %vm669, %v626, %v628
  %v671 = vsel %vm669, %v628, %v630
  %v672 = vsel %vm669, %v630, %v632
  %v673 = vsel %vm669, %v632, %v634
  %v674 = vsel %vm669, %v634, %v636
  %v675 = vsel %vm669, %v636, %v638
  %v676 = vsel %vm669, %v638, %v640
  %v677 = vsel %vm669, %v640, %v642
  %v678 = vsel %vm669, %v642, %v644
  %v679 = vsel %vm669, %v644, %v646
  %v680 = vsel %vm669, %v646, %v648
  %v681 = vsel %vm669, %v648, %v650
  %v682 = vsel %vm669, %v650, %v652
  %v683 = vsel %vm669, %v652, %v654
  %v684 = vsel %vm669, %v654, %v656
  %v685 = vsel %vm669, %v656, %v658
  %v686 = vsel %vm669, %v658, %v660
  %v687 = vsel %vm669, %v660, %v662
  %v688 = vsel %vm669, %v662, %v664
  %v689 = vsel %vm669, %v664, %v666
  %v690 = vsel %vm669, %v666, %v668
  %712 = vst [vmem:[#allocation2 + $0xa8] sm:$0x70] %v670
  %713 = vst [vmem:[#allocation2 + $0xb0] sm:$0x70] %v671
  %714 = vst [vmem:[#allocation2 + $0xb8] sm:$0x70] %v672
  %715 = vst [vmem:[#allocation2 + $0xc0] sm:$0x70] %v673
  %716 = vst [vmem:[#allocation2 + $0xc8] sm:$0x70] %v674
  %717 = vst [vmem:[#allocation2 + $0xd0] sm:$0x70] %v675
  %718 = vst [vmem:[#allocation2 + $0xd8] sm:$0x70] %v676
  %719 = vst [vmem:[#allocation2 + $0xe0] sm:$0x70] %v677
  %720 = vst [vmem:[#allocation2 + $0xe8] sm:$0x70] %v678
  %721 = vst [vmem:[#allocation2 + $0xf0] sm:$0x70] %v679
  %722 = vst [vmem:[#allocation2 + $0xf8] sm:$0x70] %v680
  %723 = vst [vmem:[#allocation2 + $0x100] sm:$0x70] %v681
  %724 = vst [vmem:[#allocation2 + $0x108] sm:$0x70] %v682
  %725 = vst [vmem:[#allocation2 + $0x110] sm:$0x70] %v683
  %726 = vst [vmem:[#allocation2 + $0x118] sm:$0x70] %v684
  %727 = vst [vmem:[#allocation2 + $0x120] sm:$0x70] %v685
  %728 = vst [vmem:[#allocation2 + $0x128] sm:$0x70] %v686
  %729 = vst [vmem:[#allocation2 + $0x130] sm:$0x70] %v687
  %730 = vst [vmem:[#allocation2 + $0x138] sm:$0x70] %v688
  %731 = vst [vmem:[#allocation2 + $0x140] sm:$0x70] %v689
  %732 = vst [vmem:[#allocation2 + $0x148] sm:$0x70] %v690
  %v733 = vld [vmem:[%s0] sm:$0x77]
  %v734 = vld [vmem:[%s0 + $0x8] sm:$0x77]
  %v735 = vld [vmem:[%s0 + $0x10] sm:$0x77]
  %v736 = vld [vmem:[%s0 + $0x18] sm:$0x77]
  %v737 = vld [vmem:[%s0 + $0x20] sm:$0x77]
  %v738 = vld [vmem:[%s0 + $0x28] sm:$0x77]
  %v739 = vld [vmem:[%s0 + $0x30] sm:$0x77]
  %v740 = vld [vmem:[%s0 + $0x38] sm:$0x77]
  %v741 = vld [vmem:[%s0 + $0x40] sm:$0x77]
  %v742 = vld [vmem:[%s0 + $0x48] sm:$0x77]
  %v743 = vld [vmem:[%s0 + $0x50] sm:$0x77]
  %v755 = vcombine.high %v733, %v733
  %v756 = vcombine.high %v734, %v734
  %v757 = vcombine.high %v735, %v735
  %v758 = vcombine.high %v736, %v736
  %v759 = vcombine.high %v737, %v737
  %v760 = vcombine.high %v738, %v738
  %v761 = vcombine.high %v739, %v739
  %v762 = vcombine.high %v740, %v740
  %v763 = vcombine.high %v741, %v741
  %v764 = vcombine.high %v742, %v742
  %v765 = vcombine.high %v743, %v743
  %v766 = vrot.slane %v733, 1
  %v767 = vrot.slane %v755, 1
  %v768 = vrot.slane %v734, 1
  %v769 = vrot.slane %v756, 1
  %v770 = vrot.slane %v735, 1
  %v771 = vrot.slane %v757, 1
  %v772 = vrot.slane %v736, 1
  %v773 = vrot.slane %v758, 1
  %v774 = vrot.slane %v737, 1
  %v775 = vrot.slane %v759, 1
  %v776 = vrot.slane %v738, 1
  %v777 = vrot.slane %v760, 1
  %v778 = vrot.slane %v739, 1
  %v779 = vrot.slane %v761, 1
  %v780 = vrot.slane %v740, 1
  %v781 = vrot.slane %v762, 1
  %v782 = vrot.slane %v741, 1
  %v783 = vrot.slane %v763, 1
  %v784 = vrot.slane %v742, 1
  %v785 = vrot.slane %v764, 1
  %v786 = vrot.slane %v743, 1
  %v787 = vrot.slane %v765, 1
  %788 = vrot.lane.b32.xlu0 %v766, 96
  %v789 = vpop.permute.xlu0 %788
  %790 = vrot.lane.b32.xlu0 %v767, 96
  %v791 = vpop.permute.xlu0 %790
  %792 = vrot.lane.b32.xlu0 %v768, 96
  %v793 = vpop.permute.xlu0 %792
  %794 = vrot.lane.b32.xlu0 %v769, 96
  %v795 = vpop.permute.xlu0 %794
  %796 = vrot.lane.b32.xlu0 %v770, 96
  %v797 = vpop.permute.xlu0 %796
  %798 = vrot.lane.b32.xlu0 %v771, 96
  %v799 = vpop.permute.xlu0 %798
  %800 = vrot.lane.b32.xlu0 %v772, 96
  %v801 = vpop.permute.xlu0 %800
  %802 = vrot.lane.b32.xlu0 %v773, 96
  %v803 = vpop.permute.xlu0 %802
  %804 = vrot.lane.b32.xlu0 %v774, 96
  %v805 = vpop.permute.xlu0 %804
  %806 = vrot.lane.b32.xlu0 %v775, 96
  %v807 = vpop.permute.xlu0 %806
  %808 = vrot.lane.b32.xlu0 %v776, 96
  %v809 = vpop.permute.xlu0 %808
  %810 = vrot.lane.b32.xlu0 %v777, 96
  %v811 = vpop.permute.xlu0 %810
  %812 = vrot.lane.b32.xlu0 %v778, 96
  %v813 = vpop.permute.xlu0 %812
  %814 = vrot.lane.b32.xlu0 %v779, 96
  %v815 = vpop.permute.xlu0 %814
  %816 = vrot.lane.b32.xlu0 %v780, 96
  %v817 = vpop.permute.xlu0 %816
  %818 = vrot.lane.b32.xlu0 %v781, 96
  %v819 = vpop.permute.xlu0 %818
  %820 = vrot.lane.b32.xlu0 %v782, 96
  %v821 = vpop.permute.xlu0 %820
  %822 = vrot.lane.b32.xlu0 %v783, 96
  %v823 = vpop.permute.xlu0 %822
  %824 = vrot.lane.b32.xlu0 %v784, 96
  %v825 = vpop.permute.xlu0 %824
  %826 = vrot.lane.b32.xlu0 %v785, 96
  %v827 = vpop.permute.xlu0 %826
  %828 = vrot.lane.b32.xlu0 %v786, 96
  %v829 = vpop.permute.xlu0 %828
  %830 = vrot.lane.b32.xlu0 %v787, 96
  %v831 = vpop.permute.xlu0 %830
  %vm832 = vcmask 785408
  %v833 = vsel %vm832, %v789, %v791
  %v834 = vsel %vm832, %v791, %v793
  %v835 = vsel %vm832, %v793, %v795
  %v836 = vsel %vm832, %v795, %v797
  %v837 = vsel %vm832, %v797, %v799
  %v838 = vsel %vm832, %v799, %v801
  %v839 = vsel %vm832, %v801, %v803
  %v840 = vsel %vm832, %v803, %v805
  %v841 = vsel %vm832, %v805, %v807
  %v842 = vsel %vm832, %v807, %v809
  %v843 = vsel %vm832, %v809, %v811
  %v844 = vsel %vm832, %v811, %v813
  %v845 = vsel %vm832, %v813, %v815
  %v846 = vsel %vm832, %v815, %v817
  %v847 = vsel %vm832, %v817, %v819
  %v848 = vsel %vm832, %v819, %v821
  %v849 = vsel %vm832, %v821, %v823
  %v850 = vsel %vm832, %v823, %v825
  %v851 = vsel %vm832, %v825, %v827
  %v852 = vsel %vm832, %v827, %v829
  %v853 = vsel %vm832, %v829, %v831
  %875 = vst [vmem:[#allocation2 + $0xa8] sm:$0x80] %v833
  %876 = vst [vmem:[#allocation2 + $0xb0] sm:$0x80] %v834
  %877 = vst [vmem:[#allocation2 + $0xb8] sm:$0x80] %v835
  %878 = vst [vmem:[#allocation2 + $0xc0] sm:$0x80] %v836
  %879 = vst [vmem:[#allocation2 + $0xc8] sm:$0x80] %v837
  %880 = vst [vmem:[#allocation2 + $0xd0] sm:$0x80] %v838
  %881 = vst [vmem:[#allocation2 + $0xd8] sm:$0x80] %v839
  %882 = vst [vmem:[#allocation2 + $0xe0] sm:$0x80] %v840
  %883 = vst [vmem:[#allocation2 + $0xe8] sm:$0x80] %v841
  %884 = vst [vmem:[#allocation2 + $0xf0] sm:$0x80] %v842
  %885 = vst [vmem:[#allocation2 + $0xf8] sm:$0x80] %v843
  %886 = vst [vmem:[#allocation2 + $0x100] sm:$0x80] %v844
  %887 = vst [vmem:[#allocation2 + $0x108] sm:$0x80] %v845
  %888 = vst [vmem:[#allocation2 + $0x110] sm:$0x80] %v846
  %889 = vst [vmem:[#allocation2 + $0x118] sm:$0x80] %v847
  %890 = vst [vmem:[#allocation2 + $0x120] sm:$0x80] %v848
  %891 = vst [vmem:[#allocation2 + $0x128] sm:$0x80] %v849
  %892 = vst [vmem:[#allocation2 + $0x130] sm:$0x80] %v850
  %893 = vst [vmem:[#allocation2 + $0x138] sm:$0x80] %v851
  %894 = vst [vmem:[#allocation2 + $0x140] sm:$0x80] %v852
  %895 = vst [vmem:[#allocation2 + $0x148] sm:$0x80] %v853
  %896 = vst [vmem:[#allocation2 + $0x150] sm:$0x3] %v833
  %897 = vst [vmem:[#allocation2 + $0x158] sm:$0x3] %v834
  %898 = vst [vmem:[#allocation2 + $0x160] sm:$0x3] %v835
  %899 = vst [vmem:[#allocation2 + $0x168] sm:$0x3] %v836
  %900 = vst [vmem:[#allocation2 + $0x170] sm:$0x3] %v837
  %901 = vst [vmem:[#allocation2 + $0x178] sm:$0x3] %v838
  %902 = vst [vmem:[#allocation2 + $0x180] sm:$0x3] %v839
  %903 = vst [vmem:[#allocation2 + $0x188] sm:$0x3] %v840
  %904 = vst [vmem:[#allocation2 + $0x190] sm:$0x3] %v841
  %905 = vst [vmem:[#allocation2 + $0x198] sm:$0x3] %v842
  %906 = vst [vmem:[#allocation2 + $0x1a0] sm:$0x3] %v843
  %907 = vst [vmem:[#allocation2 + $0x1a8] sm:$0x3] %v844
  %908 = vst [vmem:[#allocation2 + $0x1b0] sm:$0x3] %v845
  %909 = vst [vmem:[#allocation2 + $0x1b8] sm:$0x3] %v846
  %910 = vst [vmem:[#allocation2 + $0x1c0] sm:$0x3] %v847
  %911 = vst [vmem:[#allocation2 + $0x1c8] sm:$0x3] %v848
  %912 = vst [vmem:[#allocation2 + $0x1d0] sm:$0x3] %v849
  %913 = vst [vmem:[#allocation2 + $0x1d8] sm:$0x3] %v850
  %914 = vst [vmem:[#allocation2 + $0x1e0] sm:$0x3] %v851
  %915 = vst [vmem:[#allocation2 + $0x1e8] sm:$0x3] %v852
  %916 = vst [vmem:[#allocation2 + $0x1f0] sm:$0x3] %v853
  %v917 = vld [vmem:[%s0] sm:$0x77]
  %v918 = vld [vmem:[%s0 + $0x8] sm:$0x77]
  %v919 = vld [vmem:[%s0 + $0x10] sm:$0x77]
  %v920 = vld [vmem:[%s0 + $0x18] sm:$0x77]
  %v921 = vld [vmem:[%s0 + $0x20] sm:$0x77]
  %v922 = vld [vmem:[%s0 + $0x28] sm:$0x77]
  %v923 = vld [vmem:[%s0 + $0x30] sm:$0x77]
  %v924 = vld [vmem:[%s0 + $0x38] sm:$0x77]
  %v925 = vld [vmem:[%s0 + $0x40] sm:$0x77]
  %v926 = vld [vmem:[%s0 + $0x48] sm:$0x77]
  %v927 = vld [vmem:[%s0 + $0x50] sm:$0x77]
  %v939 = vcombine.high %v917, %v917
  %v940 = vcombine.high %v918, %v918
  %v941 = vcombine.high %v919, %v919
  %v942 = vcombine.high %v920, %v920
  %v943 = vcombine.high %v921, %v921
  %v944 = vcombine.high %v922, %v922
  %v945 = vcombine.high %v923, %v923
  %v946 = vcombine.high %v924, %v924
  %v947 = vcombine.high %v925, %v925
  %v948 = vcombine.high %v926, %v926
  %v949 = vcombine.high %v927, %v927
  %v950 = vrot.slane %v917, 6
  %v951 = vrot.slane %v939, 6
  %v952 = vrot.slane %v918, 6
  %v953 = vrot.slane %v940, 6
  %v954 = vrot.slane %v919, 6
  %v955 = vrot.slane %v941, 6
  %v956 = vrot.slane %v920, 6
  %v957 = vrot.slane %v942, 6
  %v958 = vrot.slane %v921, 6
  %v959 = vrot.slane %v943, 6
  %v960 = vrot.slane %v922, 6
  %v961 = vrot.slane %v944, 6
  %v962 = vrot.slane %v923, 6
  %v963 = vrot.slane %v945, 6
  %v964 = vrot.slane %v924, 6
  %v965 = vrot.slane %v946, 6
  %v966 = vrot.slane %v925, 6
  %v967 = vrot.slane %v947, 6
  %v968 = vrot.slane %v926, 6
  %v969 = vrot.slane %v948, 6
  %v970 = vrot.slane %v927, 6
  %v971 = vrot.slane %v949, 6
  %972 = vrot.lane.b32.xlu0 %v950, 95
  %v973 = vpop.permute.xlu0 %972
  %974 = vrot.lane.b32.xlu0 %v951, 95
  %v975 = vpop.permute.xlu0 %974
  %976 = vrot.lane.b32.xlu0 %v952, 95
  %v977 = vpop.permute.xlu0 %976
  %978 = vrot.lane.b32.xlu0 %v953, 95
  %v979 = vpop.permute.xlu0 %978
  %980 = vrot.lane.b32.xlu0 %v954, 95
  %v981 = vpop.permute.xlu0 %980
  %982 = vrot.lane.b32.xlu0 %v955, 95
  %v983 = vpop.permute.xlu0 %982
  %984 = vrot.lane.b32.xlu0 %v956, 95
  %v985 = vpop.permute.xlu0 %984
  %986 = vrot.lane.b32.xlu0 %v957, 95
  %v987 = vpop.permute.xlu0 %986
  %988 = vrot.lane.b32.xlu0 %v958, 95
  %v989 = vpop.permute.xlu0 %988
  %990 = vrot.lane.b32.xlu0 %v959, 95
  %v991 = vpop.permute.xlu0 %990
  %992 = vrot.lane.b32.xlu0 %v960, 95
  %v993 = vpop.permute.xlu0 %992
  %994 = vrot.lane.b32.xlu0 %v961, 95
  %v995 = vpop.permute.xlu0 %994
  %996 = vrot.lane.b32.xlu0 %v962, 95
  %v997 = vpop.permute.xlu0 %996
  %998 = vrot.lane.b32.xlu0 %v963, 95
  %v999 = vpop.permute.xlu0 %998
  %1000 = vrot.lane.b32.xlu0 %v964, 95
  %v1001 = vpop.permute.xlu0 %1000
  %1002 = vrot.lane.b32.xlu0 %v965, 95
  %v1003 = vpop.permute.xlu0 %1002
  %1004 = vrot.lane.b32.xlu0 %v966, 95
  %v1005 = vpop.permute.xlu0 %1004
  %1006 = vrot.lane.b32.xlu0 %v967, 95
  %v1007 = vpop.permute.xlu0 %1006
  %1008 = vrot.lane.b32.xlu0 %v968, 95
  %v1009 = vpop.permute.xlu0 %1008
  %1010 = vrot.lane.b32.xlu0 %v969, 95
  %v1011 = vpop.permute.xlu0 %1010
  %1012 = vrot.lane.b32.xlu0 %v970, 95
  %v1013 = vpop.permute.xlu0 %1012
  %1014 = vrot.lane.b32.xlu0 %v971, 95
  %v1015 = vpop.permute.xlu0 %1014
  %vm1016 = vcmask 777216
  %v1017 = vsel %vm1016, %v973, %v975
  %v1018 = vsel %vm1016, %v975, %v977
  %v1019 = vsel %vm1016, %v977, %v979
  %v1020 = vsel %vm1016, %v979, %v981
  %v1021 = vsel %vm1016, %v981, %v983
  %v1022 = vsel %vm1016, %v983, %v985
  %v1023 = vsel %vm1016, %v985, %v987
  %v1024 = vsel %vm1016, %v987, %v989
  %v1025 = vsel %vm1016, %v989, %v991
  %v1026 = vsel %vm1016, %v991, %v993
  %v1027 = vsel %vm1016, %v993, %v995
  %v1028 = vsel %vm1016, %v995, %v997
  %v1029 = vsel %vm1016, %v997, %v999
  %v1030 = vsel %vm1016, %v999, %v1001
  %v1031 = vsel %vm1016, %v1001, %v1003
  %v1032 = vsel %vm1016, %v1003, %v1005
  %v1033 = vsel %vm1016, %v1005, %v1007
  %v1034 = vsel %vm1016, %v1007, %v1009
  %v1035 = vsel %vm1016, %v1009, %v1011
  %v1036 = vsel %vm1016, %v1011, %v1013
  %v1037 = vsel %vm1016, %v1013, %v1015
  %1059 = vst [vmem:[#allocation2 + $0x150] sm:$0x1c] %v1017
  %1060 = vst [vmem:[#allocation2 + $0x158] sm:$0x1c] %v1018
  %1061 = vst [vmem:[#allocation2 + $0x160] sm:$0x1c] %v1019
  %1062 = vst [vmem:[#allocation2 + $0x168] sm:$0x1c] %v1020
  %1063 = vst [vmem:[#allocation2 + $0x170] sm:$0x1c] %v1021
  %1064 = vst [vmem:[#allocation2 + $0x178] sm:$0x1c] %v1022
  %1065 = vst [vmem:[#allocation2 + $0x180] sm:$0x1c] %v1023
  %1066 = vst [vmem:[#allocation2 + $0x188] sm:$0x1c] %v1024
  %1067 = vst [vmem:[#allocation2 + $0x190] sm:$0x1c] %v1025
  %1068 = vst [vmem:[#allocation2 + $0x198] sm:$0x1c] %v1026
  %1069 = vst [vmem:[#allocation2 + $0x1a0] sm:$0x1c] %v1027
  %1070 = vst [vmem:[#allocation2 + $0x1a8] sm:$0x1c] %v1028
  %1071 = vst [vmem:[#allocation2 + $0x1b0] sm:$0x1c] %v1029
  %1072 = vst [vmem:[#allocation2 + $0x1b8] sm:$0x1c] %v1030
  %1073 = vst [vmem:[#allocation2 + $0x1c0] sm:$0x1c] %v1031
  %1074 = vst [vmem:[#allocation2 + $0x1c8] sm:$0x1c] %v1032
  %1075 = vst [vmem:[#allocation2 + $0x1d0] sm:$0x1c] %v1033
  %1076 = vst [vmem:[#allocation2 + $0x1d8] sm:$0x1c] %v1034
  %1077 = vst [vmem:[#allocation2 + $0x1e0] sm:$0x1c] %v1035
  %1078 = vst [vmem:[#allocation2 + $0x1e8] sm:$0x1c] %v1036
  %1079 = vst [vmem:[#allocation2 + $0x1f0] sm:$0x1c] %v1037
  %v1080 = vld [vmem:[%s0] sm:$0x77]
  %v1081 = vld [vmem:[%s0 + $0x8] sm:$0x77]
  %v1082 = vld [vmem:[%s0 + $0x10] sm:$0x77]
  %v1083 = vld [vmem:[%s0 + $0x18] sm:$0x77]
  %v1084 = vld [vmem:[%s0 + $0x20] sm:$0x77]
  %v1085 = vld [vmem:[%s0 + $0x28] sm:$0x77]
  %v1086 = vld [vmem:[%s0 + $0x30] sm:$0x77]
  %v1087 = vld [vmem:[%s0 + $0x38] sm:$0x77]
  %v1088 = vld [vmem:[%s0 + $0x40] sm:$0x77]
  %v1089 = vld [vmem:[%s0 + $0x48] sm:$0x77]
  %v1090 = vld [vmem:[%s0 + $0x50] sm:$0x77]
  %v1102 = vcombine.high %v1080, %v1080
  %v1103 = vcombine.high %v1081, %v1081
  %v1104 = vcombine.high %v1082, %v1082
  %v1105 = vcombine.high %v1083, %v1083
  %v1106 = vcombine.high %v1084, %v1084
  %v1107 = vcombine.high %v1085, %v1085
  %v1108 = vcombine.high %v1086, %v1086
  %v1109 = vcombine.high %v1087, %v1087
  %v1110 = vcombine.high %v1088, %v1088
  %v1111 = vcombine.high %v1089, %v1089
  %v1112 = vcombine.high %v1090, %v1090
  %v1113 = vrot.slane %v1080, 3
  %v1114 = vrot.slane %v1102, 3
  %v1115 = vrot.slane %v1081, 3
  %v1116 = vrot.slane %v1103, 3
  %v1117 = vrot.slane %v1082, 3
  %v1118 = vrot.slane %v1104, 3
  %v1119 = vrot.slane %v1083, 3
  %v1120 = vrot.slane %v1105, 3
  %v1121 = vrot.slane %v1084, 3
  %v1122 = vrot.slane %v1106, 3
  %v1123 = vrot.slane %v1085, 3
  %v1124 = vrot.slane %v1107, 3
  %v1125 = vrot.slane %v1086, 3
  %v1126 = vrot.slane %v1108, 3
  %v1127 = vrot.slane %v1087, 3
  %v1128 = vrot.slane %v1109, 3
  %v1129 = vrot.slane %v1088, 3
  %v1130 = vrot.slane %v1110, 3
  %v1131 = vrot.slane %v1089, 3
  %v1132 = vrot.slane %v1111, 3
  %v1133 = vrot.slane %v1090, 3
  %v1134 = vrot.slane %v1112, 3
  %1135 = vrot.lane.b32.xlu0 %v1113, 94
  %v1136 = vpop.permute.xlu0 %1135
  %1137 = vrot.lane.b32.xlu0 %v1114, 94
  %v1138 = vpop.permute.xlu0 %1137
  %1139 = vrot.lane.b32.xlu0 %v1115, 94
  %v1140 = vpop.permute.xlu0 %1139
  %1141 = vrot.lane.b32.xlu0 %v1116, 94
  %v1142 = vpop.permute.xlu0 %1141
  %1143 = vrot.lane.b32.xlu0 %v1117, 94
  %v1144 = vpop.permute.xlu0 %1143
  %1145 = vrot.lane.b32.xlu0 %v1118, 94
  %v1146 = vpop.permute.xlu0 %1145
  %1147 = vrot.lane.b32.xlu0 %v1119, 94
  %v1148 = vpop.permute.xlu0 %1147
  %1149 = vrot.lane.b32.xlu0 %v1120, 94
  %v1150 = vpop.permute.xlu0 %1149
  %1151 = vrot.lane.b32.xlu0 %v1121, 94
  %v1152 = vpop.permute.xlu0 %1151
  %1153 = vrot.lane.b32.xlu0 %v1122, 94
  %v1154 = vpop.permute.xlu0 %1153
  %1155 = vrot.lane.b32.xlu0 %v1123, 94
  %v1156 = vpop.permute.xlu0 %1155
  %1157 = vrot.lane.b32.xlu0 %v1124, 94
  %v1158 = vpop.permute.xlu0 %1157
  %1159 = vrot.lane.b32.xlu0 %v1125, 94
  %v1160 = vpop.permute.xlu0 %1159
  %1161 = vrot.lane.b32.xlu0 %v1126, 94
  %v1162 = vpop.permute.xlu0 %1161
  %1163 = vrot.lane.b32.xlu0 %v1127, 94
  %v1164 = vpop.permute.xlu0 %1163
  %1165 = vrot.lane.b32.xlu0 %v1128, 94
  %v1166 = vpop.permute.xlu0 %1165
  %1167 = vrot.lane.b32.xlu0 %v1129, 94
  %v1168 = vpop.permute.xlu0 %1167
  %1169 = vrot.lane.b32.xlu0 %v1130, 94
  %v1170 = vpop.permute.xlu0 %1169
  %1171 = vrot.lane.b32.xlu0 %v1131, 94
  %v1172 = vpop.permute.xlu0 %1171
  %1173 = vrot.lane.b32.xlu0 %v1132, 94
  %v1174 = vpop.permute.xlu0 %1173
  %1175 = vrot.lane.b32.xlu0 %v1133, 94
  %v1176 = vpop.permute.xlu0 %1175
  %1177 = vrot.lane.b32.xlu0 %v1134, 94
  %v1178 = vpop.permute.xlu0 %1177
  %vm1179 = vcmask 769024
  %v1180 = vsel %vm1179, %v1136, %v1138
  %v1181 = vsel %vm1179, %v1138, %v1140
  %v1182 = vsel %vm1179, %v1140, %v1142
  %v1183 = vsel %vm1179, %v1142, %v1144
  %v1184 = vsel %vm1179, %v1144, %v1146
  %v1185 = vsel %vm1179, %v1146, %v1148
  %v1186 = vsel %vm1179, %v1148, %v1150
  %v1187 = vsel %vm1179, %v1150, %v1152
  %v1188 = vsel %vm1179, %v1152, %v1154
  %v1189 = vsel %vm1179, %v1154, %v1156
  %v1190 = vsel %vm1179, %v1156, %v1158
  %v1191 = vsel %vm1179, %v1158, %v1160
  %v1192 = vsel %vm1179, %v1160, %v1162
  %v1193 = vsel %vm1179, %v1162, %v1164
  %v1194 = vsel %vm1179, %v1164, %v1166
  %v1195 = vsel %vm1179, %v1166, %v1168
  %v1196 = vsel %vm1179, %v1168, %v1170
  %v1197 = vsel %vm1179, %v1170, %v1172
  %v1198 = vsel %vm1179, %v1172, %v1174
  %v1199 = vsel %vm1179, %v1174, %v1176
  %v1200 = vsel %vm1179, %v1176, %v1178
  %1222 = vst [vmem:[#allocation2 + $0x150] sm:$0xe0] %v1180
  %1223 = vst [vmem:[#allocation2 + $0x158] sm:$0xe0] %v1181
  %1224 = vst [vmem:[#allocation2 + $0x160] sm:$0xe0] %v1182
  %1225 = vst [vmem:[#allocation2 + $0x168] sm:$0xe0] %v1183
  %1226 = vst [vmem:[#allocation2 + $0x170] sm:$0xe0] %v1184
  %1227 = vst [vmem:[#allocation2 + $0x178] sm:$0xe0] %v1185
  %1228 = vst [vmem:[#allocation2 + $0x180] sm:$0xe0] %v1186
  %1229 = vst [vmem:[#allocation2 + $0x188] sm:$0xe0] %v1187
  %1230 = vst [vmem:[#allocation2 + $0x190] sm:$0xe0] %v1188
  %1231 = vst [vmem:[#allocation2 + $0x198] sm:$0xe0] %v1189
  %1232 = vst [vmem:[#allocation2 + $0x1a0] sm:$0xe0] %v1190
  %1233 = vst [vmem:[#allocation2 + $0x1a8] sm:$0xe0] %v1191
  %1234 = vst [vmem:[#allocation2 + $0x1b0] sm:$0xe0] %v1192
  %1235 = vst [vmem:[#allocation2 + $0x1b8] sm:$0xe0] %v1193
  %1236 = vst [vmem:[#allocation2 + $0x1c0] sm:$0xe0] %v1194
  %1237 = vst [vmem:[#allocation2 + $0x1c8] sm:$0xe0] %v1195
  %1238 = vst [vmem:[#allocation2 + $0x1d0] sm:$0xe0] %v1196
  %1239 = vst [vmem:[#allocation2 + $0x1d8] sm:$0xe0] %v1197
  %1240 = vst [vmem:[#allocation2 + $0x1e0] sm:$0xe0] %v1198
  %1241 = vst [vmem:[#allocation2 + $0x1e8] sm:$0xe0] %v1199
  %1242 = vst [vmem:[#allocation2 + $0x1f0] sm:$0xe0] %v1200
  %v1243 = vld [vmem:[%s0] sm:$0x77]
  %v1244 = vld [vmem:[%s0 + $0x8] sm:$0x77]
  %v1245 = vld [vmem:[%s0 + $0x10] sm:$0x77]
  %v1246 = vld [vmem:[%s0 + $0x18] sm:$0x77]
  %v1247 = vld [vmem:[%s0 + $0x20] sm:$0x77]
  %v1248 = vld [vmem:[%s0 + $0x28] sm:$0x77]
  %v1249 = vld [vmem:[%s0 + $0x30] sm:$0x77]
  %v1250 = vld [vmem:[%s0 + $0x38] sm:$0x77]
  %v1251 = vld [vmem:[%s0 + $0x40] sm:$0x77]
  %v1252 = vld [vmem:[%s0 + $0x48] sm:$0x77]
  %v1253 = vld [vmem:[%s0 + $0x50] sm:$0x77]
  %v1265 = vcombine.high %v1243, %v1243
  %v1266 = vcombine.high %v1244, %v1244
  %v1267 = vcombine.high %v1245, %v1245
  %v1268 = vcombine.high %v1246, %v1246
  %v1269 = vcombine.high %v1247, %v1247
  %v1270 = vcombine.high %v1248, %v1248
  %v1271 = vcombine.high %v1249, %v1249
  %v1272 = vcombine.high %v1250, %v1250
  %v1273 = vcombine.high %v1251, %v1251
  %v1274 = vcombine.high %v1252, %v1252
  %v1275 = vcombine.high %v1253, %v1253
  %1276 = vrot.lane.b32.xlu0 %v1243, 93
  %v1277 = vpop.permute.xlu0 %1276
  %1278 = vrot.lane.b32.xlu0 %v1265, 93
  %v1279 = vpop.permute.xlu0 %1278
  %1280 = vrot.lane.b32.xlu0 %v1244, 93
  %v1281 = vpop.permute.xlu0 %1280
  %1282 = vrot.lane.b32.xlu0 %v1266, 93
  %v1283 = vpop.permute.xlu0 %1282
  %1284 = vrot.lane.b32.xlu0 %v1245, 93
  %v1285 = vpop.permute.xlu0 %1284
  %1286 = vrot.lane.b32.xlu0 %v1267, 93
  %v1287 = vpop.permute.xlu0 %1286
  %1288 = vrot.lane.b32.xlu0 %v1246, 93
  %v1289 = vpop.permute.xlu0 %1288
  %1290 = vrot.lane.b32.xlu0 %v1268, 93
  %v1291 = vpop.permute.xlu0 %1290
  %1292 = vrot.lane.b32.xlu0 %v1247, 93
  %v1293 = vpop.permute.xlu0 %1292
  %1294 = vrot.lane.b32.xlu0 %v1269, 93
  %v1295 = vpop.permute.xlu0 %1294
  %1296 = vrot.lane.b32.xlu0 %v1248, 93
  %v1297 = vpop.permute.xlu0 %1296
  %1298 = vrot.lane.b32.xlu0 %v1270, 93
  %v1299 = vpop.permute.xlu0 %1298
  %1300 = vrot.lane.b32.xlu0 %v1249, 93
  %v1301 = vpop.permute.xlu0 %1300
  %1302 = vrot.lane.b32.xlu0 %v1271, 93
  %v1303 = vpop.permute.xlu0 %1302
  %1304 = vrot.lane.b32.xlu0 %v1250, 93
  %v1305 = vpop.permute.xlu0 %1304
  %1306 = vrot.lane.b32.xlu0 %v1272, 93
  %v1307 = vpop.permute.xlu0 %1306
  %1308 = vrot.lane.b32.xlu0 %v1251, 93
  %v1309 = vpop.permute.xlu0 %1308
  %1310 = vrot.lane.b32.xlu0 %v1273, 93
  %v1311 = vpop.permute.xlu0 %1310
  %1312 = vrot.lane.b32.xlu0 %v1252, 93
  %v1313 = vpop.permute.xlu0 %1312
  %1314 = vrot.lane.b32.xlu0 %v1274, 93
  %v1315 = vpop.permute.xlu0 %1314
  %1316 = vrot.lane.b32.xlu0 %v1253, 93
  %v1317 = vpop.permute.xlu0 %1316
  %1318 = vrot.lane.b32.xlu0 %v1275, 93
  %v1319 = vpop.permute.xlu0 %1318
  %vm1320 = vcmask 760832
  %v1321 = vsel %vm1320, %v1277, %v1279
  %v1322 = vsel %vm1320, %v1279, %v1281
  %v1323 = vsel %vm1320, %v1281, %v1283
  %v1324 = vsel %vm1320, %v1283, %v1285
  %v1325 = vsel %vm1320, %v1285, %v1287
  %v1326 = vsel %vm1320, %v1287, %v1289
  %v1327 = vsel %vm1320, %v1289, %v1291
  %v1328 = vsel %vm1320, %v1291, %v1293
  %v1329 = vsel %vm1320, %v1293, %v1295
  %v1330 = vsel %vm1320, %v1295, %v1297
  %v1331 = vsel %vm1320, %v1297, %v1299
  %v1332 = vsel %vm1320, %v1299, %v1301
  %v1333 = vsel %vm1320, %v1301, %v1303
  %v1334 = vsel %vm1320, %v1303, %v1305
  %v1335 = vsel %vm1320, %v1305, %v1307
  %v1336 = vsel %vm1320, %v1307, %v1309
  %v1337 = vsel %vm1320, %v1309, %v1311
  %v1338 = vsel %vm1320, %v1311, %v1313
  %v1339 = vsel %vm1320, %v1313, %v1315
  %v1340 = vsel %vm1320, %v1315, %v1317
  %v1341 = vsel %vm1320, %v1317, %v1319
  %1363 = vst [vmem:[#allocation2 + $0x1f8] sm:$0x7] %v1321
  %1364 = vst [vmem:[#allocation2 + $0x200] sm:$0x7] %v1322
  %1365 = vst [vmem:[#allocation2 + $0x208] sm:$0x7] %v1323
  %1366 = vst [vmem:[#allocation2 + $0x210] sm:$0x7] %v1324
  %1367 = vst [vmem:[#allocation2 + $0x218] sm:$0x7] %v1325
  %1368 = vst [vmem:[#allocation2 + $0x220] sm:$0x7] %v1326
  %1369 = vst [vmem:[#allocation2 + $0x228] sm:$0x7] %v1327
  %1370 = vst [vmem:[#allocation2 + $0x230] sm:$0x7] %v1328
  %1371 = vst [vmem:[#allocation2 + $0x238] sm:$0x7] %v1329
  %1372 = vst [vmem:[#allocation2 + $0x240] sm:$0x7] %v1330
  %1373 = vst [vmem:[#allocation2 + $0x248] sm:$0x7] %v1331
  %1374 = vst [vmem:[#allocation2 + $0x250] sm:$0x7] %v1332
  %1375 = vst [vmem:[#allocation2 + $0x258] sm:$0x7] %v1333
  %1376 = vst [vmem:[#allocation2 + $0x260] sm:$0x7] %v1334
  %1377 = vst [vmem:[#allocation2 + $0x268] sm:$0x7] %v1335
  %1378 = vst [vmem:[#allocation2 + $0x270] sm:$0x7] %v1336
  %1379 = vst [vmem:[#allocation2 + $0x278] sm:$0x7] %v1337
  %1380 = vst [vmem:[#allocation2 + $0x280] sm:$0x7] %v1338
  %1381 = vst [vmem:[#allocation2 + $0x288] sm:$0x7] %v1339
  %1382 = vst [vmem:[#allocation2 + $0x290] sm:$0x7] %v1340
  %1383 = vst [vmem:[#allocation2 + $0x298] sm:$0x7] %v1341
  %v1384 = vld [vmem:[%s0] sm:$0x77]
  %v1385 = vld [vmem:[%s0 + $0x8] sm:$0x77]
  %v1386 = vld [vmem:[%s0 + $0x10] sm:$0x77]
  %v1387 = vld [vmem:[%s0 + $0x18] sm:$0x77]
  %v1388 = vld [vmem:[%s0 + $0x20] sm:$0x77]
  %v1389 = vld [vmem:[%s0 + $0x28] sm:$0x77]
  %v1390 = vld [vmem:[%s0 + $0x30] sm:$0x77]
  %v1391 = vld [vmem:[%s0 + $0x38] sm:$0x77]
  %v1392 = vld [vmem:[%s0 + $0x40] sm:$0x77]
  %v1393 = vld [vmem:[%s0 + $0x48] sm:$0x77]
  %v1394 = vld [vmem:[%s0 + $0x50] sm:$0x77]
  %v1406 = vcombine.high %v1384, %v1384
  %v1407 = vcombine.high %v1385, %v1385
  %v1408 = vcombine.high %v1386, %v1386
  %v1409 = vcombine.high %v1387, %v1387
  %v1410 = vcombine.high %v1388, %v1388
  %v1411 = vcombine.high %v1389, %v1389
  %v1412 = vcombine.high %v1390, %v1390
  %v1413 = vcombine.high %v1391, %v1391
  %v1414 = vcombine.high %v1392, %v1392
  %v1415 = vcombine.high %v1393, %v1393
  %v1416 = vcombine.high %v1394, %v1394
  %v1417 = vrot.slane %v1384, 5
  %v1418 = vrot.slane %v1406, 5
  %v1419 = vrot.slane %v1385, 5
  %v1420 = vrot.slane %v1407, 5
  %v1421 = vrot.slane %v1386, 5
  %v1422 = vrot.slane %v1408, 5
  %v1423 = vrot.slane %v1387, 5
  %v1424 = vrot.slane %v1409, 5
  %v1425 = vrot.slane %v1388, 5
  %v1426 = vrot.slane %v1410, 5
  %v1427 = vrot.slane %v1389, 5
  %v1428 = vrot.slane %v1411, 5
  %v1429 = vrot.slane %v1390, 5
  %v1430 = vrot.slane %v1412, 5
  %v1431 = vrot.slane %v1391, 5
  %v1432 = vrot.slane %v1413, 5
  %v1433 = vrot.slane %v1392, 5
  %v1434 = vrot.slane %v1414, 5
  %v1435 = vrot.slane %v1393, 5
  %v1436 = vrot.slane %v1415, 5
  %v1437 = vrot.slane %v1394, 5
  %v1438 = vrot.slane %v1416, 5
  %1439 = vrot.lane.b32.xlu0 %v1417, 92
  %v1440 = vpop.permute.xlu0 %1439
  %1441 = vrot.lane.b32.xlu0 %v1418, 92
  %v1442 = vpop.permute.xlu0 %1441
  %1443 = vrot.lane.b32.xlu0 %v1419, 92
  %v1444 = vpop.permute.xlu0 %1443
  %1445 = vrot.lane.b32.xlu0 %v1420, 92
  %v1446 = vpop.permute.xlu0 %1445
  %1447 = vrot.lane.b32.xlu0 %v1421, 92
  %v1448 = vpop.permute.xlu0 %1447
  %1449 = vrot.lane.b32.xlu0 %v1422, 92
  %v1450 = vpop.permute.xlu0 %1449
  %1451 = vrot.lane.b32.xlu0 %v1423, 92
  %v1452 = vpop.permute.xlu0 %1451
  %1453 = vrot.lane.b32.xlu0 %v1424, 92
  %v1454 = vpop.permute.xlu0 %1453
  %1455 = vrot.lane.b32.xlu0 %v1425, 92
  %v1456 = vpop.permute.xlu0 %1455
  %1457 = vrot.lane.b32.xlu0 %v1426, 92
  %v1458 = vpop.permute.xlu0 %1457
  %1459 = vrot.lane.b32.xlu0 %v1427, 92
  %v1460 = vpop.permute.xlu0 %1459
  %1461 = vrot.lane.b32.xlu0 %v1428, 92
  %v1462 = vpop.permute.xlu0 %1461
  %1463 = vrot.lane.b32.xlu0 %v1429, 92
  %v1464 = vpop.permute.xlu0 %1463
  %1465 = vrot.lane.b32.xlu0 %v1430, 92
  %v1466 = vpop.permute.xlu0 %1465
  %1467 = vrot.lane.b32.xlu0 %v1431, 92
  %v1468 = vpop.permute.xlu0 %1467
  %1469 = vrot.lane.b32.xlu0 %v1432, 92
  %v1470 = vpop.permute.xlu0 %1469
  %1471 = vrot.lane.b32.xlu0 %v1433, 92
  %v1472 = vpop.permute.xlu0 %1471
  %1473 = vrot.lane.b32.xlu0 %v1434, 92
  %v1474 = vpop.permute.xlu0 %1473
  %1475 = vrot.lane.b32.xlu0 %v1435, 92
  %v1476 = vpop.permute.xlu0 %1475
  %1477 = vrot.lane.b32.xlu0 %v1436, 92
  %v1478 = vpop.permute.xlu0 %1477
  %1479 = vrot.lane.b32.xlu0 %v1437, 92
  %v1480 = vpop.permute.xlu0 %1479
  %1481 = vrot.lane.b32.xlu0 %v1438, 92
  %v1482 = vpop.permute.xlu0 %1481
  %vm1483 = vcmask 752640
  %v1484 = vsel %vm1483, %v1440, %v1442
  %v1485 = vsel %vm1483, %v1442, %v1444
  %v1486 = vsel %vm1483, %v1444, %v1446
  %v1487 = vsel %vm1483, %v1446, %v1448
  %v1488 = vsel %vm1483, %v1448, %v1450
  %v1489 = vsel %vm1483, %v1450, %v1452
  %v1490 = vsel %vm1483, %v1452, %v1454
  %v1491 = vsel %vm1483, %v1454, %v1456
  %v1492 = vsel %vm1483, %v1456, %v1458
  %v1493 = vsel %vm1483, %v1458, %v1460
  %v1494 = vsel %vm1483, %v1460, %v1462
  %v1495 = vsel %vm1483, %v1462, %v1464
  %v1496 = vsel %vm1483, %v1464, %v1466
  %v1497 = vsel %vm1483, %v1466, %v1468
  %v1498 = vsel %vm1483, %v1468, %v1470
  %v1499 = vsel %vm1483, %v1470, %v1472
  %v1500 = vsel %vm1483, %v1472, %v1474
  %v1501 = vsel %vm1483, %v1474, %v1476
  %v1502 = vsel %vm1483, %v1476, %v1478
  %v1503 = vsel %vm1483, %v1478, %v1480
  %v1504 = vsel %vm1483, %v1480, %v1482
  %1526 = vst [vmem:[#allocation2 + $0x1f8] sm:$0x38] %v1484
  %1527 = vst [vmem:[#allocation2 + $0x200] sm:$0x38] %v1485
  %1528 = vst [vmem:[#allocation2 + $0x208] sm:$0x38] %v1486
  %1529 = vst [vmem:[#allocation2 + $0x210] sm:$0x38] %v1487
  %1530 = vst [vmem:[#allocation2 + $0x218] sm:$0x38] %v1488
  %1531 = vst [vmem:[#allocation2 + $0x220] sm:$0x38] %v1489
  %1532 = vst [vmem:[#allocation2 + $0x228] sm:$0x38] %v1490
  %1533 = vst [vmem:[#allocation2 + $0x230] sm:$0x38] %v1491
  %1534 = vst [vmem:[#allocation2 + $0x238] sm:$0x38] %v1492
  %1535 = vst [vmem:[#allocation2 + $0x240] sm:$0x38] %v1493
  %1536 = vst [vmem:[#allocation2 + $0x248] sm:$0x38] %v1494
  %1537 = vst [vmem:[#allocation2 + $0x250] sm:$0x38] %v1495
  %1538 = vst [vmem:[#allocation2 + $0x258] sm:$0x38] %v1496
  %1539 = vst [vmem:[#allocation2 + $0x260] sm:$0x38] %v1497
  %1540 = vst [vmem:[#allocation2 + $0x268] sm:$0x38] %v1498
  %1541 = vst [vmem:[#allocation2 + $0x270] sm:$0x38] %v1499
  %1542 = vst [vmem:[#allocation2 + $0x278] sm:$0x38] %v1500
  %1543 = vst [vmem:[#allocation2 + $0x280] sm:$0x38] %v1501
  %1544 = vst [vmem:[#allocation2 + $0x288] sm:$0x38] %v1502
  %1545 = vst [vmem:[#allocation2 + $0x290] sm:$0x38] %v1503
  %1546 = vst [vmem:[#allocation2 + $0x298] sm:$0x38] %v1504
  %v1547 = vld [vmem:[%s0] sm:$0x77]
  %v1548 = vld [vmem:[%s0 + $0x8] sm:$0x77]
  %v1549 = vld [vmem:[%s0 + $0x10] sm:$0x77]
  %v1550 = vld [vmem:[%s0 + $0x18] sm:$0x77]
  %v1551 = vld [vmem:[%s0 + $0x20] sm:$0x77]
  %v1552 = vld [vmem:[%s0 + $0x28] sm:$0x77]
  %v1553 = vld [vmem:[%s0 + $0x30] sm:$0x77]
  %v1554 = vld [vmem:[%s0 + $0x38] sm:$0x77]
  %v1555 = vld [vmem:[%s0 + $0x40] sm:$0x77]
  %v1556 = vld [vmem:[%s0 + $0x48] sm:$0x77]
  %v1557 = vld [vmem:[%s0 + $0x50] sm:$0x77]
  %v1569 = vcombine.high %v1547, %v1547
  %v1570 = vcombine.high %v1548, %v1548
  %v1571 = vcombine.high %v1549, %v1549
  %v1572 = vcombine.high %v1550, %v1550
  %v1573 = vcombine.high %v1551, %v1551
  %v1574 = vcombine.high %v1552, %v1552
  %v1575 = vcombine.high %v1553, %v1553
  %v1576 = vcombine.high %v1554, %v1554
  %v1577 = vcombine.high %v1555, %v1555
  %v1578 = vcombine.high %v1556, %v1556
  %v1579 = vcombine.high %v1557, %v1557
  %v1580 = vrot.slane %v1547, 2
  %v1581 = vrot.slane %v1569, 2
  %v1582 = vrot.slane %v1548, 2
  %v1583 = vrot.slane %v1570, 2
  %v1584 = vrot.slane %v1549, 2
  %v1585 = vrot.slane %v1571, 2
  %v1586 = vrot.slane %v1550, 2
  %v1587 = vrot.slane %v1572, 2
  %v1588 = vrot.slane %v1551, 2
  %v1589 = vrot.slane %v1573, 2
  %v1590 = vrot.slane %v1552, 2
  %v1591 = vrot.slane %v1574, 2
  %v1592 = vrot.slane %v1553, 2
  %v1593 = vrot.slane %v1575, 2
  %v1594 = vrot.slane %v1554, 2
  %v1595 = vrot.slane %v1576, 2
  %v1596 = vrot.slane %v1555, 2
  %v1597 = vrot.slane %v1577, 2
  %v1598 = vrot.slane %v1556, 2
  %v1599 = vrot.slane %v1578, 2
  %v1600 = vrot.slane %v1557, 2
  %v1601 = vrot.slane %v1579, 2
  %1602 = vrot.lane.b32.xlu0 %v1580, 64
  %v1603 = vpop.permute.xlu0 %1602
  %1604 = vrot.lane.b32.xlu0 %v1581, 64
  %v1605 = vpop.permute.xlu0 %1604
  %1606 = vrot.lane.b32.xlu0 %v1582, 64
  %v1607 = vpop.permute.xlu0 %1606
  %1608 = vrot.lane.b32.xlu0 %v1583, 64
  %v1609 = vpop.permute.xlu0 %1608
  %1610 = vrot.lane.b32.xlu0 %v1584, 64
  %v1611 = vpop.permute.xlu0 %1610
  %1612 = vrot.lane.b32.xlu0 %v1585, 64
  %v1613 = vpop.permute.xlu0 %1612
  %1614 = vrot.lane.b32.xlu0 %v1586, 64
  %v1615 = vpop.permute.xlu0 %1614
  %1616 = vrot.lane.b32.xlu0 %v1587, 64
  %v1617 = vpop.permute.xlu0 %1616
  %1618 = vrot.lane.b32.xlu0 %v1588, 64
  %v1619 = vpop.permute.xlu0 %1618
  %1620 = vrot.lane.b32.xlu0 %v1589, 64
  %v1621 = vpop.permute.xlu0 %1620
  %1622 = vrot.lane.b32.xlu0 %v1590, 64
  %v1623 = vpop.permute.xlu0 %1622
  %1624 = vrot.lane.b32.xlu0 %v1591, 64
  %v1625 = vpop.permute.xlu0 %1624
  %1626 = vrot.lane.b32.xlu0 %v1592, 64
  %v1627 = vpop.permute.xlu0 %1626
  %1628 = vrot.lane.b32.xlu0 %v1593, 64
  %v1629 = vpop.permute.xlu0 %1628
  %1630 = vrot.lane.b32.xlu0 %v1594, 64
  %v1631 = vpop.permute.xlu0 %1630
  %1632 = vrot.lane.b32.xlu0 %v1595, 64
  %v1633 = vpop.permute.xlu0 %1632
  %1634 = vrot.lane.b32.xlu0 %v1596, 64
  %v1635 = vpop.permute.xlu0 %1634
  %1636 = vrot.lane.b32.xlu0 %v1597, 64
  %v1637 = vpop.permute.xlu0 %1636
  %1638 = vrot.lane.b32.xlu0 %v1598, 64
  %v1639 = vpop.permute.xlu0 %1638
  %1640 = vrot.lane.b32.xlu0 %v1599, 64
  %v1641 = vpop.permute.xlu0 %1640
  %1642 = vrot.lane.b32.xlu0 %v1600, 64
  %v1643 = vpop.permute.xlu0 %1642
  %1644 = vrot.lane.b32.xlu0 %v1601, 64
  %v1645 = vpop.permute.xlu0 %1644
  %vm1646 = vcmask 523264
  %v1647 = vsel %vm1646, %v1603, %v1605
  %v1648 = vsel %vm1646, %v1605, %v1607
  %v1649 = vsel %vm1646, %v1607, %v1609
  %v1650 = vsel %vm1646, %v1609, %v1611
  %v1651 = vsel %vm1646, %v1611, %v1613
  %v1652 = vsel %vm1646, %v1613, %v1615
  %v1653 = vsel %vm1646, %v1615, %v1617
  %v1654 = vsel %vm1646, %v1617, %v1619
  %v1655 = vsel %vm1646, %v1619, %v1621
  %v1656 = vsel %vm1646, %v1621, %v1623
  %v1657 = vsel %vm1646, %v1623, %v1625
  %v1658 = vsel %vm1646, %v1625, %v1627
  %v1659 = vsel %vm1646, %v1627, %v1629
  %v1660 = vsel %vm1646, %v1629, %v1631
  %v1661 = vsel %vm1646, %v1631, %v1633
  %v1662 = vsel %vm1646, %v1633, %v1635
  %v1663 = vsel %vm1646, %v1635, %v1637
  %v1664 = vsel %vm1646, %v1637, %v1639
  %v1665 = vsel %vm1646, %v1639, %v1641
  %v1666 = vsel %vm1646, %v1641, %v1643
  %v1667 = vsel %vm1646, %v1643, %v1645
  %1689 = vst [vmem:[#allocation2 + $0x1f8] sm:$0xc0] %v1647
  %1690 = vst [vmem:[#allocation2 + $0x200] sm:$0xc0] %v1648
  %1691 = vst [vmem:[#allocation2 + $0x208] sm:$0xc0] %v1649
  %1692 = vst [vmem:[#allocation2 + $0x210] sm:$0xc0] %v1650
  %1693 = vst [vmem:[#allocation2 + $0x218] sm:$0xc0] %v1651
  %1694 = vst [vmem:[#allocation2 + $0x220] sm:$0xc0] %v1652
  %1695 = vst [vmem:[#allocation2 + $0x228] sm:$0xc0] %v1653
  %1696 = vst [vmem:[#allocation2 + $0x230] sm:$0xc0] %v1654
  %1697 = vst [vmem:[#allocation2 + $0x238] sm:$0xc0] %v1655
  %1698 = vst [vmem:[#allocation2 + $0x240] sm:$0xc0] %v1656
  %1699 = vst [vmem:[#allocation2 + $0x248] sm:$0xc0] %v1657
  %1700 = vst [vmem:[#allocation2 + $0x250] sm:$0xc0] %v1658
  %1701 = vst [vmem:[#allocation2 + $0x258] sm:$0xc0] %v1659
  %1702 = vst [vmem:[#allocation2 + $0x260] sm:$0xc0] %v1660
  %1703 = vst [vmem:[#allocation2 + $0x268] sm:$0xc0] %v1661
  %1704 = vst [vmem:[#allocation2 + $0x270] sm:$0xc0] %v1662
  %1705 = vst [vmem:[#allocation2 + $0x278] sm:$0xc0] %v1663
  %1706 = vst [vmem:[#allocation2 + $0x280] sm:$0xc0] %v1664
  %1707 = vst [vmem:[#allocation2 + $0x288] sm:$0xc0] %v1665
  %1708 = vst [vmem:[#allocation2 + $0x290] sm:$0xc0] %v1666
  %1709 = vst [vmem:[#allocation2 + $0x298] sm:$0xc0] %v1667
  %1710 = vst [vmem:[#allocation2 + $0x2a0] sm:$0x1] %v1647
  %1711 = vst [vmem:[#allocation2 + $0x2a8] sm:$0x1] %v1648
  %1712 = vst [vmem:[#allocation2 + $0x2b0] sm:$0x1] %v1649
  %1713 = vst [vmem:[#allocation2 + $0x2b8] sm:$0x1] %v1650
  %1714 = vst [vmem:[#allocation2 + $0x2c0] sm:$0x1] %v1651
  %1715 = vst [vmem:[#allocation2 + $0x2c8] sm:$0x1] %v1652
  %1716 = vst [vmem:[#allocation2 + $0x2d0] sm:$0x1] %v1653
  %1717 = vst [vmem:[#allocation2 + $0x2d8] sm:$0x1] %v1654
  %1718 = vst [vmem:[#allocation2 + $0x2e0] sm:$0x1] %v1655
  %1719 = vst [vmem:[#allocation2 + $0x2e8] sm:$0x1] %v1656
  %1720 = vst [vmem:[#allocation2 + $0x2f0] sm:$0x1] %v1657
  %1721 = vst [vmem:[#allocation2 + $0x2f8] sm:$0x1] %v1658
  %1722 = vst [vmem:[#allocation2 + $0x300] sm:$0x1] %v1659
  %1723 = vst [vmem:[#allocation2 + $0x308] sm:$0x1] %v1660
  %1724 = vst [vmem:[#allocation2 + $0x310] sm:$0x1] %v1661
  %1725 = vst [vmem:[#allocation2 + $0x318] sm:$0x1] %v1662
  %1726 = vst [vmem:[#allocation2 + $0x320] sm:$0x1] %v1663
  %1727 = vst [vmem:[#allocation2 + $0x328] sm:$0x1] %v1664
  %1728 = vst [vmem:[#allocation2 + $0x330] sm:$0x1] %v1665
  %1729 = vst [vmem:[#allocation2 + $0x338] sm:$0x1] %v1666
  %1730 = vst [vmem:[#allocation2 + $0x340] sm:$0x1] %v1667
  %v1731 = vld [vmem:[%s0] sm:$0x77]
  %v1732 = vld [vmem:[%s0 + $0x8] sm:$0x77]
  %v1733 = vld [vmem:[%s0 + $0x10] sm:$0x77]
  %v1734 = vld [vmem:[%s0 + $0x18] sm:$0x77]
  %v1735 = vld [vmem:[%s0 + $0x20] sm:$0x77]
  %v1736 = vld [vmem:[%s0 + $0x28] sm:$0x77]
  %v1737 = vld [vmem:[%s0 + $0x30] sm:$0x77]
  %v1738 = vld [vmem:[%s0 + $0x38] sm:$0x77]
  %v1739 = vld [vmem:[%s0 + $0x40] sm:$0x77]
  %v1740 = vld [vmem:[%s0 + $0x48] sm:$0x77]
  %v1741 = vld [vmem:[%s0 + $0x50] sm:$0x77]
  %v1753 = vcombine.high %v1731, %v1731
  %v1754 = vcombine.high %v1732, %v1732
  %v1755 = vcombine.high %v1733, %v1733
  %v1756 = vcombine.high %v1734, %v1734
  %v1757 = vcombine.high %v1735, %v1735
  %v1758 = vcombine.high %v1736, %v1736
  %v1759 = vcombine.high %v1737, %v1737
  %v1760 = vcombine.high %v1738, %v1738
  %v1761 = vcombine.high %v1739, %v1739
  %v1762 = vcombine.high %v1740, %v1740
  %v1763 = vcombine.high %v1741, %v1741
  %v1764 = vrot.slane %v1731, 7
  %v1765 = vrot.slane %v1753, 7
  %v1766 = vrot.slane %v1732, 7
  %v1767 = vrot.slane %v1754, 7
  %v1768 = vrot.slane %v1733, 7
  %v1769 = vrot.slane %v1755, 7
  %v1770 = vrot.slane %v1734, 7
  %v1771 = vrot.slane %v1756, 7
  %v1772 = vrot.slane %v1735, 7
  %v1773 = vrot.slane %v1757, 7
  %v1774 = vrot.slane %v1736, 7
  %v1775 = vrot.slane %v1758, 7
  %v1776 = vrot.slane %v1737, 7
  %v1777 = vrot.slane %v1759, 7
  %v1778 = vrot.slane %v1738, 7
  %v1779 = vrot.slane %v1760, 7
  %v1780 = vrot.slane %v1739, 7
  %v1781 = vrot.slane %v1761, 7
  %v1782 = vrot.slane %v1740, 7
  %v1783 = vrot.slane %v1762, 7
  %v1784 = vrot.slane %v1741, 7
  %v1785 = vrot.slane %v1763, 7
  %1786 = vrot.lane.b32.xlu0 %v1764, 63
  %v1787 = vpop.permute.xlu0 %1786
  %1788 = vrot.lane.b32.xlu0 %v1765, 63
  %v1789 = vpop.permute.xlu0 %1788
  %1790 = vrot.lane.b32.xlu0 %v1766, 63
  %v1791 = vpop.permute.xlu0 %1790
  %1792 = vrot.lane.b32.xlu0 %v1767, 63
  %v1793 = vpop.permute.xlu0 %1792
  %1794 = vrot.lane.b32.xlu0 %v1768, 63
  %v1795 = vpop.permute.xlu0 %1794
  %1796 = vrot.lane.b32.xlu0 %v1769, 63
  %v1797 = vpop.permute.xlu0 %1796
  %1798 = vrot.lane.b32.xlu0 %v1770, 63
  %v1799 = vpop.permute.xlu0 %1798
  %1800 = vrot.lane.b32.xlu0 %v1771, 63
  %v1801 = vpop.permute.xlu0 %1800
  %1802 = vrot.lane.b32.xlu0 %v1772, 63
  %v1803 = vpop.permute.xlu0 %1802
  %1804 = vrot.lane.b32.xlu0 %v1773, 63
  %v1805 = vpop.permute.xlu0 %1804
  %1806 = vrot.lane.b32.xlu0 %v1774, 63
  %v1807 = vpop.permute.xlu0 %1806
  %1808 = vrot.lane.b32.xlu0 %v1775, 63
  %v1809 = vpop.permute.xlu0 %1808
  %1810 = vrot.lane.b32.xlu0 %v1776, 63
  %v1811 = vpop.permute.xlu0 %1810
  %1812 = vrot.lane.b32.xlu0 %v1777, 63
  %v1813 = vpop.permute.xlu0 %1812
  %1814 = vrot.lane.b32.xlu0 %v1778, 63
  %v1815 = vpop.permute.xlu0 %1814
  %1816 = vrot.lane.b32.xlu0 %v1779, 63
  %v1817 = vpop.permute.xlu0 %1816
  %1818 = vrot.lane.b32.xlu0 %v1780, 63
  %v1819 = vpop.permute.xlu0 %1818
  %1820 = vrot.lane.b32.xlu0 %v1781, 63
  %v1821 = vpop.permute.xlu0 %1820
  %1822 = vrot.lane.b32.xlu0 %v1782, 63
  %v1823 = vpop.permute.xlu0 %1822
  %1824 = vrot.lane.b32.xlu0 %v1783, 63
  %v1825 = vpop.permute.xlu0 %1824
  %1826 = vrot.lane.b32.xlu0 %v1784, 63
  %v1827 = vpop.permute.xlu0 %1826
  %1828 = vrot.lane.b32.xlu0 %v1785, 63
  %v1829 = vpop.permute.xlu0 %1828
  %vm1830 = vcmask 515072
  %v1831 = vsel %vm1830, %v1787, %v1789
  %v1832 = vsel %vm1830, %v1789, %v1791
  %v1833 = vsel %vm1830, %v1791, %v1793
  %v1834 = vsel %vm1830, %v1793, %v1795
  %v1835 = vsel %vm1830, %v1795, %v1797
  %v1836 = vsel %vm1830, %v1797, %v1799
  %v1837 = vsel %vm1830, %v1799, %v1801
  %v1838 = vsel %vm1830, %v1801, %v1803
  %v1839 = vsel %vm1830, %v1803, %v1805
  %v1840 = vsel %vm1830, %v1805, %v1807
  %v1841 = vsel %vm1830, %v1807, %v1809
  %v1842 = vsel %vm1830, %v1809, %v1811
  %v1843 = vsel %vm1830, %v1811, %v1813
  %v1844 = vsel %vm1830, %v1813, %v1815
  %v1845 = vsel %vm1830, %v1815, %v1817
  %v1846 = vsel %vm1830, %v1817, %v1819
  %v1847 = vsel %vm1830, %v1819, %v1821
  %v1848 = vsel %vm1830, %v1821, %v1823
  %v1849 = vsel %vm1830, %v1823, %v1825
  %v1850 = vsel %vm1830, %v1825, %v1827
  %v1851 = vsel %vm1830, %v1827, %v1829
  %1873 = vst [vmem:[#allocation2 + $0x2a0] sm:$0xe] %v1831
  %1874 = vst [vmem:[#allocation2 + $0x2a8] sm:$0xe] %v1832
  %1875 = vst [vmem:[#allocation2 + $0x2b0] sm:$0xe] %v1833
  %1876 = vst [vmem:[#allocation2 + $0x2b8] sm:$0xe] %v1834
  %1877 = vst [vmem:[#allocation2 + $0x2c0] sm:$0xe] %v1835
  %1878 = vst [vmem:[#allocation2 + $0x2c8] sm:$0xe] %v1836
  %1879 = vst [vmem:[#allocation2 + $0x2d0] sm:$0xe] %v1837
  %1880 = vst [vmem:[#allocation2 + $0x2d8] sm:$0xe] %v1838
  %1881 = vst [vmem:[#allocation2 + $0x2e0] sm:$0xe] %v1839
  %1882 = vst [vmem:[#allocation2 + $0x2e8] sm:$0xe] %v1840
  %1883 = vst [vmem:[#allocation2 + $0x2f0] sm:$0xe] %v1841
  %1884 = vst [vmem:[#allocation2 + $0x2f8] sm:$0xe] %v1842
  %1885 = vst [vmem:[#allocation2 + $0x300] sm:$0xe] %v1843
  %1886 = vst [vmem:[#allocation2 + $0x308] sm:$0xe] %v1844
  %1887 = vst [vmem:[#allocation2 + $0x310] sm:$0xe] %v1845
  %1888 = vst [vmem:[#allocation2 + $0x318] sm:$0xe] %v1846
  %1889 = vst [vmem:[#allocation2 + $0x320] sm:$0xe] %v1847
  %1890 = vst [vmem:[#allocation2 + $0x328] sm:$0xe] %v1848
  %1891 = vst [vmem:[#allocation2 + $0x330] sm:$0xe] %v1849
  %1892 = vst [vmem:[#allocation2 + $0x338] sm:$0xe] %v1850
  %1893 = vst [vmem:[#allocation2 + $0x340] sm:$0xe] %v1851
  %v1894 = vld [vmem:[%s0] sm:$0x77]
  %v1895 = vld [vmem:[%s0 + $0x8] sm:$0x77]
  %v1896 = vld [vmem:[%s0 + $0x10] sm:$0x77]
  %v1897 = vld [vmem:[%s0 + $0x18] sm:$0x77]
  %v1898 = vld [vmem:[%s0 + $0x20] sm:$0x77]
  %v1899 = vld [vmem:[%s0 + $0x28] sm:$0x77]
  %v1900 = vld [vmem:[%s0 + $0x30] sm:$0x77]
  %v1901 = vld [vmem:[%s0 + $0x38] sm:$0x77]
  %v1902 = vld [vmem:[%s0 + $0x40] sm:$0x77]
  %v1903 = vld [vmem:[%s0 + $0x48] sm:$0x77]
  %v1904 = vld [vmem:[%s0 + $0x50] sm:$0x77]
  %v1916 = vcombine.low %v1894, %v1894
  %v1917 = vcombine.low %v1895, %v1895
  %v1918 = vcombine.low %v1896, %v1896
  %v1919 = vcombine.low %v1897, %v1897
  %v1920 = vcombine.low %v1898, %v1898
  %v1921 = vcombine.low %v1899, %v1899
  %v1922 = vcombine.low %v1900, %v1900
  %v1923 = vcombine.low %v1901, %v1901
  %v1924 = vcombine.low %v1902, %v1902
  %v1925 = vcombine.low %v1903, %v1903
  %v1926 = vcombine.low %v1904, %v1904
  %1927 = vrot.lane.b32.xlu0 %v1916, 62
  %v1928 = vpop.permute.xlu0 %1927
  %1929 = vrot.lane.b32.xlu0 %v1894, 62
  %v1930 = vpop.permute.xlu0 %1929
  %1931 = vrot.lane.b32.xlu0 %v1917, 62
  %v1932 = vpop.permute.xlu0 %1931
  %1933 = vrot.lane.b32.xlu0 %v1895, 62
  %v1934 = vpop.permute.xlu0 %1933
  %1935 = vrot.lane.b32.xlu0 %v1918, 62
  %v1936 = vpop.permute.xlu0 %1935
  %1937 = vrot.lane.b32.xlu0 %v1896, 62
  %v1938 = vpop.permute.xlu0 %1937
  %1939 = vrot.lane.b32.xlu0 %v1919, 62
  %v1940 = vpop.permute.xlu0 %1939
  %1941 = vrot.lane.b32.xlu0 %v1897, 62
  %v1942 = vpop.permute.xlu0 %1941
  %1943 = vrot.lane.b32.xlu0 %v1920, 62
  %v1944 = vpop.permute.xlu0 %1943
  %1945 = vrot.lane.b32.xlu0 %v1898, 62
  %v1946 = vpop.permute.xlu0 %1945
  %1947 = vrot.lane.b32.xlu0 %v1921, 62
  %v1948 = vpop.permute.xlu0 %1947
  %1949 = vrot.lane.b32.xlu0 %v1899, 62
  %v1950 = vpop.permute.xlu0 %1949
  %1951 = vrot.lane.b32.xlu0 %v1922, 62
  %v1952 = vpop.permute.xlu0 %1951
  %1953 = vrot.lane.b32.xlu0 %v1900, 62
  %v1954 = vpop.permute.xlu0 %1953
  %1955 = vrot.lane.b32.xlu0 %v1923, 62
  %v1956 = vpop.permute.xlu0 %1955
  %1957 = vrot.lane.b32.xlu0 %v1901, 62
  %v1958 = vpop.permute.xlu0 %1957
  %1959 = vrot.lane.b32.xlu0 %v1924, 62
  %v1960 = vpop.permute.xlu0 %1959
  %1961 = vrot.lane.b32.xlu0 %v1902, 62
  %v1962 = vpop.permute.xlu0 %1961
  %1963 = vrot.lane.b32.xlu0 %v1925, 62
  %v1964 = vpop.permute.xlu0 %1963
  %1965 = vrot.lane.b32.xlu0 %v1903, 62
  %v1966 = vpop.permute.xlu0 %1965
  %1967 = vrot.lane.b32.xlu0 %v1926, 62
  %v1968 = vpop.permute.xlu0 %1967
  %1969 = vrot.lane.b32.xlu0 %v1904, 62
  %v1970 = vpop.permute.xlu0 %1969
  %vm1971 = vcmask 506880
  %v1972 = vsel %vm1971, %v1928, %v1930
  %v1973 = vsel %vm1971, %v1930, %v1932
  %v1974 = vsel %vm1971, %v1932, %v1934
  %v1975 = vsel %vm1971, %v1934, %v1936
  %v1976 = vsel %vm1971, %v1936, %v1938
  %v1977 = vsel %vm1971, %v1938, %v1940
  %v1978 = vsel %vm1971, %v1940, %v1942
  %v1979 = vsel %vm1971, %v1942, %v1944
  %v1980 = vsel %vm1971, %v1944, %v1946
  %v1981 = vsel %vm1971, %v1946, %v1948
  %v1982 = vsel %vm1971, %v1948, %v1950
  %v1983 = vsel %vm1971, %v1950, %v1952
  %v1984 = vsel %vm1971, %v1952, %v1954
  %v1985 = vsel %vm1971, %v1954, %v1956
  %v1986 = vsel %vm1971, %v1956, %v1958
  %v1987 = vsel %vm1971, %v1958, %v1960
  %v1988 = vsel %vm1971, %v1960, %v1962
  %v1989 = vsel %vm1971, %v1962, %v1964
  %v1990 = vsel %vm1971, %v1964, %v1966
  %v1991 = vsel %vm1971, %v1966, %v1968
  %v1992 = vsel %vm1971, %v1968, %v1970
  %2014 = vst [vmem:[#allocation2 + $0x2a0] sm:$0x70] %v1972
  %2015 = vst [vmem:[#allocation2 + $0x2a8] sm:$0x70] %v1973
  %2016 = vst [vmem:[#allocation2 + $0x2b0] sm:$0x70] %v1974
  %2017 = vst [vmem:[#allocation2 + $0x2b8] sm:$0x70] %v1975
  %2018 = vst [vmem:[#allocation2 + $0x2c0] sm:$0x70] %v1976
  %2019 = vst [vmem:[#allocation2 + $0x2c8] sm:$0x70] %v1977
  %2020 = vst [vmem:[#allocation2 + $0x2d0] sm:$0x70] %v1978
  %2021 = vst [vmem:[#allocation2 + $0x2d8] sm:$0x70] %v1979
  %2022 = vst [vmem:[#allocation2 + $0x2e0] sm:$0x70] %v1980
  %2023 = vst [vmem:[#allocation2 + $0x2e8] sm:$0x70] %v1981
  %2024 = vst [vmem:[#allocation2 + $0x2f0] sm:$0x70] %v1982
  %2025 = vst [vmem:[#allocation2 + $0x2f8] sm:$0x70] %v1983
  %2026 = vst [vmem:[#allocation2 + $0x300] sm:$0x70] %v1984
  %2027 = vst [vmem:[#allocation2 + $0x308] sm:$0x70] %v1985
  %2028 = vst [vmem:[#allocation2 + $0x310] sm:$0x70] %v1986
  %2029 = vst [vmem:[#allocation2 + $0x318] sm:$0x70] %v1987
  %2030 = vst [vmem:[#allocation2 + $0x320] sm:$0x70] %v1988
  %2031 = vst [vmem:[#allocation2 + $0x328] sm:$0x70] %v1989
  %2032 = vst [vmem:[#allocation2 + $0x330] sm:$0x70] %v1990
  %2033 = vst [vmem:[#allocation2 + $0x338] sm:$0x70] %v1991
  %2034 = vst [vmem:[#allocation2 + $0x340] sm:$0x70] %v1992
  %v2035 = vld [vmem:[%s0] sm:$0x77]
  %v2036 = vld [vmem:[%s0 + $0x8] sm:$0x77]
  %v2037 = vld [vmem:[%s0 + $0x10] sm:$0x77]
  %v2038 = vld [vmem:[%s0 + $0x18] sm:$0x77]
  %v2039 = vld [vmem:[%s0 + $0x20] sm:$0x77]
  %v2040 = vld [vmem:[%s0 + $0x28] sm:$0x77]
  %v2041 = vld [vmem:[%s0 + $0x30] sm:$0x77]
  %v2042 = vld [vmem:[%s0 + $0x38] sm:$0x77]
  %v2043 = vld [vmem:[%s0 + $0x40] sm:$0x77]
  %v2044 = vld [vmem:[%s0 + $0x48] sm:$0x77]
  %v2045 = vld [vmem:[%s0 + $0x50] sm:$0x77]
  %v2057 = vcombine.high %v2035, %v2035
  %v2058 = vcombine.high %v2036, %v2036
  %v2059 = vcombine.high %v2037, %v2037
  %v2060 = vcombine.high %v2038, %v2038
  %v2061 = vcombine.high %v2039, %v2039
  %v2062 = vcombine.high %v2040, %v2040
  %v2063 = vcombine.high %v2041, %v2041
  %v2064 = vcombine.high %v2042, %v2042
  %v2065 = vcombine.high %v2043, %v2043
  %v2066 = vcombine.high %v2044, %v2044
  %v2067 = vcombine.high %v2045, %v2045
  %v2068 = vrot.slane %v2035, 1
  %v2069 = vrot.slane %v2057, 1
  %v2070 = vrot.slane %v2036, 1
  %v2071 = vrot.slane %v2058, 1
  %v2072 = vrot.slane %v2037, 1
  %v2073 = vrot.slane %v2059, 1
  %v2074 = vrot.slane %v2038, 1
  %v2075 = vrot.slane %v2060, 1
  %v2076 = vrot.slane %v2039, 1
  %v2077 = vrot.slane %v2061, 1
  %v2078 = vrot.slane %v2040, 1
  %v2079 = vrot.slane %v2062, 1
  %v2080 = vrot.slane %v2041, 1
  %v2081 = vrot.slane %v2063, 1
  %v2082 = vrot.slane %v2042, 1
  %v2083 = vrot.slane %v2064, 1
  %v2084 = vrot.slane %v2043, 1
  %v2085 = vrot.slane %v2065, 1
  %v2086 = vrot.slane %v2044, 1
  %v2087 = vrot.slane %v2066, 1
  %v2088 = vrot.slane %v2045, 1
  %v2089 = vrot.slane %v2067, 1
  %2090 = vrot.lane.b32.xlu0 %v2068, 61
  %v2091 = vpop.permute.xlu0 %2090
  %2092 = vrot.lane.b32.xlu0 %v2069, 61
  %v2093 = vpop.permute.xlu0 %2092
  %2094 = vrot.lane.b32.xlu0 %v2070, 61
  %v2095 = vpop.permute.xlu0 %2094
  %2096 = vrot.lane.b32.xlu0 %v2071, 61
  %v2097 = vpop.permute.xlu0 %2096
  %2098 = vrot.lane.b32.xlu0 %v2072, 61
  %v2099 = vpop.permute.xlu0 %2098
  %2100 = vrot.lane.b32.xlu0 %v2073, 61
  %v2101 = vpop.permute.xlu0 %2100
  %2102 = vrot.lane.b32.xlu0 %v2074, 61
  %v2103 = vpop.permute.xlu0 %2102
  %2104 = vrot.lane.b32.xlu0 %v2075, 61
  %v2105 = vpop.permute.xlu0 %2104
  %2106 = vrot.lane.b32.xlu0 %v2076, 61
  %v2107 = vpop.permute.xlu0 %2106
  %2108 = vrot.lane.b32.xlu0 %v2077, 61
  %v2109 = vpop.permute.xlu0 %2108
  %2110 = vrot.lane.b32.xlu0 %v2078, 61
  %v2111 = vpop.permute.xlu0 %2110
  %2112 = vrot.lane.b32.xlu0 %v2079, 61
  %v2113 = vpop.permute.xlu0 %2112
  %2114 = vrot.lane.b32.xlu0 %v2080, 61
  %v2115 = vpop.permute.xlu0 %2114
  %2116 = vrot.lane.b32.xlu0 %v2081, 61
  %v2117 = vpop.permute.xlu0 %2116
  %2118 = vrot.lane.b32.xlu0 %v2082, 61
  %v2119 = vpop.permute.xlu0 %2118
  %2120 = vrot.lane.b32.xlu0 %v2083, 61
  %v2121 = vpop.permute.xlu0 %2120
  %2122 = vrot.lane.b32.xlu0 %v2084, 61
  %v2123 = vpop.permute.xlu0 %2122
  %2124 = vrot.lane.b32.xlu0 %v2085, 61
  %v2125 = vpop.permute.xlu0 %2124
  %2126 = vrot.lane.b32.xlu0 %v2086, 61
  %v2127 = vpop.permute.xlu0 %2126
  %2128 = vrot.lane.b32.xlu0 %v2087, 61
  %v2129 = vpop.permute.xlu0 %2128
  %2130 = vrot.lane.b32.xlu0 %v2088, 61
  %v2131 = vpop.permute.xlu0 %2130
  %2132 = vrot.lane.b32.xlu0 %v2089, 61
  %v2133 = vpop.permute.xlu0 %2132
  %vm2134 = vcmask 498688
  %v2135 = vsel %vm2134, %v2091, %v2093
  %v2136 = vsel %vm2134, %v2093, %v2095
  %v2137 = vsel %vm2134, %v2095, %v2097
  %v2138 = vsel %vm2134, %v2097, %v2099
  %v2139 = vsel %vm2134, %v2099, %v2101
  %v2140 = vsel %vm2134, %v2101, %v2103
  %v2141 = vsel %vm2134, %v2103, %v2105
  %v2142 = vsel %vm2134, %v2105, %v2107
  %v2143 = vsel %vm2134, %v2107, %v2109
  %v2144 = vsel %vm2134, %v2109, %v2111
  %v2145 = vsel %vm2134, %v2111, %v2113
  %v2146 = vsel %vm2134, %v2113, %v2115
  %v2147 = vsel %vm2134, %v2115, %v2117
  %v2148 = vsel %vm2134, %v2117, %v2119
  %v2149 = vsel %vm2134, %v2119, %v2121
  %v2150 = vsel %vm2134, %v2121, %v2123
  %v2151 = vsel %vm2134, %v2123, %v2125
  %v2152 = vsel %vm2134, %v2125, %v2127
  %v2153 = vsel %vm2134, %v2127, %v2129
  %v2154 = vsel %vm2134, %v2129, %v2131
  %v2155 = vsel %vm2134, %v2131, %v2133
  %2177 = vst [vmem:[#allocation2 + $0x2a0] sm:$0x80] %v2135
  %2178 = vst [vmem:[#allocation2 + $0x2a8] sm:$0x80] %v2136
  %2179 = vst [vmem:[#allocation2 + $0x2b0] sm:$0x80] %v2137
  %2180 = vst [vmem:[#allocation2 + $0x2b8] sm:$0x80] %v2138
  %2181 = vst [vmem:[#allocation2 + $0x2c0] sm:$0x80] %v2139
  %2182 = vst [vmem:[#allocation2 + $0x2c8] sm:$0x80] %v2140
  %2183 = vst [vmem:[#allocation2 + $0x2d0] sm:$0x80] %v2141
  %2184 = vst [vmem:[#allocation2 + $0x2d8] sm:$0x80] %v2142
  %2185 = vst [vmem:[#allocation2 + $0x2e0] sm:$0x80] %v2143
  %2186 = vst [vmem:[#allocation2 + $0x2e8] sm:$0x80] %v2144
  %2187 = vst [vmem:[#allocation2 + $0x2f0] sm:$0x80] %v2145
  %2188 = vst [vmem:[#allocation2 + $0x2f8] sm:$0x80] %v2146
  %2189 = vst [vmem:[#allocation2 + $0x300] sm:$0x80] %v2147
  %2190 = vst [vmem:[#allocation2 + $0x308] sm:$0x80] %v2148
  %2191 = vst [vmem:[#allocation2 + $0x310] sm:$0x80] %v2149
  %2192 = vst [vmem:[#allocation2 + $0x318] sm:$0x80] %v2150
  %2193 = vst [vmem:[#allocation2 + $0x320] sm:$0x80] %v2151
  %2194 = vst [vmem:[#allocation2 + $0x328] sm:$0x80] %v2152
  %2195 = vst [vmem:[#allocation2 + $0x330] sm:$0x80] %v2153
  %2196 = vst [vmem:[#allocation2 + $0x338] sm:$0x80] %v2154
  %2197 = vst [vmem:[#allocation2 + $0x340] sm:$0x80] %v2155
  %2198 = vst [vmem:[#allocation2 + $0x348] sm:$0x3] %v2135
  %2199 = vst [vmem:[#allocation2 + $0x350] sm:$0x3] %v2136
  %2200 = vst [vmem:[#allocation2 + $0x358] sm:$0x3] %v2137
  %2201 = vst [vmem:[#allocation2 + $0x360] sm:$0x3] %v2138
  %2202 = vst [vmem:[#allocation2 + $0x368] sm:$0x3] %v2139
  %2203 = vst [vmem:[#allocation2 + $0x370] sm:$0x3] %v2140
  %2204 = vst [vmem:[#allocation2 + $0x378] sm:$0x3] %v2141
  %2205 = vst [vmem:[#allocation2 + $0x380] sm:$0x3] %v2142
  %2206 = vst [vmem:[#allocation2 + $0x388] sm:$0x3] %v2143
  %2207 = vst [vmem:[#allocation2 + $0x390] sm:$0x3] %v2144
  %2208 = vst [vmem:[#allocation2 + $0x398] sm:$0x3] %v2145
  %2209 = vst [vmem:[#allocation2 + $0x3a0] sm:$0x3] %v2146
  %2210 = vst [vmem:[#allocation2 + $0x3a8] sm:$0x3] %v2147
  %2211 = vst [vmem:[#allocation2 + $0x3b0] sm:$0x3] %v2148
  %2212 = vst [vmem:[#allocation2 + $0x3b8] sm:$0x3] %v2149
  %2213 = vst [vmem:[#allocation2 + $0x3c0] sm:$0x3] %v2150
  %2214 = vst [vmem:[#allocation2 + $0x3c8] sm:$0x3] %v2151
  %2215 = vst [vmem:[#allocation2 + $0x3d0] sm:$0x3] %v2152
  %2216 = vst [vmem:[#allocation2 + $0x3d8] sm:$0x3] %v2153
  %2217 = vst [vmem:[#allocation2 + $0x3e0] sm:$0x3] %v2154
  %2218 = vst [vmem:[#allocation2 + $0x3e8] sm:$0x3] %v2155
  %v2219 = vld [vmem:[%s0] sm:$0x77]
  %v2220 = vld [vmem:[%s0 + $0x8] sm:$0x77]
  %v2221 = vld [vmem:[%s0 + $0x10] sm:$0x77]
  %v2222 = vld [vmem:[%s0 + $0x18] sm:$0x77]
  %v2223 = vld [vmem:[%s0 + $0x20] sm:$0x77]
  %v2224 = vld [vmem:[%s0 + $0x28] sm:$0x77]
  %v2225 = vld [vmem:[%s0 + $0x30] sm:$0x77]
  %v2226 = vld [vmem:[%s0 + $0x38] sm:$0x77]
  %v2227 = vld [vmem:[%s0 + $0x40] sm:$0x77]
  %v2228 = vld [vmem:[%s0 + $0x48] sm:$0x77]
  %v2229 = vld [vmem:[%s0 + $0x50] sm:$0x77]
  %v2241 = vcombine.high %v2219, %v2219
  %v2242 = vcombine.high %v2220, %v2220
  %v2243 = vcombine.high %v2221, %v2221
  %v2244 = vcombine.high %v2222, %v2222
  %v2245 = vcombine.high %v2223, %v2223
  %v2246 = vcombine.high %v2224, %v2224
  %v2247 = vcombine.high %v2225, %v2225
  %v2248 = vcombine.high %v2226, %v2226
  %v2249 = vcombine.high %v2227, %v2227
  %v2250 = vcombine.high %v2228, %v2228
  %v2251 = vcombine.high %v2229, %v2229
  %v2252 = vrot.slane %v2219, 6
  %v2253 = vrot.slane %v2241, 6
  %v2254 = vrot.slane %v2220, 6
  %v2255 = vrot.slane %v2242, 6
  %v2256 = vrot.slane %v2221, 6
  %v2257 = vrot.slane %v2243, 6
  %v2258 = vrot.slane %v2222, 6
  %v2259 = vrot.slane %v2244, 6
  %v2260 = vrot.slane %v2223, 6
  %v2261 = vrot.slane %v2245, 6
  %v2262 = vrot.slane %v2224, 6
  %v2263 = vrot.slane %v2246, 6
  %v2264 = vrot.slane %v2225, 6
  %v2265 = vrot.slane %v2247, 6
  %v2266 = vrot.slane %v2226, 6
  %v2267 = vrot.slane %v2248, 6
  %v2268 = vrot.slane %v2227, 6
  %v2269 = vrot.slane %v2249, 6
  %v2270 = vrot.slane %v2228, 6
  %v2271 = vrot.slane %v2250, 6
  %v2272 = vrot.slane %v2229, 6
  %v2273 = vrot.slane %v2251, 6
  %2274 = vrot.lane.b32.xlu0 %v2252, 60
  %v2275 = vpop.permute.xlu0 %2274
  %2276 = vrot.lane.b32.xlu0 %v2253, 60
  %v2277 = vpop.permute.xlu0 %2276
  %2278 = vrot.lane.b32.xlu0 %v2254, 60
  %v2279 = vpop.permute.xlu0 %2278
  %2280 = vrot.lane.b32.xlu0 %v2255, 60
  %v2281 = vpop.permute.xlu0 %2280
  %2282 = vrot.lane.b32.xlu0 %v2256, 60
  %v2283 = vpop.permute.xlu0 %2282
  %2284 = vrot.lane.b32.xlu0 %v2257, 60
  %v2285 = vpop.permute.xlu0 %2284
  %2286 = vrot.lane.b32.xlu0 %v2258, 60
  %v2287 = vpop.permute.xlu0 %2286
  %2288 = vrot.lane.b32.xlu0 %v2259, 60
  %v2289 = vpop.permute.xlu0 %2288
  %2290 = vrot.lane.b32.xlu0 %v2260, 60
  %v2291 = vpop.permute.xlu0 %2290
  %2292 = vrot.lane.b32.xlu0 %v2261, 60
  %v2293 = vpop.permute.xlu0 %2292
  %2294 = vrot.lane.b32.xlu0 %v2262, 60
  %v2295 = vpop.permute.xlu0 %2294
  %2296 = vrot.lane.b32.xlu0 %v2263, 60
  %v2297 = vpop.permute.xlu0 %2296
  %2298 = vrot.lane.b32.xlu0 %v2264, 60
  %v2299 = vpop.permute.xlu0 %2298
  %2300 = vrot.lane.b32.xlu0 %v2265, 60
  %v2301 = vpop.permute.xlu0 %2300
  %2302 = vrot.lane.b32.xlu0 %v2266, 60
  %v2303 = vpop.permute.xlu0 %2302
  %2304 = vrot.lane.b32.xlu0 %v2267, 60
  %v2305 = vpop.permute.xlu0 %2304
  %2306 = vrot.lane.b32.xlu0 %v2268, 60
  %v2307 = vpop.permute.xlu0 %2306
  %2308 = vrot.lane.b32.xlu0 %v2269, 60
  %v2309 = vpop.permute.xlu0 %2308
  %2310 = vrot.lane.b32.xlu0 %v2270, 60
  %v2311 = vpop.permute.xlu0 %2310
  %2312 = vrot.lane.b32.xlu0 %v2271, 60
  %v2313 = vpop.permute.xlu0 %2312
  %2314 = vrot.lane.b32.xlu0 %v2272, 60
  %v2315 = vpop.permute.xlu0 %2314
  %2316 = vrot.lane.b32.xlu0 %v2273, 60
  %v2317 = vpop.permute.xlu0 %2316
  %vm2318 = vcmask 490496
  %v2319 = vsel %vm2318, %v2275, %v2277
  %v2320 = vsel %vm2318, %v2277, %v2279
  %v2321 = vsel %vm2318, %v2279, %v2281
  %v2322 = vsel %vm2318, %v2281, %v2283
  %v2323 = vsel %vm2318, %v2283, %v2285
  %v2324 = vsel %vm2318, %v2285, %v2287
  %v2325 = vsel %vm2318, %v2287, %v2289
  %v2326 = vsel %vm2318, %v2289, %v2291
  %v2327 = vsel %vm2318, %v2291, %v2293
  %v2328 = vsel %vm2318, %v2293, %v2295
  %v2329 = vsel %vm2318, %v2295, %v2297
  %v2330 = vsel %vm2318, %v2297, %v2299
  %v2331 = vsel %vm2318, %v2299, %v2301
  %v2332 = vsel %vm2318, %v2301, %v2303
  %v2333 = vsel %vm2318, %v2303, %v2305
  %v2334 = vsel %vm2318, %v2305, %v2307
  %v2335 = vsel %vm2318, %v2307, %v2309
  %v2336 = vsel %vm2318, %v2309, %v2311
  %v2337 = vsel %vm2318, %v2311, %v2313
  %v2338 = vsel %vm2318, %v2313, %v2315
  %v2339 = vsel %vm2318, %v2315, %v2317
  %2361 = vst [vmem:[#allocation2 + $0x348] sm:$0x1c] %v2319
  %2362 = vst [vmem:[#allocation2 + $0x350] sm:$0x1c] %v2320
  %2363 = vst [vmem:[#allocation2 + $0x358] sm:$0x1c] %v2321
  %2364 = vst [vmem:[#allocation2 + $0x360] sm:$0x1c] %v2322
  %2365 = vst [vmem:[#allocation2 + $0x368] sm:$0x1c] %v2323
  %2366 = vst [vmem:[#allocation2 + $0x370] sm:$0x1c] %v2324
  %2367 = vst [vmem:[#allocation2 + $0x378] sm:$0x1c] %v2325
  %2368 = vst [vmem:[#allocation2 + $0x380] sm:$0x1c] %v2326
  %2369 = vst [vmem:[#allocation2 + $0x388] sm:$0x1c] %v2327
  %2370 = vst [vmem:[#allocation2 + $0x390] sm:$0x1c] %v2328
  %2371 = vst [vmem:[#allocation2 + $0x398] sm:$0x1c] %v2329
  %2372 = vst [vmem:[#allocation2 + $0x3a0] sm:$0x1c] %v2330
  %2373 = vst [vmem:[#allocation2 + $0x3a8] sm:$0x1c] %v2331
  %2374 = vst [vmem:[#allocation2 + $0x3b0] sm:$0x1c] %v2332
  %2375 = vst [vmem:[#allocation2 + $0x3b8] sm:$0x1c] %v2333
  %2376 = vst [vmem:[#allocation2 + $0x3c0] sm:$0x1c] %v2334
  %2377 = vst [vmem:[#allocation2 + $0x3c8] sm:$0x1c] %v2335
  %2378 = vst [vmem:[#allocation2 + $0x3d0] sm:$0x1c] %v2336
  %2379 = vst [vmem:[#allocation2 + $0x3d8] sm:$0x1c] %v2337
  %2380 = vst [vmem:[#allocation2 + $0x3e0] sm:$0x1c] %v2338
  %2381 = vst [vmem:[#allocation2 + $0x3e8] sm:$0x1c] %v2339
  %v2382 = vld [vmem:[%s0] sm:$0x77]
  %v2383 = vld [vmem:[%s0 + $0x8] sm:$0x77]
  %v2384 = vld [vmem:[%s0 + $0x10] sm:$0x77]
  %v2385 = vld [vmem:[%s0 + $0x18] sm:$0x77]
  %v2386 = vld [vmem:[%s0 + $0x20] sm:$0x77]
  %v2387 = vld [vmem:[%s0 + $0x28] sm:$0x77]
  %v2388 = vld [vmem:[%s0 + $0x30] sm:$0x77]
  %v2389 = vld [vmem:[%s0 + $0x38] sm:$0x77]
  %v2390 = vld [vmem:[%s0 + $0x40] sm:$0x77]
  %v2391 = vld [vmem:[%s0 + $0x48] sm:$0x77]
  %v2392 = vld [vmem:[%s0 + $0x50] sm:$0x77]
  %v2404 = vcombine.high %v2382, %v2382
  %v2405 = vcombine.high %v2383, %v2383
  %v2406 = vcombine.high %v2384, %v2384
  %v2407 = vcombine.high %v2385, %v2385
  %v2408 = vcombine.high %v2386, %v2386
  %v2409 = vcombine.high %v2387, %v2387
  %v2410 = vcombine.high %v2388, %v2388
  %v2411 = vcombine.high %v2389, %v2389
  %v2412 = vcombine.high %v2390, %v2390
  %v2413 = vcombine.high %v2391, %v2391
  %v2414 = vcombine.high %v2392, %v2392
  %v2415 = vrot.slane %v2382, 3
  %v2416 = vrot.slane %v2404, 3
  %v2417 = vrot.slane %v2383, 3
  %v2418 = vrot.slane %v2405, 3
  %v2419 = vrot.slane %v2384, 3
  %v2420 = vrot.slane %v2406, 3
  %v2421 = vrot.slane %v2385, 3
  %v2422 = vrot.slane %v2407, 3
  %v2423 = vrot.slane %v2386, 3
  %v2424 = vrot.slane %v2408, 3
  %v2425 = vrot.slane %v2387, 3
  %v2426 = vrot.slane %v2409, 3
  %v2427 = vrot.slane %v2388, 3
  %v2428 = vrot.slane %v2410, 3
  %v2429 = vrot.slane %v2389, 3
  %v2430 = vrot.slane %v2411, 3
  %v2431 = vrot.slane %v2390, 3
  %v2432 = vrot.slane %v2412, 3
  %v2433 = vrot.slane %v2391, 3
  %v2434 = vrot.slane %v2413, 3
  %v2435 = vrot.slane %v2392, 3
  %v2436 = vrot.slane %v2414, 3
  %2437 = vrot.lane.b32.xlu0 %v2415, 32
  %v2438 = vpop.permute.xlu0 %2437
  %2439 = vrot.lane.b32.xlu0 %v2416, 32
  %v2440 = vpop.permute.xlu0 %2439
  %2441 = vrot.lane.b32.xlu0 %v2417, 32
  %v2442 = vpop.permute.xlu0 %2441
  %2443 = vrot.lane.b32.xlu0 %v2418, 32
  %v2444 = vpop.permute.xlu0 %2443
  %2445 = vrot.lane.b32.xlu0 %v2419, 32
  %v2446 = vpop.permute.xlu0 %2445
  %2447 = vrot.lane.b32.xlu0 %v2420, 32
  %v2448 = vpop.permute.xlu0 %2447
  %2449 = vrot.lane.b32.xlu0 %v2421, 32
  %v2450 = vpop.permute.xlu0 %2449
  %2451 = vrot.lane.b32.xlu0 %v2422, 32
  %v2452 = vpop.permute.xlu0 %2451
  %2453 = vrot.lane.b32.xlu0 %v2423, 32
  %v2454 = vpop.permute.xlu0 %2453
  %2455 = vrot.lane.b32.xlu0 %v2424, 32
  %v2456 = vpop.permute.xlu0 %2455
  %2457 = vrot.lane.b32.xlu0 %v2425, 32
  %v2458 = vpop.permute.xlu0 %2457
  %2459 = vrot.lane.b32.xlu0 %v2426, 32
  %v2460 = vpop.permute.xlu0 %2459
  %2461 = vrot.lane.b32.xlu0 %v2427, 32
  %v2462 = vpop.permute.xlu0 %2461
  %2463 = vrot.lane.b32.xlu0 %v2428, 32
  %v2464 = vpop.permute.xlu0 %2463
  %2465 = vrot.lane.b32.xlu0 %v2429, 32
  %v2466 = vpop.permute.xlu0 %2465
  %2467 = vrot.lane.b32.xlu0 %v2430, 32
  %v2468 = vpop.permute.xlu0 %2467
  %2469 = vrot.lane.b32.xlu0 %v2431, 32
  %v2470 = vpop.permute.xlu0 %2469
  %2471 = vrot.lane.b32.xlu0 %v2432, 32
  %v2472 = vpop.permute.xlu0 %2471
  %2473 = vrot.lane.b32.xlu0 %v2433, 32
  %v2474 = vpop.permute.xlu0 %2473
  %2475 = vrot.lane.b32.xlu0 %v2434, 32
  %v2476 = vpop.permute.xlu0 %2475
  %2477 = vrot.lane.b32.xlu0 %v2435, 32
  %v2478 = vpop.permute.xlu0 %2477
  %2479 = vrot.lane.b32.xlu0 %v2436, 32
  %v2480 = vpop.permute.xlu0 %2479
  %vm2481 = vcmask 261120
  %v2482 = vsel %vm2481, %v2438, %v2440
  %v2483 = vsel %vm2481, %v2440, %v2442
  %v2484 = vsel %vm2481, %v2442, %v2444
  %v2485 = vsel %vm2481, %v2444, %v2446
  %v2486 = vsel %vm2481, %v2446, %v2448
  %v2487 = vsel %vm2481, %v2448, %v2450
  %v2488 = vsel %vm2481, %v2450, %v2452
  %v2489 = vsel %vm2481, %v2452, %v2454
  %v2490 = vsel %vm2481, %v2454, %v2456
  %v2491 = vsel %vm2481, %v2456, %v2458
  %v2492 = vsel %vm2481, %v2458, %v2460
  %v2493 = vsel %vm2481, %v2460, %v2462
  %v2494 = vsel %vm2481, %v2462, %v2464
  %v2495 = vsel %vm2481, %v2464, %v2466
  %v2496 = vsel %vm2481, %v2466, %v2468
  %v2497 = vsel %vm2481, %v2468, %v2470
  %v2498 = vsel %vm2481, %v2470, %v2472
  %v2499 = vsel %vm2481, %v2472, %v2474
  %v2500 = vsel %vm2481, %v2474, %v2476
  %v2501 = vsel %vm2481, %v2476, %v2478
  %v2502 = vsel %vm2481, %v2478, %v2480
  %2524 = vst [vmem:[#allocation2 + $0x348] sm:$0xe0] %v2482
  %2525 = vst [vmem:[#allocation2 + $0x350] sm:$0xe0] %v2483
  %2526 = vst [vmem:[#allocation2 + $0x358] sm:$0xe0] %v2484
  %2527 = vst [vmem:[#allocation2 + $0x360] sm:$0xe0] %v2485
  %2528 = vst [vmem:[#allocation2 + $0x368] sm:$0xe0] %v2486
  %2529 = vst [vmem:[#allocation2 + $0x370] sm:$0xe0] %v2487
  %2530 = vst [vmem:[#allocation2 + $0x378] sm:$0xe0] %v2488
  %2531 = vst [vmem:[#allocation2 + $0x380] sm:$0xe0] %v2489
  %2532 = vst [vmem:[#allocation2 + $0x388] sm:$0xe0] %v2490
  %2533 = vst [vmem:[#allocation2 + $0x390] sm:$0xe0] %v2491
  %2534 = vst [vmem:[#allocation2 + $0x398] sm:$0xe0] %v2492
  %2535 = vst [vmem:[#allocation2 + $0x3a0] sm:$0xe0] %v2493
  %2536 = vst [vmem:[#allocation2 + $0x3a8] sm:$0xe0] %v2494
  %2537 = vst [vmem:[#allocation2 + $0x3b0] sm:$0xe0] %v2495
  %2538 = vst [vmem:[#allocation2 + $0x3b8] sm:$0xe0] %v2496
  %2539 = vst [vmem:[#allocation2 + $0x3c0] sm:$0xe0] %v2497
  %2540 = vst [vmem:[#allocation2 + $0x3c8] sm:$0xe0] %v2498
  %2541 = vst [vmem:[#allocation2 + $0x3d0] sm:$0xe0] %v2499
  %2542 = vst [vmem:[#allocation2 + $0x3d8] sm:$0xe0] %v2500
  %2543 = vst [vmem:[#allocation2 + $0x3e0] sm:$0xe0] %v2501
  %2544 = vst [vmem:[#allocation2 + $0x3e8] sm:$0xe0] %v2502
  %v2545 = vld [vmem:[%s0] sm:$0x77]
  %v2546 = vld [vmem:[%s0 + $0x8] sm:$0x77]
  %v2547 = vld [vmem:[%s0 + $0x10] sm:$0x77]
  %v2548 = vld [vmem:[%s0 + $0x18] sm:$0x77]
  %v2549 = vld [vmem:[%s0 + $0x20] sm:$0x77]
  %v2550 = vld [vmem:[%s0 + $0x28] sm:$0x77]
  %v2551 = vld [vmem:[%s0 + $0x30] sm:$0x77]
  %v2552 = vld [vmem:[%s0 + $0x38] sm:$0x77]
  %v2553 = vld [vmem:[%s0 + $0x40] sm:$0x77]
  %v2554 = vld [vmem:[%s0 + $0x48] sm:$0x77]
  %v2555 = vld [vmem:[%s0 + $0x50] sm:$0x77]
  %v2567 = vcombine.high %v2545, %v2545
  %v2568 = vcombine.high %v2546, %v2546
  %v2569 = vcombine.high %v2547, %v2547
  %v2570 = vcombine.high %v2548, %v2548
  %v2571 = vcombine.high %v2549, %v2549
  %v2572 = vcombine.high %v2550, %v2550
  %v2573 = vcombine.high %v2551, %v2551
  %v2574 = vcombine.high %v2552, %v2552
  %v2575 = vcombine.high %v2553, %v2553
  %v2576 = vcombine.high %v2554, %v2554
  %v2577 = vcombine.high %v2555, %v2555
  %2578 = vrot.lane.b32.xlu0 %v2545, 31
  %v2579 = vpop.permute.xlu0 %2578
  %2580 = vrot.lane.b32.xlu0 %v2567, 31
  %v2581 = vpop.permute.xlu0 %2580
  %2582 = vrot.lane.b32.xlu0 %v2546, 31
  %v2583 = vpop.permute.xlu0 %2582
  %2584 = vrot.lane.b32.xlu0 %v2568, 31
  %v2585 = vpop.permute.xlu0 %2584
  %2586 = vrot.lane.b32.xlu0 %v2547, 31
  %v2587 = vpop.permute.xlu0 %2586
  %2588 = vrot.lane.b32.xlu0 %v2569, 31
  %v2589 = vpop.permute.xlu0 %2588
  %2590 = vrot.lane.b32.xlu0 %v2548, 31
  %v2591 = vpop.permute.xlu0 %2590
  %2592 = vrot.lane.b32.xlu0 %v2570, 31
  %v2593 = vpop.permute.xlu0 %2592
  %2594 = vrot.lane.b32.xlu0 %v2549, 31
  %v2595 = vpop.permute.xlu0 %2594
  %2596 = vrot.lane.b32.xlu0 %v2571, 31
  %v2597 = vpop.permute.xlu0 %2596
  %2598 = vrot.lane.b32.xlu0 %v2550, 31
  %v2599 = vpop.permute.xlu0 %2598
  %2600 = vrot.lane.b32.xlu0 %v2572, 31
  %v2601 = vpop.permute.xlu0 %2600
  %2602 = vrot.lane.b32.xlu0 %v2551, 31
  %v2603 = vpop.permute.xlu0 %2602
  %2604 = vrot.lane.b32.xlu0 %v2573, 31
  %v2605 = vpop.permute.xlu0 %2604
  %2606 = vrot.lane.b32.xlu0 %v2552, 31
  %v2607 = vpop.permute.xlu0 %2606
  %2608 = vrot.lane.b32.xlu0 %v2574, 31
  %v2609 = vpop.permute.xlu0 %2608
  %2610 = vrot.lane.b32.xlu0 %v2553, 31
  %v2611 = vpop.permute.xlu0 %2610
  %2612 = vrot.lane.b32.xlu0 %v2575, 31
  %v2613 = vpop.permute.xlu0 %2612
  %2614 = vrot.lane.b32.xlu0 %v2554, 31
  %v2615 = vpop.permute.xlu0 %2614
  %2616 = vrot.lane.b32.xlu0 %v2576, 31
  %v2617 = vpop.permute.xlu0 %2616
  %2618 = vrot.lane.b32.xlu0 %v2555, 31
  %v2619 = vpop.permute.xlu0 %2618
  %2620 = vrot.lane.b32.xlu0 %v2577, 31
  %v2621 = vpop.permute.xlu0 %2620
  %vm2622 = vcmask 252928
  %v2623 = vsel %vm2622, %v2579, %v2581
  %v2624 = vsel %vm2622, %v2581, %v2583
  %v2625 = vsel %vm2622, %v2583, %v2585
  %v2626 = vsel %vm2622, %v2585, %v2587
  %v2627 = vsel %vm2622, %v2587, %v2589
  %v2628 = vsel %vm2622, %v2589, %v2591
  %v2629 = vsel %vm2622, %v2591, %v2593
  %v2630 = vsel %vm2622, %v2593, %v2595
  %v2631 = vsel %vm2622, %v2595, %v2597
  %v2632 = vsel %vm2622, %v2597, %v2599
  %v2633 = vsel %vm2622, %v2599, %v2601
  %v2634 = vsel %vm2622, %v2601, %v2603
  %v2635 = vsel %vm2622, %v2603, %v2605
  %v2636 = vsel %vm2622, %v2605, %v2607
  %v2637 = vsel %vm2622, %v2607, %v2609
  %v2638 = vsel %vm2622, %v2609, %v2611
  %v2639 = vsel %vm2622, %v2611, %v2613
  %v2640 = vsel %vm2622, %v2613, %v2615
  %v2641 = vsel %vm2622, %v2615, %v2617
  %v2642 = vsel %vm2622, %v2617, %v2619
  %v2643 = vsel %vm2622, %v2619, %v2621
  %2665 = vst [vmem:[#allocation2 + $0x3f0] sm:$0x7] %v2623
  %2666 = vst [vmem:[#allocation2 + $0x3f8] sm:$0x7] %v2624
  %2667 = vst [vmem:[#allocation2 + $0x400] sm:$0x7] %v2625
  %2668 = vst [vmem:[#allocation2 + $0x408] sm:$0x7] %v2626
  %2669 = vst [vmem:[#allocation2 + $0x410] sm:$0x7] %v2627
  %2670 = vst [vmem:[#allocation2 + $0x418] sm:$0x7] %v2628
  %2671 = vst [vmem:[#allocation2 + $0x420] sm:$0x7] %v2629
  %2672 = vst [vmem:[#allocation2 + $0x428] sm:$0x7] %v2630
  %2673 = vst [vmem:[#allocation2 + $0x430] sm:$0x7] %v2631
  %2674 = vst [vmem:[#allocation2 + $0x438] sm:$0x7] %v2632
  %2675 = vst [vmem:[#allocation2 + $0x440] sm:$0x7] %v2633
  %2676 = vst [vmem:[#allocation2 + $0x448] sm:$0x7] %v2634
  %2677 = vst [vmem:[#allocation2 + $0x450] sm:$0x7] %v2635
  %2678 = vst [vmem:[#allocation2 + $0x458] sm:$0x7] %v2636
  %2679 = vst [vmem:[#allocation2 + $0x460] sm:$0x7] %v2637
  %2680 = vst [vmem:[#allocation2 + $0x468] sm:$0x7] %v2638
  %2681 = vst [vmem:[#allocation2 + $0x470] sm:$0x7] %v2639
  %2682 = vst [vmem:[#allocation2 + $0x478] sm:$0x7] %v2640
  %2683 = vst [vmem:[#allocation2 + $0x480] sm:$0x7] %v2641
  %2684 = vst [vmem:[#allocation2 + $0x488] sm:$0x7] %v2642
  %2685 = vst [vmem:[#allocation2 + $0x490] sm:$0x7] %v2643
  %v2686 = vld [vmem:[%s0] sm:$0x77]
  %v2687 = vld [vmem:[%s0 + $0x8] sm:$0x77]
  %v2688 = vld [vmem:[%s0 + $0x10] sm:$0x77]
  %v2689 = vld [vmem:[%s0 + $0x18] sm:$0x77]
  %v2690 = vld [vmem:[%s0 + $0x20] sm:$0x77]
  %v2691 = vld [vmem:[%s0 + $0x28] sm:$0x77]
  %v2692 = vld [vmem:[%s0 + $0x30] sm:$0x77]
  %v2693 = vld [vmem:[%s0 + $0x38] sm:$0x77]
  %v2694 = vld [vmem:[%s0 + $0x40] sm:$0x77]
  %v2695 = vld [vmem:[%s0 + $0x48] sm:$0x77]
  %v2696 = vld [vmem:[%s0 + $0x50] sm:$0x77]
  %v2708 = vcombine.high %v2686, %v2686
  %v2709 = vcombine.high %v2687, %v2687
  %v2710 = vcombine.high %v2688, %v2688
  %v2711 = vcombine.high %v2689, %v2689
  %v2712 = vcombine.high %v2690, %v2690
  %v2713 = vcombine.high %v2691, %v2691
  %v2714 = vcombine.high %v2692, %v2692
  %v2715 = vcombine.high %v2693, %v2693
  %v2716 = vcombine.high %v2694, %v2694
  %v2717 = vcombine.high %v2695, %v2695
  %v2718 = vcombine.high %v2696, %v2696
  %v2719 = vrot.slane %v2686, 5
  %v2720 = vrot.slane %v2708, 5
  %v2721 = vrot.slane %v2687, 5
  %v2722 = vrot.slane %v2709, 5
  %v2723 = vrot.slane %v2688, 5
  %v2724 = vrot.slane %v2710, 5
  %v2725 = vrot.slane %v2689, 5
  %v2726 = vrot.slane %v2711, 5
  %v2727 = vrot.slane %v2690, 5
  %v2728 = vrot.slane %v2712, 5
  %v2729 = vrot.slane %v2691, 5
  %v2730 = vrot.slane %v2713, 5
  %v2731 = vrot.slane %v2692, 5
  %v2732 = vrot.slane %v2714, 5
  %v2733 = vrot.slane %v2693, 5
  %v2734 = vrot.slane %v2715, 5
  %v2735 = vrot.slane %v2694, 5
  %v2736 = vrot.slane %v2716, 5
  %v2737 = vrot.slane %v2695, 5
  %v2738 = vrot.slane %v2717, 5
  %v2739 = vrot.slane %v2696, 5
  %v2740 = vrot.slane %v2718, 5
  %2741 = vrot.lane.b32.xlu0 %v2719, 30
  %v2742 = vpop.permute.xlu0 %2741
  %2743 = vrot.lane.b32.xlu0 %v2720, 30
  %v2744 = vpop.permute.xlu0 %2743
  %2745 = vrot.lane.b32.xlu0 %v2721, 30
  %v2746 = vpop.permute.xlu0 %2745
  %2747 = vrot.lane.b32.xlu0 %v2722, 30
  %v2748 = vpop.permute.xlu0 %2747
  %2749 = vrot.lane.b32.xlu0 %v2723, 30
  %v2750 = vpop.permute.xlu0 %2749
  %2751 = vrot.lane.b32.xlu0 %v2724, 30
  %v2752 = vpop.permute.xlu0 %2751
  %2753 = vrot.lane.b32.xlu0 %v2725, 30
  %v2754 = vpop.permute.xlu0 %2753
  %2755 = vrot.lane.b32.xlu0 %v2726, 30
  %v2756 = vpop.permute.xlu0 %2755
  %2757 = vrot.lane.b32.xlu0 %v2727, 30
  %v2758 = vpop.permute.xlu0 %2757
  %2759 = vrot.lane.b32.xlu0 %v2728, 30
  %v2760 = vpop.permute.xlu0 %2759
  %2761 = vrot.lane.b32.xlu0 %v2729, 30
  %v2762 = vpop.permute.xlu0 %2761
  %2763 = vrot.lane.b32.xlu0 %v2730, 30
  %v2764 = vpop.permute.xlu0 %2763
  %2765 = vrot.lane.b32.xlu0 %v2731, 30
  %v2766 = vpop.permute.xlu0 %2765
  %2767 = vrot.lane.b32.xlu0 %v2732, 30
  %v2768 = vpop.permute.xlu0 %2767
  %2769 = vrot.lane.b32.xlu0 %v2733, 30
  %v2770 = vpop.permute.xlu0 %2769
  %2771 = vrot.lane.b32.xlu0 %v2734, 30
  %v2772 = vpop.permute.xlu0 %2771
  %2773 = vrot.lane.b32.xlu0 %v2735, 30
  %v2774 = vpop.permute.xlu0 %2773
  %2775 = vrot.lane.b32.xlu0 %v2736, 30
  %v2776 = vpop.permute.xlu0 %2775
  %2777 = vrot.lane.b32.xlu0 %v2737, 30
  %v2778 = vpop.permute.xlu0 %2777
  %2779 = vrot.lane.b32.xlu0 %v2738, 30
  %v2780 = vpop.permute.xlu0 %2779
  %2781 = vrot.lane.b32.xlu0 %v2739, 30
  %v2782 = vpop.permute.xlu0 %2781
  %2783 = vrot.lane.b32.xlu0 %v2740, 30
  %v2784 = vpop.permute.xlu0 %2783
  %vm2785 = vcmask 244736
  %v2786 = vsel %vm2785, %v2742, %v2744
  %v2787 = vsel %vm2785, %v2744, %v2746
  %v2788 = vsel %vm2785, %v2746, %v2748
  %v2789 = vsel %vm2785, %v2748, %v2750
  %v2790 = vsel %vm2785, %v2750, %v2752
  %v2791 = vsel %vm2785, %v2752, %v2754
  %v2792 = vsel %vm2785, %v2754, %v2756
  %v2793 = vsel %vm2785, %v2756, %v2758
  %v2794 = vsel %vm2785, %v2758, %v2760
  %v2795 = vsel %vm2785, %v2760, %v2762
  %v2796 = vsel %vm2785, %v2762, %v2764
  %v2797 = vsel %vm2785, %v2764, %v2766
  %v2798 = vsel %vm2785, %v2766, %v2768
  %v2799 = vsel %vm2785, %v2768, %v2770
  %v2800 = vsel %vm2785, %v2770, %v2772
  %v2801 = vsel %vm2785, %v2772, %v2774
  %v2802 = vsel %vm2785, %v2774, %v2776
  %v2803 = vsel %vm2785, %v2776, %v2778
  %v2804 = vsel %vm2785, %v2778, %v2780
  %v2805 = vsel %vm2785, %v2780, %v2782
  %v2806 = vsel %vm2785, %v2782, %v2784
  %2828 = vst [vmem:[#allocation2 + $0x3f0] sm:$0x38] %v2786
  %2829 = vst [vmem:[#allocation2 + $0x3f8] sm:$0x38] %v2787
  %2830 = vst [vmem:[#allocation2 + $0x400] sm:$0x38] %v2788
  %2831 = vst [vmem:[#allocation2 + $0x408] sm:$0x38] %v2789
  %2832 = vst [vmem:[#allocation2 + $0x410] sm:$0x38] %v2790
  %2833 = vst [vmem:[#allocation2 + $0x418] sm:$0x38] %v2791
  %2834 = vst [vmem:[#allocation2 + $0x420] sm:$0x38] %v2792
  %2835 = vst [vmem:[#allocation2 + $0x428] sm:$0x38] %v2793
  %2836 = vst [vmem:[#allocation2 + $0x430] sm:$0x38] %v2794
  %2837 = vst [vmem:[#allocation2 + $0x438] sm:$0x38] %v2795
  %2838 = vst [vmem:[#allocation2 + $0x440] sm:$0x38] %v2796
  %2839 = vst [vmem:[#allocation2 + $0x448] sm:$0x38] %v2797
  %2840 = vst [vmem:[#allocation2 + $0x450] sm:$0x38] %v2798
  %2841 = vst [vmem:[#allocation2 + $0x458] sm:$0x38] %v2799
  %2842 = vst [vmem:[#allocation2 + $0x460] sm:$0x38] %v2800
  %2843 = vst [vmem:[#allocation2 + $0x468] sm:$0x38] %v2801
  %2844 = vst [vmem:[#allocation2 + $0x470] sm:$0x38] %v2802
  %2845 = vst [vmem:[#allocation2 + $0x478] sm:$0x38] %v2803
  %2846 = vst [vmem:[#allocation2 + $0x480] sm:$0x38] %v2804
  %2847 = vst [vmem:[#allocation2 + $0x488] sm:$0x38] %v2805
  %2848 = vst [vmem:[#allocation2 + $0x490] sm:$0x38] %v2806
  %v2849 = vld [vmem:[%s0] sm:$0x77]
  %v2850 = vld [vmem:[%s0 + $0x8] sm:$0x77]
  %v2851 = vld [vmem:[%s0 + $0x10] sm:$0x77]
  %v2852 = vld [vmem:[%s0 + $0x18] sm:$0x77]
  %v2853 = vld [vmem:[%s0 + $0x20] sm:$0x77]
  %v2854 = vld [vmem:[%s0 + $0x28] sm:$0x77]
  %v2855 = vld [vmem:[%s0 + $0x30] sm:$0x77]
  %v2856 = vld [vmem:[%s0 + $0x38] sm:$0x77]
  %v2857 = vld [vmem:[%s0 + $0x40] sm:$0x77]
  %v2858 = vld [vmem:[%s0 + $0x48] sm:$0x77]
  %v2859 = vld [vmem:[%s0 + $0x50] sm:$0x77]
  %v2871 = vcombine.high %v2849, %v2849
  %v2872 = vcombine.high %v2850, %v2850
  %v2873 = vcombine.high %v2851, %v2851
  %v2874 = vcombine.high %v2852, %v2852
  %v2875 = vcombine.high %v2853, %v2853
  %v2876 = vcombine.high %v2854, %v2854
  %v2877 = vcombine.high %v2855, %v2855
  %v2878 = vcombine.high %v2856, %v2856
  %v2879 = vcombine.high %v2857, %v2857
  %v2880 = vcombine.high %v2858, %v2858
  %v2881 = vcombine.high %v2859, %v2859
  %v2882 = vrot.slane %v2849, 2
  %v2883 = vrot.slane %v2871, 2
  %v2884 = vrot.slane %v2850, 2
  %v2885 = vrot.slane %v2872, 2
  %v2886 = vrot.slane %v2851, 2
  %v2887 = vrot.slane %v2873, 2
  %v2888 = vrot.slane %v2852, 2
  %v2889 = vrot.slane %v2874, 2
  %v2890 = vrot.slane %v2853, 2
  %v2891 = vrot.slane %v2875, 2
  %v2892 = vrot.slane %v2854, 2
  %v2893 = vrot.slane %v2876, 2
  %v2894 = vrot.slane %v2855, 2
  %v2895 = vrot.slane %v2877, 2
  %v2896 = vrot.slane %v2856, 2
  %v2897 = vrot.slane %v2878, 2
  %v2898 = vrot.slane %v2857, 2
  %v2899 = vrot.slane %v2879, 2
  %v2900 = vrot.slane %v2858, 2
  %v2901 = vrot.slane %v2880, 2
  %v2902 = vrot.slane %v2859, 2
  %v2903 = vrot.slane %v2881, 2
  %2904 = vrot.lane.b32.xlu0 %v2882, 29
  %v2905 = vpop.permute.xlu0 %2904
  %2906 = vrot.lane.b32.xlu0 %v2883, 29
  %v2907 = vpop.permute.xlu0 %2906
  %2908 = vrot.lane.b32.xlu0 %v2884, 29
  %v2909 = vpop.permute.xlu0 %2908
  %2910 = vrot.lane.b32.xlu0 %v2885, 29
  %v2911 = vpop.permute.xlu0 %2910
  %2912 = vrot.lane.b32.xlu0 %v2886, 29
  %v2913 = vpop.permute.xlu0 %2912
  %2914 = vrot.lane.b32.xlu0 %v2887, 29
  %v2915 = vpop.permute.xlu0 %2914
  %2916 = vrot.lane.b32.xlu0 %v2888, 29
  %v2917 = vpop.permute.xlu0 %2916
  %2918 = vrot.lane.b32.xlu0 %v2889, 29
  %v2919 = vpop.permute.xlu0 %2918
  %2920 = vrot.lane.b32.xlu0 %v2890, 29
  %v2921 = vpop.permute.xlu0 %2920
  %2922 = vrot.lane.b32.xlu0 %v2891, 29
  %v2923 = vpop.permute.xlu0 %2922
  %2924 = vrot.lane.b32.xlu0 %v2892, 29
  %v2925 = vpop.permute.xlu0 %2924
  %2926 = vrot.lane.b32.xlu0 %v2893, 29
  %v2927 = vpop.permute.xlu0 %2926
  %2928 = vrot.lane.b32.xlu0 %v2894, 29
  %v2929 = vpop.permute.xlu0 %2928
  %2930 = vrot.lane.b32.xlu0 %v2895, 29
  %v2931 = vpop.permute.xlu0 %2930
  %2932 = vrot.lane.b32.xlu0 %v2896, 29
  %v2933 = vpop.permute.xlu0 %2932
  %2934 = vrot.lane.b32.xlu0 %v2897, 29
  %v2935 = vpop.permute.xlu0 %2934
  %2936 = vrot.lane.b32.xlu0 %v2898, 29
  %v2937 = vpop.permute.xlu0 %2936
  %2938 = vrot.lane.b32.xlu0 %v2899, 29
  %v2939 = vpop.permute.xlu0 %2938
  %2940 = vrot.lane.b32.xlu0 %v2900, 29
  %v2941 = vpop.permute.xlu0 %2940
  %2942 = vrot.lane.b32.xlu0 %v2901, 29
  %v2943 = vpop.permute.xlu0 %2942
  %2944 = vrot.lane.b32.xlu0 %v2902, 29
  %v2945 = vpop.permute.xlu0 %2944
  %2946 = vrot.lane.b32.xlu0 %v2903, 29
  %v2947 = vpop.permute.xlu0 %2946
  %vm2948 = vcmask 236544
  %v2949 = vsel %vm2948, %v2905, %v2907
  %v2950 = vsel %vm2948, %v2907, %v2909
  %v2951 = vsel %vm2948, %v2909, %v2911
  %v2952 = vsel %vm2948, %v2911, %v2913
  %v2953 = vsel %vm2948, %v2913, %v2915
  %v2954 = vsel %vm2948, %v2915, %v2917
  %v2955 = vsel %vm2948, %v2917, %v2919
  %v2956 = vsel %vm2948, %v2919, %v2921
  %v2957 = vsel %vm2948, %v2921, %v2923
  %v2958 = vsel %vm2948, %v2923, %v2925
  %v2959 = vsel %vm2948, %v2925, %v2927
  %v2960 = vsel %vm2948, %v2927, %v2929
  %v2961 = vsel %vm2948, %v2929, %v2931
  %v2962 = vsel %vm2948, %v2931, %v2933
  %v2963 = vsel %vm2948, %v2933, %v2935
  %v2964 = vsel %vm2948, %v2935, %v2937
  %v2965 = vsel %vm2948, %v2937, %v2939
  %v2966 = vsel %vm2948, %v2939, %v2941
  %v2967 = vsel %vm2948, %v2941, %v2943
  %v2968 = vsel %vm2948, %v2943, %v2945
  %v2969 = vsel %vm2948, %v2945, %v2947
  %2991 = vst [vmem:[#allocation2 + $0x3f0] sm:$0xc0] %v2949
  %2992 = vst [vmem:[#allocation2 + $0x3f8] sm:$0xc0] %v2950
  %2993 = vst [vmem:[#allocation2 + $0x400] sm:$0xc0] %v2951
  %2994 = vst [vmem:[#allocation2 + $0x408] sm:$0xc0] %v2952
  %2995 = vst [vmem:[#allocation2 + $0x410] sm:$0xc0] %v2953
  %2996 = vst [vmem:[#allocation2 + $0x418] sm:$0xc0] %v2954
  %2997 = vst [vmem:[#allocation2 + $0x420] sm:$0xc0] %v2955
  %2998 = vst [vmem:[#allocation2 + $0x428] sm:$0xc0] %v2956
  %2999 = vst [vmem:[#allocation2 + $0x430] sm:$0xc0] %v2957
  %3000 = vst [vmem:[#allocation2 + $0x438] sm:$0xc0] %v2958
  %3001 = vst [vmem:[#allocation2 + $0x440] sm:$0xc0] %v2959
  %3002 = vst [vmem:[#allocation2 + $0x448] sm:$0xc0] %v2960
  %3003 = vst [vmem:[#allocation2 + $0x450] sm:$0xc0] %v2961
  %3004 = vst [vmem:[#allocation2 + $0x458] sm:$0xc0] %v2962
  %3005 = vst [vmem:[#allocation2 + $0x460] sm:$0xc0] %v2963
  %3006 = vst [vmem:[#allocation2 + $0x468] sm:$0xc0] %v2964
  %3007 = vst [vmem:[#allocation2 + $0x470] sm:$0xc0] %v2965
  %3008 = vst [vmem:[#allocation2 + $0x478] sm:$0xc0] %v2966
  %3009 = vst [vmem:[#allocation2 + $0x480] sm:$0xc0] %v2967
  %3010 = vst [vmem:[#allocation2 + $0x488] sm:$0xc0] %v2968
  %3011 = vst [vmem:[#allocation2 + $0x490] sm:$0xc0] %v2969
  %3012 = vst [vmem:[#allocation2 + $0x498] sm:$0x1] %v2949
  %3013 = vst [vmem:[#allocation2 + $0x4a0] sm:$0x1] %v2950
  %3014 = vst [vmem:[#allocation2 + $0x4a8] sm:$0x1] %v2951
  %3015 = vst [vmem:[#allocation2 + $0x4b0] sm:$0x1] %v2952
  %3016 = vst [vmem:[#allocation2 + $0x4b8] sm:$0x1] %v2953
  %3017 = vst [vmem:[#allocation2 + $0x4c0] sm:$0x1] %v2954
  %3018 = vst [vmem:[#allocation2 + $0x4c8] sm:$0x1] %v2955
  %3019 = vst [vmem:[#allocation2 + $0x4d0] sm:$0x1] %v2956
  %3020 = vst [vmem:[#allocation2 + $0x4d8] sm:$0x1] %v2957
  %3021 = vst [vmem:[#allocation2 + $0x4e0] sm:$0x1] %v2958
  %3022 = vst [vmem:[#allocation2 + $0x4e8] sm:$0x1] %v2959
  %3023 = vst [vmem:[#allocation2 + $0x4f0] sm:$0x1] %v2960
  %3024 = vst [vmem:[#allocation2 + $0x4f8] sm:$0x1] %v2961
  %3025 = vst [vmem:[#allocation2 + $0x500] sm:$0x1] %v2962
  %3026 = vst [vmem:[#allocation2 + $0x508] sm:$0x1] %v2963
  %3027 = vst [vmem:[#allocation2 + $0x510] sm:$0x1] %v2964
  %3028 = vst [vmem:[#allocation2 + $0x518] sm:$0x1] %v2965
  %3029 = vst [vmem:[#allocation2 + $0x520] sm:$0x1] %v2966
  %3030 = vst [vmem:[#allocation2 + $0x528] sm:$0x1] %v2967
  %3031 = vst [vmem:[#allocation2 + $0x530] sm:$0x1] %v2968
  %3032 = vst [vmem:[#allocation2 + $0x538] sm:$0x1] %v2969
  %v3033 = vld [vmem:[%s0] sm:$0x77]
  %v3034 = vld [vmem:[%s0 + $0x8] sm:$0x77]
  %v3035 = vld [vmem:[%s0 + $0x10] sm:$0x77]
  %v3036 = vld [vmem:[%s0 + $0x18] sm:$0x77]
  %v3037 = vld [vmem:[%s0 + $0x20] sm:$0x77]
  %v3038 = vld [vmem:[%s0 + $0x28] sm:$0x77]
  %v3039 = vld [vmem:[%s0 + $0x30] sm:$0x77]
  %v3040 = vld [vmem:[%s0 + $0x38] sm:$0x77]
  %v3041 = vld [vmem:[%s0 + $0x40] sm:$0x77]
  %v3042 = vld [vmem:[%s0 + $0x48] sm:$0x77]
  %v3043 = vld [vmem:[%s0 + $0x50] sm:$0x77]
  %v3055 = vcombine.high %v3033, %v3033
  %v3056 = vcombine.high %v3034, %v3034
  %v3057 = vcombine.high %v3035, %v3035
  %v3058 = vcombine.high %v3036, %v3036
  %v3059 = vcombine.high %v3037, %v3037
  %v3060 = vcombine.high %v3038, %v3038
  %v3061 = vcombine.high %v3039, %v3039
  %v3062 = vcombine.high %v3040, %v3040
  %v3063 = vcombine.high %v3041, %v3041
  %v3064 = vcombine.high %v3042, %v3042
  %v3065 = vcombine.high %v3043, %v3043
  %v3066 = vrot.slane %v3033, 7
  %v3067 = vrot.slane %v3055, 7
  %v3068 = vrot.slane %v3034, 7
  %v3069 = vrot.slane %v3056, 7
  %v3070 = vrot.slane %v3035, 7
  %v3071 = vrot.slane %v3057, 7
  %v3072 = vrot.slane %v3036, 7
  %v3073 = vrot.slane %v3058, 7
  %v3074 = vrot.slane %v3037, 7
  %v3075 = vrot.slane %v3059, 7
  %v3076 = vrot.slane %v3038, 7
  %v3077 = vrot.slane %v3060, 7
  %v3078 = vrot.slane %v3039, 7
  %v3079 = vrot.slane %v3061, 7
  %v3080 = vrot.slane %v3040, 7
  %v3081 = vrot.slane %v3062, 7
  %v3082 = vrot.slane %v3041, 7
  %v3083 = vrot.slane %v3063, 7
  %v3084 = vrot.slane %v3042, 7
  %v3085 = vrot.slane %v3064, 7
  %v3086 = vrot.slane %v3043, 7
  %v3087 = vrot.slane %v3065, 7
  %3088 = vrot.lane.b32.xlu0 %v3066, 28
  %v3089 = vpop.permute.xlu0 %3088
  %3090 = vrot.lane.b32.xlu0 %v3067, 28
  %v3091 = vpop.permute.xlu0 %3090
  %3092 = vrot.lane.b32.xlu0 %v3068, 28
  %v3093 = vpop.permute.xlu0 %3092
  %3094 = vrot.lane.b32.xlu0 %v3069, 28
  %v3095 = vpop.permute.xlu0 %3094
  %3096 = vrot.lane.b32.xlu0 %v3070, 28
  %v3097 = vpop.permute.xlu0 %3096
  %3098 = vrot.lane.b32.xlu0 %v3071, 28
  %v3099 = vpop.permute.xlu0 %3098
  %3100 = vrot.lane.b32.xlu0 %v3072, 28
  %v3101 = vpop.permute.xlu0 %3100
  %3102 = vrot.lane.b32.xlu0 %v3073, 28
  %v3103 = vpop.permute.xlu0 %3102
  %3104 = vrot.lane.b32.xlu0 %v3074, 28
  %v3105 = vpop.permute.xlu0 %3104
  %3106 = vrot.lane.b32.xlu0 %v3075, 28
  %v3107 = vpop.permute.xlu0 %3106
  %3108 = vrot.lane.b32.xlu0 %v3076, 28
  %v3109 = vpop.permute.xlu0 %3108
  %3110 = vrot.lane.b32.xlu0 %v3077, 28
  %v3111 = vpop.permute.xlu0 %3110
  %3112 = vrot.lane.b32.xlu0 %v3078, 28
  %v3113 = vpop.permute.xlu0 %3112
  %3114 = vrot.lane.b32.xlu0 %v3079, 28
  %v3115 = vpop.permute.xlu0 %3114
  %3116 = vrot.lane.b32.xlu0 %v3080, 28
  %v3117 = vpop.permute.xlu0 %3116
  %3118 = vrot.lane.b32.xlu0 %v3081, 28
  %v3119 = vpop.permute.xlu0 %3118
  %3120 = vrot.lane.b32.xlu0 %v3082, 28
  %v3121 = vpop.permute.xlu0 %3120
  %3122 = vrot.lane.b32.xlu0 %v3083, 28
  %v3123 = vpop.permute.xlu0 %3122
  %3124 = vrot.lane.b32.xlu0 %v3084, 28
  %v3125 = vpop.permute.xlu0 %3124
  %3126 = vrot.lane.b32.xlu0 %v3085, 28
  %v3127 = vpop.permute.xlu0 %3126
  %3128 = vrot.lane.b32.xlu0 %v3086, 28
  %v3129 = vpop.permute.xlu0 %3128
  %3130 = vrot.lane.b32.xlu0 %v3087, 28
  %v3131 = vpop.permute.xlu0 %3130
  %vm3132 = vcmask 228352
  %v3133 = vsel %vm3132, %v3089, %v3091
  %v3134 = vsel %vm3132, %v3091, %v3093
  %v3135 = vsel %vm3132, %v3093, %v3095
  %v3136 = vsel %vm3132, %v3095, %v3097
  %v3137 = vsel %vm3132, %v3097, %v3099
  %v3138 = vsel %vm3132, %v3099, %v3101
  %v3139 = vsel %vm3132, %v3101, %v3103
  %v3140 = vsel %vm3132, %v3103, %v3105
  %v3141 = vsel %vm3132, %v3105, %v3107
  %v3142 = vsel %vm3132, %v3107, %v3109
  %v3143 = vsel %vm3132, %v3109, %v3111
  %v3144 = vsel %vm3132, %v3111, %v3113
  %v3145 = vsel %vm3132, %v3113, %v3115
  %v3146 = vsel %vm3132, %v3115, %v3117
  %v3147 = vsel %vm3132, %v3117, %v3119
  %v3148 = vsel %vm3132, %v3119, %v3121
  %v3149 = vsel %vm3132, %v3121, %v3123
  %v3150 = vsel %vm3132, %v3123, %v3125
  %v3151 = vsel %vm3132, %v3125, %v3127
  %v3152 = vsel %vm3132, %v3127, %v3129
  %v3153 = vsel %vm3132, %v3129, %v3131
  %3175 = vst [vmem:[#allocation2 + $0x498] sm:$0xe] %v3133
  %3176 = vst [vmem:[#allocation2 + $0x4a0] sm:$0xe] %v3134
  %3177 = vst [vmem:[#allocation2 + $0x4a8] sm:$0xe] %v3135
  %3178 = vst [vmem:[#allocation2 + $0x4b0] sm:$0xe] %v3136
  %3179 = vst [vmem:[#allocation2 + $0x4b8] sm:$0xe] %v3137
  %3180 = vst [vmem:[#allocation2 + $0x4c0] sm:$0xe] %v3138
  %3181 = vst [vmem:[#allocation2 + $0x4c8] sm:$0xe] %v3139
  %3182 = vst [vmem:[#allocation2 + $0x4d0] sm:$0xe] %v3140
  %3183 = vst [vmem:[#allocation2 + $0x4d8] sm:$0xe] %v3141
  %3184 = vst [vmem:[#allocation2 + $0x4e0] sm:$0xe] %v3142
  %3185 = vst [vmem:[#allocation2 + $0x4e8] sm:$0xe] %v3143
  %3186 = vst [vmem:[#allocation2 + $0x4f0] sm:$0xe] %v3144
  %3187 = vst [vmem:[#allocation2 + $0x4f8] sm:$0xe] %v3145
  %3188 = vst [vmem:[#allocation2 + $0x500] sm:$0xe] %v3146
  %3189 = vst [vmem:[#allocation2 + $0x508] sm:$0xe] %v3147
  %3190 = vst [vmem:[#allocation2 + $0x510] sm:$0xe] %v3148
  %3191 = vst [vmem:[#allocation2 + $0x518] sm:$0xe] %v3149
  %3192 = vst [vmem:[#allocation2 + $0x520] sm:$0xe] %v3150
  %3193 = vst [vmem:[#allocation2 + $0x528] sm:$0xe] %v3151
  %3194 = vst [vmem:[#allocation2 + $0x530] sm:$0xe] %v3152
  %3195 = vst [vmem:[#allocation2 + $0x538] sm:$0xe] %v3153
  %v3196 = vld [vmem:[%s0 + $0x4] sm:$0x77]
  %v3197 = vld [vmem:[%s0 + $0xc] sm:$0x77]
  %v3198 = vld [vmem:[%s0 + $0x14] sm:$0x77]
  %v3199 = vld [vmem:[%s0 + $0x1c] sm:$0x77]
  %v3200 = vld [vmem:[%s0 + $0x24] sm:$0x77]
  %v3201 = vld [vmem:[%s0 + $0x2c] sm:$0x77]
  %v3202 = vld [vmem:[%s0 + $0x34] sm:$0x77]
  %v3203 = vld [vmem:[%s0 + $0x3c] sm:$0x77]
  %v3204 = vld [vmem:[%s0 + $0x44] sm:$0x77]
  %v3205 = vld [vmem:[%s0 + $0x4c] sm:$0x77]
  %v3206 = vld [vmem:[%s0 + $0x54] sm:$0x7]
  %v3218 = vcombine.low %v3196, %v3196
  %v3219 = vcombine.low %v3197, %v3197
  %v3220 = vcombine.low %v3198, %v3198
  %v3221 = vcombine.low %v3199, %v3199
  %v3222 = vcombine.low %v3200, %v3200
  %v3223 = vcombine.low %v3201, %v3201
  %v3224 = vcombine.low %v3202, %v3202
  %v3225 = vcombine.low %v3203, %v3203
  %v3226 = vcombine.low %v3204, %v3204
  %v3227 = vcombine.low %v3205, %v3205
  %v3228 = vcombine.low %v3206, %v3206
  %3240 = vst [vmem:[#allocation2 + $0x498] sm:$0x70] %v3218
  %3241 = vst [vmem:[#allocation2 + $0x4a0] sm:$0x70] %v3196
  %3242 = vst [vmem:[#allocation2 + $0x4a8] sm:$0x70] %v3219
  %3243 = vst [vmem:[#allocation2 + $0x4b0] sm:$0x70] %v3197
  %3244 = vst [vmem:[#allocation2 + $0x4b8] sm:$0x70] %v3220
  %3245 = vst [vmem:[#allocation2 + $0x4c0] sm:$0x70] %v3198
  %3246 = vst [vmem:[#allocation2 + $0x4c8] sm:$0x70] %v3221
  %3247 = vst [vmem:[#allocation2 + $0x4d0] sm:$0x70] %v3199
  %3248 = vst [vmem:[#allocation2 + $0x4d8] sm:$0x70] %v3222
  %3249 = vst [vmem:[#allocation2 + $0x4e0] sm:$0x70] %v3200
  %3250 = vst [vmem:[#allocation2 + $0x4e8] sm:$0x70] %v3223
  %3251 = vst [vmem:[#allocation2 + $0x4f0] sm:$0x70] %v3201
  %3252 = vst [vmem:[#allocation2 + $0x4f8] sm:$0x70] %v3224
  %3253 = vst [vmem:[#allocation2 + $0x500] sm:$0x70] %v3202
  %3254 = vst [vmem:[#allocation2 + $0x508] sm:$0x70] %v3225
  %3255 = vst [vmem:[#allocation2 + $0x510] sm:$0x70] %v3203
  %3256 = vst [vmem:[#allocation2 + $0x518] sm:$0x70] %v3226
  %3257 = vst [vmem:[#allocation2 + $0x520] sm:$0x70] %v3204
  %3258 = vst [vmem:[#allocation2 + $0x528] sm:$0x70] %v3227
  %3259 = vst [vmem:[#allocation2 + $0x530] sm:$0x70] %v3205
  %3260 = vst [vmem:[#allocation2 + $0x538] sm:$0x70] %v3228
  %v3261 = vld [vmem:[%s0 + $0x4] sm:$0x77]
  %v3262 = vld [vmem:[%s0 + $0xc] sm:$0x77]
  %v3263 = vld [vmem:[%s0 + $0x14] sm:$0x77]
  %v3264 = vld [vmem:[%s0 + $0x1c] sm:$0x77]
  %v3265 = vld [vmem:[%s0 + $0x24] sm:$0x77]
  %v3266 = vld [vmem:[%s0 + $0x2c] sm:$0x77]
  %v3267 = vld [vmem:[%s0 + $0x34] sm:$0x77]
  %v3268 = vld [vmem:[%s0 + $0x3c] sm:$0x77]
  %v3269 = vld [vmem:[%s0 + $0x44] sm:$0x77]
  %v3270 = vld [vmem:[%s0 + $0x4c] sm:$0x77]
  %v3271 = vld [vmem:[%s0 + $0x54] sm:$0x77]
  %v3283 = vcombine.high %v3261, %v3261
  %v3284 = vcombine.high %v3262, %v3262
  %v3285 = vcombine.high %v3263, %v3263
  %v3286 = vcombine.high %v3264, %v3264
  %v3287 = vcombine.high %v3265, %v3265
  %v3288 = vcombine.high %v3266, %v3266
  %v3289 = vcombine.high %v3267, %v3267
  %v3290 = vcombine.high %v3268, %v3268
  %v3291 = vcombine.high %v3269, %v3269
  %v3292 = vcombine.high %v3270, %v3270
  %v3293 = vcombine.high %v3271, %v3271
  %v3294 = vrot.slane %v3261, 1
  %v3295 = vrot.slane %v3283, 1
  %v3296 = vrot.slane %v3262, 1
  %v3297 = vrot.slane %v3284, 1
  %v3298 = vrot.slane %v3263, 1
  %v3299 = vrot.slane %v3285, 1
  %v3300 = vrot.slane %v3264, 1
  %v3301 = vrot.slane %v3286, 1
  %v3302 = vrot.slane %v3265, 1
  %v3303 = vrot.slane %v3287, 1
  %v3304 = vrot.slane %v3266, 1
  %v3305 = vrot.slane %v3288, 1
  %v3306 = vrot.slane %v3267, 1
  %v3307 = vrot.slane %v3289, 1
  %v3308 = vrot.slane %v3268, 1
  %v3309 = vrot.slane %v3290, 1
  %v3310 = vrot.slane %v3269, 1
  %v3311 = vrot.slane %v3291, 1
  %v3312 = vrot.slane %v3270, 1
  %v3313 = vrot.slane %v3292, 1
  %v3314 = vrot.slane %v3271, 1
  %v3315 = vrot.slane %v3293, 1
  %3316 = vrot.lane.b32.xlu0 %v3294, 127
  %v3317 = vpop.permute.xlu0 %3316
  %3318 = vrot.lane.b32.xlu0 %v3295, 127
  %v3319 = vpop.permute.xlu0 %3318
  %3320 = vrot.lane.b32.xlu0 %v3296, 127
  %v3321 = vpop.permute.xlu0 %3320
  %3322 = vrot.lane.b32.xlu0 %v3297, 127
  %v3323 = vpop.permute.xlu0 %3322
  %3324 = vrot.lane.b32.xlu0 %v3298, 127
  %v3325 = vpop.permute.xlu0 %3324
  %3326 = vrot.lane.b32.xlu0 %v3299, 127
  %v3327 = vpop.permute.xlu0 %3326
  %3328 = vrot.lane.b32.xlu0 %v3300, 127
  %v3329 = vpop.permute.xlu0 %3328
  %3330 = vrot.lane.b32.xlu0 %v3301, 127
  %v3331 = vpop.permute.xlu0 %3330
  %3332 = vrot.lane.b32.xlu0 %v3302, 127
  %v3333 = vpop.permute.xlu0 %3332
  %3334 = vrot.lane.b32.xlu0 %v3303, 127
  %v3335 = vpop.permute.xlu0 %3334
  %3336 = vrot.lane.b32.xlu0 %v3304, 127
  %v3337 = vpop.permute.xlu0 %3336
  %3338 = vrot.lane.b32.xlu0 %v3305, 127
  %v3339 = vpop.permute.xlu0 %3338
  %3340 = vrot.lane.b32.xlu0 %v3306, 127
  %v3341 = vpop.permute.xlu0 %3340
  %3342 = vrot.lane.b32.xlu0 %v3307, 127
  %v3343 = vpop.permute.xlu0 %3342
  %3344 = vrot.lane.b32.xlu0 %v3308, 127
  %v3345 = vpop.permute.xlu0 %3344
  %3346 = vrot.lane.b32.xlu0 %v3309, 127
  %v3347 = vpop.permute.xlu0 %3346
  %3348 = vrot.lane.b32.xlu0 %v3310, 127
  %v3349 = vpop.permute.xlu0 %3348
  %3350 = vrot.lane.b32.xlu0 %v3311, 127
  %v3351 = vpop.permute.xlu0 %3350
  %3352 = vrot.lane.b32.xlu0 %v3312, 127
  %v3353 = vpop.permute.xlu0 %3352
  %3354 = vrot.lane.b32.xlu0 %v3313, 127
  %v3355 = vpop.permute.xlu0 %3354
  %3356 = vrot.lane.b32.xlu0 %v3314, 127
  %v3357 = vpop.permute.xlu0 %3356
  %3358 = vrot.lane.b32.xlu0 %v3315, 127
  %v3359 = vpop.permute.xlu0 %3358
  %v3360 = vsel %vm181, %v3317, %v3319
  %v3361 = vsel %vm181, %v3319, %v3321
  %v3362 = vsel %vm181, %v3321, %v3323
  %v3363 = vsel %vm181, %v3323, %v3325
  %v3364 = vsel %vm181, %v3325, %v3327
  %v3365 = vsel %vm181, %v3327, %v3329
  %v3366 = vsel %vm181, %v3329, %v3331
  %v3367 = vsel %vm181, %v3331, %v3333
  %v3368 = vsel %vm181, %v3333, %v3335
  %v3369 = vsel %vm181, %v3335, %v3337
  %v3370 = vsel %vm181, %v3337, %v3339
  %v3371 = vsel %vm181, %v3339, %v3341
  %v3372 = vsel %vm181, %v3341, %v3343
  %v3373 = vsel %vm181, %v3343, %v3345
  %v3374 = vsel %vm181, %v3345, %v3347
  %v3375 = vsel %vm181, %v3347, %v3349
  %v3376 = vsel %vm181, %v3349, %v3351
  %v3377 = vsel %vm181, %v3351, %v3353
  %v3378 = vsel %vm181, %v3353, %v3355
  %v3379 = vsel %vm181, %v3355, %v3357
  %v3380 = vsel %vm181, %v3357, %v3359
  %3402 = vst [vmem:[#allocation2 + $0x498] sm:$0x80] %v3360
  %3403 = vst [vmem:[#allocation2 + $0x4a0] sm:$0x80] %v3361
  %3404 = vst [vmem:[#allocation2 + $0x4a8] sm:$0x80] %v3362
  %3405 = vst [vmem:[#allocation2 + $0x4b0] sm:$0x80] %v3363
  %3406 = vst [vmem:[#allocation2 + $0x4b8] sm:$0x80] %v3364
  %3407 = vst [vmem:[#allocation2 + $0x4c0] sm:$0x80] %v3365
  %3408 = vst [vmem:[#allocation2 + $0x4c8] sm:$0x80] %v3366
  %3409 = vst [vmem:[#allocation2 + $0x4d0] sm:$0x80] %v3367
  %3410 = vst [vmem:[#allocation2 + $0x4d8] sm:$0x80] %v3368
  %3411 = vst [vmem:[#allocation2 + $0x4e0] sm:$0x80] %v3369
  %3412 = vst [vmem:[#allocation2 + $0x4e8] sm:$0x80] %v3370
  %3413 = vst [vmem:[#allocation2 + $0x4f0] sm:$0x80] %v3371
  %3414 = vst [vmem:[#allocation2 + $0x4f8] sm:$0x80] %v3372
  %3415 = vst [vmem:[#allocation2 + $0x500] sm:$0x80] %v3373
  %3416 = vst [vmem:[#allocation2 + $0x508] sm:$0x80] %v3374
  %3417 = vst [vmem:[#allocation2 + $0x510] sm:$0x80] %v3375
  %3418 = vst [vmem:[#allocation2 + $0x518] sm:$0x80] %v3376
  %3419 = vst [vmem:[#allocation2 + $0x520] sm:$0x80] %v3377
  %3420 = vst [vmem:[#allocation2 + $0x528] sm:$0x80] %v3378
  %3421 = vst [vmem:[#allocation2 + $0x530] sm:$0x80] %v3379
  %3422 = vst [vmem:[#allocation2 + $0x538] sm:$0x80] %v3380
  %3423 = vst [vmem:[#allocation2 + $0x540] sm:$0x3] %v3360
  %3424 = vst [vmem:[#allocation2 + $0x548] sm:$0x3] %v3361
  %3425 = vst [vmem:[#allocation2 + $0x550] sm:$0x3] %v3362
  %3426 = vst [vmem:[#allocation2 + $0x558] sm:$0x3] %v3363
  %3427 = vst [vmem:[#allocation2 + $0x560] sm:$0x3] %v3364
  %3428 = vst [vmem:[#allocation2 + $0x568] sm:$0x3] %v3365
  %3429 = vst [vmem:[#allocation2 + $0x570] sm:$0x3] %v3366
  %3430 = vst [vmem:[#allocation2 + $0x578] sm:$0x3] %v3367
  %3431 = vst [vmem:[#allocation2 + $0x580] sm:$0x3] %v3368
  %3432 = vst [vmem:[#allocation2 + $0x588] sm:$0x3] %v3369
  %3433 = vst [vmem:[#allocation2 + $0x590] sm:$0x3] %v3370
  %3434 = vst [vmem:[#allocation2 + $0x598] sm:$0x3] %v3371
  %3435 = vst [vmem:[#allocation2 + $0x5a0] sm:$0x3] %v3372
  %3436 = vst [vmem:[#allocation2 + $0x5a8] sm:$0x3] %v3373
  %3437 = vst [vmem:[#allocation2 + $0x5b0] sm:$0x3] %v3374
  %3438 = vst [vmem:[#allocation2 + $0x5b8] sm:$0x3] %v3375
  %3439 = vst [vmem:[#allocation2 + $0x5c0] sm:$0x3] %v3376
  %3440 = vst [vmem:[#allocation2 + $0x5c8] sm:$0x3] %v3377
  %3441 = vst [vmem:[#allocation2 + $0x5d0] sm:$0x3] %v3378
  %3442 = vst [vmem:[#allocation2 + $0x5d8] sm:$0x3] %v3379
  %3443 = vst [vmem:[#allocation2 + $0x5e0] sm:$0x3] %v3380
  %v3444 = vld [vmem:[%s0 + $0x4] sm:$0x77]
  %v3445 = vld [vmem:[%s0 + $0xc] sm:$0x77]
  %v3446 = vld [vmem:[%s0 + $0x14] sm:$0x77]
  %v3447 = vld [vmem:[%s0 + $0x1c] sm:$0x77]
  %v3448 = vld [vmem:[%s0 + $0x24] sm:$0x77]
  %v3449 = vld [vmem:[%s0 + $0x2c] sm:$0x77]
  %v3450 = vld [vmem:[%s0 + $0x34] sm:$0x77]
  %v3451 = vld [vmem:[%s0 + $0x3c] sm:$0x77]
  %v3452 = vld [vmem:[%s0 + $0x44] sm:$0x77]
  %v3453 = vld [vmem:[%s0 + $0x4c] sm:$0x77]
  %v3454 = vld [vmem:[%s0 + $0x54] sm:$0x77]
  %v3466 = vcombine.high %v3444, %v3444
  %v3467 = vcombine.high %v3445, %v3445
  %v3468 = vcombine.high %v3446, %v3446
  %v3469 = vcombine.high %v3447, %v3447
  %v3470 = vcombine.high %v3448, %v3448
  %v3471 = vcombine.high %v3449, %v3449
  %v3472 = vcombine.high %v3450, %v3450
  %v3473 = vcombine.high %v3451, %v3451
  %v3474 = vcombine.high %v3452, %v3452
  %v3475 = vcombine.high %v3453, %v3453
  %v3476 = vcombine.high %v3454, %v3454
  %v3477 = vrot.slane %v3444, 6
  %v3478 = vrot.slane %v3466, 6
  %v3479 = vrot.slane %v3445, 6
  %v3480 = vrot.slane %v3467, 6
  %v3481 = vrot.slane %v3446, 6
  %v3482 = vrot.slane %v3468, 6
  %v3483 = vrot.slane %v3447, 6
  %v3484 = vrot.slane %v3469, 6
  %v3485 = vrot.slane %v3448, 6
  %v3486 = vrot.slane %v3470, 6
  %v3487 = vrot.slane %v3449, 6
  %v3488 = vrot.slane %v3471, 6
  %v3489 = vrot.slane %v3450, 6
  %v3490 = vrot.slane %v3472, 6
  %v3491 = vrot.slane %v3451, 6
  %v3492 = vrot.slane %v3473, 6
  %v3493 = vrot.slane %v3452, 6
  %v3494 = vrot.slane %v3474, 6
  %v3495 = vrot.slane %v3453, 6
  %v3496 = vrot.slane %v3475, 6
  %v3497 = vrot.slane %v3454, 6
  %v3498 = vrot.slane %v3476, 6
  %3499 = vrot.lane.b32.xlu0 %v3477, 126
  %v3500 = vpop.permute.xlu0 %3499
  %3501 = vrot.lane.b32.xlu0 %v3478, 126
  %v3502 = vpop.permute.xlu0 %3501
  %3503 = vrot.lane.b32.xlu0 %v3479, 126
  %v3504 = vpop.permute.xlu0 %3503
  %3505 = vrot.lane.b32.xlu0 %v3480, 126
  %v3506 = vpop.permute.xlu0 %3505
  %3507 = vrot.lane.b32.xlu0 %v3481, 126
  %v3508 = vpop.permute.xlu0 %3507
  %3509 = vrot.lane.b32.xlu0 %v3482, 126
  %v3510 = vpop.permute.xlu0 %3509
  %3511 = vrot.lane.b32.xlu0 %v3483, 126
  %v3512 = vpop.permute.xlu0 %3511
  %3513 = vrot.lane.b32.xlu0 %v3484, 126
  %v3514 = vpop.permute.xlu0 %3513
  %3515 = vrot.lane.b32.xlu0 %v3485, 126
  %v3516 = vpop.permute.xlu0 %3515
  %3517 = vrot.lane.b32.xlu0 %v3486, 126
  %v3518 = vpop.permute.xlu0 %3517
  %3519 = vrot.lane.b32.xlu0 %v3487, 126
  %v3520 = vpop.permute.xlu0 %3519
  %3521 = vrot.lane.b32.xlu0 %v3488, 126
  %v3522 = vpop.permute.xlu0 %3521
  %3523 = vrot.lane.b32.xlu0 %v3489, 126
  %v3524 = vpop.permute.xlu0 %3523
  %3525 = vrot.lane.b32.xlu0 %v3490, 126
  %v3526 = vpop.permute.xlu0 %3525
  %3527 = vrot.lane.b32.xlu0 %v3491, 126
  %v3528 = vpop.permute.xlu0 %3527
  %3529 = vrot.lane.b32.xlu0 %v3492, 126
  %v3530 = vpop.permute.xlu0 %3529
  %3531 = vrot.lane.b32.xlu0 %v3493, 126
  %v3532 = vpop.permute.xlu0 %3531
  %3533 = vrot.lane.b32.xlu0 %v3494, 126
  %v3534 = vpop.permute.xlu0 %3533
  %3535 = vrot.lane.b32.xlu0 %v3495, 126
  %v3536 = vpop.permute.xlu0 %3535
  %3537 = vrot.lane.b32.xlu0 %v3496, 126
  %v3538 = vpop.permute.xlu0 %3537
  %3539 = vrot.lane.b32.xlu0 %v3497, 126
  %v3540 = vpop.permute.xlu0 %3539
  %3541 = vrot.lane.b32.xlu0 %v3498, 126
  %v3542 = vpop.permute.xlu0 %3541
  %v3543 = vsel %vm344, %v3500, %v3502
  %v3544 = vsel %vm344, %v3502, %v3504
  %v3545 = vsel %vm344, %v3504, %v3506
  %v3546 = vsel %vm344, %v3506, %v3508
  %v3547 = vsel %vm344, %v3508, %v3510
  %v3548 = vsel %vm344, %v3510, %v3512
  %v3549 = vsel %vm344, %v3512, %v3514
  %v3550 = vsel %vm344, %v3514, %v3516
  %v3551 = vsel %vm344, %v3516, %v3518
  %v3552 = vsel %vm344, %v3518, %v3520
  %v3553 = vsel %vm344, %v3520, %v3522
  %v3554 = vsel %vm344, %v3522, %v3524
  %v3555 = vsel %vm344, %v3524, %v3526
  %v3556 = vsel %vm344, %v3526, %v3528
  %v3557 = vsel %vm344, %v3528, %v3530
  %v3558 = vsel %vm344, %v3530, %v3532
  %v3559 = vsel %vm344, %v3532, %v3534
  %v3560 = vsel %vm344, %v3534, %v3536
  %v3561 = vsel %vm344, %v3536, %v3538
  %v3562 = vsel %vm344, %v3538, %v3540
  %v3563 = vsel %vm344, %v3540, %v3542
  %3585 = vst [vmem:[#allocation2 + $0x540] sm:$0x1c] %v3543
  %3586 = vst [vmem:[#allocation2 + $0x548] sm:$0x1c] %v3544
  %3587 = vst [vmem:[#allocation2 + $0x550] sm:$0x1c] %v3545
  %3588 = vst [vmem:[#allocation2 + $0x558] sm:$0x1c] %v3546
  %3589 = vst [vmem:[#allocation2 + $0x560] sm:$0x1c] %v3547
  %3590 = vst [vmem:[#allocation2 + $0x568] sm:$0x1c] %v3548
  %3591 = vst [vmem:[#allocation2 + $0x570] sm:$0x1c] %v3549
  %3592 = vst [vmem:[#allocation2 + $0x578] sm:$0x1c] %v3550
  %3593 = vst [vmem:[#allocation2 + $0x580] sm:$0x1c] %v3551
  %3594 = vst [vmem:[#allocation2 + $0x588] sm:$0x1c] %v3552
  %3595 = vst [vmem:[#allocation2 + $0x590] sm:$0x1c] %v3553
  %3596 = vst [vmem:[#allocation2 + $0x598] sm:$0x1c] %v3554
  %3597 = vst [vmem:[#allocation2 + $0x5a0] sm:$0x1c] %v3555
  %3598 = vst [vmem:[#allocation2 + $0x5a8] sm:$0x1c] %v3556
  %3599 = vst [vmem:[#allocation2 + $0x5b0] sm:$0x1c] %v3557
  %3600 = vst [vmem:[#allocation2 + $0x5b8] sm:$0x1c] %v3558
  %3601 = vst [vmem:[#allocation2 + $0x5c0] sm:$0x1c] %v3559
  %3602 = vst [vmem:[#allocation2 + $0x5c8] sm:$0x1c] %v3560
  %3603 = vst [vmem:[#allocation2 + $0x5d0] sm:$0x1c] %v3561
  %3604 = vst [vmem:[#allocation2 + $0x5d8] sm:$0x1c] %v3562
  %3605 = vst [vmem:[#allocation2 + $0x5e0] sm:$0x1c] %v3563
  %v3606 = vld [vmem:[%s0 + $0x4] sm:$0x77]
  %v3607 = vld [vmem:[%s0 + $0xc] sm:$0x77]
  %v3608 = vld [vmem:[%s0 + $0x14] sm:$0x77]
  %v3609 = vld [vmem:[%s0 + $0x1c] sm:$0x77]
  %v3610 = vld [vmem:[%s0 + $0x24] sm:$0x77]
  %v3611 = vld [vmem:[%s0 + $0x2c] sm:$0x77]
  %v3612 = vld [vmem:[%s0 + $0x34] sm:$0x77]
  %v3613 = vld [vmem:[%s0 + $0x3c] sm:$0x77]
  %v3614 = vld [vmem:[%s0 + $0x44] sm:$0x77]
  %v3615 = vld [vmem:[%s0 + $0x4c] sm:$0x77]
  %v3616 = vld [vmem:[%s0 + $0x54] sm:$0x77]
  %v3628 = vcombine.high %v3606, %v3606
  %v3629 = vcombine.high %v3607, %v3607
  %v3630 = vcombine.high %v3608, %v3608
  %v3631 = vcombine.high %v3609, %v3609
  %v3632 = vcombine.high %v3610, %v3610
  %v3633 = vcombine.high %v3611, %v3611
  %v3634 = vcombine.high %v3612, %v3612
  %v3635 = vcombine.high %v3613, %v3613
  %v3636 = vcombine.high %v3614, %v3614
  %v3637 = vcombine.high %v3615, %v3615
  %v3638 = vcombine.high %v3616, %v3616
  %v3639 = vrot.slane %v3606, 3
  %v3640 = vrot.slane %v3628, 3
  %v3641 = vrot.slane %v3607, 3
  %v3642 = vrot.slane %v3629, 3
  %v3643 = vrot.slane %v3608, 3
  %v3644 = vrot.slane %v3630, 3
  %v3645 = vrot.slane %v3609, 3
  %v3646 = vrot.slane %v3631, 3
  %v3647 = vrot.slane %v3610, 3
  %v3648 = vrot.slane %v3632, 3
  %v3649 = vrot.slane %v3611, 3
  %v3650 = vrot.slane %v3633, 3
  %v3651 = vrot.slane %v3612, 3
  %v3652 = vrot.slane %v3634, 3
  %v3653 = vrot.slane %v3613, 3
  %v3654 = vrot.slane %v3635, 3
  %v3655 = vrot.slane %v3614, 3
  %v3656 = vrot.slane %v3636, 3
  %v3657 = vrot.slane %v3615, 3
  %v3658 = vrot.slane %v3637, 3
  %v3659 = vrot.slane %v3616, 3
  %v3660 = vrot.slane %v3638, 3
  %3661 = vrot.lane.b32.xlu0 %v3639, 125
  %v3662 = vpop.permute.xlu0 %3661
  %3663 = vrot.lane.b32.xlu0 %v3640, 125
  %v3664 = vpop.permute.xlu0 %3663
  %3665 = vrot.lane.b32.xlu0 %v3641, 125
  %v3666 = vpop.permute.xlu0 %3665
  %3667 = vrot.lane.b32.xlu0 %v3642, 125
  %v3668 = vpop.permute.xlu0 %3667
  %3669 = vrot.lane.b32.xlu0 %v3643, 125
  %v3670 = vpop.permute.xlu0 %3669
  %3671 = vrot.lane.b32.xlu0 %v3644, 125
  %v3672 = vpop.permute.xlu0 %3671
  %3673 = vrot.lane.b32.xlu0 %v3645, 125
  %v3674 = vpop.permute.xlu0 %3673
  %3675 = vrot.lane.b32.xlu0 %v3646, 125
  %v3676 = vpop.permute.xlu0 %3675
  %3677 = vrot.lane.b32.xlu0 %v3647, 125
  %v3678 = vpop.permute.xlu0 %3677
  %3679 = vrot.lane.b32.xlu0 %v3648, 125
  %v3680 = vpop.permute.xlu0 %3679
  %3681 = vrot.lane.b32.xlu0 %v3649, 125
  %v3682 = vpop.permute.xlu0 %3681
  %3683 = vrot.lane.b32.xlu0 %v3650, 125
  %v3684 = vpop.permute.xlu0 %3683
  %3685 = vrot.lane.b32.xlu0 %v3651, 125
  %v3686 = vpop.permute.xlu0 %3685
  %3687 = vrot.lane.b32.xlu0 %v3652, 125
  %v3688 = vpop.permute.xlu0 %3687
  %3689 = vrot.lane.b32.xlu0 %v3653, 125
  %v3690 = vpop.permute.xlu0 %3689
  %3691 = vrot.lane.b32.xlu0 %v3654, 125
  %v3692 = vpop.permute.xlu0 %3691
  %3693 = vrot.lane.b32.xlu0 %v3655, 125
  %v3694 = vpop.permute.xlu0 %3693
  %3695 = vrot.lane.b32.xlu0 %v3656, 125
  %v3696 = vpop.permute.xlu0 %3695
  %3697 = vrot.lane.b32.xlu0 %v3657, 125
  %v3698 = vpop.permute.xlu0 %3697
  %3699 = vrot.lane.b32.xlu0 %v3658, 125
  %v3700 = vpop.permute.xlu0 %3699
  %3701 = vrot.lane.b32.xlu0 %v3659, 125
  %v3702 = vpop.permute.xlu0 %3701
  %3703 = vrot.lane.b32.xlu0 %v3660, 125
  %v3704 = vpop.permute.xlu0 %3703
  %v3705 = vsel %vm528, %v3662, %v3664
  %v3706 = vsel %vm528, %v3664, %v3666
  %v3707 = vsel %vm528, %v3666, %v3668
  %v3708 = vsel %vm528, %v3668, %v3670
  %v3709 = vsel %vm528, %v3670, %v3672
  %v3710 = vsel %vm528, %v3672, %v3674
  %v3711 = vsel %vm528, %v3674, %v3676
  %v3712 = vsel %vm528, %v3676, %v3678
  %v3713 = vsel %vm528, %v3678, %v3680
  %v3714 = vsel %vm528, %v3680, %v3682
  %v3715 = vsel %vm528, %v3682, %v3684
  %v3716 = vsel %vm528, %v3684, %v3686
  %v3717 = vsel %vm528, %v3686, %v3688
  %v3718 = vsel %vm528, %v3688, %v3690
  %v3719 = vsel %vm528, %v3690, %v3692
  %v3720 = vsel %vm528, %v3692, %v3694
  %v3721 = vsel %vm528, %v3694, %v3696
  %v3722 = vsel %vm528, %v3696, %v3698
  %v3723 = vsel %vm528, %v3698, %v3700
  %v3724 = vsel %vm528, %v3700, %v3702
  %v3725 = vsel %vm528, %v3702, %v3704
  %3747 = vst [vmem:[#allocation2 + $0x540] sm:$0xe0] %v3705
  %3748 = vst [vmem:[#allocation2 + $0x548] sm:$0xe0] %v3706
  %3749 = vst [vmem:[#allocation2 + $0x550] sm:$0xe0] %v3707
  %3750 = vst [vmem:[#allocation2 + $0x558] sm:$0xe0] %v3708
  %3751 = vst [vmem:[#allocation2 + $0x560] sm:$0xe0] %v3709
  %3752 = vst [vmem:[#allocation2 + $0x568] sm:$0xe0] %v3710
  %3753 = vst [vmem:[#allocation2 + $0x570] sm:$0xe0] %v3711
  %3754 = vst [vmem:[#allocation2 + $0x578] sm:$0xe0] %v3712
  %3755 = vst [vmem:[#allocation2 + $0x580] sm:$0xe0] %v3713
  %3756 = vst [vmem:[#allocation2 + $0x588] sm:$0xe0] %v3714
  %3757 = vst [vmem:[#allocation2 + $0x590] sm:$0xe0] %v3715
  %3758 = vst [vmem:[#allocation2 + $0x598] sm:$0xe0] %v3716
  %3759 = vst [vmem:[#allocation2 + $0x5a0] sm:$0xe0] %v3717
  %3760 = vst [vmem:[#allocation2 + $0x5a8] sm:$0xe0] %v3718
  %3761 = vst [vmem:[#allocation2 + $0x5b0] sm:$0xe0] %v3719
  %3762 = vst [vmem:[#allocation2 + $0x5b8] sm:$0xe0] %v3720
  %3763 = vst [vmem:[#allocation2 + $0x5c0] sm:$0xe0] %v3721
  %3764 = vst [vmem:[#allocation2 + $0x5c8] sm:$0xe0] %v3722
  %3765 = vst [vmem:[#allocation2 + $0x5d0] sm:$0xe0] %v3723
  %3766 = vst [vmem:[#allocation2 + $0x5d8] sm:$0xe0] %v3724
  %3767 = vst [vmem:[#allocation2 + $0x5e0] sm:$0xe0] %v3725
  %v3768 = vld [vmem:[%s0 + $0x4] sm:$0x77]
  %v3769 = vld [vmem:[%s0 + $0xc] sm:$0x77]
  %v3770 = vld [vmem:[%s0 + $0x14] sm:$0x77]
  %v3771 = vld [vmem:[%s0 + $0x1c] sm:$0x77]
  %v3772 = vld [vmem:[%s0 + $0x24] sm:$0x77]
  %v3773 = vld [vmem:[%s0 + $0x2c] sm:$0x77]
  %v3774 = vld [vmem:[%s0 + $0x34] sm:$0x77]
  %v3775 = vld [vmem:[%s0 + $0x3c] sm:$0x77]
  %v3776 = vld [vmem:[%s0 + $0x44] sm:$0x77]
  %v3777 = vld [vmem:[%s0 + $0x4c] sm:$0x77]
  %v3778 = vld [vmem:[%s0 + $0x54] sm:$0x77]
  %v3790 = vcombine.high %v3768, %v3768
  %v3791 = vcombine.high %v3769, %v3769
  %v3792 = vcombine.high %v3770, %v3770
  %v3793 = vcombine.high %v3771, %v3771
  %v3794 = vcombine.high %v3772, %v3772
  %v3795 = vcombine.high %v3773, %v3773
  %v3796 = vcombine.high %v3774, %v3774
  %v3797 = vcombine.high %v3775, %v3775
  %v3798 = vcombine.high %v3776, %v3776
  %v3799 = vcombine.high %v3777, %v3777
  %v3800 = vcombine.high %v3778, %v3778
  %3801 = vrot.lane.b32.xlu0 %v3768, 124
  %v3802 = vpop.permute.xlu0 %3801
  %3803 = vrot.lane.b32.xlu0 %v3790, 124
  %v3804 = vpop.permute.xlu0 %3803
  %3805 = vrot.lane.b32.xlu0 %v3769, 124
  %v3806 = vpop.permute.xlu0 %3805
  %3807 = vrot.lane.b32.xlu0 %v3791, 124
  %v3808 = vpop.permute.xlu0 %3807
  %3809 = vrot.lane.b32.xlu0 %v3770, 124
  %v3810 = vpop.permute.xlu0 %3809
  %3811 = vrot.lane.b32.xlu0 %v3792, 124
  %v3812 = vpop.permute.xlu0 %3811
  %3813 = vrot.lane.b32.xlu0 %v3771, 124
  %v3814 = vpop.permute.xlu0 %3813
  %3815 = vrot.lane.b32.xlu0 %v3793, 124
  %v3816 = vpop.permute.xlu0 %3815
  %3817 = vrot.lane.b32.xlu0 %v3772, 124
  %v3818 = vpop.permute.xlu0 %3817
  %3819 = vrot.lane.b32.xlu0 %v3794, 124
  %v3820 = vpop.permute.xlu0 %3819
  %3821 = vrot.lane.b32.xlu0 %v3773, 124
  %v3822 = vpop.permute.xlu0 %3821
  %3823 = vrot.lane.b32.xlu0 %v3795, 124
  %v3824 = vpop.permute.xlu0 %3823
  %3825 = vrot.lane.b32.xlu0 %v3774, 124
  %v3826 = vpop.permute.xlu0 %3825
  %3827 = vrot.lane.b32.xlu0 %v3796, 124
  %v3828 = vpop.permute.xlu0 %3827
  %3829 = vrot.lane.b32.xlu0 %v3775, 124
  %v3830 = vpop.permute.xlu0 %3829
  %3831 = vrot.lane.b32.xlu0 %v3797, 124
  %v3832 = vpop.permute.xlu0 %3831
  %3833 = vrot.lane.b32.xlu0 %v3776, 124
  %v3834 = vpop.permute.xlu0 %3833
  %3835 = vrot.lane.b32.xlu0 %v3798, 124
  %v3836 = vpop.permute.xlu0 %3835
  %3837 = vrot.lane.b32.xlu0 %v3777, 124
  %v3838 = vpop.permute.xlu0 %3837
  %3839 = vrot.lane.b32.xlu0 %v3799, 124
  %v3840 = vpop.permute.xlu0 %3839
  %3841 = vrot.lane.b32.xlu0 %v3778, 124
  %v3842 = vpop.permute.xlu0 %3841
  %3843 = vrot.lane.b32.xlu0 %v3800, 124
  %v3844 = vpop.permute.xlu0 %3843
  %v3845 = vsel %vm669, %v3802, %v3804
  %v3846 = vsel %vm669, %v3804, %v3806
  %v3847 = vsel %vm669, %v3806, %v3808
  %v3848 = vsel %vm669, %v3808, %v3810
  %v3849 = vsel %vm669, %v3810, %v3812
  %v3850 = vsel %vm669, %v3812, %v3814
  %v3851 = vsel %vm669, %v3814, %v3816
  %v3852 = vsel %vm669, %v3816, %v3818
  %v3853 = vsel %vm669, %v3818, %v3820
  %v3854 = vsel %vm669, %v3820, %v3822
  %v3855 = vsel %vm669, %v3822, %v3824
  %v3856 = vsel %vm669, %v3824, %v3826
  %v3857 = vsel %vm669, %v3826, %v3828
  %v3858 = vsel %vm669, %v3828, %v3830
  %v3859 = vsel %vm669, %v3830, %v3832
  %v3860 = vsel %vm669, %v3832, %v3834
  %v3861 = vsel %vm669, %v3834, %v3836
  %v3862 = vsel %vm669, %v3836, %v3838
  %v3863 = vsel %vm669, %v3838, %v3840
  %v3864 = vsel %vm669, %v3840, %v3842
  %v3865 = vsel %vm669, %v3842, %v3844
  %3887 = vst [vmem:[#allocation2 + $0x5e8] sm:$0x7] %v3845
  %3888 = vst [vmem:[#allocation2 + $0x5f0] sm:$0x7] %v3846
  %3889 = vst [vmem:[#allocation2 + $0x5f8] sm:$0x7] %v3847
  %3890 = vst [vmem:[#allocation2 + $0x600] sm:$0x7] %v3848
  %3891 = vst [vmem:[#allocation2 + $0x608] sm:$0x7] %v3849
  %3892 = vst [vmem:[#allocation2 + $0x610] sm:$0x7] %v3850
  %3893 = vst [vmem:[#allocation2 + $0x618] sm:$0x7] %v3851
  %3894 = vst [vmem:[#allocation2 + $0x620] sm:$0x7] %v3852
  %3895 = vst [vmem:[#allocation2 + $0x628] sm:$0x7] %v3853
  %3896 = vst [vmem:[#allocation2 + $0x630] sm:$0x7] %v3854
  %3897 = vst [vmem:[#allocation2 + $0x638] sm:$0x7] %v3855
  %3898 = vst [vmem:[#allocation2 + $0x640] sm:$0x7] %v3856
  %3899 = vst [vmem:[#allocation2 + $0x648] sm:$0x7] %v3857
  %3900 = vst [vmem:[#allocation2 + $0x650] sm:$0x7] %v3858
  %3901 = vst [vmem:[#allocation2 + $0x658] sm:$0x7] %v3859
  %3902 = vst [vmem:[#allocation2 + $0x660] sm:$0x7] %v3860
  %3903 = vst [vmem:[#allocation2 + $0x668] sm:$0x7] %v3861
  %3904 = vst [vmem:[#allocation2 + $0x670] sm:$0x7] %v3862
  %3905 = vst [vmem:[#allocation2 + $0x678] sm:$0x7] %v3863
  %3906 = vst [vmem:[#allocation2 + $0x680] sm:$0x7] %v3864
  %3907 = vst [vmem:[#allocation2 + $0x688] sm:$0x7] %v3865
  %3908 = vst [vmem:[#allocation2 + $0x5e8] sm:$0xf8] 0.0
  %3909 = vst [vmem:[#allocation2 + $0x5f0] sm:$0xf8] 0.0
  %3910 = vst [vmem:[#allocation2 + $0x5f8] sm:$0xf8] 0.0
  %3911 = vst [vmem:[#allocation2 + $0x600] sm:$0xf8] 0.0
  %3912 = vst [vmem:[#allocation2 + $0x608] sm:$0xf8] 0.0
  %3913 = vst [vmem:[#allocation2 + $0x610] sm:$0xf8] 0.0
  %3914 = vst [vmem:[#allocation2 + $0x618] sm:$0xf8] 0.0
  %3915 = vst [vmem:[#allocation2 + $0x620] sm:$0xf8] 0.0
  %3916 = vst [vmem:[#allocation2 + $0x628] sm:$0xf8] 0.0
  %3917 = vst [vmem:[#allocation2 + $0x630] sm:$0xf8] 0.0
  %3918 = vst [vmem:[#allocation2 + $0x638] sm:$0xf8] 0.0
  %3919 = vst [vmem:[#allocation2 + $0x640] sm:$0xf8] 0.0
  %3920 = vst [vmem:[#allocation2 + $0x648] sm:$0xf8] 0.0
  %3921 = vst [vmem:[#allocation2 + $0x650] sm:$0xf8] 0.0
  %3922 = vst [vmem:[#allocation2 + $0x658] sm:$0xf8] 0.0
  %3923 = vst [vmem:[#allocation2 + $0x660] sm:$0xf8] 0.0
  %3924 = vst [vmem:[#allocation2 + $0x668] sm:$0xf8] 0.0
  %3925 = vst [vmem:[#allocation2 + $0x670] sm:$0xf8] 0.0
  %3926 = vst [vmem:[#allocation2 + $0x678] sm:$0xf8] 0.0
  %3927 = vst [vmem:[#allocation2 + $0x680] sm:$0xf8] 0.0
  %3928 = vst [vmem:[#allocation2 + $0x688] sm:$0xf8] 0.0
  %v3929 = vld [vmem:[%s1] sm:$0xff]
  %v3930 = vld [vmem:[#allocation2] sm:$0xff]
  %v3931 = vld [vmem:[#allocation2 + $0x8] sm:$0xff]
  %v3932 = vld [vmem:[#allocation2 + $0x10] sm:$0xff]
  %v3933 = vld [vmem:[#allocation2 + $0x18] sm:$0xff]
  %v3934 = vld [vmem:[#allocation2 + $0x20] sm:$0xff]
  %v3935 = vld [vmem:[#allocation2 + $0x28] sm:$0xff]
  %v3936 = vld [vmem:[#allocation2 + $0x30] sm:$0xff]
  %v3937 = vld [vmem:[#allocation2 + $0x38] sm:$0xff]
  %v3938 = vld [vmem:[#allocation2 + $0x40] sm:$0xff]
  %v3939 = vld [vmem:[#allocation2 + $0x48] sm:$0xff]
  %v3940 = vld [vmem:[#allocation2 + $0x50] sm:$0xff]
  %v3941 = vld [vmem:[#allocation2 + $0x58] sm:$0xff]
  %v3942 = vld [vmem:[#allocation2 + $0x60] sm:$0xff]
  %v3943 = vld [vmem:[#allocation2 + $0x68] sm:$0xff]
  %v3944 = vld [vmem:[#allocation2 + $0x70] sm:$0xff]
  %v3945 = vld [vmem:[#allocation2 + $0x78] sm:$0xff]
  %v3946 = vld [vmem:[#allocation2 + $0x80] sm:$0xff]
  %v3947 = vld [vmem:[#allocation2 + $0x88] sm:$0xff]
  %v3948 = vld [vmem:[#allocation2 + $0x90] sm:$0xff]
  %v3949 = vld [vmem:[#allocation2 + $0x98] sm:$0xff]
  %v3950 = vld [vmem:[#allocation2 + $0xa0] sm:$0xff]
  %v3951 = vld [vmem:[#allocation2 + $0xa8] sm:$0xff]
  %v3952 = vld [vmem:[#allocation2 + $0xb0] sm:$0xff]
  %v3953 = vld [vmem:[#allocation2 + $0xb8] sm:$0xff]
  %v3954 = vld [vmem:[#allocation2 + $0xc0] sm:$0xff]
  %v3955 = vld [vmem:[#allocation2 + $0xc8] sm:$0xff]
  %v3956 = vld [vmem:[#allocation2 + $0xd0] sm:$0xff]
  %v3957 = vld [vmem:[#allocation2 + $0xd8] sm:$0xff]
  %v3958 = vld [vmem:[#allocation2 + $0xe0] sm:$0xff]
  %v3959 = vld [vmem:[#allocation2 + $0xe8] sm:$0xff]
  %v3960 = vld [vmem:[#allocation2 + $0xf0] sm:$0xff]
  %v3961 = vld [vmem:[#allocation2 + $0xf8] sm:$0xff]
  %v3962 = vld [vmem:[#allocation2 + $0x100] sm:$0xff]
  %v3963 = vld [vmem:[#allocation2 + $0x108] sm:$0xff]
  %v3964 = vld [vmem:[#allocation2 + $0x110] sm:$0xff]
  %v3965 = vld [vmem:[#allocation2 + $0x118] sm:$0xff]
  %v3966 = vld [vmem:[#allocation2 + $0x120] sm:$0xff]
  %v3967 = vld [vmem:[#allocation2 + $0x128] sm:$0xff]
  %v3968 = vld [vmem:[#allocation2 + $0x130] sm:$0xff]
  %v3969 = vld [vmem:[#allocation2 + $0x138] sm:$0xff]
  %v3970 = vld [vmem:[#allocation2 + $0x140] sm:$0xff]
  %v3971 = vld [vmem:[#allocation2 + $0x148] sm:$0xff]
  %v3972 = vld [vmem:[#allocation2 + $0x150] sm:$0xff]
  %v3973 = vld [vmem:[#allocation2 + $0x158] sm:$0xff]
  %v3974 = vld [vmem:[#allocation2 + $0x160] sm:$0xff]
  %v3975 = vld [vmem:[#allocation2 + $0x168] sm:$0xff]
  %v3976 = vld [vmem:[#allocation2 + $0x170] sm:$0xff]
  %v3977 = vld [vmem:[#allocation2 + $0x178] sm:$0xff]
  %v3978 = vld [vmem:[#allocation2 + $0x180] sm:$0xff]
  %v3979 = vld [vmem:[#allocation2 + $0x188] sm:$0xff]
  %v3980 = vld [vmem:[#allocation2 + $0x190] sm:$0xff]
  %v3981 = vld [vmem:[#allocation2 + $0x198] sm:$0xff]
  %v3982 = vld [vmem:[#allocation2 + $0x1a0] sm:$0xff]
  %v3983 = vld [vmem:[#allocation2 + $0x1a8] sm:$0xff]
  %v3984 = vld [vmem:[#allocation2 + $0x1b0] sm:$0xff]
  %v3985 = vld [vmem:[#allocation2 + $0x1b8] sm:$0xff]
  %v3986 = vld [vmem:[#allocation2 + $0x1c0] sm:$0xff]
  %v3987 = vld [vmem:[#allocation2 + $0x1c8] sm:$0xff]
  %v3988 = vld [vmem:[#allocation2 + $0x1d0] sm:$0xff]
  %v3989 = vld [vmem:[#allocation2 + $0x1d8] sm:$0xff]
  %v3990 = vld [vmem:[#allocation2 + $0x1e0] sm:$0xff]
  %v3991 = vld [vmem:[#allocation2 + $0x1e8] sm:$0xff]
  %v3992 = vld [vmem:[#allocation2 + $0x1f0] sm:$0xff]
  %v3993 = vld [vmem:[#allocation2 + $0x1f8] sm:$0xff]
  %v3994 = vld [vmem:[#allocation2 + $0x200] sm:$0xff]
  %v3995 = vld [vmem:[#allocation2 + $0x208] sm:$0xff]
  %v3996 = vld [vmem:[#allocation2 + $0x210] sm:$0xff]
  %v3997 = vld [vmem:[#allocation2 + $0x218] sm:$0xff]
  %v3998 = vld [vmem:[#allocation2 + $0x220] sm:$0xff]
  %v3999 = vld [vmem:[#allocation2 + $0x228] sm:$0xff]
  %v4000 = vld [vmem:[#allocation2 + $0x230] sm:$0xff]
  %v4001 = vld [vmem:[#allocation2 + $0x238] sm:$0xff]
  %v4002 = vld [vmem:[#allocation2 + $0x240] sm:$0xff]
  %v4003 = vld [vmem:[#allocation2 + $0x248] sm:$0xff]
  %v4004 = vld [vmem:[#allocation2 + $0x250] sm:$0xff]
  %v4005 = vld [vmem:[#allocation2 + $0x258] sm:$0xff]
  %v4006 = vld [vmem:[#allocation2 + $0x260] sm:$0xff]
  %v4007 = vld [vmem:[#allocation2 + $0x268] sm:$0xff]
  %v4008 = vld [vmem:[#allocation2 + $0x270] sm:$0xff]
  %v4009 = vld [vmem:[#allocation2 + $0x278] sm:$0xff]
  %v4010 = vld [vmem:[#allocation2 + $0x280] sm:$0xff]
  %v4011 = vld [vmem:[#allocation2 + $0x288] sm:$0xff]
  %v4012 = vld [vmem:[#allocation2 + $0x290] sm:$0xff]
  %v4013 = vld [vmem:[#allocation2 + $0x298] sm:$0xff]
  %v4014 = vld [vmem:[#allocation2 + $0x2a0] sm:$0xff]
  %v4015 = vld [vmem:[#allocation2 + $0x2a8] sm:$0xff]
  %v4016 = vld [vmem:[#allocation2 + $0x2b0] sm:$0xff]
  %v4017 = vld [vmem:[#allocation2 + $0x2b8] sm:$0xff]
  %v4018 = vld [vmem:[#allocation2 + $0x2c0] sm:$0xff]
  %v4019 = vld [vmem:[#allocation2 + $0x2c8] sm:$0xff]
  %v4020 = vld [vmem:[#allocation2 + $0x2d0] sm:$0xff]
  %v4021 = vld [vmem:[#allocation2 + $0x2d8] sm:$0xff]
  %v4022 = vld [vmem:[#allocation2 + $0x2e0] sm:$0xff]
  %v4023 = vld [vmem:[#allocation2 + $0x2e8] sm:$0xff]
  %v4024 = vld [vmem:[#allocation2 + $0x2f0] sm:$0xff]
  %v4025 = vld [vmem:[#allocation2 + $0x2f8] sm:$0xff]
  %v4026 = vld [vmem:[#allocation2 + $0x300] sm:$0xff]
  %v4027 = vld [vmem:[#allocation2 + $0x308] sm:$0xff]
  %v4028 = vld [vmem:[#allocation2 + $0x310] sm:$0xff]
  %v4029 = vld [vmem:[#allocation2 + $0x318] sm:$0xff]
  %v4030 = vld [vmem:[#allocation2 + $0x320] sm:$0xff]
  %v4031 = vld [vmem:[#allocation2 + $0x328] sm:$0xff]
  %v4032 = vld [vmem:[#allocation2 + $0x330] sm:$0xff]
  %v4033 = vld [vmem:[#allocation2 + $0x338] sm:$0xff]
  %v4034 = vld [vmem:[#allocation2 + $0x340] sm:$0xff]
  %v4035 = vld [vmem:[#allocation2 + $0x348] sm:$0xff]
  %v4036 = vld [vmem:[#allocation2 + $0x350] sm:$0xff]
  %v4037 = vld [vmem:[#allocation2 + $0x358] sm:$0xff]
  %v4038 = vld [vmem:[#allocation2 + $0x360] sm:$0xff]
  %v4039 = vld [vmem:[#allocation2 + $0x368] sm:$0xff]
  %v4040 = vld [vmem:[#allocation2 + $0x370] sm:$0xff]
  %v4041 = vld [vmem:[#allocation2 + $0x378] sm:$0xff]
  %v4042 = vld [vmem:[#allocation2 + $0x380] sm:$0xff]
  %v4043 = vld [vmem:[#allocation2 + $0x388] sm:$0xff]
  %v4044 = vld [vmem:[#allocation2 + $0x390] sm:$0xff]
  %v4045 = vld [vmem:[#allocation2 + $0x398] sm:$0xff]
  %v4046 = vld [vmem:[#allocation2 + $0x3a0] sm:$0xff]
  %v4047 = vld [vmem:[#allocation2 + $0x3a8] sm:$0xff]
  %v4048 = vld [vmem:[#allocation2 + $0x3b0] sm:$0xff]
  %v4049 = vld [vmem:[#allocation2 + $0x3b8] sm:$0xff]
  %v4050 = vld [vmem:[#allocation2 + $0x3c0] sm:$0xff]
  %v4051 = vld [vmem:[#allocation2 + $0x3c8] sm:$0xff]
  %v4052 = vld [vmem:[#allocation2 + $0x3d0] sm:$0xff]
  %v4053 = vld [vmem:[#allocation2 + $0x3d8] sm:$0xff]
  %v4054 = vld [vmem:[#allocation2 + $0x3e0] sm:$0xff]
  %v4055 = vld [vmem:[#allocation2 + $0x3e8] sm:$0xff]
  %v4056 = vld [vmem:[#allocation2 + $0x3f0] sm:$0xff]
  %v4057 = vld [vmem:[#allocation2 + $0x3f8] sm:$0xff]
  %v4058 = vld [vmem:[#allocation2 + $0x400] sm:$0xff]
  %v4059 = vld [vmem:[#allocation2 + $0x408] sm:$0xff]
  %v4060 = vld [vmem:[#allocation2 + $0x410] sm:$0xff]
  %v4061 = vld [vmem:[#allocation2 + $0x418] sm:$0xff]
  %v4062 = vld [vmem:[#allocation2 + $0x420] sm:$0xff]
  %v4063 = vld [vmem:[#allocation2 + $0x428] sm:$0xff]
  %v4064 = vld [vmem:[#allocation2 + $0x430] sm:$0xff]
  %v4065 = vld [vmem:[#allocation2 + $0x438] sm:$0xff]
  %v4066 = vld [vmem:[#allocation2 + $0x440] sm:$0xff]
  %v4067 = vld [vmem:[#allocation2 + $0x448] sm:$0xff]
  %v4068 = vld [vmem:[#allocation2 + $0x450] sm:$0xff]
  %v4069 = vld [vmem:[#allocation2 + $0x458] sm:$0xff]
  %v4070 = vld [vmem:[#allocation2 + $0x460] sm:$0xff]
  %v4071 = vld [vmem:[#allocation2 + $0x468] sm:$0xff]
  %v4072 = vld [vmem:[#allocation2 + $0x470] sm:$0xff]
  %v4073 = vld [vmem:[#allocation2 + $0x478] sm:$0xff]
  %v4074 = vld [vmem:[#allocation2 + $0x480] sm:$0xff]
  %v4075 = vld [vmem:[#allocation2 + $0x488] sm:$0xff]
  %v4076 = vld [vmem:[#allocation2 + $0x490] sm:$0xff]
  %v4077 = vld [vmem:[#allocation2 + $0x498] sm:$0xff]
  %v4078 = vld [vmem:[#allocation2 + $0x4a0] sm:$0xff]
  %v4079 = vld [vmem:[#allocation2 + $0x4a8] sm:$0xff]
  %v4080 = vld [vmem:[#allocation2 + $0x4b0] sm:$0xff]
  %v4081 = vld [vmem:[#allocation2 + $0x4b8] sm:$0xff]
  %v4082 = vld [vmem:[#allocation2 + $0x4c0] sm:$0xff]
  %v4083 = vld [vmem:[#allocation2 + $0x4c8] sm:$0xff]
  %v4084 = vld [vmem:[#allocation2 + $0x4d0] sm:$0xff]
  %v4085 = vld [vmem:[#allocation2 + $0x4d8] sm:$0xff]
  %v4086 = vld [vmem:[#allocation2 + $0x4e0] sm:$0xff]
  %v4087 = vld [vmem:[#allocation2 + $0x4e8] sm:$0xff]
  %v4088 = vld [vmem:[#allocation2 + $0x4f0] sm:$0xff]
  %v4089 = vld [vmem:[#allocation2 + $0x4f8] sm:$0xff]
  %v4090 = vld [vmem:[#allocation2 + $0x500] sm:$0xff]
  %v4091 = vld [vmem:[#allocation2 + $0x508] sm:$0xff]
  %v4092 = vld [vmem:[#allocation2 + $0x510] sm:$0xff]
  %v4093 = vld [vmem:[#allocation2 + $0x518] sm:$0xff]
  %v4094 = vld [vmem:[#allocation2 + $0x520] sm:$0xff]
  %v4095 = vld [vmem:[#allocation2 + $0x528] sm:$0xff]
  %v4096 = vld [vmem:[#allocation2 + $0x530] sm:$0xff]
  %v4097 = vld [vmem:[#allocation2 + $0x538] sm:$0xff]
  %v4098 = vld [vmem:[#allocation2 + $0x540] sm:$0xff]
  %v4099 = vld [vmem:[#allocation2 + $0x548] sm:$0xff]
  %v4100 = vld [vmem:[#allocation2 + $0x550] sm:$0xff]
  %v4101 = vld [vmem:[#allocation2 + $0x558] sm:$0xff]
  %v4102 = vld [vmem:[#allocation2 + $0x560] sm:$0xff]
  %v4103 = vld [vmem:[#allocation2 + $0x568] sm:$0xff]
  %v4104 = vld [vmem:[#allocation2 + $0x570] sm:$0xff]
  %v4105 = vld [vmem:[#allocation2 + $0x578] sm:$0xff]
  %v4106 = vld [vmem:[#allocation2 + $0x580] sm:$0xff]
  %v4107 = vld [vmem:[#allocation2 + $0x588] sm:$0xff]
  %v4108 = vld [vmem:[#allocation2 + $0x590] sm:$0xff]
  %v4109 = vld [vmem:[#allocation2 + $0x598] sm:$0xff]
  %v4110 = vld [vmem:[#allocation2 + $0x5a0] sm:$0xff]
  %v4111 = vld [vmem:[#allocation2 + $0x5a8] sm:$0xff]
  %v4112 = vld [vmem:[#allocation2 + $0x5b0] sm:$0xff]
  %v4113 = vld [vmem:[#allocation2 + $0x5b8] sm:$0xff]
  %v4114 = vld [vmem:[#allocation2 + $0x5c0] sm:$0xff]
  %v4115 = vld [vmem:[#allocation2 + $0x5c8] sm:$0xff]
  %v4116 = vld [vmem:[#allocation2 + $0x5d0] sm:$0xff]
  %v4117 = vld [vmem:[#allocation2 + $0x5d8] sm:$0xff]
  %v4118 = vld [vmem:[#allocation2 + $0x5e0] sm:$0xff]
  %v4119 = vld [vmem:[#allocation2 + $0x5e8] sm:$0xff]
  %v4120 = vld [vmem:[#allocation2 + $0x5f0] sm:$0xff]
  %v4121 = vld [vmem:[#allocation2 + $0x5f8] sm:$0xff]
  %v4122 = vld [vmem:[#allocation2 + $0x600] sm:$0xff]
  %v4123 = vld [vmem:[#allocation2 + $0x608] sm:$0xff]
  %v4124 = vld [vmem:[#allocation2 + $0x610] sm:$0xff]
  %v4125 = vld [vmem:[#allocation2 + $0x618] sm:$0xff]
  %v4126 = vld [vmem:[#allocation2 + $0x620] sm:$0xff]
  %v4127 = vld [vmem:[#allocation2 + $0x628] sm:$0xff]
  %v4128 = vld [vmem:[#allocation2 + $0x630] sm:$0xff]
  %v4129 = vld [vmem:[#allocation2 + $0x638] sm:$0xff]
  %v4130 = vld [vmem:[#allocation2 + $0x640] sm:$0xff]
  %v4131 = vld [vmem:[#allocation2 + $0x648] sm:$0xff]
  %v4132 = vld [vmem:[#allocation2 + $0x650] sm:$0xff]
  %v4133 = vld [vmem:[#allocation2 + $0x658] sm:$0xff]
  %v4134 = vld [vmem:[#allocation2 + $0x660] sm:$0xff]
  %v4135 = vld [vmem:[#allocation2 + $0x668] sm:$0xff]
  %v4136 = vld [vmem:[#allocation2 + $0x670] sm:$0xff]
  %v4137 = vld [vmem:[#allocation2 + $0x678] sm:$0xff]
  %v4138 = vld [vmem:[#allocation2 + $0x680] sm:$0xff]
  %v4139 = vld [vmem:[#allocation2 + $0x688] sm:$0xff]
  %v4140 = vld [vmem:[%s2] sm:$0xff]
  %4142 = vset.pattern.permute.xlu0 0
  %4143 = vperm.xlu0 %4142, %v4140
  %v4144 = vpop.permute.xlu0 %4143
  %vm4146 = vcmask 654336
  %v4148 = vsel %vm4146, %v3929, 0
  %4150 = vmatprep.subr.mxu0 0.0
  %4151 = vmatpush1.msra.mxu0 0.0
  %4152 = vmatprep.subr.mxu0 0.0
  %4153 = vmatpush1.msra.mxu0 0.0
  %4154 = vmatprep.subr.mxu0 0.0
  %4155 = vmatpush1.msra.mxu0 0.0
  %4156 = vmatprep.subr.mxu0 0.0
  %4157 = vmatpush1.msra.mxu0 0.0
  %4158 = vmatprep.subr.mxu0 0.0
  %4159 = vmatpush1.msra.mxu0 0.0
  %4160 = vmatprep.subr.mxu0 0.0
  %4161 = vmatpush1.msra.mxu0 0.0
  %4162 = vmatprep.subr.mxu0 %v4120
  %4163 = vmatpush1.msra.mxu0 %v4119
  %4164 = vmatprep.subr.mxu0 %v4099
  %4165 = vmatpush1.msra.mxu0 %v4098
  %4166 = vmatprep.subr.mxu0 %v4078
  %4167 = vmatpush1.msra.mxu0 %v4077
  %4168 = vmatprep.subr.mxu0 %v4057
  %4169 = vmatpush1.msra.mxu0 %v4056
  %4170 = vmatprep.subr.mxu0 %v4036
  %4171 = vmatpush1.msra.mxu0 %v4035
  %4172 = vmatprep.subr.mxu0 %v4015
  %4173 = vmatpush1.msra.mxu0 %v4014
  %4174 = vmatprep.subr.mxu0 %v3994
  %4175 = vmatpush1.msra.mxu0 %v3993
  %4176 = vmatprep.subr.mxu0 %v3973
  %4177 = vmatpush1.msra.mxu0 %v3972
  %4178 = vmatprep.subr.mxu0 %v3952
  %4179 = vmatpush1.msra.mxu0 %v3951
  %4180 = vmatprep.subr.mxu0 %v3931
  %4181 = vmatpush1.msra.mxu0 %v3930
  %4182 = vmatprep.subr.mxu0 0.0
  %4183 = vmatpush2.msra.mxu0 0.0
  %4184 = vmatprep.subr.mxu0 0.0
  %4185 = vmatpush2.msra.mxu0 0.0
  %4186 = vmatprep.subr.mxu0 0.0
  %4187 = vmatpush2.msra.mxu0 0.0
  %4188 = vmatprep.subr.mxu0 0.0
  %4189 = vmatpush2.msra.mxu0 0.0
  %4190 = vmatprep.subr.mxu0 0.0
  %4191 = vmatpush2.msra.mxu0 0.0
  %4192 = vmatprep.subr.mxu0 0.0
  %4193 = vmatpush2.msra.mxu0 0.0
  %4194 = vmatprep.subr.mxu0 0.0
  %4195 = vmatpush2.msra.mxu0 0.0
  %4196 = vmatprep.subr.mxu0 0.0
  %4197 = vmatpush2.msra.mxu0 0.0
  %4198 = vmatprep.subr.mxu0 0.0
  %4199 = vmatpush2.msra.mxu0 0.0
  %4200 = vmatprep.subr.mxu0 0.0
  %4201 = vmatpush2.msra.mxu0 0.0
  %4202 = vmatprep.subr.mxu0 0.0
  %4203 = vmatpush2.msra.mxu0 0.0
  %4204 = vmatprep.subr.mxu0 0.0
  %4205 = vmatpush2.msra.mxu0 0.0
  %4206 = vmatprep.subr.mxu0 0.0
  %4207 = vmatpush2.msra.mxu0 0.0
  %4208 = vmatprep.subr.mxu0 0.0
  %4209 = vmatpush2.msra.mxu0 0.0
  %4210 = vmatprep.subr.mxu0 0.0
  %4211 = vmatpush2.msra.mxu0 0.0
  %4212 = vmatprep.subr.mxu0 0.0
  %4213 = vmatpush2.msra.mxu0 0.0
  %4214 = vmatprep.mubr.f32.mxu0 0.0
  %4215 = vmatmul.mubr.f32.gmra.mxu0 %v4148
  %v4216 = vpop.f32.mrf.mxu0
  %v4217 = vadd.f32 %v4144, %v4216
  %v4218 = vpop.f32.mrf.mxu0
  %v4219 = vadd.f32 %v4144, %v4218
  %4220 = vdwg.mxu0
  %4221 = vmatprep.subr.mxu0 0.0
  %4222 = vmatpush1.msra.mxu0 0.0
  %4223 = vmatprep.subr.mxu0 0.0
  %4224 = vmatpush1.msra.mxu0 0.0
  %4225 = vmatprep.subr.mxu0 0.0
  %4226 = vmatpush1.msra.mxu0 0.0
  %4227 = vmatprep.subr.mxu0 0.0
  %4228 = vmatpush1.msra.mxu0 0.0
  %4229 = vmatprep.subr.mxu0 0.0
  %4230 = vmatpush1.msra.mxu0 0.0
  %4231 = vmatprep.subr.mxu0 0.0
  %4232 = vmatpush1.msra.mxu0 0.0
  %4233 = vmatprep.subr.mxu0 %v4122
  %4234 = vmatpush1.msra.mxu0 %v4121
  %4235 = vmatprep.subr.mxu0 %v4101
  %4236 = vmatpush1.msra.mxu0 %v4100
  %4237 = vmatprep.subr.mxu0 %v4080
  %4238 = vmatpush1.msra.mxu0 %v4079
  %4239 = vmatprep.subr.mxu0 %v4059
  %4240 = vmatpush1.msra.mxu0 %v4058
  %4241 = vmatprep.subr.mxu0 %v4038
  %4242 = vmatpush1.msra.mxu0 %v4037
  %4243 = vmatprep.subr.mxu0 %v4017
  %4244 = vmatpush1.msra.mxu0 %v4016
  %4245 = vmatprep.subr.mxu0 %v3996
  %4246 = vmatpush1.msra.mxu0 %v3995
  %4247 = vmatprep.subr.mxu0 %v3975
  %4248 = vmatpush1.msra.mxu0 %v3974
  %4249 = vmatprep.subr.mxu0 %v3954
  %4250 = vmatpush1.msra.mxu0 %v3953
  %4251 = vmatprep.subr.mxu0 %v3933
  %4252 = vmatpush1.msra.mxu0 %v3932
  %4253 = vmatprep.subr.mxu0 0.0
  %4254 = vmatpush2.msra.mxu0 0.0
  %4255 = vmatprep.subr.mxu0 0.0
  %4256 = vmatpush2.msra.mxu0 0.0
  %4257 = vmatprep.subr.mxu0 0.0
  %4258 = vmatpush2.msra.mxu0 0.0
  %4259 = vmatprep.subr.mxu0 0.0
  %4260 = vmatpush2.msra.mxu0 0.0
  %4261 = vmatprep.subr.mxu0 0.0
  %4262 = vmatpush2.msra.mxu0 0.0
  %4263 = vmatprep.subr.mxu0 0.0
  %4264 = vmatpush2.msra.mxu0 0.0
  %4265 = vmatprep.subr.mxu0 0.0
  %4266 = vmatpush2.msra.mxu0 0.0
  %4267 = vmatprep.subr.mxu0 0.0
  %4268 = vmatpush2.msra.mxu0 0.0
  %4269 = vmatprep.subr.mxu0 0.0
  %4270 = vmatpush2.msra.mxu0 0.0
  %4271 = vmatprep.subr.mxu0 0.0
  %4272 = vmatpush2.msra.mxu0 0.0
  %4273 = vmatprep.subr.mxu0 0.0
  %4274 = vmatpush2.msra.mxu0 0.0
  %4275 = vmatprep.subr.mxu0 0.0
  %4276 = vmatpush2.msra.mxu0 0.0
  %4277 = vmatprep.subr.mxu0 0.0
  %4278 = vmatpush2.msra.mxu0 0.0
  %4279 = vmatprep.subr.mxu0 0.0
  %4280 = vmatpush2.msra.mxu0 0.0
  %4281 = vmatprep.subr.mxu0 0.0
  %4282 = vmatpush2.msra.mxu0 0.0
  %4283 = vmatprep.subr.mxu0 0.0
  %4284 = vmatpush2.msra.mxu0 0.0
  %4285 = vmatprep.mubr.f32.mxu0 0.0
  %4286 = vmatmul.mubr.f32.gmra.mxu0 %v4148
  %v4287 = vpop.f32.mrf.mxu0
  %v4288 = vadd.f32 %v4144, %v4287
  %v4289 = vpop.f32.mrf.mxu0
  %v4290 = vadd.f32 %v4144, %v4289
  %4291 = vdwg.mxu0
  %4292 = vmatprep.subr.mxu0 0.0
  %4293 = vmatpush1.msra.mxu0 0.0
  %4294 = vmatprep.subr.mxu0 0.0
  %4295 = vmatpush1.msra.mxu0 0.0
  %4296 = vmatprep.subr.mxu0 0.0
  %4297 = vmatpush1.msra.mxu0 0.0
  %4298 = vmatprep.subr.mxu0 0.0
  %4299 = vmatpush1.msra.mxu0 0.0
  %4300 = vmatprep.subr.mxu0 0.0
  %4301 = vmatpush1.msra.mxu0 0.0
  %4302 = vmatprep.subr.mxu0 0.0
  %4303 = vmatpush1.msra.mxu0 0.0
  %4304 = vmatprep.subr.mxu0 %v4124
  %4305 = vmatpush1.msra.mxu0 %v4123
  %4306 = vmatprep.subr.mxu0 %v4103
  %4307 = vmatpush1.msra.mxu0 %v4102
  %4308 = vmatprep.subr.mxu0 %v4082
  %4309 = vmatpush1.msra.mxu0 %v4081
  %4310 = vmatprep.subr.mxu0 %v4061
  %4311 = vmatpush1.msra.mxu0 %v4060
  %4312 = vmatprep.subr.mxu0 %v4040
  %4313 = vmatpush1.msra.mxu0 %v4039
  %4314 = vmatprep.subr.mxu0 %v4019
  %4315 = vmatpush1.msra.mxu0 %v4018
  %4316 = vmatprep.subr.mxu0 %v3998
  %4317 = vmatpush1.msra.mxu0 %v3997
  %4318 = vmatprep.subr.mxu0 %v3977
  %4319 = vmatpush1.msra.mxu0 %v3976
  %4320 = vmatprep.subr.mxu0 %v3956
  %4321 = vmatpush1.msra.mxu0 %v3955
  %4322 = vmatprep.subr.mxu0 %v3935
  %4323 = vmatpush1.msra.mxu0 %v3934
  %4324 = vmatprep.subr.mxu0 0.0
  %4325 = vmatpush2.msra.mxu0 0.0
  %4326 = vmatprep.subr.mxu0 0.0
  %4327 = vmatpush2.msra.mxu0 0.0
  %4328 = vmatprep.subr.mxu0 0.0
  %4329 = vmatpush2.msra.mxu0 0.0
  %4330 = vmatprep.subr.mxu0 0.0
  %4331 = vmatpush2.msra.mxu0 0.0
  %4332 = vmatprep.subr.mxu0 0.0
  %4333 = vmatpush2.msra.mxu0 0.0
  %4334 = vmatprep.subr.mxu0 0.0
  %4335 = vmatpush2.msra.mxu0 0.0
  %4336 = vmatprep.subr.mxu0 0.0
  %4337 = vmatpush2.msra.mxu0 0.0
  %4338 = vmatprep.subr.mxu0 0.0
  %4339 = vmatpush2.msra.mxu0 0.0
  %4340 = vmatprep.subr.mxu0 0.0
  %4341 = vmatpush2.msra.mxu0 0.0
  %4342 = vmatprep.subr.mxu0 0.0
  %4343 = vmatpush2.msra.mxu0 0.0
  %4344 = vmatprep.subr.mxu0 0.0
  %4345 = vmatpush2.msra.mxu0 0.0
  %4346 = vmatprep.subr.mxu0 0.0
  %4347 = vmatpush2.msra.mxu0 0.0
  %4348 = vmatprep.subr.mxu0 0.0
  %4349 = vmatpush2.msra.mxu0 0.0
  %4350 = vmatprep.subr.mxu0 0.0
  %4351 = vmatpush2.msra.mxu0 0.0
  %4352 = vmatprep.subr.mxu0 0.0
  %4353 = vmatpush2.msra.mxu0 0.0
  %4354 = vmatprep.subr.mxu0 0.0
  %4355 = vmatpush2.msra.mxu0 0.0
  %4356 = vmatprep.mubr.f32.mxu0 0.0
  %4357 = vmatmul.mubr.f32.gmra.mxu0 %v4148
  %v4358 = vpop.f32.mrf.mxu0
  %v4359 = vadd.f32 %v4144, %v4358
  %v4360 = vpop.f32.mrf.mxu0
  %v4361 = vadd.f32 %v4144, %v4360
  %4362 = vdwg.mxu0
  %4363 = vmatprep.subr.mxu0 0.0
  %4364 = vmatpush1.msra.mxu0 0.0
  %4365 = vmatprep.subr.mxu0 0.0
  %4366 = vmatpush1.msra.mxu0 0.0
  %4367 = vmatprep.subr.mxu0 0.0
  %4368 = vmatpush1.msra.mxu0 0.0
  %4369 = vmatprep.subr.mxu0 0.0
  %4370 = vmatpush1.msra.mxu0 0.0
  %4371 = vmatprep.subr.mxu0 0.0
  %4372 = vmatpush1.msra.mxu0 0.0
  %4373 = vmatprep.subr.mxu0 0.0
  %4374 = vmatpush1.msra.mxu0 0.0
  %4375 = vmatprep.subr.mxu0 %v4126
  %4376 = vmatpush1.msra.mxu0 %v4125
  %4377 = vmatprep.subr.mxu0 %v4105
  %4378 = vmatpush1.msra.mxu0 %v4104
  %4379 = vmatprep.subr.mxu0 %v4084
  %4380 = vmatpush1.msra.mxu0 %v4083
  %4381 = vmatprep.subr.mxu0 %v4063
  %4382 = vmatpush1.msra.mxu0 %v4062
  %4383 = vmatprep.subr.mxu0 %v4042
  %4384 = vmatpush1.msra.mxu0 %v4041
  %4385 = vmatprep.subr.mxu0 %v4021
  %4386 = vmatpush1.msra.mxu0 %v4020
  %4387 = vmatprep.subr.mxu0 %v4000
  %4388 = vmatpush1.msra.mxu0 %v3999
  %4389 = vmatprep.subr.mxu0 %v3979
  %4390 = vmatpush1.msra.mxu0 %v3978
  %4391 = vmatprep.subr.mxu0 %v3958
  %4392 = vmatpush1.msra.mxu0 %v3957
  %4393 = vmatprep.subr.mxu0 %v3937
  %4394 = vmatpush1.msra.mxu0 %v3936
  %4395 = vmatprep.subr.mxu0 0.0
  %4396 = vmatpush2.msra.mxu0 0.0
  %4397 = vmatprep.subr.mxu0 0.0
  %4398 = vmatpush2.msra.mxu0 0.0
  %4399 = vmatprep.subr.mxu0 0.0
  %4400 = vmatpush2.msra.mxu0 0.0
  %4401 = vmatprep.subr.mxu0 0.0
  %4402 = vmatpush2.msra.mxu0 0.0
  %4403 = vmatprep.subr.mxu0 0.0
  %4404 = vmatpush2.msra.mxu0 0.0
  %4405 = vmatprep.subr.mxu0 0.0
  %4406 = vmatpush2.msra.mxu0 0.0
  %4407 = vmatprep.subr.mxu0 0.0
  %4408 = vmatpush2.msra.mxu0 0.0
  %4409 = vmatprep.subr.mxu0 0.0
  %4410 = vmatpush2.msra.mxu0 0.0
  %4411 = vmatprep.subr.mxu0 0.0
  %4412 = vmatpush2.msra.mxu0 0.0
  %4413 = vmatprep.subr.mxu0 0.0
  %4414 = vmatpush2.msra.mxu0 0.0
  %4415 = vmatprep.subr.mxu0 0.0
  %4416 = vmatpush2.msra.mxu0 0.0
  %4417 = vmatprep.subr.mxu0 0.0
  %4418 = vmatpush2.msra.mxu0 0.0
  %4419 = vmatprep.subr.mxu0 0.0
  %4420 = vmatpush2.msra.mxu0 0.0
  %4421 = vmatprep.subr.mxu0 0.0
  %4422 = vmatpush2.msra.mxu0 0.0
  %4423 = vmatprep.subr.mxu0 0.0
  %4424 = vmatpush2.msra.mxu0 0.0
  %4425 = vmatprep.subr.mxu0 0.0
  %4426 = vmatpush2.msra.mxu0 0.0
  %4427 = vmatprep.mubr.f32.mxu0 0.0
  %4428 = vmatmul.mubr.f32.gmra.mxu0 %v4148
  %v4429 = vpop.f32.mrf.mxu0
  %v4430 = vadd.f32 %v4144, %v4429
  %v4431 = vpop.f32.mrf.mxu0
  %v4432 = vadd.f32 %v4144, %v4431
  %4433 = vdwg.mxu0
  %4434 = vmatprep.subr.mxu0 0.0
  %4435 = vmatpush1.msra.mxu0 0.0
  %4436 = vmatprep.subr.mxu0 0.0
  %4437 = vmatpush1.msra.mxu0 0.0
  %4438 = vmatprep.subr.mxu0 0.0
  %4439 = vmatpush1.msra.mxu0 0.0
  %4440 = vmatprep.subr.mxu0 0.0
  %4441 = vmatpush1.msra.mxu0 0.0
  %4442 = vmatprep.subr.mxu0 0.0
  %4443 = vmatpush1.msra.mxu0 0.0
  %4444 = vmatprep.subr.mxu0 0.0
  %4445 = vmatpush1.msra.mxu0 0.0
  %4446 = vmatprep.subr.mxu0 %v4128
  %4447 = vmatpush1.msra.mxu0 %v4127
  %4448 = vmatprep.subr.mxu0 %v4107
  %4449 = vmatpush1.msra.mxu0 %v4106
  %4450 = vmatprep.subr.mxu0 %v4086
  %4451 = vmatpush1.msra.mxu0 %v4085
  %4452 = vmatprep.subr.mxu0 %v4065
  %4453 = vmatpush1.msra.mxu0 %v4064
  %4454 = vmatprep.subr.mxu0 %v4044
  %4455 = vmatpush1.msra.mxu0 %v4043
  %4456 = vmatprep.subr.mxu0 %v4023
  %4457 = vmatpush1.msra.mxu0 %v4022
  %4458 = vmatprep.subr.mxu0 %v4002
  %4459 = vmatpush1.msra.mxu0 %v4001
  %4460 = vmatprep.subr.mxu0 %v3981
  %4461 = vmatpush1.msra.mxu0 %v3980
  %4462 = vmatprep.subr.mxu0 %v3960
  %4463 = vmatpush1.msra.mxu0 %v3959
  %4464 = vmatprep.subr.mxu0 %v3939
  %4465 = vmatpush1.msra.mxu0 %v3938
  %4466 = vmatprep.subr.mxu0 0.0
  %4467 = vmatpush2.msra.mxu0 0.0
  %4468 = vmatprep.subr.mxu0 0.0
  %4469 = vmatpush2.msra.mxu0 0.0
  %4470 = vmatprep.subr.mxu0 0.0
  %4471 = vmatpush2.msra.mxu0 0.0
  %4472 = vmatprep.subr.mxu0 0.0
  %4473 = vmatpush2.msra.mxu0 0.0
  %4474 = vmatprep.subr.mxu0 0.0
  %4475 = vmatpush2.msra.mxu0 0.0
  %4476 = vmatprep.subr.mxu0 0.0
  %4477 = vmatpush2.msra.mxu0 0.0
  %4478 = vmatprep.subr.mxu0 0.0
  %4479 = vmatpush2.msra.mxu0 0.0
  %4480 = vmatprep.subr.mxu0 0.0
  %4481 = vmatpush2.msra.mxu0 0.0
  %4482 = vmatprep.subr.mxu0 0.0
  %4483 = vmatpush2.msra.mxu0 0.0
  %4484 = vmatprep.subr.mxu0 0.0
  %4485 = vmatpush2.msra.mxu0 0.0
  %4486 = vmatprep.subr.mxu0 0.0
  %4487 = vmatpush2.msra.mxu0 0.0
  %4488 = vmatprep.subr.mxu0 0.0
  %4489 = vmatpush2.msra.mxu0 0.0
  %4490 = vmatprep.subr.mxu0 0.0
  %4491 = vmatpush2.msra.mxu0 0.0
  %4492 = vmatprep.subr.mxu0 0.0
  %4493 = vmatpush2.msra.mxu0 0.0
  %4494 = vmatprep.subr.mxu0 0.0
  %4495 = vmatpush2.msra.mxu0 0.0
  %4496 = vmatprep.subr.mxu0 0.0
  %4497 = vmatpush2.msra.mxu0 0.0
  %4498 = vmatprep.mubr.f32.mxu0 0.0
  %4499 = vmatmul.mubr.f32.gmra.mxu0 %v4148
  %v4500 = vpop.f32.mrf.mxu0
  %v4501 = vadd.f32 %v4144, %v4500
  %v4502 = vpop.f32.mrf.mxu0
  %v4503 = vadd.f32 %v4144, %v4502
  %4504 = vdwg.mxu0
  %4505 = vmatprep.subr.mxu0 0.0
  %4506 = vmatpush1.msra.mxu0 0.0
  %4507 = vmatprep.subr.mxu0 0.0
  %4508 = vmatpush1.msra.mxu0 0.0
  %4509 = vmatprep.subr.mxu0 0.0
  %4510 = vmatpush1.msra.mxu0 0.0
  %4511 = vmatprep.subr.mxu0 0.0
  %4512 = vmatpush1.msra.mxu0 0.0
  %4513 = vmatprep.subr.mxu0 0.0
  %4514 = vmatpush1.msra.mxu0 0.0
  %4515 = vmatprep.subr.mxu0 0.0
  %4516 = vmatpush1.msra.mxu0 0.0
  %4517 = vmatprep.subr.mxu0 %v4130
  %4518 = vmatpush1.msra.mxu0 %v4129
  %4519 = vmatprep.subr.mxu0 %v4109
  %4520 = vmatpush1.msra.mxu0 %v4108
  %4521 = vmatprep.subr.mxu0 %v4088
  %4522 = vmatpush1.msra.mxu0 %v4087
  %4523 = vmatprep.subr.mxu0 %v4067
  %4524 = vmatpush1.msra.mxu0 %v4066
  %4525 = vmatprep.subr.mxu0 %v4046
  %4526 = vmatpush1.msra.mxu0 %v4045
  %4527 = vmatprep.subr.mxu0 %v4025
  %4528 = vmatpush1.msra.mxu0 %v4024
  %4529 = vmatprep.subr.mxu0 %v4004
  %4530 = vmatpush1.msra.mxu0 %v4003
  %4531 = vmatprep.subr.mxu0 %v3983
  %4532 = vmatpush1.msra.mxu0 %v3982
  %4533 = vmatprep.subr.mxu0 %v3962
  %4534 = vmatpush1.msra.mxu0 %v3961
  %4535 = vmatprep.subr.mxu0 %v3941
  %4536 = vmatpush1.msra.mxu0 %v3940
  %4537 = vmatprep.subr.mxu0 0.0
  %4538 = vmatpush2.msra.mxu0 0.0
  %4539 = vmatprep.subr.mxu0 0.0
  %4540 = vmatpush2.msra.mxu0 0.0
  %4541 = vmatprep.subr.mxu0 0.0
  %4542 = vmatpush2.msra.mxu0 0.0
  %4543 = vmatprep.subr.mxu0 0.0
  %4544 = vmatpush2.msra.mxu0 0.0
  %4545 = vmatprep.subr.mxu0 0.0
  %4546 = vmatpush2.msra.mxu0 0.0
  %4547 = vmatprep.subr.mxu0 0.0
  %4548 = vmatpush2.msra.mxu0 0.0
  %4549 = vmatprep.subr.mxu0 0.0
  %4550 = vmatpush2.msra.mxu0 0.0
  %4551 = vmatprep.subr.mxu0 0.0
  %4552 = vmatpush2.msra.mxu0 0.0
  %4553 = vmatprep.subr.mxu0 0.0
  %4554 = vmatpush2.msra.mxu0 0.0
  %4555 = vmatprep.subr.mxu0 0.0
  %4556 = vmatpush2.msra.mxu0 0.0
  %4557 = vmatprep.subr.mxu0 0.0
  %4558 = vmatpush2.msra.mxu0 0.0
  %4559 = vmatprep.subr.mxu0 0.0
  %4560 = vmatpush2.msra.mxu0 0.0
  %4561 = vmatprep.subr.mxu0 0.0
  %4562 = vmatpush2.msra.mxu0 0.0
  %4563 = vmatprep.subr.mxu0 0.0
  %4564 = vmatpush2.msra.mxu0 0.0
  %4565 = vmatprep.subr.mxu0 0.0
  %4566 = vmatpush2.msra.mxu0 0.0
  %4567 = vmatprep.subr.mxu0 0.0
  %4568 = vmatpush2.msra.mxu0 0.0
  %4569 = vmatprep.mubr.f32.mxu0 0.0
  %4570 = vmatmul.mubr.f32.gmra.mxu0 %v4148
  %v4571 = vpop.f32.mrf.mxu0
  %v4572 = vadd.f32 %v4144, %v4571
  %v4573 = vpop.f32.mrf.mxu0
  %v4574 = vadd.f32 %v4144, %v4573
  %4575 = vdwg.mxu0
  %4576 = vmatprep.subr.mxu0 0.0
  %4577 = vmatpush1.msra.mxu0 0.0
  %4578 = vmatprep.subr.mxu0 0.0
  %4579 = vmatpush1.msra.mxu0 0.0
  %4580 = vmatprep.subr.mxu0 0.0
  %4581 = vmatpush1.msra.mxu0 0.0
  %4582 = vmatprep.subr.mxu0 0.0
  %4583 = vmatpush1.msra.mxu0 0.0
  %4584 = vmatprep.subr.mxu0 0.0
  %4585 = vmatpush1.msra.mxu0 0.0
  %4586 = vmatprep.subr.mxu0 0.0
  %4587 = vmatpush1.msra.mxu0 0.0
  %4588 = vmatprep.subr.mxu0 %v4132
  %4589 = vmatpush1.msra.mxu0 %v4131
  %4590 = vmatprep.subr.mxu0 %v4111
  %4591 = vmatpush1.msra.mxu0 %v4110
  %4592 = vmatprep.subr.mxu0 %v4090
  %4593 = vmatpush1.msra.mxu0 %v4089
  %4594 = vmatprep.subr.mxu0 %v4069
  %4595 = vmatpush1.msra.mxu0 %v4068
  %4596 = vmatprep.subr.mxu0 %v4048
  %4597 = vmatpush1.msra.mxu0 %v4047
  %4598 = vmatprep.subr.mxu0 %v4027
  %4599 = vmatpush1.msra.mxu0 %v4026
  %4600 = vmatprep.subr.mxu0 %v4006
  %4601 = vmatpush1.msra.mxu0 %v4005
  %4602 = vmatprep.subr.mxu0 %v3985
  %4603 = vmatpush1.msra.mxu0 %v3984
  %4604 = vmatprep.subr.mxu0 %v3964
  %4605 = vmatpush1.msra.mxu0 %v3963
  %4606 = vmatprep.subr.mxu0 %v3943
  %4607 = vmatpush1.msra.mxu0 %v3942
  %4608 = vmatprep.subr.mxu0 0.0
  %4609 = vmatpush2.msra.mxu0 0.0
  %4610 = vmatprep.subr.mxu0 0.0
  %4611 = vmatpush2.msra.mxu0 0.0
  %4612 = vmatprep.subr.mxu0 0.0
  %4613 = vmatpush2.msra.mxu0 0.0
  %4614 = vmatprep.subr.mxu0 0.0
  %4615 = vmatpush2.msra.mxu0 0.0
  %4616 = vmatprep.subr.mxu0 0.0
  %4617 = vmatpush2.msra.mxu0 0.0
  %4618 = vmatprep.subr.mxu0 0.0
  %4619 = vmatpush2.msra.mxu0 0.0
  %4620 = vmatprep.subr.mxu0 0.0
  %4621 = vmatpush2.msra.mxu0 0.0
  %4622 = vmatprep.subr.mxu0 0.0
  %4623 = vmatpush2.msra.mxu0 0.0
  %4624 = vmatprep.subr.mxu0 0.0
  %4625 = vmatpush2.msra.mxu0 0.0
  %4626 = vmatprep.subr.mxu0 0.0
  %4627 = vmatpush2.msra.mxu0 0.0
  %4628 = vmatprep.subr.mxu0 0.0
  %4629 = vmatpush2.msra.mxu0 0.0
  %4630 = vmatprep.subr.mxu0 0.0
  %4631 = vmatpush2.msra.mxu0 0.0
  %4632 = vmatprep.subr.mxu0 0.0
  %4633 = vmatpush2.msra.mxu0 0.0
  %4634 = vmatprep.subr.mxu0 0.0
  %4635 = vmatpush2.msra.mxu0 0.0
  %4636 = vmatprep.subr.mxu0 0.0
  %4637 = vmatpush2.msra.mxu0 0.0
  %4638 = vmatprep.subr.mxu0 0.0
  %4639 = vmatpush2.msra.mxu0 0.0
  %4640 = vmatprep.mubr.f32.mxu0 0.0
  %4641 = vmatmul.mubr.f32.gmra.mxu0 %v4148
  %v4642 = vpop.f32.mrf.mxu0
  %v4643 = vadd.f32 %v4144, %v4642
  %v4644 = vpop.f32.mrf.mxu0
  %v4645 = vadd.f32 %v4144, %v4644
  %4646 = vdwg.mxu0
  %4647 = vmatprep.subr.mxu0 0.0
  %4648 = vmatpush1.msra.mxu0 0.0
  %4649 = vmatprep.subr.mxu0 0.0
  %4650 = vmatpush1.msra.mxu0 0.0
  %4651 = vmatprep.subr.mxu0 0.0
  %4652 = vmatpush1.msra.mxu0 0.0
  %4653 = vmatprep.subr.mxu0 0.0
  %4654 = vmatpush1.msra.mxu0 0.0
  %4655 = vmatprep.subr.mxu0 0.0
  %4656 = vmatpush1.msra.mxu0 0.0
  %4657 = vmatprep.subr.mxu0 0.0
  %4658 = vmatpush1.msra.mxu0 0.0
  %4659 = vmatprep.subr.mxu0 %v4134
  %4660 = vmatpush1.msra.mxu0 %v4133
  %4661 = vmatprep.subr.mxu0 %v4113
  %4662 = vmatpush1.msra.mxu0 %v4112
  %4663 = vmatprep.subr.mxu0 %v4092
  %4664 = vmatpush1.msra.mxu0 %v4091
  %4665 = vmatprep.subr.mxu0 %v4071
  %4666 = vmatpush1.msra.mxu0 %v4070
  %4667 = vmatprep.subr.mxu0 %v4050
  %4668 = vmatpush1.msra.mxu0 %v4049
  %4669 = vmatprep.subr.mxu0 %v4029
  %4670 = vmatpush1.msra.mxu0 %v4028
  %4671 = vmatprep.subr.mxu0 %v4008
  %4672 = vmatpush1.msra.mxu0 %v4007
  %4673 = vmatprep.subr.mxu0 %v3987
  %4674 = vmatpush1.msra.mxu0 %v3986
  %4675 = vmatprep.subr.mxu0 %v3966
  %4676 = vmatpush1.msra.mxu0 %v3965
  %4677 = vmatprep.subr.mxu0 %v3945
  %4678 = vmatpush1.msra.mxu0 %v3944
  %4679 = vmatprep.subr.mxu0 0.0
  %4680 = vmatpush2.msra.mxu0 0.0
  %4681 = vmatprep.subr.mxu0 0.0
  %4682 = vmatpush2.msra.mxu0 0.0
  %4683 = vmatprep.subr.mxu0 0.0
  %4684 = vmatpush2.msra.mxu0 0.0
  %4685 = vmatprep.subr.mxu0 0.0
  %4686 = vmatpush2.msra.mxu0 0.0
  %4687 = vmatprep.subr.mxu0 0.0
  %4688 = vmatpush2.msra.mxu0 0.0
  %4689 = vmatprep.subr.mxu0 0.0
  %4690 = vmatpush2.msra.mxu0 0.0
  %4691 = vmatprep.subr.mxu0 0.0
  %4692 = vmatpush2.msra.mxu0 0.0
  %4693 = vmatprep.subr.mxu0 0.0
  %4694 = vmatpush2.msra.mxu0 0.0
  %4695 = vmatprep.subr.mxu0 0.0
  %4696 = vmatpush2.msra.mxu0 0.0
  %4697 = vmatprep.subr.mxu0 0.0
  %4698 = vmatpush2.msra.mxu0 0.0
  %4699 = vmatprep.subr.mxu0 0.0
  %4700 = vmatpush2.msra.mxu0 0.0
  %4701 = vmatprep.subr.mxu0 0.0
  %4702 = vmatpush2.msra.mxu0 0.0
  %4703 = vmatprep.subr.mxu0 0.0
  %4704 = vmatpush2.msra.mxu0 0.0
  %4705 = vmatprep.subr.mxu0 0.0
  %4706 = vmatpush2.msra.mxu0 0.0
  %4707 = vmatprep.subr.mxu0 0.0
  %4708 = vmatpush2.msra.mxu0 0.0
  %4709 = vmatprep.subr.mxu0 0.0
  %4710 = vmatpush2.msra.mxu0 0.0
  %4711 = vmatprep.mubr.f32.mxu0 0.0
  %4712 = vmatmul.mubr.f32.gmra.mxu0 %v4148
  %v4713 = vpop.f32.mrf.mxu0
  %v4714 = vadd.f32 %v4144, %v4713
  %v4715 = vpop.f32.mrf.mxu0
  %v4716 = vadd.f32 %v4144, %v4715
  %4717 = vdwg.mxu0
  %4718 = vmatprep.subr.mxu0 0.0
  %4719 = vmatpush1.msra.mxu0 0.0
  %4720 = vmatprep.subr.mxu0 0.0
  %4721 = vmatpush1.msra.mxu0 0.0
  %4722 = vmatprep.subr.mxu0 0.0
  %4723 = vmatpush1.msra.mxu0 0.0
  %4724 = vmatprep.subr.mxu0 0.0
  %4725 = vmatpush1.msra.mxu0 0.0
  %4726 = vmatprep.subr.mxu0 0.0
  %4727 = vmatpush1.msra.mxu0 0.0
  %4728 = vmatprep.subr.mxu0 0.0
  %4729 = vmatpush1.msra.mxu0 0.0
  %4730 = vmatprep.subr.mxu0 %v4136
  %4731 = vmatpush1.msra.mxu0 %v4135
  %4732 = vmatprep.subr.mxu0 %v4115
  %4733 = vmatpush1.msra.mxu0 %v4114
  %4734 = vmatprep.subr.mxu0 %v4094
  %4735 = vmatpush1.msra.mxu0 %v4093
  %4736 = vmatprep.subr.mxu0 %v4073
  %4737 = vmatpush1.msra.mxu0 %v4072
  %4738 = vmatprep.subr.mxu0 %v4052
  %4739 = vmatpush1.msra.mxu0 %v4051
  %4740 = vmatprep.subr.mxu0 %v4031
  %4741 = vmatpush1.msra.mxu0 %v4030
  %4742 = vmatprep.subr.mxu0 %v4010
  %4743 = vmatpush1.msra.mxu0 %v4009
  %4744 = vmatprep.subr.mxu0 %v3989
  %4745 = vmatpush1.msra.mxu0 %v3988
  %4746 = vmatprep.subr.mxu0 %v3968
  %4747 = vmatpush1.msra.mxu0 %v3967
  %4748 = vmatprep.subr.mxu0 %v3947
  %4749 = vmatpush1.msra.mxu0 %v3946
  %4750 = vmatprep.subr.mxu0 0.0
  %4751 = vmatpush2.msra.mxu0 0.0
  %4752 = vmatprep.subr.mxu0 0.0
  %4753 = vmatpush2.msra.mxu0 0.0
  %4754 = vmatprep.subr.mxu0 0.0
  %4755 = vmatpush2.msra.mxu0 0.0
  %4756 = vmatprep.subr.mxu0 0.0
  %4757 = vmatpush2.msra.mxu0 0.0
  %4758 = vmatprep.subr.mxu0 0.0
  %4759 = vmatpush2.msra.mxu0 0.0
  %4760 = vmatprep.subr.mxu0 0.0
  %4761 = vmatpush2.msra.mxu0 0.0
  %4762 = vmatprep.subr.mxu0 0.0
  %4763 = vmatpush2.msra.mxu0 0.0
  %4764 = vmatprep.subr.mxu0 0.0
  %4765 = vmatpush2.msra.mxu0 0.0
  %4766 = vmatprep.subr.mxu0 0.0
  %4767 = vmatpush2.msra.mxu0 0.0
  %4768 = vmatprep.subr.mxu0 0.0
  %4769 = vmatpush2.msra.mxu0 0.0
  %4770 = vmatprep.subr.mxu0 0.0
  %4771 = vmatpush2.msra.mxu0 0.0
  %4772 = vmatprep.subr.mxu0 0.0
  %4773 = vmatpush2.msra.mxu0 0.0
  %4774 = vmatprep.subr.mxu0 0.0
  %4775 = vmatpush2.msra.mxu0 0.0
  %4776 = vmatprep.subr.mxu0 0.0
  %4777 = vmatpush2.msra.mxu0 0.0
  %4778 = vmatprep.subr.mxu0 0.0
  %4779 = vmatpush2.msra.mxu0 0.0
  %4780 = vmatprep.subr.mxu0 0.0
  %4781 = vmatpush2.msra.mxu0 0.0
  %4782 = vmatprep.mubr.f32.mxu0 0.0
  %4783 = vmatmul.mubr.f32.gmra.mxu0 %v4148
  %v4784 = vpop.f32.mrf.mxu0
  %v4785 = vadd.f32 %v4144, %v4784
  %v4786 = vpop.f32.mrf.mxu0
  %v4787 = vadd.f32 %v4144, %v4786
  %4788 = vdwg.mxu0
  %4789 = vmatprep.subr.mxu0 0.0
  %4790 = vmatpush1.msra.mxu0 0.0
  %4791 = vmatprep.subr.mxu0 0.0
  %4792 = vmatpush1.msra.mxu0 0.0
  %4793 = vmatprep.subr.mxu0 0.0
  %4794 = vmatpush1.msra.mxu0 0.0
  %4795 = vmatprep.subr.mxu0 0.0
  %4796 = vmatpush1.msra.mxu0 0.0
  %4797 = vmatprep.subr.mxu0 0.0
  %4798 = vmatpush1.msra.mxu0 0.0
  %4799 = vmatprep.subr.mxu0 0.0
  %4800 = vmatpush1.msra.mxu0 0.0
  %4801 = vmatprep.subr.mxu0 %v4138
  %4802 = vmatpush1.msra.mxu0 %v4137
  %4803 = vmatprep.subr.mxu0 %v4117
  %4804 = vmatpush1.msra.mxu0 %v4116
  %4805 = vmatprep.subr.mxu0 %v4096
  %4806 = vmatpush1.msra.mxu0 %v4095
  %4807 = vmatprep.subr.mxu0 %v4075
  %4808 = vmatpush1.msra.mxu0 %v4074
  %4809 = vmatprep.subr.mxu0 %v4054
  %4810 = vmatpush1.msra.mxu0 %v4053
  %4811 = vmatprep.subr.mxu0 %v4033
  %4812 = vmatpush1.msra.mxu0 %v4032
  %4813 = vmatprep.subr.mxu0 %v4012
  %4814 = vmatpush1.msra.mxu0 %v4011
  %4815 = vmatprep.subr.mxu0 %v3991
  %4816 = vmatpush1.msra.mxu0 %v3990
  %4817 = vmatprep.subr.mxu0 %v3970
  %4818 = vmatpush1.msra.mxu0 %v3969
  %4819 = vmatprep.subr.mxu0 %v3949
  %4820 = vmatpush1.msra.mxu0 %v3948
  %4821 = vmatprep.subr.mxu0 0.0
  %4822 = vmatpush2.msra.mxu0 0.0
  %4823 = vmatprep.subr.mxu0 0.0
  %4824 = vmatpush2.msra.mxu0 0.0
  %4825 = vmatprep.subr.mxu0 0.0
  %4826 = vmatpush2.msra.mxu0 0.0
  %4827 = vmatprep.subr.mxu0 0.0
  %4828 = vmatpush2.msra.mxu0 0.0
  %4829 = vmatprep.subr.mxu0 0.0
  %4830 = vmatpush2.msra.mxu0 0.0
  %4831 = vmatprep.subr.mxu0 0.0
  %4832 = vmatpush2.msra.mxu0 0.0
  %4833 = vmatprep.subr.mxu0 0.0
  %4834 = vmatpush2.msra.mxu0 0.0
  %4835 = vmatprep.subr.mxu0 0.0
  %4836 = vmatpush2.msra.mxu0 0.0
  %4837 = vmatprep.subr.mxu0 0.0
  %4838 = vmatpush2.msra.mxu0 0.0
  %4839 = vmatprep.subr.mxu0 0.0
  %4840 = vmatpush2.msra.mxu0 0.0
  %4841 = vmatprep.subr.mxu0 0.0
  %4842 = vmatpush2.msra.mxu0 0.0
  %4843 = vmatprep.subr.mxu0 0.0
  %4844 = vmatpush2.msra.mxu0 0.0
  %4845 = vmatprep.subr.mxu0 0.0
  %4846 = vmatpush2.msra.mxu0 0.0
  %4847 = vmatprep.subr.mxu0 0.0
  %4848 = vmatpush2.msra.mxu0 0.0
  %4849 = vmatprep.subr.mxu0 0.0
  %4850 = vmatpush2.msra.mxu0 0.0
  %4851 = vmatprep.subr.mxu0 0.0
  %4852 = vmatpush2.msra.mxu0 0.0
  %4853 = vmatprep.mubr.f32.mxu0 0.0
  %4854 = vmatmul.mubr.f32.gmra.mxu0 %v4148
  %v4855 = vpop.f32.mrf.mxu0
  %v4856 = vadd.f32 %v4144, %v4855
  %v4857 = vpop.f32.mrf.mxu0
  %v4858 = vadd.f32 %v4144, %v4857
  %4859 = vdwg.mxu0
  %4860 = vmatprep.subr.mxu0 0.0
  %4861 = vmatpush1.msra.mxu0 0.0
  %4862 = vmatprep.subr.mxu0 0.0
  %4863 = vmatpush1.msra.mxu0 0.0
  %4864 = vmatprep.subr.mxu0 0.0
  %4865 = vmatpush1.msra.mxu0 0.0
  %4866 = vmatprep.subr.mxu0 0.0
  %4867 = vmatpush1.msra.mxu0 0.0
  %4868 = vmatprep.subr.mxu0 0.0
  %4869 = vmatpush1.msra.mxu0 0.0
  %4870 = vmatprep.subr.mxu0 0.0
  %4871 = vmatpush1.msra.mxu0 0.0
  %4872 = vmatprep.subr.mxu0 0.0
  %4873 = vmatpush1.msra.mxu0 %v4139
  %4874 = vmatprep.subr.mxu0 0.0
  %4875 = vmatpush1.msra.mxu0 %v4118
  %4876 = vmatprep.subr.mxu0 0.0
  %4877 = vmatpush1.msra.mxu0 %v4097
  %4878 = vmatprep.subr.mxu0 0.0
  %4879 = vmatpush1.msra.mxu0 %v4076
  %4880 = vmatprep.subr.mxu0 0.0
  %4881 = vmatpush1.msra.mxu0 %v4055
  %4882 = vmatprep.subr.mxu0 0.0
  %4883 = vmatpush1.msra.mxu0 %v4034
  %4884 = vmatprep.subr.mxu0 0.0
  %4885 = vmatpush1.msra.mxu0 %v4013
  %4886 = vmatprep.subr.mxu0 0.0
  %4887 = vmatpush1.msra.mxu0 %v3992
  %4888 = vmatprep.subr.mxu0 0.0
  %4889 = vmatpush1.msra.mxu0 %v3971
  %4890 = vmatprep.subr.mxu0 0.0
  %4891 = vmatpush1.msra.mxu0 %v3950
  %4892 = vmatprep.subr.mxu0 0.0
  %4893 = vmatpush2.msra.mxu0 0.0
  %4894 = vmatprep.subr.mxu0 0.0
  %4895 = vmatpush2.msra.mxu0 0.0
  %4896 = vmatprep.subr.mxu0 0.0
  %4897 = vmatpush2.msra.mxu0 0.0
  %4898 = vmatprep.subr.mxu0 0.0
  %4899 = vmatpush2.msra.mxu0 0.0
  %4900 = vmatprep.subr.mxu0 0.0
  %4901 = vmatpush2.msra.mxu0 0.0
  %4902 = vmatprep.subr.mxu0 0.0
  %4903 = vmatpush2.msra.mxu0 0.0
  %4904 = vmatprep.subr.mxu0 0.0
  %4905 = vmatpush2.msra.mxu0 0.0
  %4906 = vmatprep.subr.mxu0 0.0
  %4907 = vmatpush2.msra.mxu0 0.0
  %4908 = vmatprep.subr.mxu0 0.0
  %4909 = vmatpush2.msra.mxu0 0.0
  %4910 = vmatprep.subr.mxu0 0.0
  %4911 = vmatpush2.msra.mxu0 0.0
  %4912 = vmatprep.subr.mxu0 0.0
  %4913 = vmatpush2.msra.mxu0 0.0
  %4914 = vmatprep.subr.mxu0 0.0
  %4915 = vmatpush2.msra.mxu0 0.0
  %4916 = vmatprep.subr.mxu0 0.0
  %4917 = vmatpush2.msra.mxu0 0.0
  %4918 = vmatprep.subr.mxu0 0.0
  %4919 = vmatpush2.msra.mxu0 0.0
  %4920 = vmatprep.subr.mxu0 0.0
  %4921 = vmatpush2.msra.mxu0 0.0
  %4922 = vmatprep.subr.mxu0 0.0
  %4923 = vmatpush2.msra.mxu0 0.0
  %4924 = vmatprep.mubr.f32.mxu0 0.0
  %4925 = vmatmul.mubr.f32.gmra.mxu0 %v4148
  %v4926 = vpop.f32.mrf.mxu0
  %v4927 = vadd.f32 %v4144, %v4926
  %v4928 = vpop.f32.mrf.mxu0
  %4929 = vdwg.mxu0
  %v4930 = vmax.f32 %v4217, 0.0
  %v4931 = vmax.f32 %v4219, 0.0
  %v4932 = vmax.f32 %v4288, 0.0
  %v4933 = vmax.f32 %v4290, 0.0
  %v4934 = vmax.f32 %v4359, 0.0
  %v4935 = vmax.f32 %v4361, 0.0
  %v4936 = vmax.f32 %v4430, 0.0
  %v4937 = vmax.f32 %v4432, 0.0
  %v4938 = vmax.f32 %v4501, 0.0
  %v4939 = vmax.f32 %v4503, 0.0
  %v4940 = vmax.f32 %v4572, 0.0
  %v4941 = vmax.f32 %v4574, 0.0
  %v4942 = vmax.f32 %v4643, 0.0
  %v4943 = vmax.f32 %v4645, 0.0
  %v4944 = vmax.f32 %v4714, 0.0
  %v4945 = vmax.f32 %v4716, 0.0
  %v4946 = vmax.f32 %v4785, 0.0
  %v4947 = vmax.f32 %v4787, 0.0
  %v4948 = vmax.f32 %v4856, 0.0
  %v4949 = vmax.f32 %v4858, 0.0
  %v4950 = vmax.f32 %v4927, 0.0
  %4972 = vrot.lane.b32.xlu0 %v4930, 127
  %v4973 = vpop.permute.xlu0 %4972
  %4974 = vrot.lane.b32.xlu0 %v4931, 127
  %v4975 = vpop.permute.xlu0 %4974
  %4976 = vrot.lane.b32.xlu0 %v4932, 127
  %v4977 = vpop.permute.xlu0 %4976
  %4978 = vrot.lane.b32.xlu0 %v4933, 127
  %v4979 = vpop.permute.xlu0 %4978
  %4980 = vrot.lane.b32.xlu0 %v4934, 127
  %v4981 = vpop.permute.xlu0 %4980
  %4982 = vrot.lane.b32.xlu0 %v4935, 127
  %v4983 = vpop.permute.xlu0 %4982
  %4984 = vrot.lane.b32.xlu0 %v4936, 127
  %v4985 = vpop.permute.xlu0 %4984
  %4986 = vrot.lane.b32.xlu0 %v4937, 127
  %v4987 = vpop.permute.xlu0 %4986
  %4988 = vrot.lane.b32.xlu0 %v4938, 127
  %v4989 = vpop.permute.xlu0 %4988
  %4990 = vrot.lane.b32.xlu0 %v4939, 127
  %v4991 = vpop.permute.xlu0 %4990
  %4992 = vrot.lane.b32.xlu0 %v4940, 127
  %v4993 = vpop.permute.xlu0 %4992
  %4994 = vrot.lane.b32.xlu0 %v4941, 127
  %v4995 = vpop.permute.xlu0 %4994
  %4996 = vrot.lane.b32.xlu0 %v4942, 127
  %v4997 = vpop.permute.xlu0 %4996
  %4998 = vrot.lane.b32.xlu0 %v4943, 127
  %v4999 = vpop.permute.xlu0 %4998
  %5000 = vrot.lane.b32.xlu0 %v4944, 127
  %v5001 = vpop.permute.xlu0 %5000
  %5002 = vrot.lane.b32.xlu0 %v4945, 127
  %v5003 = vpop.permute.xlu0 %5002
  %5004 = vrot.lane.b32.xlu0 %v4946, 127
  %v5005 = vpop.permute.xlu0 %5004
  %5006 = vrot.lane.b32.xlu0 %v4947, 127
  %v5007 = vpop.permute.xlu0 %5006
  %5008 = vrot.lane.b32.xlu0 %v4948, 127
  %v5009 = vpop.permute.xlu0 %5008
  %5010 = vrot.lane.b32.xlu0 %v4949, 127
  %v5011 = vpop.permute.xlu0 %5010
  %5012 = vrot.lane.b32.xlu0 %v4950, 127
  %v5013 = vpop.permute.xlu0 %5012
  %v5014 = vsel %vm181, %v4973, %v4975
  %v5015 = vsel %vm181, %v4975, %v4977
  %v5016 = vsel %vm181, %v4977, %v4979
  %v5017 = vsel %vm181, %v4979, %v4981
  %v5018 = vsel %vm181, %v4981, %v4983
  %v5019 = vsel %vm181, %v4983, %v4985
  %v5020 = vsel %vm181, %v4985, %v4987
  %v5021 = vsel %vm181, %v4987, %v4989
  %v5022 = vsel %vm181, %v4989, %v4991
  %v5023 = vsel %vm181, %v4991, %v4993
  %v5024 = vsel %vm181, %v4993, %v4995
  %v5025 = vsel %vm181, %v4995, %v4997
  %v5026 = vsel %vm181, %v4997, %v4999
  %v5027 = vsel %vm181, %v4999, %v5001
  %v5028 = vsel %vm181, %v5001, %v5003
  %v5029 = vsel %vm181, %v5003, %v5005
  %v5030 = vsel %vm181, %v5005, %v5007
  %v5031 = vsel %vm181, %v5007, %v5009
  %v5032 = vsel %vm181, %v5009, %v5011
  %v5033 = vsel %vm181, %v5011, %v5013
  %v5054 = vmax.f32 %v4930, %v5014
  %v5055 = vmax.f32 %v4931, %v5015
  %v5056 = vmax.f32 %v4932, %v5016
  %v5057 = vmax.f32 %v4933, %v5017
  %v5058 = vmax.f32 %v4934, %v5018
  %v5059 = vmax.f32 %v4935, %v5019
  %v5060 = vmax.f32 %v4936, %v5020
  %v5061 = vmax.f32 %v4937, %v5021
  %v5062 = vmax.f32 %v4938, %v5022
  %v5063 = vmax.f32 %v4939, %v5023
  %v5064 = vmax.f32 %v4940, %v5024
  %v5065 = vmax.f32 %v4941, %v5025
  %v5066 = vmax.f32 %v4942, %v5026
  %v5067 = vmax.f32 %v4943, %v5027
  %v5068 = vmax.f32 %v4944, %v5028
  %v5069 = vmax.f32 %v4945, %v5029
  %v5070 = vmax.f32 %v4946, %v5030
  %v5071 = vmax.f32 %v4947, %v5031
  %v5072 = vmax.f32 %v4948, %v5032
  %v5073 = vmax.f32 %v4949, %v5033
  %v5075 = vmax.f32 %v4950, %v5013
  %5097 = vrot.lane.b32.xlu0 %v5054, 96
  %v5098 = vpop.permute.xlu0 %5097
  %5099 = vrot.lane.b32.xlu0 %v5055, 96
  %v5100 = vpop.permute.xlu0 %5099
  %5101 = vrot.lane.b32.xlu0 %v5056, 96
  %v5102 = vpop.permute.xlu0 %5101
  %5103 = vrot.lane.b32.xlu0 %v5057, 96
  %v5104 = vpop.permute.xlu0 %5103
  %5105 = vrot.lane.b32.xlu0 %v5058, 96
  %v5106 = vpop.permute.xlu0 %5105
  %5107 = vrot.lane.b32.xlu0 %v5059, 96
  %v5108 = vpop.permute.xlu0 %5107
  %5109 = vrot.lane.b32.xlu0 %v5060, 96
  %v5110 = vpop.permute.xlu0 %5109
  %5111 = vrot.lane.b32.xlu0 %v5061, 96
  %v5112 = vpop.permute.xlu0 %5111
  %5113 = vrot.lane.b32.xlu0 %v5062, 96
  %v5114 = vpop.permute.xlu0 %5113
  %5115 = vrot.lane.b32.xlu0 %v5063, 96
  %v5116 = vpop.permute.xlu0 %5115
  %5117 = vrot.lane.b32.xlu0 %v5064, 96
  %v5118 = vpop.permute.xlu0 %5117
  %5119 = vrot.lane.b32.xlu0 %v5065, 96
  %v5120 = vpop.permute.xlu0 %5119
  %5121 = vrot.lane.b32.xlu0 %v5066, 96
  %v5122 = vpop.permute.xlu0 %5121
  %5123 = vrot.lane.b32.xlu0 %v5067, 96
  %v5124 = vpop.permute.xlu0 %5123
  %5125 = vrot.lane.b32.xlu0 %v5068, 96
  %v5126 = vpop.permute.xlu0 %5125
  %5127 = vrot.lane.b32.xlu0 %v5069, 96
  %v5128 = vpop.permute.xlu0 %5127
  %5129 = vrot.lane.b32.xlu0 %v5070, 96
  %v5130 = vpop.permute.xlu0 %5129
  %5131 = vrot.lane.b32.xlu0 %v5071, 96
  %v5132 = vpop.permute.xlu0 %5131
  %5133 = vrot.lane.b32.xlu0 %v5072, 96
  %v5134 = vpop.permute.xlu0 %5133
  %5135 = vrot.lane.b32.xlu0 %v5073, 96
  %v5136 = vpop.permute.xlu0 %5135
  %5137 = vrot.lane.b32.xlu0 %v5075, 96
  %v5138 = vpop.permute.xlu0 %5137
  %v5139 = vsel %vm832, %v5098, %v5100
  %v5140 = vsel %vm832, %v5100, %v5102
  %v5141 = vsel %vm832, %v5102, %v5104
  %v5142 = vsel %vm832, %v5104, %v5106
  %v5143 = vsel %vm832, %v5106, %v5108
  %v5144 = vsel %vm832, %v5108, %v5110
  %v5145 = vsel %vm832, %v5110, %v5112
  %v5146 = vsel %vm832, %v5112, %v5114
  %v5147 = vsel %vm832, %v5114, %v5116
  %v5148 = vsel %vm832, %v5116, %v5118
  %v5149 = vsel %vm832, %v5118, %v5120
  %v5150 = vsel %vm832, %v5120, %v5122
  %v5151 = vsel %vm832, %v5122, %v5124
  %v5152 = vsel %vm832, %v5124, %v5126
  %v5153 = vsel %vm832, %v5126, %v5128
  %v5154 = vsel %vm832, %v5128, %v5130
  %v5155 = vsel %vm832, %v5130, %v5132
  %v5156 = vsel %vm832, %v5132, %v5134
  %v5157 = vsel %vm832, %v5134, %v5136
  %v5158 = vsel %vm832, %v5136, %v5138
  %v5179 = vmax.f32 %v5054, %v5139
  %v5180 = vmax.f32 %v5055, %v5140
  %v5181 = vmax.f32 %v5056, %v5141
  %v5182 = vmax.f32 %v5057, %v5142
  %v5183 = vmax.f32 %v5058, %v5143
  %v5184 = vmax.f32 %v5059, %v5144
  %v5185 = vmax.f32 %v5060, %v5145
  %v5186 = vmax.f32 %v5061, %v5146
  %v5187 = vmax.f32 %v5062, %v5147
  %v5188 = vmax.f32 %v5063, %v5148
  %v5189 = vmax.f32 %v5064, %v5149
  %v5190 = vmax.f32 %v5065, %v5150
  %v5191 = vmax.f32 %v5066, %v5151
  %v5192 = vmax.f32 %v5067, %v5152
  %v5193 = vmax.f32 %v5068, %v5153
  %v5194 = vmax.f32 %v5069, %v5154
  %v5195 = vmax.f32 %v5070, %v5155
  %v5196 = vmax.f32 %v5071, %v5156
  %v5197 = vmax.f32 %v5072, %v5157
  %v5198 = vmax.f32 %v5073, %v5158
  %5199 = vst [vmem:[#allocation3] sm:$0x3f] %v5179
  %5200 = vst [vmem:[#allocation3 + $0x8] sm:$0x3f] %v5180
  %5201 = vst [vmem:[#allocation3 + $0x10] sm:$0x3f] %v5181
  %5202 = vst [vmem:[#allocation3 + $0x18] sm:$0x3f] %v5182
  %5203 = vst [vmem:[#allocation3 + $0x20] sm:$0x3f] %v5183
  %5204 = vst [vmem:[#allocation3 + $0x28] sm:$0x3f] %v5184
  %5205 = vst [vmem:[#allocation3 + $0x30] sm:$0x3f] %v5185
  %5206 = vst [vmem:[#allocation3 + $0x38] sm:$0x3f] %v5186
  %5207 = vst [vmem:[#allocation3 + $0x40] sm:$0x3f] %v5187
  %5208 = vst [vmem:[#allocation3 + $0x48] sm:$0x3f] %v5188
  %5209 = vst [vmem:[#allocation3 + $0x50] sm:$0x3f] %v5189
  %5210 = vst [vmem:[#allocation3 + $0x58] sm:$0x3f] %v5190
  %5211 = vst [vmem:[#allocation3 + $0x60] sm:$0x3f] %v5191
  %5212 = vst [vmem:[#allocation3 + $0x68] sm:$0x3f] %v5192
  %5213 = vst [vmem:[#allocation3 + $0x70] sm:$0x3f] %v5193
  %5214 = vst [vmem:[#allocation3 + $0x78] sm:$0x3f] %v5194
  %5215 = vst [vmem:[#allocation3 + $0x80] sm:$0x3f] %v5195
  %v5234 = vrot.slane %v5179, 2
  %v5235 = vrot.slane %v5180, 2
  %v5236 = vrot.slane %v5181, 2
  %v5237 = vrot.slane %v5182, 2
  %v5238 = vrot.slane %v5183, 2
  %v5239 = vrot.slane %v5184, 2
  %v5240 = vrot.slane %v5185, 2
  %v5241 = vrot.slane %v5186, 2
  %v5242 = vrot.slane %v5187, 2
  %v5243 = vrot.slane %v5188, 2
  %v5244 = vrot.slane %v5189, 2
  %v5245 = vrot.slane %v5190, 2
  %v5246 = vrot.slane %v5191, 2
  %v5247 = vrot.slane %v5192, 2
  %v5248 = vrot.slane %v5193, 2
  %v5249 = vrot.slane %v5194, 2
  %v5250 = vrot.slane %v5195, 2
  %v5251 = vrot.slane %v5196, 2
  %5252 = vrot.lane.b32.xlu0 %v5234, 126
  %v5253 = vpop.permute.xlu0 %5252
  %5254 = vrot.lane.b32.xlu0 %v5235, 126
  %v5255 = vpop.permute.xlu0 %5254
  %5256 = vrot.lane.b32.xlu0 %v5236, 126
  %v5257 = vpop.permute.xlu0 %5256
  %5258 = vrot.lane.b32.xlu0 %v5237, 126
  %v5259 = vpop.permute.xlu0 %5258
  %5260 = vrot.lane.b32.xlu0 %v5238, 126
  %v5261 = vpop.permute.xlu0 %5260
  %5262 = vrot.lane.b32.xlu0 %v5239, 126
  %v5263 = vpop.permute.xlu0 %5262
  %5264 = vrot.lane.b32.xlu0 %v5240, 126
  %v5265 = vpop.permute.xlu0 %5264
  %5266 = vrot.lane.b32.xlu0 %v5241, 126
  %v5267 = vpop.permute.xlu0 %5266
  %5268 = vrot.lane.b32.xlu0 %v5242, 126
  %v5269 = vpop.permute.xlu0 %5268
  %5270 = vrot.lane.b32.xlu0 %v5243, 126
  %v5271 = vpop.permute.xlu0 %5270
  %5272 = vrot.lane.b32.xlu0 %v5244, 126
  %v5273 = vpop.permute.xlu0 %5272
  %5274 = vrot.lane.b32.xlu0 %v5245, 126
  %v5275 = vpop.permute.xlu0 %5274
  %5276 = vrot.lane.b32.xlu0 %v5246, 126
  %v5277 = vpop.permute.xlu0 %5276
  %5278 = vrot.lane.b32.xlu0 %v5247, 126
  %v5279 = vpop.permute.xlu0 %5278
  %5280 = vrot.lane.b32.xlu0 %v5248, 126
  %v5281 = vpop.permute.xlu0 %5280
  %5282 = vrot.lane.b32.xlu0 %v5249, 126
  %v5283 = vpop.permute.xlu0 %5282
  %5284 = vrot.lane.b32.xlu0 %v5250, 126
  %v5285 = vpop.permute.xlu0 %5284
  %5286 = vrot.lane.b32.xlu0 %v5251, 126
  %v5287 = vpop.permute.xlu0 %5286
  %v5288 = vsel %vm344, %v5253, %v5255
  %v5289 = vsel %vm344, %v5255, %v5257
  %v5290 = vsel %vm344, %v5257, %v5259
  %v5291 = vsel %vm344, %v5259, %v5261
  %v5292 = vsel %vm344, %v5261, %v5263
  %v5293 = vsel %vm344, %v5263, %v5265
  %v5294 = vsel %vm344, %v5265, %v5267
  %v5295 = vsel %vm344, %v5267, %v5269
  %v5296 = vsel %vm344, %v5269, %v5271
  %v5297 = vsel %vm344, %v5271, %v5273
  %v5298 = vsel %vm344, %v5273, %v5275
  %v5299 = vsel %vm344, %v5275, %v5277
  %v5300 = vsel %vm344, %v5277, %v5279
  %v5301 = vsel %vm344, %v5279, %v5281
  %v5302 = vsel %vm344, %v5281, %v5283
  %v5303 = vsel %vm344, %v5283, %v5285
  %v5304 = vsel %vm344, %v5285, %v5287
  %5322 = vst [vmem:[#allocation3] sm:$0xc0] %v5288
  %5323 = vst [vmem:[#allocation3 + $0x8] sm:$0xc0] %v5289
  %5324 = vst [vmem:[#allocation3 + $0x10] sm:$0xc0] %v5290
  %5325 = vst [vmem:[#allocation3 + $0x18] sm:$0xc0] %v5291
  %5326 = vst [vmem:[#allocation3 + $0x20] sm:$0xc0] %v5292
  %5327 = vst [vmem:[#allocation3 + $0x28] sm:$0xc0] %v5293
  %5328 = vst [vmem:[#allocation3 + $0x30] sm:$0xc0] %v5294
  %5329 = vst [vmem:[#allocation3 + $0x38] sm:$0xc0] %v5295
  %5330 = vst [vmem:[#allocation3 + $0x40] sm:$0xc0] %v5296
  %5331 = vst [vmem:[#allocation3 + $0x48] sm:$0xc0] %v5297
  %5332 = vst [vmem:[#allocation3 + $0x50] sm:$0xc0] %v5298
  %5333 = vst [vmem:[#allocation3 + $0x58] sm:$0xc0] %v5299
  %5334 = vst [vmem:[#allocation3 + $0x60] sm:$0xc0] %v5300
  %5335 = vst [vmem:[#allocation3 + $0x68] sm:$0xc0] %v5301
  %5336 = vst [vmem:[#allocation3 + $0x70] sm:$0xc0] %v5302
  %5337 = vst [vmem:[#allocation3 + $0x78] sm:$0xc0] %v5303
  %5338 = vst [vmem:[#allocation3 + $0x80] sm:$0xc0] %v5304
  %5339 = vst [vmem:[#allocation3 + $0x88] sm:$0xf] %v5288
  %5340 = vst [vmem:[#allocation3 + $0x90] sm:$0xf] %v5289
  %5341 = vst [vmem:[#allocation3 + $0x98] sm:$0xf] %v5290
  %5342 = vst [vmem:[#allocation3 + $0xa0] sm:$0xf] %v5291
  %5343 = vst [vmem:[#allocation3 + $0xa8] sm:$0xf] %v5292
  %5344 = vst [vmem:[#allocation3 + $0xb0] sm:$0xf] %v5293
  %5345 = vst [vmem:[#allocation3 + $0xb8] sm:$0xf] %v5294
  %5346 = vst [vmem:[#allocation3 + $0xc0] sm:$0xf] %v5295
  %5347 = vst [vmem:[#allocation3 + $0xc8] sm:$0xf] %v5296
  %5348 = vst [vmem:[#allocation3 + $0xd0] sm:$0xf] %v5297
  %5349 = vst [vmem:[#allocation3 + $0xd8] sm:$0xf] %v5298
  %5350 = vst [vmem:[#allocation3 + $0xe0] sm:$0xf] %v5299
  %5351 = vst [vmem:[#allocation3 + $0xe8] sm:$0xf] %v5300
  %5352 = vst [vmem:[#allocation3 + $0xf0] sm:$0xf] %v5301
  %5353 = vst [vmem:[#allocation3 + $0xf8] sm:$0xf] %v5302
  %5354 = vst [vmem:[#allocation3 + $0x100] sm:$0xf] %v5303
  %5355 = vst [vmem:[#allocation3 + $0x108] sm:$0xf] %v5304
  %v5356 = vrot.slane %v5179, 4
  %v5357 = vrot.slane %v5180, 4
  %v5358 = vrot.slane %v5181, 4
  %v5359 = vrot.slane %v5182, 4
  %v5360 = vrot.slane %v5183, 4
  %v5361 = vrot.slane %v5184, 4
  %v5362 = vrot.slane %v5185, 4
  %v5363 = vrot.slane %v5186, 4
  %v5364 = vrot.slane %v5187, 4
  %v5365 = vrot.slane %v5188, 4
  %v5366 = vrot.slane %v5189, 4
  %v5367 = vrot.slane %v5190, 4
  %v5368 = vrot.slane %v5191, 4
  %v5369 = vrot.slane %v5192, 4
  %v5370 = vrot.slane %v5193, 4
  %v5371 = vrot.slane %v5194, 4
  %v5372 = vrot.slane %v5195, 4
  %v5373 = vrot.slane %v5196, 4
  %5374 = vrot.lane.b32.xlu0 %v5356, 124
  %v5375 = vpop.permute.xlu0 %5374
  %5376 = vrot.lane.b32.xlu0 %v5357, 124
  %v5377 = vpop.permute.xlu0 %5376
  %5378 = vrot.lane.b32.xlu0 %v5358, 124
  %v5379 = vpop.permute.xlu0 %5378
  %5380 = vrot.lane.b32.xlu0 %v5359, 124
  %v5381 = vpop.permute.xlu0 %5380
  %5382 = vrot.lane.b32.xlu0 %v5360, 124
  %v5383 = vpop.permute.xlu0 %5382
  %5384 = vrot.lane.b32.xlu0 %v5361, 124
  %v5385 = vpop.permute.xlu0 %5384
  %5386 = vrot.lane.b32.xlu0 %v5362, 124
  %v5387 = vpop.permute.xlu0 %5386
  %5388 = vrot.lane.b32.xlu0 %v5363, 124
  %v5389 = vpop.permute.xlu0 %5388
  %5390 = vrot.lane.b32.xlu0 %v5364, 124
  %v5391 = vpop.permute.xlu0 %5390
  %5392 = vrot.lane.b32.xlu0 %v5365, 124
  %v5393 = vpop.permute.xlu0 %5392
  %5394 = vrot.lane.b32.xlu0 %v5366, 124
  %v5395 = vpop.permute.xlu0 %5394
  %5396 = vrot.lane.b32.xlu0 %v5367, 124
  %v5397 = vpop.permute.xlu0 %5396
  %5398 = vrot.lane.b32.xlu0 %v5368, 124
  %v5399 = vpop.permute.xlu0 %5398
  %5400 = vrot.lane.b32.xlu0 %v5369, 124
  %v5401 = vpop.permute.xlu0 %5400
  %5402 = vrot.lane.b32.xlu0 %v5370, 124
  %v5403 = vpop.permute.xlu0 %5402
  %5404 = vrot.lane.b32.xlu0 %v5371, 124
  %v5405 = vpop.permute.xlu0 %5404
  %5406 = vrot.lane.b32.xlu0 %v5372, 124
  %v5407 = vpop.permute.xlu0 %5406
  %5408 = vrot.lane.b32.xlu0 %v5373, 124
  %v5409 = vpop.permute.xlu0 %5408
  %v5410 = vsel %vm669, %v5375, %v5377
  %v5411 = vsel %vm669, %v5377, %v5379
  %v5412 = vsel %vm669, %v5379, %v5381
  %v5413 = vsel %vm669, %v5381, %v5383
  %v5414 = vsel %vm669, %v5383, %v5385
  %v5415 = vsel %vm669, %v5385, %v5387
  %v5416 = vsel %vm669, %v5387, %v5389
  %v5417 = vsel %vm669, %v5389, %v5391
  %v5418 = vsel %vm669, %v5391, %v5393
  %v5419 = vsel %vm669, %v5393, %v5395
  %v5420 = vsel %vm669, %v5395, %v5397
  %v5421 = vsel %vm669, %v5397, %v5399
  %v5422 = vsel %vm669, %v5399, %v5401
  %v5423 = vsel %vm669, %v5401, %v5403
  %v5424 = vsel %vm669, %v5403, %v5405
  %v5425 = vsel %vm669, %v5405, %v5407
  %v5426 = vsel %vm669, %v5407, %v5409
  %5444 = vst [vmem:[#allocation3 + $0x88] sm:$0xf0] %v5410
  %5445 = vst [vmem:[#allocation3 + $0x90] sm:$0xf0] %v5411
  %5446 = vst [vmem:[#allocation3 + $0x98] sm:$0xf0] %v5412
  %5447 = vst [vmem:[#allocation3 + $0xa0] sm:$0xf0] %v5413
  %5448 = vst [vmem:[#allocation3 + $0xa8] sm:$0xf0] %v5414
  %5449 = vst [vmem:[#allocation3 + $0xb0] sm:$0xf0] %v5415
  %5450 = vst [vmem:[#allocation3 + $0xb8] sm:$0xf0] %v5416
  %5451 = vst [vmem:[#allocation3 + $0xc0] sm:$0xf0] %v5417
  %5452 = vst [vmem:[#allocation3 + $0xc8] sm:$0xf0] %v5418
  %5453 = vst [vmem:[#allocation3 + $0xd0] sm:$0xf0] %v5419
  %5454 = vst [vmem:[#allocation3 + $0xd8] sm:$0xf0] %v5420
  %5455 = vst [vmem:[#allocation3 + $0xe0] sm:$0xf0] %v5421
  %5456 = vst [vmem:[#allocation3 + $0xe8] sm:$0xf0] %v5422
  %5457 = vst [vmem:[#allocation3 + $0xf0] sm:$0xf0] %v5423
  %5458 = vst [vmem:[#allocation3 + $0xf8] sm:$0xf0] %v5424
  %5459 = vst [vmem:[#allocation3 + $0x100] sm:$0xf0] %v5425
  %5460 = vst [vmem:[#allocation3 + $0x108] sm:$0xf0] %v5426
  %5461 = vst [vmem:[#allocation3 + $0x110] sm:$0x3] %v5410
  %5462 = vst [vmem:[#allocation3 + $0x118] sm:$0x3] %v5411
  %5463 = vst [vmem:[#allocation3 + $0x120] sm:$0x3] %v5412
  %5464 = vst [vmem:[#allocation3 + $0x128] sm:$0x3] %v5413
  %5465 = vst [vmem:[#allocation3 + $0x130] sm:$0x3] %v5414
  %5466 = vst [vmem:[#allocation3 + $0x138] sm:$0x3] %v5415
  %5467 = vst [vmem:[#allocation3 + $0x140] sm:$0x3] %v5416
  %5468 = vst [vmem:[#allocation3 + $0x148] sm:$0x3] %v5417
  %5469 = vst [vmem:[#allocation3 + $0x150] sm:$0x3] %v5418
  %5470 = vst [vmem:[#allocation3 + $0x158] sm:$0x3] %v5419
  %5471 = vst [vmem:[#allocation3 + $0x160] sm:$0x3] %v5420
  %5472 = vst [vmem:[#allocation3 + $0x168] sm:$0x3] %v5421
  %5473 = vst [vmem:[#allocation3 + $0x170] sm:$0x3] %v5422
  %5474 = vst [vmem:[#allocation3 + $0x178] sm:$0x3] %v5423
  %5475 = vst [vmem:[#allocation3 + $0x180] sm:$0x3] %v5424
  %5476 = vst [vmem:[#allocation3 + $0x188] sm:$0x3] %v5425
  %5477 = vst [vmem:[#allocation3 + $0x190] sm:$0x3] %v5426
  %v5478 = vrot.slane %v5179, 6
  %v5479 = vrot.slane %v5180, 6
  %v5480 = vrot.slane %v5181, 6
  %v5481 = vrot.slane %v5182, 6
  %v5482 = vrot.slane %v5183, 6
  %v5483 = vrot.slane %v5184, 6
  %v5484 = vrot.slane %v5185, 6
  %v5485 = vrot.slane %v5186, 6
  %v5486 = vrot.slane %v5187, 6
  %v5487 = vrot.slane %v5188, 6
  %v5488 = vrot.slane %v5189, 6
  %v5489 = vrot.slane %v5190, 6
  %v5490 = vrot.slane %v5191, 6
  %v5491 = vrot.slane %v5192, 6
  %v5492 = vrot.slane %v5193, 6
  %v5493 = vrot.slane %v5194, 6
  %v5494 = vrot.slane %v5195, 6
  %v5495 = vrot.slane %v5196, 6
  %5496 = vrot.lane.b32.xlu0 %v5478, 122
  %v5497 = vpop.permute.xlu0 %5496
  %5498 = vrot.lane.b32.xlu0 %v5479, 122
  %v5499 = vpop.permute.xlu0 %5498
  %5500 = vrot.lane.b32.xlu0 %v5480, 122
  %v5501 = vpop.permute.xlu0 %5500
  %5502 = vrot.lane.b32.xlu0 %v5481, 122
  %v5503 = vpop.permute.xlu0 %5502
  %5504 = vrot.lane.b32.xlu0 %v5482, 122
  %v5505 = vpop.permute.xlu0 %5504
  %5506 = vrot.lane.b32.xlu0 %v5483, 122
  %v5507 = vpop.permute.xlu0 %5506
  %5508 = vrot.lane.b32.xlu0 %v5484, 122
  %v5509 = vpop.permute.xlu0 %5508
  %5510 = vrot.lane.b32.xlu0 %v5485, 122
  %v5511 = vpop.permute.xlu0 %5510
  %5512 = vrot.lane.b32.xlu0 %v5486, 122
  %v5513 = vpop.permute.xlu0 %5512
  %5514 = vrot.lane.b32.xlu0 %v5487, 122
  %v5515 = vpop.permute.xlu0 %5514
  %5516 = vrot.lane.b32.xlu0 %v5488, 122
  %v5517 = vpop.permute.xlu0 %5516
  %5518 = vrot.lane.b32.xlu0 %v5489, 122
  %v5519 = vpop.permute.xlu0 %5518
  %5520 = vrot.lane.b32.xlu0 %v5490, 122
  %v5521 = vpop.permute.xlu0 %5520
  %5522 = vrot.lane.b32.xlu0 %v5491, 122
  %v5523 = vpop.permute.xlu0 %5522
  %5524 = vrot.lane.b32.xlu0 %v5492, 122
  %v5525 = vpop.permute.xlu0 %5524
  %5526 = vrot.lane.b32.xlu0 %v5493, 122
  %v5527 = vpop.permute.xlu0 %5526
  %5528 = vrot.lane.b32.xlu0 %v5494, 122
  %v5529 = vpop.permute.xlu0 %5528
  %5530 = vrot.lane.b32.xlu0 %v5495, 122
  %v5531 = vpop.permute.xlu0 %5530
  %vm5532 = vcmask 998400
  %v5533 = vsel %vm5532, %v5497, %v5499
  %v5534 = vsel %vm5532, %v5499, %v5501
  %v5535 = vsel %vm5532, %v5501, %v5503
  %v5536 = vsel %vm5532, %v5503, %v5505
  %v5537 = vsel %vm5532, %v5505, %v5507
  %v5538 = vsel %vm5532, %v5507, %v5509
  %v5539 = vsel %vm5532, %v5509, %v5511
  %v5540 = vsel %vm5532, %v5511, %v5513
  %v5541 = vsel %vm5532, %v5513, %v5515
  %v5542 = vsel %vm5532, %v5515, %v5517
  %v5543 = vsel %vm5532, %v5517, %v5519
  %v5544 = vsel %vm5532, %v5519, %v5521
  %v5545 = vsel %vm5532, %v5521, %v5523
  %v5546 = vsel %vm5532, %v5523, %v5525
  %v5547 = vsel %vm5532, %v5525, %v5527
  %v5548 = vsel %vm5532, %v5527, %v5529
  %v5549 = vsel %vm5532, %v5529, %v5531
  %5567 = vst [vmem:[#allocation3 + $0x110] sm:$0xfc] %v5533
  %5568 = vst [vmem:[#allocation3 + $0x118] sm:$0xfc] %v5534
  %5569 = vst [vmem:[#allocation3 + $0x120] sm:$0xfc] %v5535
  %5570 = vst [vmem:[#allocation3 + $0x128] sm:$0xfc] %v5536
  %5571 = vst [vmem:[#allocation3 + $0x130] sm:$0xfc] %v5537
  %5572 = vst [vmem:[#allocation3 + $0x138] sm:$0xfc] %v5538
  %5573 = vst [vmem:[#allocation3 + $0x140] sm:$0xfc] %v5539
  %5574 = vst [vmem:[#allocation3 + $0x148] sm:$0xfc] %v5540
  %5575 = vst [vmem:[#allocation3 + $0x150] sm:$0xfc] %v5541
  %5576 = vst [vmem:[#allocation3 + $0x158] sm:$0xfc] %v5542
  %5577 = vst [vmem:[#allocation3 + $0x160] sm:$0xfc] %v5543
  %5578 = vst [vmem:[#allocation3 + $0x168] sm:$0xfc] %v5544
  %5579 = vst [vmem:[#allocation3 + $0x170] sm:$0xfc] %v5545
  %5580 = vst [vmem:[#allocation3 + $0x178] sm:$0xfc] %v5546
  %5581 = vst [vmem:[#allocation3 + $0x180] sm:$0xfc] %v5547
  %5582 = vst [vmem:[#allocation3 + $0x188] sm:$0xfc] %v5548
  %5583 = vst [vmem:[#allocation3 + $0x190] sm:$0xfc] %v5549
  %5584 = vrot.lane.b32.xlu0 %v5179, 120
  %v5585 = vpop.permute.xlu0 %5584
  %5586 = vrot.lane.b32.xlu0 %v5180, 120
  %v5587 = vpop.permute.xlu0 %5586
  %5588 = vrot.lane.b32.xlu0 %v5181, 120
  %v5589 = vpop.permute.xlu0 %5588
  %5590 = vrot.lane.b32.xlu0 %v5182, 120
  %v5591 = vpop.permute.xlu0 %5590
  %5592 = vrot.lane.b32.xlu0 %v5183, 120
  %v5593 = vpop.permute.xlu0 %5592
  %5594 = vrot.lane.b32.xlu0 %v5184, 120
  %v5595 = vpop.permute.xlu0 %5594
  %5596 = vrot.lane.b32.xlu0 %v5185, 120
  %v5597 = vpop.permute.xlu0 %5596
  %5598 = vrot.lane.b32.xlu0 %v5186, 120
  %v5599 = vpop.permute.xlu0 %5598
  %5600 = vrot.lane.b32.xlu0 %v5187, 120
  %v5601 = vpop.permute.xlu0 %5600
  %5602 = vrot.lane.b32.xlu0 %v5188, 120
  %v5603 = vpop.permute.xlu0 %5602
  %5604 = vrot.lane.b32.xlu0 %v5189, 120
  %v5605 = vpop.permute.xlu0 %5604
  %5606 = vrot.lane.b32.xlu0 %v5190, 120
  %v5607 = vpop.permute.xlu0 %5606
  %5608 = vrot.lane.b32.xlu0 %v5191, 120
  %v5609 = vpop.permute.xlu0 %5608
  %5610 = vrot.lane.b32.xlu0 %v5192, 120
  %v5611 = vpop.permute.xlu0 %5610
  %5612 = vrot.lane.b32.xlu0 %v5193, 120
  %v5613 = vpop.permute.xlu0 %5612
  %5614 = vrot.lane.b32.xlu0 %v5194, 120
  %v5615 = vpop.permute.xlu0 %5614
  %5616 = vrot.lane.b32.xlu0 %v5195, 120
  %v5617 = vpop.permute.xlu0 %5616
  %5618 = vrot.lane.b32.xlu0 %v5196, 120
  %v5619 = vpop.permute.xlu0 %5618
  %vm5620 = vcmask 982016
  %v5621 = vsel %vm5620, %v5585, %v5587
  %v5622 = vsel %vm5620, %v5587, %v5589
  %v5623 = vsel %vm5620, %v5589, %v5591
  %v5624 = vsel %vm5620, %v5591, %v5593
  %v5625 = vsel %vm5620, %v5593, %v5595
  %v5626 = vsel %vm5620, %v5595, %v5597
  %v5627 = vsel %vm5620, %v5597, %v5599
  %v5628 = vsel %vm5620, %v5599, %v5601
  %v5629 = vsel %vm5620, %v5601, %v5603
  %v5630 = vsel %vm5620, %v5603, %v5605
  %v5631 = vsel %vm5620, %v5605, %v5607
  %v5632 = vsel %vm5620, %v5607, %v5609
  %v5633 = vsel %vm5620, %v5609, %v5611
  %v5634 = vsel %vm5620, %v5611, %v5613
  %v5635 = vsel %vm5620, %v5613, %v5615
  %v5636 = vsel %vm5620, %v5615, %v5617
  %v5637 = vsel %vm5620, %v5617, %v5619
  %5655 = vst [vmem:[#allocation3 + $0x198] sm:$0x3f] %v5621
  %5656 = vst [vmem:[#allocation3 + $0x1a0] sm:$0x3f] %v5622
  %5657 = vst [vmem:[#allocation3 + $0x1a8] sm:$0x3f] %v5623
  %5658 = vst [vmem:[#allocation3 + $0x1b0] sm:$0x3f] %v5624
  %5659 = vst [vmem:[#allocation3 + $0x1b8] sm:$0x3f] %v5625
  %5660 = vst [vmem:[#allocation3 + $0x1c0] sm:$0x3f] %v5626
  %5661 = vst [vmem:[#allocation3 + $0x1c8] sm:$0x3f] %v5627
  %5662 = vst [vmem:[#allocation3 + $0x1d0] sm:$0x3f] %v5628
  %5663 = vst [vmem:[#allocation3 + $0x1d8] sm:$0x3f] %v5629
  %5664 = vst [vmem:[#allocation3 + $0x1e0] sm:$0x3f] %v5630
  %5665 = vst [vmem:[#allocation3 + $0x1e8] sm:$0x3f] %v5631
  %5666 = vst [vmem:[#allocation3 + $0x1f0] sm:$0x3f] %v5632
  %5667 = vst [vmem:[#allocation3 + $0x1f8] sm:$0x3f] %v5633
  %5668 = vst [vmem:[#allocation3 + $0x200] sm:$0x3f] %v5634
  %5669 = vst [vmem:[#allocation3 + $0x208] sm:$0x3f] %v5635
  %5670 = vst [vmem:[#allocation3 + $0x210] sm:$0x3f] %v5636
  %5671 = vst [vmem:[#allocation3 + $0x218] sm:$0x3f] %v5637
  %5672 = vrot.lane.b32.xlu0 %v5234, 64
  %v5673 = vpop.permute.xlu0 %5672
  %5674 = vrot.lane.b32.xlu0 %v5235, 64
  %v5675 = vpop.permute.xlu0 %5674
  %5676 = vrot.lane.b32.xlu0 %v5236, 64
  %v5677 = vpop.permute.xlu0 %5676
  %5678 = vrot.lane.b32.xlu0 %v5237, 64
  %v5679 = vpop.permute.xlu0 %5678
  %5680 = vrot.lane.b32.xlu0 %v5238, 64
  %v5681 = vpop.permute.xlu0 %5680
  %5682 = vrot.lane.b32.xlu0 %v5239, 64
  %v5683 = vpop.permute.xlu0 %5682
  %5684 = vrot.lane.b32.xlu0 %v5240, 64
  %v5685 = vpop.permute.xlu0 %5684
  %5686 = vrot.lane.b32.xlu0 %v5241, 64
  %v5687 = vpop.permute.xlu0 %5686
  %5688 = vrot.lane.b32.xlu0 %v5242, 64
  %v5689 = vpop.permute.xlu0 %5688
  %5690 = vrot.lane.b32.xlu0 %v5243, 64
  %v5691 = vpop.permute.xlu0 %5690
  %5692 = vrot.lane.b32.xlu0 %v5244, 64
  %v5693 = vpop.permute.xlu0 %5692
  %5694 = vrot.lane.b32.xlu0 %v5245, 64
  %v5695 = vpop.permute.xlu0 %5694
  %5696 = vrot.lane.b32.xlu0 %v5246, 64
  %v5697 = vpop.permute.xlu0 %5696
  %5698 = vrot.lane.b32.xlu0 %v5247, 64
  %v5699 = vpop.permute.xlu0 %5698
  %5700 = vrot.lane.b32.xlu0 %v5248, 64
  %v5701 = vpop.permute.xlu0 %5700
  %5702 = vrot.lane.b32.xlu0 %v5249, 64
  %v5703 = vpop.permute.xlu0 %5702
  %5704 = vrot.lane.b32.xlu0 %v5250, 64
  %v5705 = vpop.permute.xlu0 %5704
  %5706 = vrot.lane.b32.xlu0 %v5251, 64
  %v5707 = vpop.permute.xlu0 %5706
  %v5708 = vsel %vm1646, %v5673, %v5675
  %v5709 = vsel %vm1646, %v5675, %v5677
  %v5710 = vsel %vm1646, %v5677, %v5679
  %v5711 = vsel %vm1646, %v5679, %v5681
  %v5712 = vsel %vm1646, %v5681, %v5683
  %v5713 = vsel %vm1646, %v5683, %v5685
  %v5714 = vsel %vm1646, %v5685, %v5687
  %v5715 = vsel %vm1646, %v5687, %v5689
  %v5716 = vsel %vm1646, %v5689, %v5691
  %v5717 = vsel %vm1646, %v5691, %v5693
  %v5718 = vsel %vm1646, %v5693, %v5695
  %v5719 = vsel %vm1646, %v5695, %v5697
  %v5720 = vsel %vm1646, %v5697, %v5699
  %v5721 = vsel %vm1646, %v5699, %v5701
  %v5722 = vsel %vm1646, %v5701, %v5703
  %v5723 = vsel %vm1646, %v5703, %v5705
  %v5724 = vsel %vm1646, %v5705, %v5707
  %5742 = vst [vmem:[#allocation3 + $0x198] sm:$0xc0] %v5708
  %5743 = vst [vmem:[#allocation3 + $0x1a0] sm:$0xc0] %v5709
  %5744 = vst [vmem:[#allocation3 + $0x1a8] sm:$0xc0] %v5710
  %5745 = vst [vmem:[#allocation3 + $0x1b0] sm:$0xc0] %v5711
  %5746 = vst [vmem:[#allocation3 + $0x1b8] sm:$0xc0] %v5712
  %5747 = vst [vmem:[#allocation3 + $0x1c0] sm:$0xc0] %v5713
  %5748 = vst [vmem:[#allocation3 + $0x1c8] sm:$0xc0] %v5714
  %5749 = vst [vmem:[#allocation3 + $0x1d0] sm:$0xc0] %v5715
  %5750 = vst [vmem:[#allocation3 + $0x1d8] sm:$0xc0] %v5716
  %5751 = vst [vmem:[#allocation3 + $0x1e0] sm:$0xc0] %v5717
  %5752 = vst [vmem:[#allocation3 + $0x1e8] sm:$0xc0] %v5718
  %5753 = vst [vmem:[#allocation3 + $0x1f0] sm:$0xc0] %v5719
  %5754 = vst [vmem:[#allocation3 + $0x1f8] sm:$0xc0] %v5720
  %5755 = vst [vmem:[#allocation3 + $0x200] sm:$0xc0] %v5721
  %5756 = vst [vmem:[#allocation3 + $0x208] sm:$0xc0] %v5722
  %5757 = vst [vmem:[#allocation3 + $0x210] sm:$0xc0] %v5723
  %5758 = vst [vmem:[#allocation3 + $0x218] sm:$0xc0] %v5724
  %5759 = vst [vmem:[#allocation3 + $0x220] sm:$0xf] %v5708
  %5760 = vst [vmem:[#allocation3 + $0x228] sm:$0xf] %v5709
  %5761 = vst [vmem:[#allocation3 + $0x230] sm:$0xf] %v5710
  %5762 = vst [vmem:[#allocation3 + $0x238] sm:$0xf] %v5711
  %5763 = vst [vmem:[#allocation3 + $0x240] sm:$0xf] %v5712
  %5764 = vst [vmem:[#allocation3 + $0x248] sm:$0xf] %v5713
  %5765 = vst [vmem:[#allocation3 + $0x250] sm:$0xf] %v5714
  %5766 = vst [vmem:[#allocation3 + $0x258] sm:$0xf] %v5715
  %5767 = vst [vmem:[#allocation3 + $0x260] sm:$0xf] %v5716
  %5768 = vst [vmem:[#allocation3 + $0x268] sm:$0xf] %v5717
  %5769 = vst [vmem:[#allocation3 + $0x270] sm:$0xf] %v5718
  %5770 = vst [vmem:[#allocation3 + $0x278] sm:$0xf] %v5719
  %5771 = vst [vmem:[#allocation3 + $0x280] sm:$0xf] %v5720
  %5772 = vst [vmem:[#allocation3 + $0x288] sm:$0xf] %v5721
  %5773 = vst [vmem:[#allocation3 + $0x290] sm:$0xf] %v5722
  %5774 = vst [vmem:[#allocation3 + $0x298] sm:$0xf] %v5723
  %5775 = vst [vmem:[#allocation3 + $0x2a0] sm:$0xf] %v5724
  %5776 = vrot.lane.b32.xlu0 %v5356, 62
  %v5777 = vpop.permute.xlu0 %5776
  %5778 = vrot.lane.b32.xlu0 %v5357, 62
  %v5779 = vpop.permute.xlu0 %5778
  %5780 = vrot.lane.b32.xlu0 %v5358, 62
  %v5781 = vpop.permute.xlu0 %5780
  %5782 = vrot.lane.b32.xlu0 %v5359, 62
  %v5783 = vpop.permute.xlu0 %5782
  %5784 = vrot.lane.b32.xlu0 %v5360, 62
  %v5785 = vpop.permute.xlu0 %5784
  %5786 = vrot.lane.b32.xlu0 %v5361, 62
  %v5787 = vpop.permute.xlu0 %5786
  %5788 = vrot.lane.b32.xlu0 %v5362, 62
  %v5789 = vpop.permute.xlu0 %5788
  %5790 = vrot.lane.b32.xlu0 %v5363, 62
  %v5791 = vpop.permute.xlu0 %5790
  %5792 = vrot.lane.b32.xlu0 %v5364, 62
  %v5793 = vpop.permute.xlu0 %5792
  %5794 = vrot.lane.b32.xlu0 %v5365, 62
  %v5795 = vpop.permute.xlu0 %5794
  %5796 = vrot.lane.b32.xlu0 %v5366, 62
  %v5797 = vpop.permute.xlu0 %5796
  %5798 = vrot.lane.b32.xlu0 %v5367, 62
  %v5799 = vpop.permute.xlu0 %5798
  %5800 = vrot.lane.b32.xlu0 %v5368, 62
  %v5801 = vpop.permute.xlu0 %5800
  %5802 = vrot.lane.b32.xlu0 %v5369, 62
  %v5803 = vpop.permute.xlu0 %5802
  %5804 = vrot.lane.b32.xlu0 %v5370, 62
  %v5805 = vpop.permute.xlu0 %5804
  %5806 = vrot.lane.b32.xlu0 %v5371, 62
  %v5807 = vpop.permute.xlu0 %5806
  %5808 = vrot.lane.b32.xlu0 %v5372, 62
  %v5809 = vpop.permute.xlu0 %5808
  %5810 = vrot.lane.b32.xlu0 %v5373, 62
  %v5811 = vpop.permute.xlu0 %5810
  %v5812 = vsel %vm1971, %v5777, %v5779
  %v5813 = vsel %vm1971, %v5779, %v5781
  %v5814 = vsel %vm1971, %v5781, %v5783
  %v5815 = vsel %vm1971, %v5783, %v5785
  %v5816 = vsel %vm1971, %v5785, %v5787
  %v5817 = vsel %vm1971, %v5787, %v5789
  %v5818 = vsel %vm1971, %v5789, %v5791
  %v5819 = vsel %vm1971, %v5791, %v5793
  %v5820 = vsel %vm1971, %v5793, %v5795
  %v5821 = vsel %vm1971, %v5795, %v5797
  %v5822 = vsel %vm1971, %v5797, %v5799
  %v5823 = vsel %vm1971, %v5799, %v5801
  %v5824 = vsel %vm1971, %v5801, %v5803
  %v5825 = vsel %vm1971, %v5803, %v5805
  %v5826 = vsel %vm1971, %v5805, %v5807
  %v5827 = vsel %vm1971, %v5807, %v5809
  %v5828 = vsel %vm1971, %v5809, %v5811
  %5846 = vst [vmem:[#allocation3 + $0x220] sm:$0xf0] %v5812
  %5847 = vst [vmem:[#allocation3 + $0x228] sm:$0xf0] %v5813
  %5848 = vst [vmem:[#allocation3 + $0x230] sm:$0xf0] %v5814
  %5849 = vst [vmem:[#allocation3 + $0x238] sm:$0xf0] %v5815
  %5850 = vst [vmem:[#allocation3 + $0x240] sm:$0xf0] %v5816
  %5851 = vst [vmem:[#allocation3 + $0x248] sm:$0xf0] %v5817
  %5852 = vst [vmem:[#allocation3 + $0x250] sm:$0xf0] %v5818
  %5853 = vst [vmem:[#allocation3 + $0x258] sm:$0xf0] %v5819
  %5854 = vst [vmem:[#allocation3 + $0x260] sm:$0xf0] %v5820
  %5855 = vst [vmem:[#allocation3 + $0x268] sm:$0xf0] %v5821
  %5856 = vst [vmem:[#allocation3 + $0x270] sm:$0xf0] %v5822
  %5857 = vst [vmem:[#allocation3 + $0x278] sm:$0xf0] %v5823
  %5858 = vst [vmem:[#allocation3 + $0x280] sm:$0xf0] %v5824
  %5859 = vst [vmem:[#allocation3 + $0x288] sm:$0xf0] %v5825
  %5860 = vst [vmem:[#allocation3 + $0x290] sm:$0xf0] %v5826
  %5861 = vst [vmem:[#allocation3 + $0x298] sm:$0xf0] %v5827
  %5862 = vst [vmem:[#allocation3 + $0x2a0] sm:$0xf0] %v5828
  %5863 = vst [vmem:[#allocation3 + $0x2a8] sm:$0x3] %v5812
  %5864 = vst [vmem:[#allocation3 + $0x2b0] sm:$0x3] %v5813
  %5865 = vst [vmem:[#allocation3 + $0x2b8] sm:$0x3] %v5814
  %5866 = vst [vmem:[#allocation3 + $0x2c0] sm:$0x3] %v5815
  %5867 = vst [vmem:[#allocation3 + $0x2c8] sm:$0x3] %v5816
  %5868 = vst [vmem:[#allocation3 + $0x2d0] sm:$0x3] %v5817
  %5869 = vst [vmem:[#allocation3 + $0x2d8] sm:$0x3] %v5818
  %5870 = vst [vmem:[#allocation3 + $0x2e0] sm:$0x3] %v5819
  %5871 = vst [vmem:[#allocation3 + $0x2e8] sm:$0x3] %v5820
  %5872 = vst [vmem:[#allocation3 + $0x2f0] sm:$0x3] %v5821
  %5873 = vst [vmem:[#allocation3 + $0x2f8] sm:$0x3] %v5822
  %5874 = vst [vmem:[#allocation3 + $0x300] sm:$0x3] %v5823
  %5875 = vst [vmem:[#allocation3 + $0x308] sm:$0x3] %v5824
  %5876 = vst [vmem:[#allocation3 + $0x310] sm:$0x3] %v5825
  %5877 = vst [vmem:[#allocation3 + $0x318] sm:$0x3] %v5826
  %5878 = vst [vmem:[#allocation3 + $0x320] sm:$0x3] %v5827
  %5879 = vst [vmem:[#allocation3 + $0x328] sm:$0x3] %v5828
  %5880 = vrot.lane.b32.xlu0 %v5478, 60
  %v5881 = vpop.permute.xlu0 %5880
  %5882 = vrot.lane.b32.xlu0 %v5479, 60
  %v5883 = vpop.permute.xlu0 %5882
  %5884 = vrot.lane.b32.xlu0 %v5480, 60
  %v5885 = vpop.permute.xlu0 %5884
  %5886 = vrot.lane.b32.xlu0 %v5481, 60
  %v5887 = vpop.permute.xlu0 %5886
  %5888 = vrot.lane.b32.xlu0 %v5482, 60
  %v5889 = vpop.permute.xlu0 %5888
  %5890 = vrot.lane.b32.xlu0 %v5483, 60
  %v5891 = vpop.permute.xlu0 %5890
  %5892 = vrot.lane.b32.xlu0 %v5484, 60
  %v5893 = vpop.permute.xlu0 %5892
  %5894 = vrot.lane.b32.xlu0 %v5485, 60
  %v5895 = vpop.permute.xlu0 %5894
  %5896 = vrot.lane.b32.xlu0 %v5486, 60
  %v5897 = vpop.permute.xlu0 %5896
  %5898 = vrot.lane.b32.xlu0 %v5487, 60
  %v5899 = vpop.permute.xlu0 %5898
  %5900 = vrot.lane.b32.xlu0 %v5488, 60
  %v5901 = vpop.permute.xlu0 %5900
  %5902 = vrot.lane.b32.xlu0 %v5489, 60
  %v5903 = vpop.permute.xlu0 %5902
  %5904 = vrot.lane.b32.xlu0 %v5490, 60
  %v5905 = vpop.permute.xlu0 %5904
  %5906 = vrot.lane.b32.xlu0 %v5491, 60
  %v5907 = vpop.permute.xlu0 %5906
  %5908 = vrot.lane.b32.xlu0 %v5492, 60
  %v5909 = vpop.permute.xlu0 %5908
  %5910 = vrot.lane.b32.xlu0 %v5493, 60
  %v5911 = vpop.permute.xlu0 %5910
  %5912 = vrot.lane.b32.xlu0 %v5494, 60
  %v5913 = vpop.permute.xlu0 %5912
  %5914 = vrot.lane.b32.xlu0 %v5495, 60
  %v5915 = vpop.permute.xlu0 %5914
  %v5916 = vsel %vm2318, %v5881, %v5883
  %v5917 = vsel %vm2318, %v5883, %v5885
  %v5918 = vsel %vm2318, %v5885, %v5887
  %v5919 = vsel %vm2318, %v5887, %v5889
  %v5920 = vsel %vm2318, %v5889, %v5891
  %v5921 = vsel %vm2318, %v5891, %v5893
  %v5922 = vsel %vm2318, %v5893, %v5895
  %v5923 = vsel %vm2318, %v5895, %v5897
  %v5924 = vsel %vm2318, %v5897, %v5899
  %v5925 = vsel %vm2318, %v5899, %v5901
  %v5926 = vsel %vm2318, %v5901, %v5903
  %v5927 = vsel %vm2318, %v5903, %v5905
  %v5928 = vsel %vm2318, %v5905, %v5907
  %v5929 = vsel %vm2318, %v5907, %v5909
  %v5930 = vsel %vm2318, %v5909, %v5911
  %v5931 = vsel %vm2318, %v5911, %v5913
  %v5932 = vsel %vm2318, %v5913, %v5915
  %5950 = vst [vmem:[#allocation3 + $0x2a8] sm:$0xfc] %v5916
  %5951 = vst [vmem:[#allocation3 + $0x2b0] sm:$0xfc] %v5917
  %5952 = vst [vmem:[#allocation3 + $0x2b8] sm:$0xfc] %v5918
  %5953 = vst [vmem:[#allocation3 + $0x2c0] sm:$0xfc] %v5919
  %5954 = vst [vmem:[#allocation3 + $0x2c8] sm:$0xfc] %v5920
  %5955 = vst [vmem:[#allocation3 + $0x2d0] sm:$0xfc] %v5921
  %5956 = vst [vmem:[#allocation3 + $0x2d8] sm:$0xfc] %v5922
  %5957 = vst [vmem:[#allocation3 + $0x2e0] sm:$0xfc] %v5923
  %5958 = vst [vmem:[#allocation3 + $0x2e8] sm:$0xfc] %v5924
  %5959 = vst [vmem:[#allocation3 + $0x2f0] sm:$0xfc] %v5925
  %5960 = vst [vmem:[#allocation3 + $0x2f8] sm:$0xfc] %v5926
  %5961 = vst [vmem:[#allocation3 + $0x300] sm:$0xfc] %v5927
  %5962 = vst [vmem:[#allocation3 + $0x308] sm:$0xfc] %v5928
  %5963 = vst [vmem:[#allocation3 + $0x310] sm:$0xfc] %v5929
  %5964 = vst [vmem:[#allocation3 + $0x318] sm:$0xfc] %v5930
  %5965 = vst [vmem:[#allocation3 + $0x320] sm:$0xfc] %v5931
  %5966 = vst [vmem:[#allocation3 + $0x328] sm:$0xfc] %v5932
  %5967 = vrot.lane.b32.xlu0 %v5179, 58
  %v5968 = vpop.permute.xlu0 %5967
  %5969 = vrot.lane.b32.xlu0 %v5180, 58
  %v5970 = vpop.permute.xlu0 %5969
  %5971 = vrot.lane.b32.xlu0 %v5181, 58
  %v5972 = vpop.permute.xlu0 %5971
  %5973 = vrot.lane.b32.xlu0 %v5182, 58
  %v5974 = vpop.permute.xlu0 %5973
  %5975 = vrot.lane.b32.xlu0 %v5183, 58
  %v5976 = vpop.permute.xlu0 %5975
  %5977 = vrot.lane.b32.xlu0 %v5184, 58
  %v5978 = vpop.permute.xlu0 %5977
  %5979 = vrot.lane.b32.xlu0 %v5185, 58
  %v5980 = vpop.permute.xlu0 %5979
  %5981 = vrot.lane.b32.xlu0 %v5186, 58
  %v5982 = vpop.permute.xlu0 %5981
  %5983 = vrot.lane.b32.xlu0 %v5187, 58
  %v5984 = vpop.permute.xlu0 %5983
  %5985 = vrot.lane.b32.xlu0 %v5188, 58
  %v5986 = vpop.permute.xlu0 %5985
  %5987 = vrot.lane.b32.xlu0 %v5189, 58
  %v5988 = vpop.permute.xlu0 %5987
  %5989 = vrot.lane.b32.xlu0 %v5190, 58
  %v5990 = vpop.permute.xlu0 %5989
  %5991 = vrot.lane.b32.xlu0 %v5191, 58
  %v5992 = vpop.permute.xlu0 %5991
  %5993 = vrot.lane.b32.xlu0 %v5192, 58
  %v5994 = vpop.permute.xlu0 %5993
  %5995 = vrot.lane.b32.xlu0 %v5193, 58
  %v5996 = vpop.permute.xlu0 %5995
  %5997 = vrot.lane.b32.xlu0 %v5194, 58
  %v5998 = vpop.permute.xlu0 %5997
  %5999 = vrot.lane.b32.xlu0 %v5195, 58
  %v6000 = vpop.permute.xlu0 %5999
  %6001 = vrot.lane.b32.xlu0 %v5196, 58
  %v6002 = vpop.permute.xlu0 %6001
  %vm6003 = vcmask 474112
  %v6004 = vsel %vm6003, %v5968, %v5970
  %v6005 = vsel %vm6003, %v5970, %v5972
  %v6006 = vsel %vm6003, %v5972, %v5974
  %v6007 = vsel %vm6003, %v5974, %v5976
  %v6008 = vsel %vm6003, %v5976, %v5978
  %v6009 = vsel %vm6003, %v5978, %v5980
  %v6010 = vsel %vm6003, %v5980, %v5982
  %v6011 = vsel %vm6003, %v5982, %v5984
  %v6012 = vsel %vm6003, %v5984, %v5986
  %v6013 = vsel %vm6003, %v5986, %v5988
  %v6014 = vsel %vm6003, %v5988, %v5990
  %v6015 = vsel %vm6003, %v5990, %v5992
  %v6016 = vsel %vm6003, %v5992, %v5994
  %v6017 = vsel %vm6003, %v5994, %v5996
  %v6018 = vsel %vm6003, %v5996, %v5998
  %v6019 = vsel %vm6003, %v5998, %v6000
  %v6020 = vsel %vm6003, %v6000, %v6002
  %6038 = vst [vmem:[#allocation3 + $0x330] sm:$0x3f] %v6004
  %6039 = vst [vmem:[#allocation3 + $0x338] sm:$0x3f] %v6005
  %6040 = vst [vmem:[#allocation3 + $0x340] sm:$0x3f] %v6006
  %6041 = vst [vmem:[#allocation3 + $0x348] sm:$0x3f] %v6007
  %6042 = vst [vmem:[#allocation3 + $0x350] sm:$0x3f] %v6008
  %6043 = vst [vmem:[#allocation3 + $0x358] sm:$0x3f] %v6009
  %6044 = vst [vmem:[#allocation3 + $0x360] sm:$0x3f] %v6010
  %6045 = vst [vmem:[#allocation3 + $0x368] sm:$0x3f] %v6011
  %6046 = vst [vmem:[#allocation3 + $0x370] sm:$0x3f] %v6012
  %6047 = vst [vmem:[#allocation3 + $0x378] sm:$0x3f] %v6013
  %6048 = vst [vmem:[#allocation3 + $0x380] sm:$0x3f] %v6014
  %6049 = vst [vmem:[#allocation3 + $0x388] sm:$0x3f] %v6015
  %6050 = vst [vmem:[#allocation3 + $0x390] sm:$0x3f] %v6016
  %6051 = vst [vmem:[#allocation3 + $0x398] sm:$0x3f] %v6017
  %6052 = vst [vmem:[#allocation3 + $0x3a0] sm:$0x3f] %v6018
  %6053 = vst [vmem:[#allocation3 + $0x3a8] sm:$0x3f] %v6019
  %6054 = vst [vmem:[#allocation3 + $0x3b0] sm:$0x3f] %v6020
  %6055 = vrot.lane.b32.xlu0 %v5234, 56
  %v6056 = vpop.permute.xlu0 %6055
  %6057 = vrot.lane.b32.xlu0 %v5235, 56
  %v6058 = vpop.permute.xlu0 %6057
  %6059 = vrot.lane.b32.xlu0 %v5236, 56
  %v6060 = vpop.permute.xlu0 %6059
  %6061 = vrot.lane.b32.xlu0 %v5237, 56
  %v6062 = vpop.permute.xlu0 %6061
  %6063 = vrot.lane.b32.xlu0 %v5238, 56
  %v6064 = vpop.permute.xlu0 %6063
  %6065 = vrot.lane.b32.xlu0 %v5239, 56
  %v6066 = vpop.permute.xlu0 %6065
  %6067 = vrot.lane.b32.xlu0 %v5240, 56
  %v6068 = vpop.permute.xlu0 %6067
  %6069 = vrot.lane.b32.xlu0 %v5241, 56
  %v6070 = vpop.permute.xlu0 %6069
  %6071 = vrot.lane.b32.xlu0 %v5242, 56
  %v6072 = vpop.permute.xlu0 %6071
  %6073 = vrot.lane.b32.xlu0 %v5243, 56
  %v6074 = vpop.permute.xlu0 %6073
  %6075 = vrot.lane.b32.xlu0 %v5244, 56
  %v6076 = vpop.permute.xlu0 %6075
  %6077 = vrot.lane.b32.xlu0 %v5245, 56
  %v6078 = vpop.permute.xlu0 %6077
  %6079 = vrot.lane.b32.xlu0 %v5246, 56
  %v6080 = vpop.permute.xlu0 %6079
  %6081 = vrot.lane.b32.xlu0 %v5247, 56
  %v6082 = vpop.permute.xlu0 %6081
  %6083 = vrot.lane.b32.xlu0 %v5248, 56
  %v6084 = vpop.permute.xlu0 %6083
  %6085 = vrot.lane.b32.xlu0 %v5249, 56
  %v6086 = vpop.permute.xlu0 %6085
  %6087 = vrot.lane.b32.xlu0 %v5250, 56
  %v6088 = vpop.permute.xlu0 %6087
  %6089 = vrot.lane.b32.xlu0 %v5251, 56
  %v6090 = vpop.permute.xlu0 %6089
  %vm6091 = vcmask 457728
  %v6092 = vsel %vm6091, %v6056, %v6058
  %v6093 = vsel %vm6091, %v6058, %v6060
  %v6094 = vsel %vm6091, %v6060, %v6062
  %v6095 = vsel %vm6091, %v6062, %v6064
  %v6096 = vsel %vm6091, %v6064, %v6066
  %v6097 = vsel %vm6091, %v6066, %v6068
  %v6098 = vsel %vm6091, %v6068, %v6070
  %v6099 = vsel %vm6091, %v6070, %v6072
  %v6100 = vsel %vm6091, %v6072, %v6074
  %v6101 = vsel %vm6091, %v6074, %v6076
  %v6102 = vsel %vm6091, %v6076, %v6078
  %v6103 = vsel %vm6091, %v6078, %v6080
  %v6104 = vsel %vm6091, %v6080, %v6082
  %v6105 = vsel %vm6091, %v6082, %v6084
  %v6106 = vsel %vm6091, %v6084, %v6086
  %v6107 = vsel %vm6091, %v6086, %v6088
  %v6108 = vsel %vm6091, %v6088, %v6090
  %6126 = vst [vmem:[#allocation3 + $0x330] sm:$0xc0] %v6092
  %6127 = vst [vmem:[#allocation3 + $0x338] sm:$0xc0] %v6093
  %6128 = vst [vmem:[#allocation3 + $0x340] sm:$0xc0] %v6094
  %6129 = vst [vmem:[#allocation3 + $0x348] sm:$0xc0] %v6095
  %6130 = vst [vmem:[#allocation3 + $0x350] sm:$0xc0] %v6096
  %6131 = vst [vmem:[#allocation3 + $0x358] sm:$0xc0] %v6097
  %6132 = vst [vmem:[#allocation3 + $0x360] sm:$0xc0] %v6098
  %6133 = vst [vmem:[#allocation3 + $0x368] sm:$0xc0] %v6099
  %6134 = vst [vmem:[#allocation3 + $0x370] sm:$0xc0] %v6100
  %6135 = vst [vmem:[#allocation3 + $0x378] sm:$0xc0] %v6101
  %6136 = vst [vmem:[#allocation3 + $0x380] sm:$0xc0] %v6102
  %6137 = vst [vmem:[#allocation3 + $0x388] sm:$0xc0] %v6103
  %6138 = vst [vmem:[#allocation3 + $0x390] sm:$0xc0] %v6104
  %6139 = vst [vmem:[#allocation3 + $0x398] sm:$0xc0] %v6105
  %6140 = vst [vmem:[#allocation3 + $0x3a0] sm:$0xc0] %v6106
  %6141 = vst [vmem:[#allocation3 + $0x3a8] sm:$0xc0] %v6107
  %6142 = vst [vmem:[#allocation3 + $0x3b0] sm:$0xc0] %v6108
  %6143 = vst [vmem:[#allocation3 + $0x3b8] sm:$0xf] %v6092
  %6144 = vst [vmem:[#allocation3 + $0x3c0] sm:$0xf] %v6093
  %6145 = vst [vmem:[#allocation3 + $0x3c8] sm:$0xf] %v6094
  %6146 = vst [vmem:[#allocation3 + $0x3d0] sm:$0xf] %v6095
  %6147 = vst [vmem:[#allocation3 + $0x3d8] sm:$0xf] %v6096
  %6148 = vst [vmem:[#allocation3 + $0x3e0] sm:$0xf] %v6097
  %6149 = vst [vmem:[#allocation3 + $0x3e8] sm:$0xf] %v6098
  %6150 = vst [vmem:[#allocation3 + $0x3f0] sm:$0xf] %v6099
  %6151 = vst [vmem:[#allocation3 + $0x3f8] sm:$0xf] %v6100
  %6152 = vst [vmem:[#allocation3 + $0x400] sm:$0xf] %v6101
  %6153 = vst [vmem:[#allocation3 + $0x408] sm:$0xf] %v6102
  %6154 = vst [vmem:[#allocation3 + $0x410] sm:$0xf] %v6103
  %6155 = vst [vmem:[#allocation3 + $0x418] sm:$0xf] %v6104
  %6156 = vst [vmem:[#allocation3 + $0x420] sm:$0xf] %v6105
  %6157 = vst [vmem:[#allocation3 + $0x428] sm:$0xf] %v6106
  %6158 = vst [vmem:[#allocation3 + $0x430] sm:$0xf] %v6107
  %6159 = vst [vmem:[#allocation3 + $0x438] sm:$0xf] %v6108
  %6177 = vst [vmem:[#allocation3 + $0x3b8] sm:$0xf0] %v5357
  %6178 = vst [vmem:[#allocation3 + $0x3c0] sm:$0xf0] %v5358
  %6179 = vst [vmem:[#allocation3 + $0x3c8] sm:$0xf0] %v5359
  %6180 = vst [vmem:[#allocation3 + $0x3d0] sm:$0xf0] %v5360
  %6181 = vst [vmem:[#allocation3 + $0x3d8] sm:$0xf0] %v5361
  %6182 = vst [vmem:[#allocation3 + $0x3e0] sm:$0xf0] %v5362
  %6183 = vst [vmem:[#allocation3 + $0x3e8] sm:$0xf0] %v5363
  %6184 = vst [vmem:[#allocation3 + $0x3f0] sm:$0xf0] %v5364
  %6185 = vst [vmem:[#allocation3 + $0x3f8] sm:$0xf0] %v5365
  %6186 = vst [vmem:[#allocation3 + $0x400] sm:$0xf0] %v5366
  %6187 = vst [vmem:[#allocation3 + $0x408] sm:$0xf0] %v5367
  %6188 = vst [vmem:[#allocation3 + $0x410] sm:$0xf0] %v5368
  %6189 = vst [vmem:[#allocation3 + $0x418] sm:$0xf0] %v5369
  %6190 = vst [vmem:[#allocation3 + $0x420] sm:$0xf0] %v5370
  %6191 = vst [vmem:[#allocation3 + $0x428] sm:$0xf0] %v5371
  %6192 = vst [vmem:[#allocation3 + $0x430] sm:$0xf0] %v5372
  %6193 = vst [vmem:[#allocation3 + $0x438] sm:$0xf0] %v5373
  %6194 = vst [vmem:[#allocation3 + $0x440] sm:$0x3] %v5357
  %6195 = vst [vmem:[#allocation3 + $0x448] sm:$0x3] %v5358
  %6196 = vst [vmem:[#allocation3 + $0x450] sm:$0x3] %v5359
  %6197 = vst [vmem:[#allocation3 + $0x458] sm:$0x3] %v5360
  %6198 = vst [vmem:[#allocation3 + $0x460] sm:$0x3] %v5361
  %6199 = vst [vmem:[#allocation3 + $0x468] sm:$0x3] %v5362
  %6200 = vst [vmem:[#allocation3 + $0x470] sm:$0x3] %v5363
  %6201 = vst [vmem:[#allocation3 + $0x478] sm:$0x3] %v5364
  %6202 = vst [vmem:[#allocation3 + $0x480] sm:$0x3] %v5365
  %6203 = vst [vmem:[#allocation3 + $0x488] sm:$0x3] %v5366
  %6204 = vst [vmem:[#allocation3 + $0x490] sm:$0x3] %v5367
  %6205 = vst [vmem:[#allocation3 + $0x498] sm:$0x3] %v5368
  %6206 = vst [vmem:[#allocation3 + $0x4a0] sm:$0x3] %v5369
  %6207 = vst [vmem:[#allocation3 + $0x4a8] sm:$0x3] %v5370
  %6208 = vst [vmem:[#allocation3 + $0x4b0] sm:$0x3] %v5371
  %6209 = vst [vmem:[#allocation3 + $0x4b8] sm:$0x3] %v5372
  %6210 = vst [vmem:[#allocation3 + $0x4c0] sm:$0x3] %v5373
  %v6212 = vrot.slane %v5197, 6
  %6213 = vrot.lane.b32.xlu0 %v5479, 126
  %v6214 = vpop.permute.xlu0 %6213
  %6215 = vrot.lane.b32.xlu0 %v5480, 126
  %v6216 = vpop.permute.xlu0 %6215
  %6217 = vrot.lane.b32.xlu0 %v5481, 126
  %v6218 = vpop.permute.xlu0 %6217
  %6219 = vrot.lane.b32.xlu0 %v5482, 126
  %v6220 = vpop.permute.xlu0 %6219
  %6221 = vrot.lane.b32.xlu0 %v5483, 126
  %v6222 = vpop.permute.xlu0 %6221
  %6223 = vrot.lane.b32.xlu0 %v5484, 126
  %v6224 = vpop.permute.xlu0 %6223
  %6225 = vrot.lane.b32.xlu0 %v5485, 126
  %v6226 = vpop.permute.xlu0 %6225
  %6227 = vrot.lane.b32.xlu0 %v5486, 126
  %v6228 = vpop.permute.xlu0 %6227
  %6229 = vrot.lane.b32.xlu0 %v5487, 126
  %v6230 = vpop.permute.xlu0 %6229
  %6231 = vrot.lane.b32.xlu0 %v5488, 126
  %v6232 = vpop.permute.xlu0 %6231
  %6233 = vrot.lane.b32.xlu0 %v5489, 126
  %v6234 = vpop.permute.xlu0 %6233
  %6235 = vrot.lane.b32.xlu0 %v5490, 126
  %v6236 = vpop.permute.xlu0 %6235
  %6237 = vrot.lane.b32.xlu0 %v5491, 126
  %v6238 = vpop.permute.xlu0 %6237
  %6239 = vrot.lane.b32.xlu0 %v5492, 126
  %v6240 = vpop.permute.xlu0 %6239
  %6241 = vrot.lane.b32.xlu0 %v5493, 126
  %v6242 = vpop.permute.xlu0 %6241
  %6243 = vrot.lane.b32.xlu0 %v5494, 126
  %v6244 = vpop.permute.xlu0 %6243
  %6245 = vrot.lane.b32.xlu0 %v5495, 126
  %v6246 = vpop.permute.xlu0 %6245
  %6247 = vrot.lane.b32.xlu0 %v6212, 126
  %v6248 = vpop.permute.xlu0 %6247
  %v6249 = vsel %vm344, %v6214, %v6216
  %v6250 = vsel %vm344, %v6216, %v6218
  %v6251 = vsel %vm344, %v6218, %v6220
  %v6252 = vsel %vm344, %v6220, %v6222
  %v6253 = vsel %vm344, %v6222, %v6224
  %v6254 = vsel %vm344, %v6224, %v6226
  %v6255 = vsel %vm344, %v6226, %v6228
  %v6256 = vsel %vm344, %v6228, %v6230
  %v6257 = vsel %vm344, %v6230, %v6232
  %v6258 = vsel %vm344, %v6232, %v6234
  %v6259 = vsel %vm344, %v6234, %v6236
  %v6260 = vsel %vm344, %v6236, %v6238
  %v6261 = vsel %vm344, %v6238, %v6240
  %v6262 = vsel %vm344, %v6240, %v6242
  %v6263 = vsel %vm344, %v6242, %v6244
  %v6264 = vsel %vm344, %v6244, %v6246
  %v6265 = vsel %vm344, %v6246, %v6248
  %6283 = vst [vmem:[#allocation3 + $0x440] sm:$0xfc] %v6249
  %6284 = vst [vmem:[#allocation3 + $0x448] sm:$0xfc] %v6250
  %6285 = vst [vmem:[#allocation3 + $0x450] sm:$0xfc] %v6251
  %6286 = vst [vmem:[#allocation3 + $0x458] sm:$0xfc] %v6252
  %6287 = vst [vmem:[#allocation3 + $0x460] sm:$0xfc] %v6253
  %6288 = vst [vmem:[#allocation3 + $0x468] sm:$0xfc] %v6254
  %6289 = vst [vmem:[#allocation3 + $0x470] sm:$0xfc] %v6255
  %6290 = vst [vmem:[#allocation3 + $0x478] sm:$0xfc] %v6256
  %6291 = vst [vmem:[#allocation3 + $0x480] sm:$0xfc] %v6257
  %6292 = vst [vmem:[#allocation3 + $0x488] sm:$0xfc] %v6258
  %6293 = vst [vmem:[#allocation3 + $0x490] sm:$0xfc] %v6259
  %6294 = vst [vmem:[#allocation3 + $0x498] sm:$0xfc] %v6260
  %6295 = vst [vmem:[#allocation3 + $0x4a0] sm:$0xfc] %v6261
  %6296 = vst [vmem:[#allocation3 + $0x4a8] sm:$0xfc] %v6262
  %6297 = vst [vmem:[#allocation3 + $0x4b0] sm:$0xfc] %v6263
  %6298 = vst [vmem:[#allocation3 + $0x4b8] sm:$0xfc] %v6264
  %6299 = vst [vmem:[#allocation3 + $0x4c0] sm:$0xfc] %v6265
  %6300 = vrot.lane.b32.xlu0 %v5180, 124
  %v6301 = vpop.permute.xlu0 %6300
  %6302 = vrot.lane.b32.xlu0 %v5181, 124
  %v6303 = vpop.permute.xlu0 %6302
  %6304 = vrot.lane.b32.xlu0 %v5182, 124
  %v6305 = vpop.permute.xlu0 %6304
  %6306 = vrot.lane.b32.xlu0 %v5183, 124
  %v6307 = vpop.permute.xlu0 %6306
  %6308 = vrot.lane.b32.xlu0 %v5184, 124
  %v6309 = vpop.permute.xlu0 %6308
  %6310 = vrot.lane.b32.xlu0 %v5185, 124
  %v6311 = vpop.permute.xlu0 %6310
  %6312 = vrot.lane.b32.xlu0 %v5186, 124
  %v6313 = vpop.permute.xlu0 %6312
  %6314 = vrot.lane.b32.xlu0 %v5187, 124
  %v6315 = vpop.permute.xlu0 %6314
  %6316 = vrot.lane.b32.xlu0 %v5188, 124
  %v6317 = vpop.permute.xlu0 %6316
  %6318 = vrot.lane.b32.xlu0 %v5189, 124
  %v6319 = vpop.permute.xlu0 %6318
  %6320 = vrot.lane.b32.xlu0 %v5190, 124
  %v6321 = vpop.permute.xlu0 %6320
  %6322 = vrot.lane.b32.xlu0 %v5191, 124
  %v6323 = vpop.permute.xlu0 %6322
  %6324 = vrot.lane.b32.xlu0 %v5192, 124
  %v6325 = vpop.permute.xlu0 %6324
  %6326 = vrot.lane.b32.xlu0 %v5193, 124
  %v6327 = vpop.permute.xlu0 %6326
  %6328 = vrot.lane.b32.xlu0 %v5194, 124
  %v6329 = vpop.permute.xlu0 %6328
  %6330 = vrot.lane.b32.xlu0 %v5195, 124
  %v6331 = vpop.permute.xlu0 %6330
  %6332 = vrot.lane.b32.xlu0 %v5196, 124
  %v6333 = vpop.permute.xlu0 %6332
  %6334 = vrot.lane.b32.xlu0 %v5197, 124
  %v6335 = vpop.permute.xlu0 %6334
  %v6336 = vsel %vm669, %v6301, %v6303
  %v6337 = vsel %vm669, %v6303, %v6305
  %v6338 = vsel %vm669, %v6305, %v6307
  %v6339 = vsel %vm669, %v6307, %v6309
  %v6340 = vsel %vm669, %v6309, %v6311
  %v6341 = vsel %vm669, %v6311, %v6313
  %v6342 = vsel %vm669, %v6313, %v6315
  %v6343 = vsel %vm669, %v6315, %v6317
  %v6344 = vsel %vm669, %v6317, %v6319
  %v6345 = vsel %vm669, %v6319, %v6321
  %v6346 = vsel %vm669, %v6321, %v6323
  %v6347 = vsel %vm669, %v6323, %v6325
  %v6348 = vsel %vm669, %v6325, %v6327
  %v6349 = vsel %vm669, %v6327, %v6329
  %v6350 = vsel %vm669, %v6329, %v6331
  %v6351 = vsel %vm669, %v6331, %v6333
  %v6352 = vsel %vm669, %v6333, %v6335
  %6370 = vst [vmem:[#allocation3 + $0x4c8] sm:$0x3f] %v6336
  %6371 = vst [vmem:[#allocation3 + $0x4d0] sm:$0x3f] %v6337
  %6372 = vst [vmem:[#allocation3 + $0x4d8] sm:$0x3f] %v6338
  %6373 = vst [vmem:[#allocation3 + $0x4e0] sm:$0x3f] %v6339
  %6374 = vst [vmem:[#allocation3 + $0x4e8] sm:$0x3f] %v6340
  %6375 = vst [vmem:[#allocation3 + $0x4f0] sm:$0x3f] %v6341
  %6376 = vst [vmem:[#allocation3 + $0x4f8] sm:$0x3f] %v6342
  %6377 = vst [vmem:[#allocation3 + $0x500] sm:$0x3f] %v6343
  %6378 = vst [vmem:[#allocation3 + $0x508] sm:$0x3f] %v6344
  %6379 = vst [vmem:[#allocation3 + $0x510] sm:$0x3f] %v6345
  %6380 = vst [vmem:[#allocation3 + $0x518] sm:$0x3f] %v6346
  %6381 = vst [vmem:[#allocation3 + $0x520] sm:$0x3f] %v6347
  %6382 = vst [vmem:[#allocation3 + $0x528] sm:$0x3f] %v6348
  %6383 = vst [vmem:[#allocation3 + $0x530] sm:$0x3f] %v6349
  %6384 = vst [vmem:[#allocation3 + $0x538] sm:$0x3f] %v6350
  %6385 = vst [vmem:[#allocation3 + $0x540] sm:$0x3f] %v6351
  %6386 = vst [vmem:[#allocation3 + $0x548] sm:$0x3f] %v6352
  %v6387 = vrot.slane %v5197, 2
  %6388 = vrot.lane.b32.xlu0 %v5235, 122
  %v6389 = vpop.permute.xlu0 %6388
  %6390 = vrot.lane.b32.xlu0 %v5236, 122
  %v6391 = vpop.permute.xlu0 %6390
  %6392 = vrot.lane.b32.xlu0 %v5237, 122
  %v6393 = vpop.permute.xlu0 %6392
  %6394 = vrot.lane.b32.xlu0 %v5238, 122
  %v6395 = vpop.permute.xlu0 %6394
  %6396 = vrot.lane.b32.xlu0 %v5239, 122
  %v6397 = vpop.permute.xlu0 %6396
  %6398 = vrot.lane.b32.xlu0 %v5240, 122
  %v6399 = vpop.permute.xlu0 %6398
  %6400 = vrot.lane.b32.xlu0 %v5241, 122
  %v6401 = vpop.permute.xlu0 %6400
  %6402 = vrot.lane.b32.xlu0 %v5242, 122
  %v6403 = vpop.permute.xlu0 %6402
  %6404 = vrot.lane.b32.xlu0 %v5243, 122
  %v6405 = vpop.permute.xlu0 %6404
  %6406 = vrot.lane.b32.xlu0 %v5244, 122
  %v6407 = vpop.permute.xlu0 %6406
  %6408 = vrot.lane.b32.xlu0 %v5245, 122
  %v6409 = vpop.permute.xlu0 %6408
  %6410 = vrot.lane.b32.xlu0 %v5246, 122
  %v6411 = vpop.permute.xlu0 %6410
  %6412 = vrot.lane.b32.xlu0 %v5247, 122
  %v6413 = vpop.permute.xlu0 %6412
  %6414 = vrot.lane.b32.xlu0 %v5248, 122
  %v6415 = vpop.permute.xlu0 %6414
  %6416 = vrot.lane.b32.xlu0 %v5249, 122
  %v6417 = vpop.permute.xlu0 %6416
  %6418 = vrot.lane.b32.xlu0 %v5250, 122
  %v6419 = vpop.permute.xlu0 %6418
  %6420 = vrot.lane.b32.xlu0 %v5251, 122
  %v6421 = vpop.permute.xlu0 %6420
  %6422 = vrot.lane.b32.xlu0 %v6387, 122
  %v6423 = vpop.permute.xlu0 %6422
  %v6424 = vsel %vm5532, %v6389, %v6391
  %v6425 = vsel %vm5532, %v6391, %v6393
  %v6426 = vsel %vm5532, %v6393, %v6395
  %v6427 = vsel %vm5532, %v6395, %v6397
  %v6428 = vsel %vm5532, %v6397, %v6399
  %v6429 = vsel %vm5532, %v6399, %v6401
  %v6430 = vsel %vm5532, %v6401, %v6403
  %v6431 = vsel %vm5532, %v6403, %v6405
  %v6432 = vsel %vm5532, %v6405, %v6407
  %v6433 = vsel %vm5532, %v6407, %v6409
  %v6434 = vsel %vm5532, %v6409, %v6411
  %v6435 = vsel %vm5532, %v6411, %v6413
  %v6436 = vsel %vm5532, %v6413, %v6415
  %v6437 = vsel %vm5532, %v6415, %v6417
  %v6438 = vsel %vm5532, %v6417, %v6419
  %v6439 = vsel %vm5532, %v6419, %v6421
  %v6440 = vsel %vm5532, %v6421, %v6423
  %6458 = vst [vmem:[#allocation3 + $0x4c8] sm:$0xc0] %v6424
  %6459 = vst [vmem:[#allocation3 + $0x4d0] sm:$0xc0] %v6425
  %6460 = vst [vmem:[#allocation3 + $0x4d8] sm:$0xc0] %v6426
  %6461 = vst [vmem:[#allocation3 + $0x4e0] sm:$0xc0] %v6427
  %6462 = vst [vmem:[#allocation3 + $0x4e8] sm:$0xc0] %v6428
  %6463 = vst [vmem:[#allocation3 + $0x4f0] sm:$0xc0] %v6429
  %6464 = vst [vmem:[#allocation3 + $0x4f8] sm:$0xc0] %v6430
  %6465 = vst [vmem:[#allocation3 + $0x500] sm:$0xc0] %v6431
  %6466 = vst [vmem:[#allocation3 + $0x508] sm:$0xc0] %v6432
  %6467 = vst [vmem:[#allocation3 + $0x510] sm:$0xc0] %v6433
  %6468 = vst [vmem:[#allocation3 + $0x518] sm:$0xc0] %v6434
  %6469 = vst [vmem:[#allocation3 + $0x520] sm:$0xc0] %v6435
  %6470 = vst [vmem:[#allocation3 + $0x528] sm:$0xc0] %v6436
  %6471 = vst [vmem:[#allocation3 + $0x530] sm:$0xc0] %v6437
  %6472 = vst [vmem:[#allocation3 + $0x538] sm:$0xc0] %v6438
  %6473 = vst [vmem:[#allocation3 + $0x540] sm:$0xc0] %v6439
  %6474 = vst [vmem:[#allocation3 + $0x548] sm:$0xc0] %v6440
  %6475 = vst [vmem:[#allocation3 + $0x550] sm:$0xf] %v6424
  %6476 = vst [vmem:[#allocation3 + $0x558] sm:$0xf] %v6425
  %6477 = vst [vmem:[#allocation3 + $0x560] sm:$0xf] %v6426
  %6478 = vst [vmem:[#allocation3 + $0x568] sm:$0xf] %v6427
  %6479 = vst [vmem:[#allocation3 + $0x570] sm:$0xf] %v6428
  %6480 = vst [vmem:[#allocation3 + $0x578] sm:$0xf] %v6429
  %6481 = vst [vmem:[#allocation3 + $0x580] sm:$0xf] %v6430
  %6482 = vst [vmem:[#allocation3 + $0x588] sm:$0xf] %v6431
  %6483 = vst [vmem:[#allocation3 + $0x590] sm:$0xf] %v6432
  %6484 = vst [vmem:[#allocation3 + $0x598] sm:$0xf] %v6433
  %6485 = vst [vmem:[#allocation3 + $0x5a0] sm:$0xf] %v6434
  %6486 = vst [vmem:[#allocation3 + $0x5a8] sm:$0xf] %v6435
  %6487 = vst [vmem:[#allocation3 + $0x5b0] sm:$0xf] %v6436
  %6488 = vst [vmem:[#allocation3 + $0x5b8] sm:$0xf] %v6437
  %6489 = vst [vmem:[#allocation3 + $0x5c0] sm:$0xf] %v6438
  %6490 = vst [vmem:[#allocation3 + $0x5c8] sm:$0xf] %v6439
  %6491 = vst [vmem:[#allocation3 + $0x5d0] sm:$0xf] %v6440
  %v6492 = vrot.slane %v5197, 4
  %6493 = vrot.lane.b32.xlu0 %v5357, 120
  %v6494 = vpop.permute.xlu0 %6493
  %6495 = vrot.lane.b32.xlu0 %v5358, 120
  %v6496 = vpop.permute.xlu0 %6495
  %6497 = vrot.lane.b32.xlu0 %v5359, 120
  %v6498 = vpop.permute.xlu0 %6497
  %6499 = vrot.lane.b32.xlu0 %v5360, 120
  %v6500 = vpop.permute.xlu0 %6499
  %6501 = vrot.lane.b32.xlu0 %v5361, 120
  %v6502 = vpop.permute.xlu0 %6501
  %6503 = vrot.lane.b32.xlu0 %v5362, 120
  %v6504 = vpop.permute.xlu0 %6503
  %6505 = vrot.lane.b32.xlu0 %v5363, 120
  %v6506 = vpop.permute.xlu0 %6505
  %6507 = vrot.lane.b32.xlu0 %v5364, 120
  %v6508 = vpop.permute.xlu0 %6507
  %6509 = vrot.lane.b32.xlu0 %v5365, 120
  %v6510 = vpop.permute.xlu0 %6509
  %6511 = vrot.lane.b32.xlu0 %v5366, 120
  %v6512 = vpop.permute.xlu0 %6511
  %6513 = vrot.lane.b32.xlu0 %v5367, 120
  %v6514 = vpop.permute.xlu0 %6513
  %6515 = vrot.lane.b32.xlu0 %v5368, 120
  %v6516 = vpop.permute.xlu0 %6515
  %6517 = vrot.lane.b32.xlu0 %v5369, 120
  %v6518 = vpop.permute.xlu0 %6517
  %6519 = vrot.lane.b32.xlu0 %v5370, 120
  %v6520 = vpop.permute.xlu0 %6519
  %6521 = vrot.lane.b32.xlu0 %v5371, 120
  %v6522 = vpop.permute.xlu0 %6521
  %6523 = vrot.lane.b32.xlu0 %v5372, 120
  %v6524 = vpop.permute.xlu0 %6523
  %6525 = vrot.lane.b32.xlu0 %v5373, 120
  %v6526 = vpop.permute.xlu0 %6525
  %6527 = vrot.lane.b32.xlu0 %v6492, 120
  %v6528 = vpop.permute.xlu0 %6527
  %v6529 = vsel %vm5620, %v6494, %v6496
  %v6530 = vsel %vm5620, %v6496, %v6498
  %v6531 = vsel %vm5620, %v6498, %v6500
  %v6532 = vsel %vm5620, %v6500, %v6502
  %v6533 = vsel %vm5620, %v6502, %v6504
  %v6534 = vsel %vm5620, %v6504, %v6506
  %v6535 = vsel %vm5620, %v6506, %v6508
  %v6536 = vsel %vm5620, %v6508, %v6510
  %v6537 = vsel %vm5620, %v6510, %v6512
  %v6538 = vsel %vm5620, %v6512, %v6514
  %v6539 = vsel %vm5620, %v6514, %v6516
  %v6540 = vsel %vm5620, %v6516, %v6518
  %v6541 = vsel %vm5620, %v6518, %v6520
  %v6542 = vsel %vm5620, %v6520, %v6522
  %v6543 = vsel %vm5620, %v6522, %v6524
  %v6544 = vsel %vm5620, %v6524, %v6526
  %v6545 = vsel %vm5620, %v6526, %v6528
  %6563 = vst [vmem:[#allocation3 + $0x550] sm:$0xf0] %v6529
  %6564 = vst [vmem:[#allocation3 + $0x558] sm:$0xf0] %v6530
  %6565 = vst [vmem:[#allocation3 + $0x560] sm:$0xf0] %v6531
  %6566 = vst [vmem:[#allocation3 + $0x568] sm:$0xf0] %v6532
  %6567 = vst [vmem:[#allocation3 + $0x570] sm:$0xf0] %v6533
  %6568 = vst [vmem:[#allocation3 + $0x578] sm:$0xf0] %v6534
  %6569 = vst [vmem:[#allocation3 + $0x580] sm:$0xf0] %v6535
  %6570 = vst [vmem:[#allocation3 + $0x588] sm:$0xf0] %v6536
  %6571 = vst [vmem:[#allocation3 + $0x590] sm:$0xf0] %v6537
  %6572 = vst [vmem:[#allocation3 + $0x598] sm:$0xf0] %v6538
  %6573 = vst [vmem:[#allocation3 + $0x5a0] sm:$0xf0] %v6539
  %6574 = vst [vmem:[#allocation3 + $0x5a8] sm:$0xf0] %v6540
  %6575 = vst [vmem:[#allocation3 + $0x5b0] sm:$0xf0] %v6541
  %6576 = vst [vmem:[#allocation3 + $0x5b8] sm:$0xf0] %v6542
  %6577 = vst [vmem:[#allocation3 + $0x5c0] sm:$0xf0] %v6543
  %6578 = vst [vmem:[#allocation3 + $0x5c8] sm:$0xf0] %v6544
  %6579 = vst [vmem:[#allocation3 + $0x5d0] sm:$0xf0] %v6545
  %6580 = vst [vmem:[#allocation3 + $0x5d8] sm:$0x3] %v6529
  %6581 = vst [vmem:[#allocation3 + $0x5e0] sm:$0x3] %v6530
  %6582 = vst [vmem:[#allocation3 + $0x5e8] sm:$0x3] %v6531
  %6583 = vst [vmem:[#allocation3 + $0x5f0] sm:$0x3] %v6532
  %6584 = vst [vmem:[#allocation3 + $0x5f8] sm:$0x3] %v6533
  %6585 = vst [vmem:[#allocation3 + $0x600] sm:$0x3] %v6534
  %6586 = vst [vmem:[#allocation3 + $0x608] sm:$0x3] %v6535
  %6587 = vst [vmem:[#allocation3 + $0x610] sm:$0x3] %v6536
  %6588 = vst [vmem:[#allocation3 + $0x618] sm:$0x3] %v6537
  %6589 = vst [vmem:[#allocation3 + $0x620] sm:$0x3] %v6538
  %6590 = vst [vmem:[#allocation3 + $0x628] sm:$0x3] %v6539
  %6591 = vst [vmem:[#allocation3 + $0x630] sm:$0x3] %v6540
  %6592 = vst [vmem:[#allocation3 + $0x638] sm:$0x3] %v6541
  %6593 = vst [vmem:[#allocation3 + $0x640] sm:$0x3] %v6542
  %6594 = vst [vmem:[#allocation3 + $0x648] sm:$0x3] %v6543
  %6595 = vst [vmem:[#allocation3 + $0x650] sm:$0x3] %v6544
  %6596 = vst [vmem:[#allocation3 + $0x658] sm:$0x3] %v6545
  %6597 = vrot.lane.b32.xlu0 %v5479, 64
  %v6598 = vpop.permute.xlu0 %6597
  %6599 = vrot.lane.b32.xlu0 %v5480, 64
  %v6600 = vpop.permute.xlu0 %6599
  %6601 = vrot.lane.b32.xlu0 %v5481, 64
  %v6602 = vpop.permute.xlu0 %6601
  %6603 = vrot.lane.b32.xlu0 %v5482, 64
  %v6604 = vpop.permute.xlu0 %6603
  %6605 = vrot.lane.b32.xlu0 %v5483, 64
  %v6606 = vpop.permute.xlu0 %6605
  %6607 = vrot.lane.b32.xlu0 %v5484, 64
  %v6608 = vpop.permute.xlu0 %6607
  %6609 = vrot.lane.b32.xlu0 %v5485, 64
  %v6610 = vpop.permute.xlu0 %6609
  %6611 = vrot.lane.b32.xlu0 %v5486, 64
  %v6612 = vpop.permute.xlu0 %6611
  %6613 = vrot.lane.b32.xlu0 %v5487, 64
  %v6614 = vpop.permute.xlu0 %6613
  %6615 = vrot.lane.b32.xlu0 %v5488, 64
  %v6616 = vpop.permute.xlu0 %6615
  %6617 = vrot.lane.b32.xlu0 %v5489, 64
  %v6618 = vpop.permute.xlu0 %6617
  %6619 = vrot.lane.b32.xlu0 %v5490, 64
  %v6620 = vpop.permute.xlu0 %6619
  %6621 = vrot.lane.b32.xlu0 %v5491, 64
  %v6622 = vpop.permute.xlu0 %6621
  %6623 = vrot.lane.b32.xlu0 %v5492, 64
  %v6624 = vpop.permute.xlu0 %6623
  %6625 = vrot.lane.b32.xlu0 %v5493, 64
  %v6626 = vpop.permute.xlu0 %6625
  %6627 = vrot.lane.b32.xlu0 %v5494, 64
  %v6628 = vpop.permute.xlu0 %6627
  %6629 = vrot.lane.b32.xlu0 %v5495, 64
  %v6630 = vpop.permute.xlu0 %6629
  %6631 = vrot.lane.b32.xlu0 %v6212, 64
  %v6632 = vpop.permute.xlu0 %6631
  %v6633 = vsel %vm1646, %v6598, %v6600
  %v6634 = vsel %vm1646, %v6600, %v6602
  %v6635 = vsel %vm1646, %v6602, %v6604
  %v6636 = vsel %vm1646, %v6604, %v6606
  %v6637 = vsel %vm1646, %v6606, %v6608
  %v6638 = vsel %vm1646, %v6608, %v6610
  %v6639 = vsel %vm1646, %v6610, %v6612
  %v6640 = vsel %vm1646, %v6612, %v6614
  %v6641 = vsel %vm1646, %v6614, %v6616
  %v6642 = vsel %vm1646, %v6616, %v6618
  %v6643 = vsel %vm1646, %v6618, %v6620
  %v6644 = vsel %vm1646, %v6620, %v6622
  %v6645 = vsel %vm1646, %v6622, %v6624
  %v6646 = vsel %vm1646, %v6624, %v6626
  %v6647 = vsel %vm1646, %v6626, %v6628
  %v6648 = vsel %vm1646, %v6628, %v6630
  %v6649 = vsel %vm1646, %v6630, %v6632
  %6667 = vst [vmem:[#allocation3 + $0x5d8] sm:$0xfc] %v6633
  %6668 = vst [vmem:[#allocation3 + $0x5e0] sm:$0xfc] %v6634
  %6669 = vst [vmem:[#allocation3 + $0x5e8] sm:$0xfc] %v6635
  %6670 = vst [vmem:[#allocation3 + $0x5f0] sm:$0xfc] %v6636
  %6671 = vst [vmem:[#allocation3 + $0x5f8] sm:$0xfc] %v6637
  %6672 = vst [vmem:[#allocation3 + $0x600] sm:$0xfc] %v6638
  %6673 = vst [vmem:[#allocation3 + $0x608] sm:$0xfc] %v6639
  %6674 = vst [vmem:[#allocation3 + $0x610] sm:$0xfc] %v6640
  %6675 = vst [vmem:[#allocation3 + $0x618] sm:$0xfc] %v6641
  %6676 = vst [vmem:[#allocation3 + $0x620] sm:$0xfc] %v6642
  %6677 = vst [vmem:[#allocation3 + $0x628] sm:$0xfc] %v6643
  %6678 = vst [vmem:[#allocation3 + $0x630] sm:$0xfc] %v6644
  %6679 = vst [vmem:[#allocation3 + $0x638] sm:$0xfc] %v6645
  %6680 = vst [vmem:[#allocation3 + $0x640] sm:$0xfc] %v6646
  %6681 = vst [vmem:[#allocation3 + $0x648] sm:$0xfc] %v6647
  %6682 = vst [vmem:[#allocation3 + $0x650] sm:$0xfc] %v6648
  %6683 = vst [vmem:[#allocation3 + $0x658] sm:$0xfc] %v6649
  %6684 = vrot.lane.b32.xlu0 %v5180, 62
  %v6685 = vpop.permute.xlu0 %6684
  %6686 = vrot.lane.b32.xlu0 %v5181, 62
  %v6687 = vpop.permute.xlu0 %6686
  %6688 = vrot.lane.b32.xlu0 %v5182, 62
  %v6689 = vpop.permute.xlu0 %6688
  %6690 = vrot.lane.b32.xlu0 %v5183, 62
  %v6691 = vpop.permute.xlu0 %6690
  %6692 = vrot.lane.b32.xlu0 %v5184, 62
  %v6693 = vpop.permute.xlu0 %6692
  %6694 = vrot.lane.b32.xlu0 %v5185, 62
  %v6695 = vpop.permute.xlu0 %6694
  %6696 = vrot.lane.b32.xlu0 %v5186, 62
  %v6697 = vpop.permute.xlu0 %6696
  %6698 = vrot.lane.b32.xlu0 %v5187, 62
  %v6699 = vpop.permute.xlu0 %6698
  %6700 = vrot.lane.b32.xlu0 %v5188, 62
  %v6701 = vpop.permute.xlu0 %6700
  %6702 = vrot.lane.b32.xlu0 %v5189, 62
  %v6703 = vpop.permute.xlu0 %6702
  %6704 = vrot.lane.b32.xlu0 %v5190, 62
  %v6705 = vpop.permute.xlu0 %6704
  %6706 = vrot.lane.b32.xlu0 %v5191, 62
  %v6707 = vpop.permute.xlu0 %6706
  %6708 = vrot.lane.b32.xlu0 %v5192, 62
  %v6709 = vpop.permute.xlu0 %6708
  %6710 = vrot.lane.b32.xlu0 %v5193, 62
  %v6711 = vpop.permute.xlu0 %6710
  %6712 = vrot.lane.b32.xlu0 %v5194, 62
  %v6713 = vpop.permute.xlu0 %6712
  %6714 = vrot.lane.b32.xlu0 %v5195, 62
  %v6715 = vpop.permute.xlu0 %6714
  %6716 = vrot.lane.b32.xlu0 %v5196, 62
  %v6717 = vpop.permute.xlu0 %6716
  %6718 = vrot.lane.b32.xlu0 %v5197, 62
  %v6719 = vpop.permute.xlu0 %6718
  %v6720 = vsel %vm1971, %v6685, %v6687
  %v6721 = vsel %vm1971, %v6687, %v6689
  %v6722 = vsel %vm1971, %v6689, %v6691
  %v6723 = vsel %vm1971, %v6691, %v6693
  %v6724 = vsel %vm1971, %v6693, %v6695
  %v6725 = vsel %vm1971, %v6695, %v6697
  %v6726 = vsel %vm1971, %v6697, %v6699
  %v6727 = vsel %vm1971, %v6699, %v6701
  %v6728 = vsel %vm1971, %v6701, %v6703
  %v6729 = vsel %vm1971, %v6703, %v6705
  %v6730 = vsel %vm1971, %v6705, %v6707
  %v6731 = vsel %vm1971, %v6707, %v6709
  %v6732 = vsel %vm1971, %v6709, %v6711
  %v6733 = vsel %vm1971, %v6711, %v6713
  %v6734 = vsel %vm1971, %v6713, %v6715
  %v6735 = vsel %vm1971, %v6715, %v6717
  %v6736 = vsel %vm1971, %v6717, %v6719
  %6754 = vst [vmem:[#allocation3 + $0x660] sm:$0x3f] %v6720
  %6755 = vst [vmem:[#allocation3 + $0x668] sm:$0x3f] %v6721
  %6756 = vst [vmem:[#allocation3 + $0x670] sm:$0x3f] %v6722
  %6757 = vst [vmem:[#allocation3 + $0x678] sm:$0x3f] %v6723
  %6758 = vst [vmem:[#allocation3 + $0x680] sm:$0x3f] %v6724
  %6759 = vst [vmem:[#allocation3 + $0x688] sm:$0x3f] %v6725
  %6760 = vst [vmem:[#allocation3 + $0x690] sm:$0x3f] %v6726
  %6761 = vst [vmem:[#allocation3 + $0x698] sm:$0x3f] %v6727
  %6762 = vst [vmem:[#allocation3 + $0x6a0] sm:$0x3f] %v6728
  %6763 = vst [vmem:[#allocation3 + $0x6a8] sm:$0x3f] %v6729
  %6764 = vst [vmem:[#allocation3 + $0x6b0] sm:$0x3f] %v6730
  %6765 = vst [vmem:[#allocation3 + $0x6b8] sm:$0x3f] %v6731
  %6766 = vst [vmem:[#allocation3 + $0x6c0] sm:$0x3f] %v6732
  %6767 = vst [vmem:[#allocation3 + $0x6c8] sm:$0x3f] %v6733
  %6768 = vst [vmem:[#allocation3 + $0x6d0] sm:$0x3f] %v6734
  %6769 = vst [vmem:[#allocation3 + $0x6d8] sm:$0x3f] %v6735
  %6770 = vst [vmem:[#allocation3 + $0x6e0] sm:$0x3f] %v6736
  %6771 = vrot.lane.b32.xlu0 %v5235, 60
  %v6772 = vpop.permute.xlu0 %6771
  %6773 = vrot.lane.b32.xlu0 %v5236, 60
  %v6774 = vpop.permute.xlu0 %6773
  %6775 = vrot.lane.b32.xlu0 %v5237, 60
  %v6776 = vpop.permute.xlu0 %6775
  %6777 = vrot.lane.b32.xlu0 %v5238, 60
  %v6778 = vpop.permute.xlu0 %6777
  %6779 = vrot.lane.b32.xlu0 %v5239, 60
  %v6780 = vpop.permute.xlu0 %6779
  %6781 = vrot.lane.b32.xlu0 %v5240, 60
  %v6782 = vpop.permute.xlu0 %6781
  %6783 = vrot.lane.b32.xlu0 %v5241, 60
  %v6784 = vpop.permute.xlu0 %6783
  %6785 = vrot.lane.b32.xlu0 %v5242, 60
  %v6786 = vpop.permute.xlu0 %6785
  %6787 = vrot.lane.b32.xlu0 %v5243, 60
  %v6788 = vpop.permute.xlu0 %6787
  %6789 = vrot.lane.b32.xlu0 %v5244, 60
  %v6790 = vpop.permute.xlu0 %6789
  %6791 = vrot.lane.b32.xlu0 %v5245, 60
  %v6792 = vpop.permute.xlu0 %6791
  %6793 = vrot.lane.b32.xlu0 %v5246, 60
  %v6794 = vpop.permute.xlu0 %6793
  %6795 = vrot.lane.b32.xlu0 %v5247, 60
  %v6796 = vpop.permute.xlu0 %6795
  %6797 = vrot.lane.b32.xlu0 %v5248, 60
  %v6798 = vpop.permute.xlu0 %6797
  %6799 = vrot.lane.b32.xlu0 %v5249, 60
  %v6800 = vpop.permute.xlu0 %6799
  %6801 = vrot.lane.b32.xlu0 %v5250, 60
  %v6802 = vpop.permute.xlu0 %6801
  %6803 = vrot.lane.b32.xlu0 %v5251, 60
  %v6804 = vpop.permute.xlu0 %6803
  %6805 = vrot.lane.b32.xlu0 %v6387, 60
  %v6806 = vpop.permute.xlu0 %6805
  %v6807 = vsel %vm2318, %v6772, %v6774
  %v6808 = vsel %vm2318, %v6774, %v6776
  %v6809 = vsel %vm2318, %v6776, %v6778
  %v6810 = vsel %vm2318, %v6778, %v6780
  %v6811 = vsel %vm2318, %v6780, %v6782
  %v6812 = vsel %vm2318, %v6782, %v6784
  %v6813 = vsel %vm2318, %v6784, %v6786
  %v6814 = vsel %vm2318, %v6786, %v6788
  %v6815 = vsel %vm2318, %v6788, %v6790
  %v6816 = vsel %vm2318, %v6790, %v6792
  %v6817 = vsel %vm2318, %v6792, %v6794
  %v6818 = vsel %vm2318, %v6794, %v6796
  %v6819 = vsel %vm2318, %v6796, %v6798
  %v6820 = vsel %vm2318, %v6798, %v6800
  %v6821 = vsel %vm2318, %v6800, %v6802
  %v6822 = vsel %vm2318, %v6802, %v6804
  %v6823 = vsel %vm2318, %v6804, %v6806
  %6841 = vst [vmem:[#allocation3 + $0x660] sm:$0xc0] %v6807
  %6842 = vst [vmem:[#allocation3 + $0x668] sm:$0xc0] %v6808
  %6843 = vst [vmem:[#allocation3 + $0x670] sm:$0xc0] %v6809
  %6844 = vst [vmem:[#allocation3 + $0x678] sm:$0xc0] %v6810
  %6845 = vst [vmem:[#allocation3 + $0x680] sm:$0xc0] %v6811
  %6846 = vst [vmem:[#allocation3 + $0x688] sm:$0xc0] %v6812
  %6847 = vst [vmem:[#allocation3 + $0x690] sm:$0xc0] %v6813
  %6848 = vst [vmem:[#allocation3 + $0x698] sm:$0xc0] %v6814
  %6849 = vst [vmem:[#allocation3 + $0x6a0] sm:$0xc0] %v6815
  %6850 = vst [vmem:[#allocation3 + $0x6a8] sm:$0xc0] %v6816
  %6851 = vst [vmem:[#allocation3 + $0x6b0] sm:$0xc0] %v6817
  %6852 = vst [vmem:[#allocation3 + $0x6b8] sm:$0xc0] %v6818
  %6853 = vst [vmem:[#allocation3 + $0x6c0] sm:$0xc0] %v6819
  %6854 = vst [vmem:[#allocation3 + $0x6c8] sm:$0xc0] %v6820
  %6855 = vst [vmem:[#allocation3 + $0x6d0] sm:$0xc0] %v6821
  %6856 = vst [vmem:[#allocation3 + $0x6d8] sm:$0xc0] %v6822
  %6857 = vst [vmem:[#allocation3 + $0x6e0] sm:$0xc0] %v6823
  %6858 = vst [vmem:[#allocation3 + $0x6e8] sm:$0xf] %v6807
  %6859 = vst [vmem:[#allocation3 + $0x6f0] sm:$0xf] %v6808
  %6860 = vst [vmem:[#allocation3 + $0x6f8] sm:$0xf] %v6809
  %6861 = vst [vmem:[#allocation3 + $0x700] sm:$0xf] %v6810
  %6862 = vst [vmem:[#allocation3 + $0x708] sm:$0xf] %v6811
  %6863 = vst [vmem:[#allocation3 + $0x710] sm:$0xf] %v6812
  %6864 = vst [vmem:[#allocation3 + $0x718] sm:$0xf] %v6813
  %6865 = vst [vmem:[#allocation3 + $0x720] sm:$0xf] %v6814
  %6866 = vst [vmem:[#allocation3 + $0x728] sm:$0xf] %v6815
  %6867 = vst [vmem:[#allocation3 + $0x730] sm:$0xf] %v6816
  %6868 = vst [vmem:[#allocation3 + $0x738] sm:$0xf] %v6817
  %6869 = vst [vmem:[#allocation3 + $0x740] sm:$0xf] %v6818
  %6870 = vst [vmem:[#allocation3 + $0x748] sm:$0xf] %v6819
  %6871 = vst [vmem:[#allocation3 + $0x750] sm:$0xf] %v6820
  %6872 = vst [vmem:[#allocation3 + $0x758] sm:$0xf] %v6821
  %6873 = vst [vmem:[#allocation3 + $0x760] sm:$0xf] %v6822
  %6874 = vst [vmem:[#allocation3 + $0x768] sm:$0xf] %v6823
  %6875 = vrot.lane.b32.xlu0 %v5357, 58
  %v6876 = vpop.permute.xlu0 %6875
  %6877 = vrot.lane.b32.xlu0 %v5358, 58
  %v6878 = vpop.permute.xlu0 %6877
  %6879 = vrot.lane.b32.xlu0 %v5359, 58
  %v6880 = vpop.permute.xlu0 %6879
  %6881 = vrot.lane.b32.xlu0 %v5360, 58
  %v6882 = vpop.permute.xlu0 %6881
  %6883 = vrot.lane.b32.xlu0 %v5361, 58
  %v6884 = vpop.permute.xlu0 %6883
  %6885 = vrot.lane.b32.xlu0 %v5362, 58
  %v6886 = vpop.permute.xlu0 %6885
  %6887 = vrot.lane.b32.xlu0 %v5363, 58
  %v6888 = vpop.permute.xlu0 %6887
  %6889 = vrot.lane.b32.xlu0 %v5364, 58
  %v6890 = vpop.permute.xlu0 %6889
  %6891 = vrot.lane.b32.xlu0 %v5365, 58
  %v6892 = vpop.permute.xlu0 %6891
  %6893 = vrot.lane.b32.xlu0 %v5366, 58
  %v6894 = vpop.permute.xlu0 %6893
  %6895 = vrot.lane.b32.xlu0 %v5367, 58
  %v6896 = vpop.permute.xlu0 %6895
  %6897 = vrot.lane.b32.xlu0 %v5368, 58
  %v6898 = vpop.permute.xlu0 %6897
  %6899 = vrot.lane.b32.xlu0 %v5369, 58
  %v6900 = vpop.permute.xlu0 %6899
  %6901 = vrot.lane.b32.xlu0 %v5370, 58
  %v6902 = vpop.permute.xlu0 %6901
  %6903 = vrot.lane.b32.xlu0 %v5371, 58
  %v6904 = vpop.permute.xlu0 %6903
  %6905 = vrot.lane.b32.xlu0 %v5372, 58
  %v6906 = vpop.permute.xlu0 %6905
  %6907 = vrot.lane.b32.xlu0 %v5373, 58
  %v6908 = vpop.permute.xlu0 %6907
  %6909 = vrot.lane.b32.xlu0 %v6492, 58
  %v6910 = vpop.permute.xlu0 %6909
  %v6911 = vsel %vm6003, %v6876, %v6878
  %v6912 = vsel %vm6003, %v6878, %v6880
  %v6913 = vsel %vm6003, %v6880, %v6882
  %v6914 = vsel %vm6003, %v6882, %v6884
  %v6915 = vsel %vm6003, %v6884, %v6886
  %v6916 = vsel %vm6003, %v6886, %v6888
  %v6917 = vsel %vm6003, %v6888, %v6890
  %v6918 = vsel %vm6003, %v6890, %v6892
  %v6919 = vsel %vm6003, %v6892, %v6894
  %v6920 = vsel %vm6003, %v6894, %v6896
  %v6921 = vsel %vm6003, %v6896, %v6898
  %v6922 = vsel %vm6003, %v6898, %v6900
  %v6923 = vsel %vm6003, %v6900, %v6902
  %v6924 = vsel %vm6003, %v6902, %v6904
  %v6925 = vsel %vm6003, %v6904, %v6906
  %v6926 = vsel %vm6003, %v6906, %v6908
  %v6927 = vsel %vm6003, %v6908, %v6910
  %6945 = vst [vmem:[#allocation3 + $0x6e8] sm:$0xf0] %v6911
  %6946 = vst [vmem:[#allocation3 + $0x6f0] sm:$0xf0] %v6912
  %6947 = vst [vmem:[#allocation3 + $0x6f8] sm:$0xf0] %v6913
  %6948 = vst [vmem:[#allocation3 + $0x700] sm:$0xf0] %v6914
  %6949 = vst [vmem:[#allocation3 + $0x708] sm:$0xf0] %v6915
  %6950 = vst [vmem:[#allocation3 + $0x710] sm:$0xf0] %v6916
  %6951 = vst [vmem:[#allocation3 + $0x718] sm:$0xf0] %v6917
  %6952 = vst [vmem:[#allocation3 + $0x720] sm:$0xf0] %v6918
  %6953 = vst [vmem:[#allocation3 + $0x728] sm:$0xf0] %v6919
  %6954 = vst [vmem:[#allocation3 + $0x730] sm:$0xf0] %v6920
  %6955 = vst [vmem:[#allocation3 + $0x738] sm:$0xf0] %v6921
  %6956 = vst [vmem:[#allocation3 + $0x740] sm:$0xf0] %v6922
  %6957 = vst [vmem:[#allocation3 + $0x748] sm:$0xf0] %v6923
  %6958 = vst [vmem:[#allocation3 + $0x750] sm:$0xf0] %v6924
  %6959 = vst [vmem:[#allocation3 + $0x758] sm:$0xf0] %v6925
  %6960 = vst [vmem:[#allocation3 + $0x760] sm:$0xf0] %v6926
  %6961 = vst [vmem:[#allocation3 + $0x768] sm:$0xf0] %v6927
  %6962 = vst [vmem:[#allocation3 + $0x770] sm:$0x3] %v6911
  %6963 = vst [vmem:[#allocation3 + $0x778] sm:$0x3] %v6912
  %6964 = vst [vmem:[#allocation3 + $0x780] sm:$0x3] %v6913
  %6965 = vst [vmem:[#allocation3 + $0x788] sm:$0x3] %v6914
  %6966 = vst [vmem:[#allocation3 + $0x790] sm:$0x3] %v6915
  %6967 = vst [vmem:[#allocation3 + $0x798] sm:$0x3] %v6916
  %6968 = vst [vmem:[#allocation3 + $0x7a0] sm:$0x3] %v6917
  %6969 = vst [vmem:[#allocation3 + $0x7a8] sm:$0x3] %v6918
  %6970 = vst [vmem:[#allocation3 + $0x7b0] sm:$0x3] %v6919
  %6971 = vst [vmem:[#allocation3 + $0x7b8] sm:$0x3] %v6920
  %6972 = vst [vmem:[#allocation3 + $0x7c0] sm:$0x3] %v6921
  %6973 = vst [vmem:[#allocation3 + $0x7c8] sm:$0x3] %v6922
  %6974 = vst [vmem:[#allocation3 + $0x7d0] sm:$0x3] %v6923
  %6975 = vst [vmem:[#allocation3 + $0x7d8] sm:$0x3] %v6924
  %6976 = vst [vmem:[#allocation3 + $0x7e0] sm:$0x3] %v6925
  %6977 = vst [vmem:[#allocation3 + $0x7e8] sm:$0x3] %v6926
  %6978 = vst [vmem:[#allocation3 + $0x7f0] sm:$0x3] %v6927
  %6979 = vrot.lane.b32.xlu0 %v5479, 56
  %v6980 = vpop.permute.xlu0 %6979
  %6981 = vrot.lane.b32.xlu0 %v5480, 56
  %v6982 = vpop.permute.xlu0 %6981
  %6983 = vrot.lane.b32.xlu0 %v5481, 56
  %v6984 = vpop.permute.xlu0 %6983
  %6985 = vrot.lane.b32.xlu0 %v5482, 56
  %v6986 = vpop.permute.xlu0 %6985
  %6987 = vrot.lane.b32.xlu0 %v5483, 56
  %v6988 = vpop.permute.xlu0 %6987
  %6989 = vrot.lane.b32.xlu0 %v5484, 56
  %v6990 = vpop.permute.xlu0 %6989
  %6991 = vrot.lane.b32.xlu0 %v5485, 56
  %v6992 = vpop.permute.xlu0 %6991
  %6993 = vrot.lane.b32.xlu0 %v5486, 56
  %v6994 = vpop.permute.xlu0 %6993
  %6995 = vrot.lane.b32.xlu0 %v5487, 56
  %v6996 = vpop.permute.xlu0 %6995
  %6997 = vrot.lane.b32.xlu0 %v5488, 56
  %v6998 = vpop.permute.xlu0 %6997
  %6999 = vrot.lane.b32.xlu0 %v5489, 56
  %v7000 = vpop.permute.xlu0 %6999
  %7001 = vrot.lane.b32.xlu0 %v5490, 56
  %v7002 = vpop.permute.xlu0 %7001
  %7003 = vrot.lane.b32.xlu0 %v5491, 56
  %v7004 = vpop.permute.xlu0 %7003
  %7005 = vrot.lane.b32.xlu0 %v5492, 56
  %v7006 = vpop.permute.xlu0 %7005
  %7007 = vrot.lane.b32.xlu0 %v5493, 56
  %v7008 = vpop.permute.xlu0 %7007
  %7009 = vrot.lane.b32.xlu0 %v5494, 56
  %v7010 = vpop.permute.xlu0 %7009
  %7011 = vrot.lane.b32.xlu0 %v5495, 56
  %v7012 = vpop.permute.xlu0 %7011
  %7013 = vrot.lane.b32.xlu0 %v6212, 56
  %v7014 = vpop.permute.xlu0 %7013
  %v7015 = vsel %vm6091, %v6980, %v6982
  %v7016 = vsel %vm6091, %v6982, %v6984
  %v7017 = vsel %vm6091, %v6984, %v6986
  %v7018 = vsel %vm6091, %v6986, %v6988
  %v7019 = vsel %vm6091, %v6988, %v6990
  %v7020 = vsel %vm6091, %v6990, %v6992
  %v7021 = vsel %vm6091, %v6992, %v6994
  %v7022 = vsel %vm6091, %v6994, %v6996
  %v7023 = vsel %vm6091, %v6996, %v6998
  %v7024 = vsel %vm6091, %v6998, %v7000
  %v7025 = vsel %vm6091, %v7000, %v7002
  %v7026 = vsel %vm6091, %v7002, %v7004
  %v7027 = vsel %vm6091, %v7004, %v7006
  %v7028 = vsel %vm6091, %v7006, %v7008
  %v7029 = vsel %vm6091, %v7008, %v7010
  %v7030 = vsel %vm6091, %v7010, %v7012
  %v7031 = vsel %vm6091, %v7012, %v7014
  %7049 = vst [vmem:[#allocation3 + $0x770] sm:$0xfc] %v7015
  %7050 = vst [vmem:[#allocation3 + $0x778] sm:$0xfc] %v7016
  %7051 = vst [vmem:[#allocation3 + $0x780] sm:$0xfc] %v7017
  %7052 = vst [vmem:[#allocation3 + $0x788] sm:$0xfc] %v7018
  %7053 = vst [vmem:[#allocation3 + $0x790] sm:$0xfc] %v7019
  %7054 = vst [vmem:[#allocation3 + $0x798] sm:$0xfc] %v7020
  %7055 = vst [vmem:[#allocation3 + $0x7a0] sm:$0xfc] %v7021
  %7056 = vst [vmem:[#allocation3 + $0x7a8] sm:$0xfc] %v7022
  %7057 = vst [vmem:[#allocation3 + $0x7b0] sm:$0xfc] %v7023
  %7058 = vst [vmem:[#allocation3 + $0x7b8] sm:$0xfc] %v7024
  %7059 = vst [vmem:[#allocation3 + $0x7c0] sm:$0xfc] %v7025
  %7060 = vst [vmem:[#allocation3 + $0x7c8] sm:$0xfc] %v7026
  %7061 = vst [vmem:[#allocation3 + $0x7d0] sm:$0xfc] %v7027
  %7062 = vst [vmem:[#allocation3 + $0x7d8] sm:$0xfc] %v7028
  %7063 = vst [vmem:[#allocation3 + $0x7e0] sm:$0xfc] %v7029
  %7064 = vst [vmem:[#allocation3 + $0x7e8] sm:$0xfc] %v7030
  %7065 = vst [vmem:[#allocation3 + $0x7f0] sm:$0xfc] %v7031
  %7066 = vst [vmem:[#allocation3 + $0x7f8] sm:$0x3f] %v5181
  %7067 = vst [vmem:[#allocation3 + $0x800] sm:$0x3f] %v5182
  %7068 = vst [vmem:[#allocation3 + $0x808] sm:$0x3f] %v5183
  %7069 = vst [vmem:[#allocation3 + $0x810] sm:$0x3f] %v5184
  %7070 = vst [vmem:[#allocation3 + $0x818] sm:$0x3f] %v5185
  %7071 = vst [vmem:[#allocation3 + $0x820] sm:$0x3f] %v5186
  %7072 = vst [vmem:[#allocation3 + $0x828] sm:$0x3f] %v5187
  %7073 = vst [vmem:[#allocation3 + $0x830] sm:$0x3f] %v5188
  %7074 = vst [vmem:[#allocation3 + $0x838] sm:$0x3f] %v5189
  %7075 = vst [vmem:[#allocation3 + $0x840] sm:$0x3f] %v5190
  %7076 = vst [vmem:[#allocation3 + $0x848] sm:$0x3f] %v5191
  %7077 = vst [vmem:[#allocation3 + $0x850] sm:$0x3f] %v5192
  %7078 = vst [vmem:[#allocation3 + $0x858] sm:$0x3f] %v5193
  %7079 = vst [vmem:[#allocation3 + $0x860] sm:$0x3f] %v5194
  %7080 = vst [vmem:[#allocation3 + $0x868] sm:$0x3f] %v5195
  %7081 = vst [vmem:[#allocation3 + $0x870] sm:$0x3f] %v5196
  %7082 = vst [vmem:[#allocation3 + $0x878] sm:$0x3f] %v5197
  %v7084 = vrot.slane %v5198, 2
  %7085 = vrot.lane.b32.xlu0 %v6387, 126
  %v7086 = vpop.permute.xlu0 %7085
  %7087 = vrot.lane.b32.xlu0 %v7084, 126
  %v7088 = vpop.permute.xlu0 %7087
  %v7089 = vsel %vm344, %v5287, %v7086
  %v7090 = vsel %vm344, %v7086, %v7088
  %7093 = vst [vmem:[#allocation3 + $0x7f8] sm:$0xc0] %v5290
  %7094 = vst [vmem:[#allocation3 + $0x800] sm:$0xc0] %v5291
  %7095 = vst [vmem:[#allocation3 + $0x808] sm:$0xc0] %v5292
  %7096 = vst [vmem:[#allocation3 + $0x810] sm:$0xc0] %v5293
  %7097 = vst [vmem:[#allocation3 + $0x818] sm:$0xc0] %v5294
  %7098 = vst [vmem:[#allocation3 + $0x820] sm:$0xc0] %v5295
  %7099 = vst [vmem:[#allocation3 + $0x828] sm:$0xc0] %v5296
  %7100 = vst [vmem:[#allocation3 + $0x830] sm:$0xc0] %v5297
  %7101 = vst [vmem:[#allocation3 + $0x838] sm:$0xc0] %v5298
  %7102 = vst [vmem:[#allocation3 + $0x840] sm:$0xc0] %v5299
  %7103 = vst [vmem:[#allocation3 + $0x848] sm:$0xc0] %v5300
  %7104 = vst [vmem:[#allocation3 + $0x850] sm:$0xc0] %v5301
  %7105 = vst [vmem:[#allocation3 + $0x858] sm:$0xc0] %v5302
  %7106 = vst [vmem:[#allocation3 + $0x860] sm:$0xc0] %v5303
  %7107 = vst [vmem:[#allocation3 + $0x868] sm:$0xc0] %v5304
  %7108 = vst [vmem:[#allocation3 + $0x870] sm:$0xc0] %v7089
  %7109 = vst [vmem:[#allocation3 + $0x878] sm:$0xc0] %v7090
  %7110 = vst [vmem:[#allocation3 + $0x880] sm:$0xf] %v5290
  %7111 = vst [vmem:[#allocation3 + $0x888] sm:$0xf] %v5291
  %7112 = vst [vmem:[#allocation3 + $0x890] sm:$0xf] %v5292
  %7113 = vst [vmem:[#allocation3 + $0x898] sm:$0xf] %v5293
  %7114 = vst [vmem:[#allocation3 + $0x8a0] sm:$0xf] %v5294
  %7115 = vst [vmem:[#allocation3 + $0x8a8] sm:$0xf] %v5295
  %7116 = vst [vmem:[#allocation3 + $0x8b0] sm:$0xf] %v5296
  %7117 = vst [vmem:[#allocation3 + $0x8b8] sm:$0xf] %v5297
  %7118 = vst [vmem:[#allocation3 + $0x8c0] sm:$0xf] %v5298
  %7119 = vst [vmem:[#allocation3 + $0x8c8] sm:$0xf] %v5299
  %7120 = vst [vmem:[#allocation3 + $0x8d0] sm:$0xf] %v5300
  %7121 = vst [vmem:[#allocation3 + $0x8d8] sm:$0xf] %v5301
  %7122 = vst [vmem:[#allocation3 + $0x8e0] sm:$0xf] %v5302
  %7123 = vst [vmem:[#allocation3 + $0x8e8] sm:$0xf] %v5303
  %7124 = vst [vmem:[#allocation3 + $0x8f0] sm:$0xf] %v5304
  %7125 = vst [vmem:[#allocation3 + $0x8f8] sm:$0xf] %v7089
  %7126 = vst [vmem:[#allocation3 + $0x900] sm:$0xf] %v7090
  %v7127 = vrot.slane %v5198, 4
  %7128 = vrot.lane.b32.xlu0 %v6492, 124
  %v7129 = vpop.permute.xlu0 %7128
  %7130 = vrot.lane.b32.xlu0 %v7127, 124
  %v7131 = vpop.permute.xlu0 %7130
  %v7132 = vsel %vm669, %v5409, %v7129
  %v7133 = vsel %vm669, %v7129, %v7131
  %7136 = vst [vmem:[#allocation3 + $0x880] sm:$0xf0] %v5412
  %7137 = vst [vmem:[#allocation3 + $0x888] sm:$0xf0] %v5413
  %7138 = vst [vmem:[#allocation3 + $0x890] sm:$0xf0] %v5414
  %7139 = vst [vmem:[#allocation3 + $0x898] sm:$0xf0] %v5415
  %7140 = vst [vmem:[#allocation3 + $0x8a0] sm:$0xf0] %v5416
  %7141 = vst [vmem:[#allocation3 + $0x8a8] sm:$0xf0] %v5417
  %7142 = vst [vmem:[#allocation3 + $0x8b0] sm:$0xf0] %v5418
  %7143 = vst [vmem:[#allocation3 + $0x8b8] sm:$0xf0] %v5419
  %7144 = vst [vmem:[#allocation3 + $0x8c0] sm:$0xf0] %v5420
  %7145 = vst [vmem:[#allocation3 + $0x8c8] sm:$0xf0] %v5421
  %7146 = vst [vmem:[#allocation3 + $0x8d0] sm:$0xf0] %v5422
  %7147 = vst [vmem:[#allocation3 + $0x8d8] sm:$0xf0] %v5423
  %7148 = vst [vmem:[#allocation3 + $0x8e0] sm:$0xf0] %v5424
  %7149 = vst [vmem:[#allocation3 + $0x8e8] sm:$0xf0] %v5425
  %7150 = vst [vmem:[#allocation3 + $0x8f0] sm:$0xf0] %v5426
  %7151 = vst [vmem:[#allocation3 + $0x8f8] sm:$0xf0] %v7132
  %7152 = vst [vmem:[#allocation3 + $0x900] sm:$0xf0] %v7133
  %7153 = vst [vmem:[#allocation3 + $0x908] sm:$0x3] %v5412
  %7154 = vst [vmem:[#allocation3 + $0x910] sm:$0x3] %v5413
  %7155 = vst [vmem:[#allocation3 + $0x918] sm:$0x3] %v5414
  %7156 = vst [vmem:[#allocation3 + $0x920] sm:$0x3] %v5415
  %7157 = vst [vmem:[#allocation3 + $0x928] sm:$0x3] %v5416
  %7158 = vst [vmem:[#allocation3 + $0x930] sm:$0x3] %v5417
  %7159 = vst [vmem:[#allocation3 + $0x938] sm:$0x3] %v5418
  %7160 = vst [vmem:[#allocation3 + $0x940] sm:$0x3] %v5419
  %7161 = vst [vmem:[#allocation3 + $0x948] sm:$0x3] %v5420
  %7162 = vst [vmem:[#allocation3 + $0x950] sm:$0x3] %v5421
  %7163 = vst [vmem:[#allocation3 + $0x958] sm:$0x3] %v5422
  %7164 = vst [vmem:[#allocation3 + $0x960] sm:$0x3] %v5423
  %7165 = vst [vmem:[#allocation3 + $0x968] sm:$0x3] %v5424
  %7166 = vst [vmem:[#allocation3 + $0x970] sm:$0x3] %v5425
  %7167 = vst [vmem:[#allocation3 + $0x978] sm:$0x3] %v5426
  %7168 = vst [vmem:[#allocation3 + $0x980] sm:$0x3] %v7132
  %7169 = vst [vmem:[#allocation3 + $0x988] sm:$0x3] %v7133
  %v7170 = vrot.slane %v5198, 6
  %7171 = vrot.lane.b32.xlu0 %v6212, 122
  %v7172 = vpop.permute.xlu0 %7171
  %7173 = vrot.lane.b32.xlu0 %v7170, 122
  %v7174 = vpop.permute.xlu0 %7173
  %v7175 = vsel %vm5532, %v5531, %v7172
  %v7176 = vsel %vm5532, %v7172, %v7174
  %7179 = vst [vmem:[#allocation3 + $0x908] sm:$0xfc] %v5535
  %7180 = vst [vmem:[#allocation3 + $0x910] sm:$0xfc] %v5536
  %7181 = vst [vmem:[#allocation3 + $0x918] sm:$0xfc] %v5537
  %7182 = vst [vmem:[#allocation3 + $0x920] sm:$0xfc] %v5538
  %7183 = vst [vmem:[#allocation3 + $0x928] sm:$0xfc] %v5539
  %7184 = vst [vmem:[#allocation3 + $0x930] sm:$0xfc] %v5540
  %7185 = vst [vmem:[#allocation3 + $0x938] sm:$0xfc] %v5541
  %7186 = vst [vmem:[#allocation3 + $0x940] sm:$0xfc] %v5542
  %7187 = vst [vmem:[#allocation3 + $0x948] sm:$0xfc] %v5543
  %7188 = vst [vmem:[#allocation3 + $0x950] sm:$0xfc] %v5544
  %7189 = vst [vmem:[#allocation3 + $0x958] sm:$0xfc] %v5545
  %7190 = vst [vmem:[#allocation3 + $0x960] sm:$0xfc] %v5546
  %7191 = vst [vmem:[#allocation3 + $0x968] sm:$0xfc] %v5547
  %7192 = vst [vmem:[#allocation3 + $0x970] sm:$0xfc] %v5548
  %7193 = vst [vmem:[#allocation3 + $0x978] sm:$0xfc] %v5549
  %7194 = vst [vmem:[#allocation3 + $0x980] sm:$0xfc] %v7175
  %7195 = vst [vmem:[#allocation3 + $0x988] sm:$0xfc] %v7176
  %7196 = vrot.lane.b32.xlu0 %v5197, 120
  %v7197 = vpop.permute.xlu0 %7196
  %7198 = vrot.lane.b32.xlu0 %v5198, 120
  %v7199 = vpop.permute.xlu0 %7198
  %v7200 = vsel %vm5620, %v5619, %v7197
  %v7201 = vsel %vm5620, %v7197, %v7199
  %7204 = vst [vmem:[#allocation3 + $0x990] sm:$0x3f] %v5623
  %7205 = vst [vmem:[#allocation3 + $0x998] sm:$0x3f] %v5624
  %7206 = vst [vmem:[#allocation3 + $0x9a0] sm:$0x3f] %v5625
  %7207 = vst [vmem:[#allocation3 + $0x9a8] sm:$0x3f] %v5626
  %7208 = vst [vmem:[#allocation3 + $0x9b0] sm:$0x3f] %v5627
  %7209 = vst [vmem:[#allocation3 + $0x9b8] sm:$0x3f] %v5628
  %7210 = vst [vmem:[#allocation3 + $0x9c0] sm:$0x3f] %v5629
  %7211 = vst [vmem:[#allocation3 + $0x9c8] sm:$0x3f] %v5630
  %7212 = vst [vmem:[#allocation3 + $0x9d0] sm:$0x3f] %v5631
  %7213 = vst [vmem:[#allocation3 + $0x9d8] sm:$0x3f] %v5632
  %7214 = vst [vmem:[#allocation3 + $0x9e0] sm:$0x3f] %v5633
  %7215 = vst [vmem:[#allocation3 + $0x9e8] sm:$0x3f] %v5634
  %7216 = vst [vmem:[#allocation3 + $0x9f0] sm:$0x3f] %v5635
  %7217 = vst [vmem:[#allocation3 + $0x9f8] sm:$0x3f] %v5636
  %7218 = vst [vmem:[#allocation3 + $0xa00] sm:$0x3f] %v5637
  %7219 = vst [vmem:[#allocation3 + $0xa08] sm:$0x3f] %v7200
  %7220 = vst [vmem:[#allocation3 + $0xa10] sm:$0x3f] %v7201
  %7221 = vst [vmem:[#allocation3 + $0x990] sm:$0xc0] 0.0
  %7222 = vst [vmem:[#allocation3 + $0x998] sm:$0xc0] 0.0
  %7223 = vst [vmem:[#allocation3 + $0x9a0] sm:$0xc0] 0.0
  %7224 = vst [vmem:[#allocation3 + $0x9a8] sm:$0xc0] 0.0
  %7225 = vst [vmem:[#allocation3 + $0x9b0] sm:$0xc0] 0.0
  %7226 = vst [vmem:[#allocation3 + $0x9b8] sm:$0xc0] 0.0
  %7227 = vst [vmem:[#allocation3 + $0x9c0] sm:$0xc0] 0.0
  %7228 = vst [vmem:[#allocation3 + $0x9c8] sm:$0xc0] 0.0
  %7229 = vst [vmem:[#allocation3 + $0x9d0] sm:$0xc0] 0.0
  %7230 = vst [vmem:[#allocation3 + $0x9d8] sm:$0xc0] 0.0
  %7231 = vst [vmem:[#allocation3 + $0x9e0] sm:$0xc0] 0.0
  %7232 = vst [vmem:[#allocation3 + $0x9e8] sm:$0xc0] 0.0
  %7233 = vst [vmem:[#allocation3 + $0x9f0] sm:$0xc0] 0.0
  %7234 = vst [vmem:[#allocation3 + $0x9f8] sm:$0xc0] 0.0
  %7235 = vst [vmem:[#allocation3 + $0xa00] sm:$0xc0] 0.0
  %7236 = vst [vmem:[#allocation3 + $0xa08] sm:$0xc0] 0.0
  %7237 = vst [vmem:[#allocation3 + $0xa10] sm:$0xc0] 0.0
  %7238 = vst [vmem:[#allocation3 + $0xa18] sm:$0xff] 0.0
  %7239 = vst [vmem:[#allocation3 + $0xa20] sm:$0xff] 0.0
  %7240 = vst [vmem:[#allocation3 + $0xa28] sm:$0xff] 0.0
  %7241 = vst [vmem:[#allocation3 + $0xa30] sm:$0xff] 0.0
  %7242 = vst [vmem:[#allocation3 + $0xa38] sm:$0xff] 0.0
  %7243 = vst [vmem:[#allocation3 + $0xa40] sm:$0xff] 0.0
  %7244 = vst [vmem:[#allocation3 + $0xa48] sm:$0xff] 0.0
  %7245 = vst [vmem:[#allocation3 + $0xa50] sm:$0xff] 0.0
  %7246 = vst [vmem:[#allocation3 + $0xa58] sm:$0xff] 0.0
  %7247 = vst [vmem:[#allocation3 + $0xa60] sm:$0xff] 0.0
  %7248 = vst [vmem:[#allocation3 + $0xa68] sm:$0xff] 0.0
  %7249 = vst [vmem:[#allocation3 + $0xa70] sm:$0xff] 0.0
  %7250 = vst [vmem:[#allocation3 + $0xa78] sm:$0xff] 0.0
  %7251 = vst [vmem:[#allocation3 + $0xa80] sm:$0xff] 0.0
  %7252 = vst [vmem:[#allocation3 + $0xa88] sm:$0xff] 0.0
  %7253 = vst [vmem:[#allocation3 + $0xa90] sm:$0xff] 0.0
  %7254 = vst [vmem:[#allocation3 + $0xa98] sm:$0xff] 0.0
  %v7255 = vld [vmem:[%s3] sm:$0xff]
  %v7256 = vld [vmem:[%s3 + $0x8] sm:$0xff]
  %v7257 = vld [vmem:[%s3 + $0x10] sm:$0xff]
  %v7258 = vld [vmem:[%s3 + $0x18] sm:$0xff]
  %v7259 = vld [vmem:[#allocation3] sm:$0xff]
  %v7260 = vld [vmem:[#allocation3 + $0x8] sm:$0xff]
  %v7261 = vld [vmem:[#allocation3 + $0x10] sm:$0xff]
  %v7262 = vld [vmem:[#allocation3 + $0x18] sm:$0xff]
  %v7263 = vld [vmem:[#allocation3 + $0x20] sm:$0xff]
  %v7264 = vld [vmem:[#allocation3 + $0x28] sm:$0xff]
  %v7265 = vld [vmem:[#allocation3 + $0x30] sm:$0xff]
  %v7266 = vld [vmem:[#allocation3 + $0x38] sm:$0xff]
  %v7267 = vld [vmem:[#allocation3 + $0x40] sm:$0xff]
  %v7268 = vld [vmem:[#allocation3 + $0x48] sm:$0xff]
  %v7269 = vld [vmem:[#allocation3 + $0x50] sm:$0xff]
  %v7270 = vld [vmem:[#allocation3 + $0x58] sm:$0xff]
  %v7271 = vld [vmem:[#allocation3 + $0x60] sm:$0xff]
  %v7272 = vld [vmem:[#allocation3 + $0x68] sm:$0xff]
  %v7273 = vld [vmem:[#allocation3 + $0x70] sm:$0xff]
  %v7274 = vld [vmem:[#allocation3 + $0x78] sm:$0xff]
  %v7275 = vld [vmem:[#allocation3 + $0x80] sm:$0xff]
  %v7276 = vld [vmem:[#allocation3 + $0x88] sm:$0xff]
  %v7277 = vld [vmem:[#allocation3 + $0x90] sm:$0xff]
  %v7278 = vld [vmem:[#allocation3 + $0x98] sm:$0xff]
  %v7279 = vld [vmem:[#allocation3 + $0xa0] sm:$0xff]
  %v7280 = vld [vmem:[#allocation3 + $0xa8] sm:$0xff]
  %v7281 = vld [vmem:[#allocation3 + $0xb0] sm:$0xff]
  %v7282 = vld [vmem:[#allocation3 + $0xb8] sm:$0xff]
  %v7283 = vld [vmem:[#allocation3 + $0xc0] sm:$0xff]
  %v7284 = vld [vmem:[#allocation3 + $0xc8] sm:$0xff]
  %v7285 = vld [vmem:[#allocation3 + $0xd0] sm:$0xff]
  %v7286 = vld [vmem:[#allocation3 + $0xd8] sm:$0xff]
  %v7287 = vld [vmem:[#allocation3 + $0xe0] sm:$0xff]
  %v7288 = vld [vmem:[#allocation3 + $0xe8] sm:$0xff]
  %v7289 = vld [vmem:[#allocation3 + $0xf0] sm:$0xff]
  %v7290 = vld [vmem:[#allocation3 + $0xf8] sm:$0xff]
  %v7291 = vld [vmem:[#allocation3 + $0x100] sm:$0xff]
  %v7292 = vld [vmem:[#allocation3 + $0x108] sm:$0xff]
  %v7293 = vld [vmem:[#allocation3 + $0x110] sm:$0xff]
  %v7294 = vld [vmem:[#allocation3 + $0x118] sm:$0xff]
  %v7295 = vld [vmem:[#allocation3 + $0x120] sm:$0xff]
  %v7296 = vld [vmem:[#allocation3 + $0x128] sm:$0xff]
  %v7297 = vld [vmem:[#allocation3 + $0x130] sm:$0xff]
  %v7298 = vld [vmem:[#allocation3 + $0x138] sm:$0xff]
  %v7299 = vld [vmem:[#allocation3 + $0x140] sm:$0xff]
  %v7300 = vld [vmem:[#allocation3 + $0x148] sm:$0xff]
  %v7301 = vld [vmem:[#allocation3 + $0x150] sm:$0xff]
  %v7302 = vld [vmem:[#allocation3 + $0x158] sm:$0xff]
  %v7303 = vld [vmem:[#allocation3 + $0x160] sm:$0xff]
  %v7304 = vld [vmem:[#allocation3 + $0x168] sm:$0xff]
  %v7305 = vld [vmem:[#allocation3 + $0x170] sm:$0xff]
  %v7306 = vld [vmem:[#allocation3 + $0x178] sm:$0xff]
  %v7307 = vld [vmem:[#allocation3 + $0x180] sm:$0xff]
  %v7308 = vld [vmem:[#allocation3 + $0x188] sm:$0xff]
  %v7309 = vld [vmem:[#allocation3 + $0x190] sm:$0xff]
  %v7310 = vld [vmem:[#allocation3 + $0x198] sm:$0xff]
  %v7311 = vld [vmem:[#allocation3 + $0x1a0] sm:$0xff]
  %v7312 = vld [vmem:[#allocation3 + $0x1a8] sm:$0xff]
  %v7313 = vld [vmem:[#allocation3 + $0x1b0] sm:$0xff]
  %v7314 = vld [vmem:[#allocation3 + $0x1b8] sm:$0xff]
  %v7315 = vld [vmem:[#allocation3 + $0x1c0] sm:$0xff]
  %v7316 = vld [vmem:[#allocation3 + $0x1c8] sm:$0xff]
  %v7317 = vld [vmem:[#allocation3 + $0x1d0] sm:$0xff]
  %v7318 = vld [vmem:[#allocation3 + $0x1d8] sm:$0xff]
  %v7319 = vld [vmem:[#allocation3 + $0x1e0] sm:$0xff]
  %v7320 = vld [vmem:[#allocation3 + $0x1e8] sm:$0xff]
  %v7321 = vld [vmem:[#allocation3 + $0x1f0] sm:$0xff]
  %v7322 = vld [vmem:[#allocation3 + $0x1f8] sm:$0xff]
  %v7323 = vld [vmem:[#allocation3 + $0x200] sm:$0xff]
  %v7324 = vld [vmem:[#allocation3 + $0x208] sm:$0xff]
  %v7325 = vld [vmem:[#allocation3 + $0x210] sm:$0xff]
  %v7326 = vld [vmem:[#allocation3 + $0x218] sm:$0xff]
  %v7327 = vld [vmem:[#allocation3 + $0x220] sm:$0xff]
  %v7328 = vld [vmem:[#allocation3 + $0x228] sm:$0xff]
  %v7329 = vld [vmem:[#allocation3 + $0x230] sm:$0xff]
  %v7330 = vld [vmem:[#allocation3 + $0x238] sm:$0xff]
  %v7331 = vld [vmem:[#allocation3 + $0x240] sm:$0xff]
  %v7332 = vld [vmem:[#allocation3 + $0x248] sm:$0xff]
  %v7333 = vld [vmem:[#allocation3 + $0x250] sm:$0xff]
  %v7334 = vld [vmem:[#allocation3 + $0x258] sm:$0xff]
  %v7335 = vld [vmem:[#allocation3 + $0x260] sm:$0xff]
  %v7336 = vld [vmem:[#allocation3 + $0x268] sm:$0xff]
  %v7337 = vld [vmem:[#allocation3 + $0x270] sm:$0xff]
  %v7338 = vld [vmem:[#allocation3 + $0x278] sm:$0xff]
  %v7339 = vld [vmem:[#allocation3 + $0x280] sm:$0xff]
  %v7340 = vld [vmem:[#allocation3 + $0x288] sm:$0xff]
  %v7341 = vld [vmem:[#allocation3 + $0x290] sm:$0xff]
  %v7342 = vld [vmem:[#allocation3 + $0x298] sm:$0xff]
  %v7343 = vld [vmem:[#allocation3 + $0x2a0] sm:$0xff]
  %v7344 = vld [vmem:[#allocation3 + $0x2a8] sm:$0xff]
  %v7345 = vld [vmem:[#allocation3 + $0x2b0] sm:$0xff]
  %v7346 = vld [vmem:[#allocation3 + $0x2b8] sm:$0xff]
  %v7347 = vld [vmem:[#allocation3 + $0x2c0] sm:$0xff]
  %v7348 = vld [vmem:[#allocation3 + $0x2c8] sm:$0xff]
  %v7349 = vld [vmem:[#allocation3 + $0x2d0] sm:$0xff]
  %v7350 = vld [vmem:[#allocation3 + $0x2d8] sm:$0xff]
  %v7351 = vld [vmem:[#allocation3 + $0x2e0] sm:$0xff]
  %v7352 = vld [vmem:[#allocation3 + $0x2e8] sm:$0xff]
  %v7353 = vld [vmem:[#allocation3 + $0x2f0] sm:$0xff]
  %v7354 = vld [vmem:[#allocation3 + $0x2f8] sm:$0xff]
  %v7355 = vld [vmem:[#allocation3 + $0x300] sm:$0xff]
  %v7356 = vld [vmem:[#allocation3 + $0x308] sm:$0xff]
  %v7357 = vld [vmem:[#allocation3 + $0x310] sm:$0xff]
  %v7358 = vld [vmem:[#allocation3 + $0x318] sm:$0xff]
  %v7359 = vld [vmem:[#allocation3 + $0x320] sm:$0xff]
  %v7360 = vld [vmem:[#allocation3 + $0x328] sm:$0xff]
  %v7361 = vld [vmem:[#allocation3 + $0x330] sm:$0xff]
  %v7362 = vld [vmem:[#allocation3 + $0x338] sm:$0xff]
  %v7363 = vld [vmem:[#allocation3 + $0x340] sm:$0xff]
  %v7364 = vld [vmem:[#allocation3 + $0x348] sm:$0xff]
  %v7365 = vld [vmem:[#allocation3 + $0x350] sm:$0xff]
  %v7366 = vld [vmem:[#allocation3 + $0x358] sm:$0xff]
  %v7367 = vld [vmem:[#allocation3 + $0x360] sm:$0xff]
  %v7368 = vld [vmem:[#allocation3 + $0x368] sm:$0xff]
  %v7369 = vld [vmem:[#allocation3 + $0x370] sm:$0xff]
  %v7370 = vld [vmem:[#allocation3 + $0x378] sm:$0xff]
  %v7371 = vld [vmem:[#allocation3 + $0x380] sm:$0xff]
  %v7372 = vld [vmem:[#allocation3 + $0x388] sm:$0xff]
  %v7373 = vld [vmem:[#allocation3 + $0x390] sm:$0xff]
  %v7374 = vld [vmem:[#allocation3 + $0x398] sm:$0xff]
  %v7375 = vld [vmem:[#allocation3 + $0x3a0] sm:$0xff]
  %v7376 = vld [vmem:[#allocation3 + $0x3a8] sm:$0xff]
  %v7377 = vld [vmem:[#allocation3 + $0x3b0] sm:$0xff]
  %v7378 = vld [vmem:[#allocation3 + $0x3b8] sm:$0xff]
  %v7379 = vld [vmem:[#allocation3 + $0x3c0] sm:$0xff]
  %v7380 = vld [vmem:[#allocation3 + $0x3c8] sm:$0xff]
  %v7381 = vld [vmem:[#allocation3 + $0x3d0] sm:$0xff]
  %v7382 = vld [vmem:[#allocation3 + $0x3d8] sm:$0xff]
  %v7383 = vld [vmem:[#allocation3 + $0x3e0] sm:$0xff]
  %v7384 = vld [vmem:[#allocation3 + $0x3e8] sm:$0xff]
  %v7385 = vld [vmem:[#allocation3 + $0x3f0] sm:$0xff]
  %v7386 = vld [vmem:[#allocation3 + $0x3f8] sm:$0xff]
  %v7387 = vld [vmem:[#allocation3 + $0x400] sm:$0xff]
  %v7388 = vld [vmem:[#allocation3 + $0x408] sm:$0xff]
  %v7389 = vld [vmem:[#allocation3 + $0x410] sm:$0xff]
  %v7390 = vld [vmem:[#allocation3 + $0x418] sm:$0xff]
  %v7391 = vld [vmem:[#allocation3 + $0x420] sm:$0xff]
  %v7392 = vld [vmem:[#allocation3 + $0x428] sm:$0xff]
  %v7393 = vld [vmem:[#allocation3 + $0x430] sm:$0xff]
  %v7394 = vld [vmem:[#allocation3 + $0x438] sm:$0xff]
  %v7395 = vld [vmem:[#allocation3 + $0x440] sm:$0xff]
  %v7396 = vld [vmem:[#allocation3 + $0x448] sm:$0xff]
  %v7397 = vld [vmem:[#allocation3 + $0x450] sm:$0xff]
  %v7398 = vld [vmem:[#allocation3 + $0x458] sm:$0xff]
  %v7399 = vld [vmem:[#allocation3 + $0x460] sm:$0xff]
  %v7400 = vld [vmem:[#allocation3 + $0x468] sm:$0xff]
  %v7401 = vld [vmem:[#allocation3 + $0x470] sm:$0xff]
  %v7402 = vld [vmem:[#allocation3 + $0x478] sm:$0xff]
  %v7403 = vld [vmem:[#allocation3 + $0x480] sm:$0xff]
  %v7404 = vld [vmem:[#allocation3 + $0x488] sm:$0xff]
  %v7405 = vld [vmem:[#allocation3 + $0x490] sm:$0xff]
  %v7406 = vld [vmem:[#allocation3 + $0x498] sm:$0xff]
  %v7407 = vld [vmem:[#allocation3 + $0x4a0] sm:$0xff]
  %v7408 = vld [vmem:[#allocation3 + $0x4a8] sm:$0xff]
  %v7409 = vld [vmem:[#allocation3 + $0x4b0] sm:$0xff]
  %v7410 = vld [vmem:[#allocation3 + $0x4b8] sm:$0xff]
  %v7411 = vld [vmem:[#allocation3 + $0x4c0] sm:$0xff]
  %v7412 = vld [vmem:[#allocation3 + $0x4c8] sm:$0xff]
  %v7413 = vld [vmem:[#allocation3 + $0x4d0] sm:$0xff]
  %v7414 = vld [vmem:[#allocation3 + $0x4d8] sm:$0xff]
  %v7415 = vld [vmem:[#allocation3 + $0x4e0] sm:$0xff]
  %v7416 = vld [vmem:[#allocation3 + $0x4e8] sm:$0xff]
  %v7417 = vld [vmem:[#allocation3 + $0x4f0] sm:$0xff]
  %v7418 = vld [vmem:[#allocation3 + $0x4f8] sm:$0xff]
  %v7419 = vld [vmem:[#allocation3 + $0x500] sm:$0xff]
  %v7420 = vld [vmem:[#allocation3 + $0x508] sm:$0xff]
  %v7421 = vld [vmem:[#allocation3 + $0x510] sm:$0xff]
  %v7422 = vld [vmem:[#allocation3 + $0x518] sm:$0xff]
  %v7423 = vld [vmem:[#allocation3 + $0x520] sm:$0xff]
  %v7424 = vld [vmem:[#allocation3 + $0x528] sm:$0xff]
  %v7425 = vld [vmem:[#allocation3 + $0x530] sm:$0xff]
  %v7426 = vld [vmem:[#allocation3 + $0x538] sm:$0xff]
  %v7427 = vld [vmem:[#allocation3 + $0x540] sm:$0xff]
  %v7428 = vld [vmem:[#allocation3 + $0x548] sm:$0xff]
  %v7429 = vld [vmem:[#allocation3 + $0x550] sm:$0xff]
  %v7430 = vld [vmem:[#allocation3 + $0x558] sm:$0xff]
  %v7431 = vld [vmem:[#allocation3 + $0x560] sm:$0xff]
  %v7432 = vld [vmem:[#allocation3 + $0x568] sm:$0xff]
  %v7433 = vld [vmem:[#allocation3 + $0x570] sm:$0xff]
  %v7434 = vld [vmem:[#allocation3 + $0x578] sm:$0xff]
  %v7435 = vld [vmem:[#allocation3 + $0x580] sm:$0xff]
  %v7436 = vld [vmem:[#allocation3 + $0x588] sm:$0xff]
  %v7437 = vld [vmem:[#allocation3 + $0x590] sm:$0xff]
  %v7438 = vld [vmem:[#allocation3 + $0x598] sm:$0xff]
  %v7439 = vld [vmem:[#allocation3 + $0x5a0] sm:$0xff]
  %v7440 = vld [vmem:[#allocation3 + $0x5a8] sm:$0xff]
  %v7441 = vld [vmem:[#allocation3 + $0x5b0] sm:$0xff]
  %v7442 = vld [vmem:[#allocation3 + $0x5b8] sm:$0xff]
  %v7443 = vld [vmem:[#allocation3 + $0x5c0] sm:$0xff]
  %v7444 = vld [vmem:[#allocation3 + $0x5c8] sm:$0xff]
  %v7445 = vld [vmem:[#allocation3 + $0x5d0] sm:$0xff]
  %v7446 = vld [vmem:[#allocation3 + $0x5d8] sm:$0xff]
  %v7447 = vld [vmem:[#allocation3 + $0x5e0] sm:$0xff]
  %v7448 = vld [vmem:[#allocation3 + $0x5e8] sm:$0xff]
  %v7449 = vld [vmem:[#allocation3 + $0x5f0] sm:$0xff]
  %v7450 = vld [vmem:[#allocation3 + $0x5f8] sm:$0xff]
  %v7451 = vld [vmem:[#allocation3 + $0x600] sm:$0xff]
  %v7452 = vld [vmem:[#allocation3 + $0x608] sm:$0xff]
  %v7453 = vld [vmem:[#allocation3 + $0x610] sm:$0xff]
  %v7454 = vld [vmem:[#allocation3 + $0x618] sm:$0xff]
  %v7455 = vld [vmem:[#allocation3 + $0x620] sm:$0xff]
  %v7456 = vld [vmem:[#allocation3 + $0x628] sm:$0xff]
  %v7457 = vld [vmem:[#allocation3 + $0x630] sm:$0xff]
  %v7458 = vld [vmem:[#allocation3 + $0x638] sm:$0xff]
  %v7459 = vld [vmem:[#allocation3 + $0x640] sm:$0xff]
  %v7460 = vld [vmem:[#allocation3 + $0x648] sm:$0xff]
  %v7461 = vld [vmem:[#allocation3 + $0x650] sm:$0xff]
  %v7462 = vld [vmem:[#allocation3 + $0x658] sm:$0xff]
  %v7463 = vld [vmem:[#allocation3 + $0x660] sm:$0xff]
  %v7464 = vld [vmem:[#allocation3 + $0x668] sm:$0xff]
  %v7465 = vld [vmem:[#allocation3 + $0x670] sm:$0xff]
  %v7466 = vld [vmem:[#allocation3 + $0x678] sm:$0xff]
  %v7467 = vld [vmem:[#allocation3 + $0x680] sm:$0xff]
  %v7468 = vld [vmem:[#allocation3 + $0x688] sm:$0xff]
  %v7469 = vld [vmem:[#allocation3 + $0x690] sm:$0xff]
  %v7470 = vld [vmem:[#allocation3 + $0x698] sm:$0xff]
  %v7471 = vld [vmem:[#allocation3 + $0x6a0] sm:$0xff]
  %v7472 = vld [vmem:[#allocation3 + $0x6a8] sm:$0xff]
  %v7473 = vld [vmem:[#allocation3 + $0x6b0] sm:$0xff]
  %v7474 = vld [vmem:[#allocation3 + $0x6b8] sm:$0xff]
  %v7475 = vld [vmem:[#allocation3 + $0x6c0] sm:$0xff]
  %v7476 = vld [vmem:[#allocation3 + $0x6c8] sm:$0xff]
  %v7477 = vld [vmem:[#allocation3 + $0x6d0] sm:$0xff]
  %v7478 = vld [vmem:[#allocation3 + $0x6d8] sm:$0xff]
  %v7479 = vld [vmem:[#allocation3 + $0x6e0] sm:$0xff]
  %v7480 = vld [vmem:[#allocation3 + $0x6e8] sm:$0xff]
  %v7481 = vld [vmem:[#allocation3 + $0x6f0] sm:$0xff]
  %v7482 = vld [vmem:[#allocation3 + $0x6f8] sm:$0xff]
  %v7483 = vld [vmem:[#allocation3 + $0x700] sm:$0xff]
  %v7484 = vld [vmem:[#allocation3 + $0x708] sm:$0xff]
  %v7485 = vld [vmem:[#allocation3 + $0x710] sm:$0xff]
  %v7486 = vld [vmem:[#allocation3 + $0x718] sm:$0xff]
  %v7487 = vld [vmem:[#allocation3 + $0x720] sm:$0xff]
  %v7488 = vld [vmem:[#allocation3 + $0x728] sm:$0xff]
  %v7489 = vld [vmem:[#allocation3 + $0x730] sm:$0xff]
  %v7490 = vld [vmem:[#allocation3 + $0x738] sm:$0xff]
  %v7491 = vld [vmem:[#allocation3 + $0x740] sm:$0xff]
  %v7492 = vld [vmem:[#allocation3 + $0x748] sm:$0xff]
  %v7493 = vld [vmem:[#allocation3 + $0x750] sm:$0xff]
  %v7494 = vld [vmem:[#allocation3 + $0x758] sm:$0xff]
  %v7495 = vld [vmem:[#allocation3 + $0x760] sm:$0xff]
  %v7496 = vld [vmem:[#allocation3 + $0x768] sm:$0xff]
  %v7497 = vld [vmem:[#allocation3 + $0x770] sm:$0xff]
  %v7498 = vld [vmem:[#allocation3 + $0x778] sm:$0xff]
  %v7499 = vld [vmem:[#allocation3 + $0x780] sm:$0xff]
  %v7500 = vld [vmem:[#allocation3 + $0x788] sm:$0xff]
  %v7501 = vld [vmem:[#allocation3 + $0x790] sm:$0xff]
  %v7502 = vld [vmem:[#allocation3 + $0x798] sm:$0xff]
  %v7503 = vld [vmem:[#allocation3 + $0x7a0] sm:$0xff]
  %v7504 = vld [vmem:[#allocation3 + $0x7a8] sm:$0xff]
  %v7505 = vld [vmem:[#allocation3 + $0x7b0] sm:$0xff]
  %v7506 = vld [vmem:[#allocation3 + $0x7b8] sm:$0xff]
  %v7507 = vld [vmem:[#allocation3 + $0x7c0] sm:$0xff]
  %v7508 = vld [vmem:[#allocation3 + $0x7c8] sm:$0xff]
  %v7509 = vld [vmem:[#allocation3 + $0x7d0] sm:$0xff]
  %v7510 = vld [vmem:[#allocation3 + $0x7d8] sm:$0xff]
  %v7511 = vld [vmem:[#allocation3 + $0x7e0] sm:$0xff]
  %v7512 = vld [vmem:[#allocation3 + $0x7e8] sm:$0xff]
  %v7513 = vld [vmem:[#allocation3 + $0x7f0] sm:$0xff]
  %v7514 = vld [vmem:[#allocation3 + $0x7f8] sm:$0xff]
  %v7515 = vld [vmem:[#allocation3 + $0x800] sm:$0xff]
  %v7516 = vld [vmem:[#allocation3 + $0x808] sm:$0xff]
  %v7517 = vld [vmem:[#allocation3 + $0x810] sm:$0xff]
  %v7518 = vld [vmem:[#allocation3 + $0x818] sm:$0xff]
  %v7519 = vld [vmem:[#allocation3 + $0x820] sm:$0xff]
  %v7520 = vld [vmem:[#allocation3 + $0x828] sm:$0xff]
  %v7521 = vld [vmem:[#allocation3 + $0x830] sm:$0xff]
  %v7522 = vld [vmem:[#allocation3 + $0x838] sm:$0xff]
  %v7523 = vld [vmem:[#allocation3 + $0x840] sm:$0xff]
  %v7524 = vld [vmem:[#allocation3 + $0x848] sm:$0xff]
  %v7525 = vld [vmem:[#allocation3 + $0x850] sm:$0xff]
  %v7526 = vld [vmem:[#allocation3 + $0x858] sm:$0xff]
  %v7527 = vld [vmem:[#allocation3 + $0x860] sm:$0xff]
  %v7528 = vld [vmem:[#allocation3 + $0x868] sm:$0xff]
  %v7529 = vld [vmem:[#allocation3 + $0x870] sm:$0xff]
  %v7530 = vld [vmem:[#allocation3 + $0x878] sm:$0xff]
  %v7531 = vld [vmem:[#allocation3 + $0x880] sm:$0xff]
  %v7532 = vld [vmem:[#allocation3 + $0x888] sm:$0xff]
  %v7533 = vld [vmem:[#allocation3 + $0x890] sm:$0xff]
  %v7534 = vld [vmem:[#allocation3 + $0x898] sm:$0xff]
  %v7535 = vld [vmem:[#allocation3 + $0x8a0] sm:$0xff]
  %v7536 = vld [vmem:[#allocation3 + $0x8a8] sm:$0xff]
  %v7537 = vld [vmem:[#allocation3 + $0x8b0] sm:$0xff]
  %v7538 = vld [vmem:[#allocation3 + $0x8b8] sm:$0xff]
  %v7539 = vld [vmem:[#allocation3 + $0x8c0] sm:$0xff]
  %v7540 = vld [vmem:[#allocation3 + $0x8c8] sm:$0xff]
  %v7541 = vld [vmem:[#allocation3 + $0x8d0] sm:$0xff]
  %v7542 = vld [vmem:[#allocation3 + $0x8d8] sm:$0xff]
  %v7543 = vld [vmem:[#allocation3 + $0x8e0] sm:$0xff]
  %v7544 = vld [vmem:[#allocation3 + $0x8e8] sm:$0xff]
  %v7545 = vld [vmem:[#allocation3 + $0x8f0] sm:$0xff]
  %v7546 = vld [vmem:[#allocation3 + $0x8f8] sm:$0xff]
  %v7547 = vld [vmem:[#allocation3 + $0x900] sm:$0xff]
  %v7548 = vld [vmem:[#allocation3 + $0x908] sm:$0xff]
  %v7549 = vld [vmem:[#allocation3 + $0x910] sm:$0xff]
  %v7550 = vld [vmem:[#allocation3 + $0x918] sm:$0xff]
  %v7551 = vld [vmem:[#allocation3 + $0x920] sm:$0xff]
  %v7552 = vld [vmem:[#allocation3 + $0x928] sm:$0xff]
  %v7553 = vld [vmem:[#allocation3 + $0x930] sm:$0xff]
  %v7554 = vld [vmem:[#allocation3 + $0x938] sm:$0xff]
  %v7555 = vld [vmem:[#allocation3 + $0x940] sm:$0xff]
  %v7556 = vld [vmem:[#allocation3 + $0x948] sm:$0xff]
  %v7557 = vld [vmem:[#allocation3 + $0x950] sm:$0xff]
  %v7558 = vld [vmem:[#allocation3 + $0x958] sm:$0xff]
  %v7559 = vld [vmem:[#allocation3 + $0x960] sm:$0xff]
  %v7560 = vld [vmem:[#allocation3 + $0x968] sm:$0xff]
  %v7561 = vld [vmem:[#allocation3 + $0x970] sm:$0xff]
  %v7562 = vld [vmem:[#allocation3 + $0x978] sm:$0xff]
  %v7563 = vld [vmem:[#allocation3 + $0x980] sm:$0xff]
  %v7564 = vld [vmem:[#allocation3 + $0x988] sm:$0xff]
  %v7565 = vld [vmem:[#allocation3 + $0x990] sm:$0xff]
  %v7566 = vld [vmem:[#allocation3 + $0x998] sm:$0xff]
  %v7567 = vld [vmem:[#allocation3 + $0x9a0] sm:$0xff]
  %v7568 = vld [vmem:[#allocation3 + $0x9a8] sm:$0xff]
  %v7569 = vld [vmem:[#allocation3 + $0x9b0] sm:$0xff]
  %v7570 = vld [vmem:[#allocation3 + $0x9b8] sm:$0xff]
  %v7571 = vld [vmem:[#allocation3 + $0x9c0] sm:$0xff]
  %v7572 = vld [vmem:[#allocation3 + $0x9c8] sm:$0xff]
  %v7573 = vld [vmem:[#allocation3 + $0x9d0] sm:$0xff]
  %v7574 = vld [vmem:[#allocation3 + $0x9d8] sm:$0xff]
  %v7575 = vld [vmem:[#allocation3 + $0x9e0] sm:$0xff]
  %v7576 = vld [vmem:[#allocation3 + $0x9e8] sm:$0xff]
  %v7577 = vld [vmem:[#allocation3 + $0x9f0] sm:$0xff]
  %v7578 = vld [vmem:[#allocation3 + $0x9f8] sm:$0xff]
  %v7579 = vld [vmem:[#allocation3 + $0xa00] sm:$0xff]
  %v7580 = vld [vmem:[#allocation3 + $0xa08] sm:$0xff]
  %v7581 = vld [vmem:[#allocation3 + $0xa10] sm:$0xff]
  %v7582 = vld [vmem:[#allocation3 + $0xa18] sm:$0xff]
  %v7583 = vld [vmem:[#allocation3 + $0xa20] sm:$0xff]
  %v7584 = vld [vmem:[#allocation3 + $0xa28] sm:$0xff]
  %v7585 = vld [vmem:[#allocation3 + $0xa30] sm:$0xff]
  %v7586 = vld [vmem:[#allocation3 + $0xa38] sm:$0xff]
  %v7587 = vld [vmem:[#allocation3 + $0xa40] sm:$0xff]
  %v7588 = vld [vmem:[#allocation3 + $0xa48] sm:$0xff]
  %v7589 = vld [vmem:[#allocation3 + $0xa50] sm:$0xff]
  %v7590 = vld [vmem:[#allocation3 + $0xa58] sm:$0xff]
  %v7591 = vld [vmem:[#allocation3 + $0xa60] sm:$0xff]
  %v7592 = vld [vmem:[#allocation3 + $0xa68] sm:$0xff]
  %v7593 = vld [vmem:[#allocation3 + $0xa70] sm:$0xff]
  %v7594 = vld [vmem:[#allocation3 + $0xa78] sm:$0xff]
  %v7595 = vld [vmem:[#allocation3 + $0xa80] sm:$0xff]
  %v7596 = vld [vmem:[#allocation3 + $0xa88] sm:$0xff]
  %v7597 = vld [vmem:[#allocation3 + $0xa90] sm:$0xff]
  %v7598 = vld [vmem:[#allocation3 + $0xa98] sm:$0xff]
  %v7599 = vld [vmem:[%s4] sm:$0xff]
  %v7600 = vld [vmem:[%s4 + $0x8] sm:$0xff]
  %7602 = vset.pattern.permute.xlu0 0
  %7603 = vperm.xlu0 %7602, %v7599
  %v7604 = vpop.permute.xlu0 %7603
  %7607 = vset.pattern.permute.xlu0 0
  %7608 = vperm.xlu0 %7607, %v7600
  %v7609 = vpop.permute.xlu0 %7608
  %v7612 = vsel %vm2481, %v7256, 0
  %v7615 = vsel %vm2481, %v7258, 0
  %7617 = vmatprep.subr.mxu0 %v7515
  %7618 = vmatpush1.msra.mxu0 %v7514
  %7619 = vmatprep.subr.mxu0 %v7498
  %7620 = vmatpush1.msra.mxu0 %v7497
  %7621 = vmatprep.subr.mxu0 %v7481
  %7622 = vmatpush1.msra.mxu0 %v7480
  %7623 = vmatprep.subr.mxu0 %v7464
  %7624 = vmatpush1.msra.mxu0 %v7463
  %7625 = vmatprep.subr.mxu0 %v7447
  %7626 = vmatpush1.msra.mxu0 %v7446
  %7627 = vmatprep.subr.mxu0 %v7430
  %7628 = vmatpush1.msra.mxu0 %v7429
  %7629 = vmatprep.subr.mxu0 %v7413
  %7630 = vmatpush1.msra.mxu0 %v7412
  %7631 = vmatprep.subr.mxu0 %v7396
  %7632 = vmatpush1.msra.mxu0 %v7395
  %7633 = vmatprep.subr.mxu0 %v7379
  %7634 = vmatpush1.msra.mxu0 %v7378
  %7635 = vmatprep.subr.mxu0 %v7362
  %7636 = vmatpush1.msra.mxu0 %v7361
  %7637 = vmatprep.subr.mxu0 %v7345
  %7638 = vmatpush1.msra.mxu0 %v7344
  %7639 = vmatprep.subr.mxu0 %v7328
  %7640 = vmatpush1.msra.mxu0 %v7327
  %7641 = vmatprep.subr.mxu0 %v7311
  %7642 = vmatpush1.msra.mxu0 %v7310
  %7643 = vmatprep.subr.mxu0 %v7294
  %7644 = vmatpush1.msra.mxu0 %v7293
  %7645 = vmatprep.subr.mxu0 %v7277
  %7646 = vmatpush1.msra.mxu0 %v7276
  %7647 = vmatprep.subr.mxu0 %v7260
  %7648 = vmatpush1.msra.mxu0 %v7259
  %7649 = vmatprep.subr.mxu0 0.0
  %7650 = vmatpush2.msra.mxu0 0.0
  %7651 = vmatprep.subr.mxu0 0.0
  %7652 = vmatpush2.msra.mxu0 0.0
  %7653 = vmatprep.subr.mxu0 0.0
  %7654 = vmatpush2.msra.mxu0 0.0
  %7655 = vmatprep.subr.mxu0 0.0
  %7656 = vmatpush2.msra.mxu0 0.0
  %7657 = vmatprep.subr.mxu0 0.0
  %7658 = vmatpush2.msra.mxu0 0.0
  %7659 = vmatprep.subr.mxu0 0.0
  %7660 = vmatpush2.msra.mxu0 0.0
  %7661 = vmatprep.subr.mxu0 0.0
  %7662 = vmatpush2.msra.mxu0 0.0
  %7663 = vmatprep.subr.mxu0 0.0
  %7664 = vmatpush2.msra.mxu0 0.0
  %7665 = vmatprep.subr.mxu0 0.0
  %7666 = vmatpush2.msra.mxu0 0.0
  %7667 = vmatprep.subr.mxu0 0.0
  %7668 = vmatpush2.msra.mxu0 0.0
  %7669 = vmatprep.subr.mxu0 0.0
  %7670 = vmatpush2.msra.mxu0 0.0
  %7671 = vmatprep.subr.mxu0 0.0
  %7672 = vmatpush2.msra.mxu0 0.0
  %7673 = vmatprep.subr.mxu0 %v7583
  %7674 = vmatpush2.msra.mxu0 %v7582
  %7675 = vmatprep.subr.mxu0 %v7566
  %7676 = vmatpush2.msra.mxu0 %v7565
  %7677 = vmatprep.subr.mxu0 %v7549
  %7678 = vmatpush2.msra.mxu0 %v7548
  %7679 = vmatprep.subr.mxu0 %v7532
  %7680 = vmatpush2.msra.mxu0 %v7531
  %7681 = vmatprep.mubr.f32.mxu0 %v7612
  %7682 = vmatmul.mubr.f32.gmra.mxu0 %v7255
  %v7683 = vpop.f32.mrf.mxu0
  %v7684 = vadd.f32 %v7604, %v7683
  %v7685 = vpop.f32.mrf.mxu0
  %v7686 = vadd.f32 %v7604, %v7685
  %7687 = vmatprep.mubr.f32.mxu0 %v7615
  %7688 = vmatmul.mubr.f32.gmra.mxu0 %v7257
  %v7689 = vpop.f32.mrf.mxu0
  %v7690 = vadd.f32 %v7609, %v7689
  %v7691 = vpop.f32.mrf.mxu0
  %v7692 = vadd.f32 %v7609, %v7691
  %7693 = vdwg.mxu0
  %7694 = vmatprep.subr.mxu0 %v7517
  %7695 = vmatpush1.msra.mxu0 %v7516
  %7696 = vmatprep.subr.mxu0 %v7500
  %7697 = vmatpush1.msra.mxu0 %v7499
  %7698 = vmatprep.subr.mxu0 %v7483
  %7699 = vmatpush1.msra.mxu0 %v7482
  %7700 = vmatprep.subr.mxu0 %v7466
  %7701 = vmatpush1.msra.mxu0 %v7465
  %7702 = vmatprep.subr.mxu0 %v7449
  %7703 = vmatpush1.msra.mxu0 %v7448
  %7704 = vmatprep.subr.mxu0 %v7432
  %7705 = vmatpush1.msra.mxu0 %v7431
  %7706 = vmatprep.subr.mxu0 %v7415
  %7707 = vmatpush1.msra.mxu0 %v7414
  %7708 = vmatprep.subr.mxu0 %v7398
  %7709 = vmatpush1.msra.mxu0 %v7397
  %7710 = vmatprep.subr.mxu0 %v7381
  %7711 = vmatpush1.msra.mxu0 %v7380
  %7712 = vmatprep.subr.mxu0 %v7364
  %7713 = vmatpush1.msra.mxu0 %v7363
  %7714 = vmatprep.subr.mxu0 %v7347
  %7715 = vmatpush1.msra.mxu0 %v7346
  %7716 = vmatprep.subr.mxu0 %v7330
  %7717 = vmatpush1.msra.mxu0 %v7329
  %7718 = vmatprep.subr.mxu0 %v7313
  %7719 = vmatpush1.msra.mxu0 %v7312
  %7720 = vmatprep.subr.mxu0 %v7296
  %7721 = vmatpush1.msra.mxu0 %v7295
  %7722 = vmatprep.subr.mxu0 %v7279
  %7723 = vmatpush1.msra.mxu0 %v7278
  %7724 = vmatprep.subr.mxu0 %v7262
  %7725 = vmatpush1.msra.mxu0 %v7261
  %7726 = vmatprep.subr.mxu0 0.0
  %7727 = vmatpush2.msra.mxu0 0.0
  %7728 = vmatprep.subr.mxu0 0.0
  %7729 = vmatpush2.msra.mxu0 0.0
  %7730 = vmatprep.subr.mxu0 0.0
  %7731 = vmatpush2.msra.mxu0 0.0
  %7732 = vmatprep.subr.mxu0 0.0
  %7733 = vmatpush2.msra.mxu0 0.0
  %7734 = vmatprep.subr.mxu0 0.0
  %7735 = vmatpush2.msra.mxu0 0.0
  %7736 = vmatprep.subr.mxu0 0.0
  %7737 = vmatpush2.msra.mxu0 0.0
  %7738 = vmatprep.subr.mxu0 0.0
  %7739 = vmatpush2.msra.mxu0 0.0
  %7740 = vmatprep.subr.mxu0 0.0
  %7741 = vmatpush2.msra.mxu0 0.0
  %7742 = vmatprep.subr.mxu0 0.0
  %7743 = vmatpush2.msra.mxu0 0.0
  %7744 = vmatprep.subr.mxu0 0.0
  %7745 = vmatpush2.msra.mxu0 0.0
  %7746 = vmatprep.subr.mxu0 0.0
  %7747 = vmatpush2.msra.mxu0 0.0
  %7748 = vmatprep.subr.mxu0 0.0
  %7749 = vmatpush2.msra.mxu0 0.0
  %7750 = vmatprep.subr.mxu0 %v7585
  %7751 = vmatpush2.msra.mxu0 %v7584
  %7752 = vmatprep.subr.mxu0 %v7568
  %7753 = vmatpush2.msra.mxu0 %v7567
  %7754 = vmatprep.subr.mxu0 %v7551
  %7755 = vmatpush2.msra.mxu0 %v7550
  %7756 = vmatprep.subr.mxu0 %v7534
  %7757 = vmatpush2.msra.mxu0 %v7533
  %7758 = vmatprep.mubr.f32.mxu0 %v7612
  %7759 = vmatmul.mubr.f32.gmra.mxu0 %v7255
  %v7760 = vpop.f32.mrf.mxu0
  %v7761 = vadd.f32 %v7604, %v7760
  %v7762 = vpop.f32.mrf.mxu0
  %v7763 = vadd.f32 %v7604, %v7762
  %7764 = vmatprep.mubr.f32.mxu0 %v7615
  %7765 = vmatmul.mubr.f32.gmra.mxu0 %v7257
  %v7766 = vpop.f32.mrf.mxu0
  %v7767 = vadd.f32 %v7609, %v7766
  %v7768 = vpop.f32.mrf.mxu0
  %v7769 = vadd.f32 %v7609, %v7768
  %7770 = vdwg.mxu0
  %7771 = vmatprep.subr.mxu0 %v7519
  %7772 = vmatpush1.msra.mxu0 %v7518
  %7773 = vmatprep.subr.mxu0 %v7502
  %7774 = vmatpush1.msra.mxu0 %v7501
  %7775 = vmatprep.subr.mxu0 %v7485
  %7776 = vmatpush1.msra.mxu0 %v7484
  %7777 = vmatprep.subr.mxu0 %v7468
  %7778 = vmatpush1.msra.mxu0 %v7467
  %7779 = vmatprep.subr.mxu0 %v7451
  %7780 = vmatpush1.msra.mxu0 %v7450
  %7781 = vmatprep.subr.mxu0 %v7434
  %7782 = vmatpush1.msra.mxu0 %v7433
  %7783 = vmatprep.subr.mxu0 %v7417
  %7784 = vmatpush1.msra.mxu0 %v7416
  %7785 = vmatprep.subr.mxu0 %v7400
  %7786 = vmatpush1.msra.mxu0 %v7399
  %7787 = vmatprep.subr.mxu0 %v7383
  %7788 = vmatpush1.msra.mxu0 %v7382
  %7789 = vmatprep.subr.mxu0 %v7366
  %7790 = vmatpush1.msra.mxu0 %v7365
  %7791 = vmatprep.subr.mxu0 %v7349
  %7792 = vmatpush1.msra.mxu0 %v7348
  %7793 = vmatprep.subr.mxu0 %v7332
  %7794 = vmatpush1.msra.mxu0 %v7331
  %7795 = vmatprep.subr.mxu0 %v7315
  %7796 = vmatpush1.msra.mxu0 %v7314
  %7797 = vmatprep.subr.mxu0 %v7298
  %7798 = vmatpush1.msra.mxu0 %v7297
  %7799 = vmatprep.subr.mxu0 %v7281
  %7800 = vmatpush1.msra.mxu0 %v7280
  %7801 = vmatprep.subr.mxu0 %v7264
  %7802 = vmatpush1.msra.mxu0 %v7263
  %7803 = vmatprep.subr.mxu0 0.0
  %7804 = vmatpush2.msra.mxu0 0.0
  %7805 = vmatprep.subr.mxu0 0.0
  %7806 = vmatpush2.msra.mxu0 0.0
  %7807 = vmatprep.subr.mxu0 0.0
  %7808 = vmatpush2.msra.mxu0 0.0
  %7809 = vmatprep.subr.mxu0 0.0
  %7810 = vmatpush2.msra.mxu0 0.0
  %7811 = vmatprep.subr.mxu0 0.0
  %7812 = vmatpush2.msra.mxu0 0.0
  %7813 = vmatprep.subr.mxu0 0.0
  %7814 = vmatpush2.msra.mxu0 0.0
  %7815 = vmatprep.subr.mxu0 0.0
  %7816 = vmatpush2.msra.mxu0 0.0
  %7817 = vmatprep.subr.mxu0 0.0
  %7818 = vmatpush2.msra.mxu0 0.0
  %7819 = vmatprep.subr.mxu0 0.0
  %7820 = vmatpush2.msra.mxu0 0.0
  %7821 = vmatprep.subr.mxu0 0.0
  %7822 = vmatpush2.msra.mxu0 0.0
  %7823 = vmatprep.subr.mxu0 0.0
  %7824 = vmatpush2.msra.mxu0 0.0
  %7825 = vmatprep.subr.mxu0 0.0
  %7826 = vmatpush2.msra.mxu0 0.0
  %7827 = vmatprep.subr.mxu0 %v7587
  %7828 = vmatpush2.msra.mxu0 %v7586
  %7829 = vmatprep.subr.mxu0 %v7570
  %7830 = vmatpush2.msra.mxu0 %v7569
  %7831 = vmatprep.subr.mxu0 %v7553
  %7832 = vmatpush2.msra.mxu0 %v7552
  %7833 = vmatprep.subr.mxu0 %v7536
  %7834 = vmatpush2.msra.mxu0 %v7535
  %7835 = vmatprep.mubr.f32.mxu0 %v7612
  %7836 = vmatmul.mubr.f32.gmra.mxu0 %v7255
  %v7837 = vpop.f32.mrf.mxu0
  %v7838 = vadd.f32 %v7604, %v7837
  %v7839 = vpop.f32.mrf.mxu0
  %v7840 = vadd.f32 %v7604, %v7839
  %7841 = vmatprep.mubr.f32.mxu0 %v7615
  %7842 = vmatmul.mubr.f32.gmra.mxu0 %v7257
  %v7843 = vpop.f32.mrf.mxu0
  %v7844 = vadd.f32 %v7609, %v7843
  %v7845 = vpop.f32.mrf.mxu0
  %v7846 = vadd.f32 %v7609, %v7845
  %7847 = vdwg.mxu0
  %7848 = vmatprep.subr.mxu0 %v7521
  %7849 = vmatpush1.msra.mxu0 %v7520
  %7850 = vmatprep.subr.mxu0 %v7504
  %7851 = vmatpush1.msra.mxu0 %v7503
  %7852 = vmatprep.subr.mxu0 %v7487
  %7853 = vmatpush1.msra.mxu0 %v7486
  %7854 = vmatprep.subr.mxu0 %v7470
  %7855 = vmatpush1.msra.mxu0 %v7469
  %7856 = vmatprep.subr.mxu0 %v7453
  %7857 = vmatpush1.msra.mxu0 %v7452
  %7858 = vmatprep.subr.mxu0 %v7436
  %7859 = vmatpush1.msra.mxu0 %v7435
  %7860 = vmatprep.subr.mxu0 %v7419
  %7861 = vmatpush1.msra.mxu0 %v7418
  %7862 = vmatprep.subr.mxu0 %v7402
  %7863 = vmatpush1.msra.mxu0 %v7401
  %7864 = vmatprep.subr.mxu0 %v7385
  %7865 = vmatpush1.msra.mxu0 %v7384
  %7866 = vmatprep.subr.mxu0 %v7368
  %7867 = vmatpush1.msra.mxu0 %v7367
  %7868 = vmatprep.subr.mxu0 %v7351
  %7869 = vmatpush1.msra.mxu0 %v7350
  %7870 = vmatprep.subr.mxu0 %v7334
  %7871 = vmatpush1.msra.mxu0 %v7333
  %7872 = vmatprep.subr.mxu0 %v7317
  %7873 = vmatpush1.msra.mxu0 %v7316
  %7874 = vmatprep.subr.mxu0 %v7300
  %7875 = vmatpush1.msra.mxu0 %v7299
  %7876 = vmatprep.subr.mxu0 %v7283
  %7877 = vmatpush1.msra.mxu0 %v7282
  %7878 = vmatprep.subr.mxu0 %v7266
  %7879 = vmatpush1.msra.mxu0 %v7265
  %7880 = vmatprep.subr.mxu0 0.0
  %7881 = vmatpush2.msra.mxu0 0.0
  %7882 = vmatprep.subr.mxu0 0.0
  %7883 = vmatpush2.msra.mxu0 0.0
  %7884 = vmatprep.subr.mxu0 0.0
  %7885 = vmatpush2.msra.mxu0 0.0
  %7886 = vmatprep.subr.mxu0 0.0
  %7887 = vmatpush2.msra.mxu0 0.0
  %7888 = vmatprep.subr.mxu0 0.0
  %7889 = vmatpush2.msra.mxu0 0.0
  %7890 = vmatprep.subr.mxu0 0.0
  %7891 = vmatpush2.msra.mxu0 0.0
  %7892 = vmatprep.subr.mxu0 0.0
  %7893 = vmatpush2.msra.mxu0 0.0
  %7894 = vmatprep.subr.mxu0 0.0
  %7895 = vmatpush2.msra.mxu0 0.0
  %7896 = vmatprep.subr.mxu0 0.0
  %7897 = vmatpush2.msra.mxu0 0.0
  %7898 = vmatprep.subr.mxu0 0.0
  %7899 = vmatpush2.msra.mxu0 0.0
  %7900 = vmatprep.subr.mxu0 0.0
  %7901 = vmatpush2.msra.mxu0 0.0
  %7902 = vmatprep.subr.mxu0 0.0
  %7903 = vmatpush2.msra.mxu0 0.0
  %7904 = vmatprep.subr.mxu0 %v7589
  %7905 = vmatpush2.msra.mxu0 %v7588
  %7906 = vmatprep.subr.mxu0 %v7572
  %7907 = vmatpush2.msra.mxu0 %v7571
  %7908 = vmatprep.subr.mxu0 %v7555
  %7909 = vmatpush2.msra.mxu0 %v7554
  %7910 = vmatprep.subr.mxu0 %v7538
  %7911 = vmatpush2.msra.mxu0 %v7537
  %7912 = vmatprep.mubr.f32.mxu0 %v7612
  %7913 = vmatmul.mubr.f32.gmra.mxu0 %v7255
  %v7914 = vpop.f32.mrf.mxu0
  %v7915 = vadd.f32 %v7604, %v7914
  %v7916 = vpop.f32.mrf.mxu0
  %v7917 = vadd.f32 %v7604, %v7916
  %7918 = vmatprep.mubr.f32.mxu0 %v7615
  %7919 = vmatmul.mubr.f32.gmra.mxu0 %v7257
  %v7920 = vpop.f32.mrf.mxu0
  %v7921 = vadd.f32 %v7609, %v7920
  %v7922 = vpop.f32.mrf.mxu0
  %v7923 = vadd.f32 %v7609, %v7922
  %7924 = vdwg.mxu0
  %7925 = vmatprep.subr.mxu0 %v7523
  %7926 = vmatpush1.msra.mxu0 %v7522
  %7927 = vmatprep.subr.mxu0 %v7506
  %7928 = vmatpush1.msra.mxu0 %v7505
  %7929 = vmatprep.subr.mxu0 %v7489
  %7930 = vmatpush1.msra.mxu0 %v7488
  %7931 = vmatprep.subr.mxu0 %v7472
  %7932 = vmatpush1.msra.mxu0 %v7471
  %7933 = vmatprep.subr.mxu0 %v7455
  %7934 = vmatpush1.msra.mxu0 %v7454
  %7935 = vmatprep.subr.mxu0 %v7438
  %7936 = vmatpush1.msra.mxu0 %v7437
  %7937 = vmatprep.subr.mxu0 %v7421
  %7938 = vmatpush1.msra.mxu0 %v7420
  %7939 = vmatprep.subr.mxu0 %v7404
  %7940 = vmatpush1.msra.mxu0 %v7403
  %7941 = vmatprep.subr.mxu0 %v7387
  %7942 = vmatpush1.msra.mxu0 %v7386
  %7943 = vmatprep.subr.mxu0 %v7370
  %7944 = vmatpush1.msra.mxu0 %v7369
  %7945 = vmatprep.subr.mxu0 %v7353
  %7946 = vmatpush1.msra.mxu0 %v7352
  %7947 = vmatprep.subr.mxu0 %v7336
  %7948 = vmatpush1.msra.mxu0 %v7335
  %7949 = vmatprep.subr.mxu0 %v7319
  %7950 = vmatpush1.msra.mxu0 %v7318
  %7951 = vmatprep.subr.mxu0 %v7302
  %7952 = vmatpush1.msra.mxu0 %v7301
  %7953 = vmatprep.subr.mxu0 %v7285
  %7954 = vmatpush1.msra.mxu0 %v7284
  %7955 = vmatprep.subr.mxu0 %v7268
  %7956 = vmatpush1.msra.mxu0 %v7267
  %7957 = vmatprep.subr.mxu0 0.0
  %7958 = vmatpush2.msra.mxu0 0.0
  %7959 = vmatprep.subr.mxu0 0.0
  %7960 = vmatpush2.msra.mxu0 0.0
  %7961 = vmatprep.subr.mxu0 0.0
  %7962 = vmatpush2.msra.mxu0 0.0
  %7963 = vmatprep.subr.mxu0 0.0
  %7964 = vmatpush2.msra.mxu0 0.0
  %7965 = vmatprep.subr.mxu0 0.0
  %7966 = vmatpush2.msra.mxu0 0.0
  %7967 = vmatprep.subr.mxu0 0.0
  %7968 = vmatpush2.msra.mxu0 0.0
  %7969 = vmatprep.subr.mxu0 0.0
  %7970 = vmatpush2.msra.mxu0 0.0
  %7971 = vmatprep.subr.mxu0 0.0
  %7972 = vmatpush2.msra.mxu0 0.0
  %7973 = vmatprep.subr.mxu0 0.0
  %7974 = vmatpush2.msra.mxu0 0.0
  %7975 = vmatprep.subr.mxu0 0.0
  %7976 = vmatpush2.msra.mxu0 0.0
  %7977 = vmatprep.subr.mxu0 0.0
  %7978 = vmatpush2.msra.mxu0 0.0
  %7979 = vmatprep.subr.mxu0 0.0
  %7980 = vmatpush2.msra.mxu0 0.0
  %7981 = vmatprep.subr.mxu0 %v7591
  %7982 = vmatpush2.msra.mxu0 %v7590
  %7983 = vmatprep.subr.mxu0 %v7574
  %7984 = vmatpush2.msra.mxu0 %v7573
  %7985 = vmatprep.subr.mxu0 %v7557
  %7986 = vmatpush2.msra.mxu0 %v7556
  %7987 = vmatprep.subr.mxu0 %v7540
  %7988 = vmatpush2.msra.mxu0 %v7539
  %7989 = vmatprep.mubr.f32.mxu0 %v7612
  %7990 = vmatmul.mubr.f32.gmra.mxu0 %v7255
  %v7991 = vpop.f32.mrf.mxu0
  %v7992 = vadd.f32 %v7604, %v7991
  %v7993 = vpop.f32.mrf.mxu0
  %v7994 = vadd.f32 %v7604, %v7993
  %7995 = vmatprep.mubr.f32.mxu0 %v7615
  %7996 = vmatmul.mubr.f32.gmra.mxu0 %v7257
  %v7997 = vpop.f32.mrf.mxu0
  %v7998 = vadd.f32 %v7609, %v7997
  %v7999 = vpop.f32.mrf.mxu0
  %v8000 = vadd.f32 %v7609, %v7999
  %8001 = vdwg.mxu0
  %8002 = vmatprep.subr.mxu0 %v7525
  %8003 = vmatpush1.msra.mxu0 %v7524
  %8004 = vmatprep.subr.mxu0 %v7508
  %8005 = vmatpush1.msra.mxu0 %v7507
  %8006 = vmatprep.subr.mxu0 %v7491
  %8007 = vmatpush1.msra.mxu0 %v7490
  %8008 = vmatprep.subr.mxu0 %v7474
  %8009 = vmatpush1.msra.mxu0 %v7473
  %8010 = vmatprep.subr.mxu0 %v7457
  %8011 = vmatpush1.msra.mxu0 %v7456
  %8012 = vmatprep.subr.mxu0 %v7440
  %8013 = vmatpush1.msra.mxu0 %v7439
  %8014 = vmatprep.subr.mxu0 %v7423
  %8015 = vmatpush1.msra.mxu0 %v7422
  %8016 = vmatprep.subr.mxu0 %v7406
  %8017 = vmatpush1.msra.mxu0 %v7405
  %8018 = vmatprep.subr.mxu0 %v7389
  %8019 = vmatpush1.msra.mxu0 %v7388
  %8020 = vmatprep.subr.mxu0 %v7372
  %8021 = vmatpush1.msra.mxu0 %v7371
  %8022 = vmatprep.subr.mxu0 %v7355
  %8023 = vmatpush1.msra.mxu0 %v7354
  %8024 = vmatprep.subr.mxu0 %v7338
  %8025 = vmatpush1.msra.mxu0 %v7337
  %8026 = vmatprep.subr.mxu0 %v7321
  %8027 = vmatpush1.msra.mxu0 %v7320
  %8028 = vmatprep.subr.mxu0 %v7304
  %8029 = vmatpush1.msra.mxu0 %v7303
  %8030 = vmatprep.subr.mxu0 %v7287
  %8031 = vmatpush1.msra.mxu0 %v7286
  %8032 = vmatprep.subr.mxu0 %v7270
  %8033 = vmatpush1.msra.mxu0 %v7269
  %8034 = vmatprep.subr.mxu0 0.0
  %8035 = vmatpush2.msra.mxu0 0.0
  %8036 = vmatprep.subr.mxu0 0.0
  %8037 = vmatpush2.msra.mxu0 0.0
  %8038 = vmatprep.subr.mxu0 0.0
  %8039 = vmatpush2.msra.mxu0 0.0
  %8040 = vmatprep.subr.mxu0 0.0
  %8041 = vmatpush2.msra.mxu0 0.0
  %8042 = vmatprep.subr.mxu0 0.0
  %8043 = vmatpush2.msra.mxu0 0.0
  %8044 = vmatprep.subr.mxu0 0.0
  %8045 = vmatpush2.msra.mxu0 0.0
  %8046 = vmatprep.subr.mxu0 0.0
  %8047 = vmatpush2.msra.mxu0 0.0
  %8048 = vmatprep.subr.mxu0 0.0
  %8049 = vmatpush2.msra.mxu0 0.0
  %8050 = vmatprep.subr.mxu0 0.0
  %8051 = vmatpush2.msra.mxu0 0.0
  %8052 = vmatprep.subr.mxu0 0.0
  %8053 = vmatpush2.msra.mxu0 0.0
  %8054 = vmatprep.subr.mxu0 0.0
  %8055 = vmatpush2.msra.mxu0 0.0
  %8056 = vmatprep.subr.mxu0 0.0
  %8057 = vmatpush2.msra.mxu0 0.0
  %8058 = vmatprep.subr.mxu0 %v7593
  %8059 = vmatpush2.msra.mxu0 %v7592
  %8060 = vmatprep.subr.mxu0 %v7576
  %8061 = vmatpush2.msra.mxu0 %v7575
  %8062 = vmatprep.subr.mxu0 %v7559
  %8063 = vmatpush2.msra.mxu0 %v7558
  %8064 = vmatprep.subr.mxu0 %v7542
  %8065 = vmatpush2.msra.mxu0 %v7541
  %8066 = vmatprep.mubr.f32.mxu0 %v7612
  %8067 = vmatmul.mubr.f32.gmra.mxu0 %v7255
  %v8068 = vpop.f32.mrf.mxu0
  %v8069 = vadd.f32 %v7604, %v8068
  %v8070 = vpop.f32.mrf.mxu0
  %v8071 = vadd.f32 %v7604, %v8070
  %8072 = vmatprep.mubr.f32.mxu0 %v7615
  %8073 = vmatmul.mubr.f32.gmra.mxu0 %v7257
  %v8074 = vpop.f32.mrf.mxu0
  %v8075 = vadd.f32 %v7609, %v8074
  %v8076 = vpop.f32.mrf.mxu0
  %v8077 = vadd.f32 %v7609, %v8076
  %8078 = vdwg.mxu0
  %8079 = vmatprep.subr.mxu0 %v7527
  %8080 = vmatpush1.msra.mxu0 %v7526
  %8081 = vmatprep.subr.mxu0 %v7510
  %8082 = vmatpush1.msra.mxu0 %v7509
  %8083 = vmatprep.subr.mxu0 %v7493
  %8084 = vmatpush1.msra.mxu0 %v7492
  %8085 = vmatprep.subr.mxu0 %v7476
  %8086 = vmatpush1.msra.mxu0 %v7475
  %8087 = vmatprep.subr.mxu0 %v7459
  %8088 = vmatpush1.msra.mxu0 %v7458
  %8089 = vmatprep.subr.mxu0 %v7442
  %8090 = vmatpush1.msra.mxu0 %v7441
  %8091 = vmatprep.subr.mxu0 %v7425
  %8092 = vmatpush1.msra.mxu0 %v7424
  %8093 = vmatprep.subr.mxu0 %v7408
  %8094 = vmatpush1.msra.mxu0 %v7407
  %8095 = vmatprep.subr.mxu0 %v7391
  %8096 = vmatpush1.msra.mxu0 %v7390
  %8097 = vmatprep.subr.mxu0 %v7374
  %8098 = vmatpush1.msra.mxu0 %v7373
  %8099 = vmatprep.subr.mxu0 %v7357
  %8100 = vmatpush1.msra.mxu0 %v7356
  %8101 = vmatprep.subr.mxu0 %v7340
  %8102 = vmatpush1.msra.mxu0 %v7339
  %8103 = vmatprep.subr.mxu0 %v7323
  %8104 = vmatpush1.msra.mxu0 %v7322
  %8105 = vmatprep.subr.mxu0 %v7306
  %8106 = vmatpush1.msra.mxu0 %v7305
  %8107 = vmatprep.subr.mxu0 %v7289
  %8108 = vmatpush1.msra.mxu0 %v7288
  %8109 = vmatprep.subr.mxu0 %v7272
  %8110 = vmatpush1.msra.mxu0 %v7271
  %8111 = vmatprep.subr.mxu0 0.0
  %8112 = vmatpush2.msra.mxu0 0.0
  %8113 = vmatprep.subr.mxu0 0.0
  %8114 = vmatpush2.msra.mxu0 0.0
  %8115 = vmatprep.subr.mxu0 0.0
  %8116 = vmatpush2.msra.mxu0 0.0
  %8117 = vmatprep.subr.mxu0 0.0
  %8118 = vmatpush2.msra.mxu0 0.0
  %8119 = vmatprep.subr.mxu0 0.0
  %8120 = vmatpush2.msra.mxu0 0.0
  %8121 = vmatprep.subr.mxu0 0.0
  %8122 = vmatpush2.msra.mxu0 0.0
  %8123 = vmatprep.subr.mxu0 0.0
  %8124 = vmatpush2.msra.mxu0 0.0
  %8125 = vmatprep.subr.mxu0 0.0
  %8126 = vmatpush2.msra.mxu0 0.0
  %8127 = vmatprep.subr.mxu0 0.0
  %8128 = vmatpush2.msra.mxu0 0.0
  %8129 = vmatprep.subr.mxu0 0.0
  %8130 = vmatpush2.msra.mxu0 0.0
  %8131 = vmatprep.subr.mxu0 0.0
  %8132 = vmatpush2.msra.mxu0 0.0
  %8133 = vmatprep.subr.mxu0 0.0
  %8134 = vmatpush2.msra.mxu0 0.0
  %8135 = vmatprep.subr.mxu0 %v7595
  %8136 = vmatpush2.msra.mxu0 %v7594
  %8137 = vmatprep.subr.mxu0 %v7578
  %8138 = vmatpush2.msra.mxu0 %v7577
  %8139 = vmatprep.subr.mxu0 %v7561
  %8140 = vmatpush2.msra.mxu0 %v7560
  %8141 = vmatprep.subr.mxu0 %v7544
  %8142 = vmatpush2.msra.mxu0 %v7543
  %8143 = vmatprep.mubr.f32.mxu0 %v7612
  %8144 = vmatmul.mubr.f32.gmra.mxu0 %v7255
  %v8145 = vpop.f32.mrf.mxu0
  %v8146 = vadd.f32 %v7604, %v8145
  %v8147 = vpop.f32.mrf.mxu0
  %v8148 = vadd.f32 %v7604, %v8147
  %8149 = vmatprep.mubr.f32.mxu0 %v7615
  %8150 = vmatmul.mubr.f32.gmra.mxu0 %v7257
  %v8151 = vpop.f32.mrf.mxu0
  %v8152 = vadd.f32 %v7609, %v8151
  %v8153 = vpop.f32.mrf.mxu0
  %v8154 = vadd.f32 %v7609, %v8153
  %8155 = vdwg.mxu0
  %8156 = vmatprep.subr.mxu0 %v7529
  %8157 = vmatpush1.msra.mxu0 %v7528
  %8158 = vmatprep.subr.mxu0 %v7512
  %8159 = vmatpush1.msra.mxu0 %v7511
  %8160 = vmatprep.subr.mxu0 %v7495
  %8161 = vmatpush1.msra.mxu0 %v7494
  %8162 = vmatprep.subr.mxu0 %v7478
  %8163 = vmatpush1.msra.mxu0 %v7477
  %8164 = vmatprep.subr.mxu0 %v7461
  %8165 = vmatpush1.msra.mxu0 %v7460
  %8166 = vmatprep.subr.mxu0 %v7444
  %8167 = vmatpush1.msra.mxu0 %v7443
  %8168 = vmatprep.subr.mxu0 %v7427
  %8169 = vmatpush1.msra.mxu0 %v7426
  %8170 = vmatprep.subr.mxu0 %v7410
  %8171 = vmatpush1.msra.mxu0 %v7409
  %8172 = vmatprep.subr.mxu0 %v7393
  %8173 = vmatpush1.msra.mxu0 %v7392
  %8174 = vmatprep.subr.mxu0 %v7376
  %8175 = vmatpush1.msra.mxu0 %v7375
  %8176 = vmatprep.subr.mxu0 %v7359
  %8177 = vmatpush1.msra.mxu0 %v7358
  %8178 = vmatprep.subr.mxu0 %v7342
  %8179 = vmatpush1.msra.mxu0 %v7341
  %8180 = vmatprep.subr.mxu0 %v7325
  %8181 = vmatpush1.msra.mxu0 %v7324
  %8182 = vmatprep.subr.mxu0 %v7308
  %8183 = vmatpush1.msra.mxu0 %v7307
  %8184 = vmatprep.subr.mxu0 %v7291
  %8185 = vmatpush1.msra.mxu0 %v7290
  %8186 = vmatprep.subr.mxu0 %v7274
  %8187 = vmatpush1.msra.mxu0 %v7273
  %8188 = vmatprep.subr.mxu0 0.0
  %8189 = vmatpush2.msra.mxu0 0.0
  %8190 = vmatprep.subr.mxu0 0.0
  %8191 = vmatpush2.msra.mxu0 0.0
  %8192 = vmatprep.subr.mxu0 0.0
  %8193 = vmatpush2.msra.mxu0 0.0
  %8194 = vmatprep.subr.mxu0 0.0
  %8195 = vmatpush2.msra.mxu0 0.0
  %8196 = vmatprep.subr.mxu0 0.0
  %8197 = vmatpush2.msra.mxu0 0.0
  %8198 = vmatprep.subr.mxu0 0.0
  %8199 = vmatpush2.msra.mxu0 0.0
  %8200 = vmatprep.subr.mxu0 0.0
  %8201 = vmatpush2.msra.mxu0 0.0
  %8202 = vmatprep.subr.mxu0 0.0
  %8203 = vmatpush2.msra.mxu0 0.0
  %8204 = vmatprep.subr.mxu0 0.0
  %8205 = vmatpush2.msra.mxu0 0.0
  %8206 = vmatprep.subr.mxu0 0.0
  %8207 = vmatpush2.msra.mxu0 0.0
  %8208 = vmatprep.subr.mxu0 0.0
  %8209 = vmatpush2.msra.mxu0 0.0
  %8210 = vmatprep.subr.mxu0 0.0
  %8211 = vmatpush2.msra.mxu0 0.0
  %8212 = vmatprep.subr.mxu0 %v7597
  %8213 = vmatpush2.msra.mxu0 %v7596
  %8214 = vmatprep.subr.mxu0 %v7580
  %8215 = vmatpush2.msra.mxu0 %v7579
  %8216 = vmatprep.subr.mxu0 %v7563
  %8217 = vmatpush2.msra.mxu0 %v7562
  %8218 = vmatprep.subr.mxu0 %v7546
  %8219 = vmatpush2.msra.mxu0 %v7545
  %8220 = vmatprep.mubr.f32.mxu0 %v7612
  %8221 = vmatmul.mubr.f32.gmra.mxu0 %v7255
  %v8222 = vpop.f32.mrf.mxu0
  %v8223 = vadd.f32 %v7604, %v8222
  %v8224 = vpop.f32.mrf.mxu0
  %v8225 = vadd.f32 %v7604, %v8224
  %8226 = vmatprep.mubr.f32.mxu0 %v7615
  %8227 = vmatmul.mubr.f32.gmra.mxu0 %v7257
  %v8228 = vpop.f32.mrf.mxu0
  %v8229 = vadd.f32 %v7609, %v8228
  %v8230 = vpop.f32.mrf.mxu0
  %v8231 = vadd.f32 %v7609, %v8230
  %8232 = vdwg.mxu0
  %8233 = vmatprep.subr.mxu0 0.0
  %8234 = vmatpush1.msra.mxu0 %v7530
  %8235 = vmatprep.subr.mxu0 0.0
  %8236 = vmatpush1.msra.mxu0 %v7513
  %8237 = vmatprep.subr.mxu0 0.0
  %8238 = vmatpush1.msra.mxu0 %v7496
  %8239 = vmatprep.subr.mxu0 0.0
  %8240 = vmatpush1.msra.mxu0 %v7479
  %8241 = vmatprep.subr.mxu0 0.0
  %8242 = vmatpush1.msra.mxu0 %v7462
  %8243 = vmatprep.subr.mxu0 0.0
  %8244 = vmatpush1.msra.mxu0 %v7445
  %8245 = vmatprep.subr.mxu0 0.0
  %8246 = vmatpush1.msra.mxu0 %v7428
  %8247 = vmatprep.subr.mxu0 0.0
  %8248 = vmatpush1.msra.mxu0 %v7411
  %8249 = vmatprep.subr.mxu0 0.0
  %8250 = vmatpush1.msra.mxu0 %v7394
  %8251 = vmatprep.subr.mxu0 0.0
  %8252 = vmatpush1.msra.mxu0 %v7377
  %8253 = vmatprep.subr.mxu0 0.0
  %8254 = vmatpush1.msra.mxu0 %v7360
  %8255 = vmatprep.subr.mxu0 0.0
  %8256 = vmatpush1.msra.mxu0 %v7343
  %8257 = vmatprep.subr.mxu0 0.0
  %8258 = vmatpush1.msra.mxu0 %v7326
  %8259 = vmatprep.subr.mxu0 0.0
  %8260 = vmatpush1.msra.mxu0 %v7309
  %8261 = vmatprep.subr.mxu0 0.0
  %8262 = vmatpush1.msra.mxu0 %v7292
  %8263 = vmatprep.subr.mxu0 0.0
  %8264 = vmatpush1.msra.mxu0 %v7275
  %8265 = vmatprep.subr.mxu0 0.0
  %8266 = vmatpush2.msra.mxu0 0.0
  %8267 = vmatprep.subr.mxu0 0.0
  %8268 = vmatpush2.msra.mxu0 0.0
  %8269 = vmatprep.subr.mxu0 0.0
  %8270 = vmatpush2.msra.mxu0 0.0
  %8271 = vmatprep.subr.mxu0 0.0
  %8272 = vmatpush2.msra.mxu0 0.0
  %8273 = vmatprep.subr.mxu0 0.0
  %8274 = vmatpush2.msra.mxu0 0.0
  %8275 = vmatprep.subr.mxu0 0.0
  %8276 = vmatpush2.msra.mxu0 0.0
  %8277 = vmatprep.subr.mxu0 0.0
  %8278 = vmatpush2.msra.mxu0 0.0
  %8279 = vmatprep.subr.mxu0 0.0
  %8280 = vmatpush2.msra.mxu0 0.0
  %8281 = vmatprep.subr.mxu0 0.0
  %8282 = vmatpush2.msra.mxu0 0.0
  %8283 = vmatprep.subr.mxu0 0.0
  %8284 = vmatpush2.msra.mxu0 0.0
  %8285 = vmatprep.subr.mxu0 0.0
  %8286 = vmatpush2.msra.mxu0 0.0
  %8287 = vmatprep.subr.mxu0 0.0
  %8288 = vmatpush2.msra.mxu0 0.0
  %8289 = vmatprep.subr.mxu0 0.0
  %8290 = vmatpush2.msra.mxu0 %v7598
  %8291 = vmatprep.subr.mxu0 0.0
  %8292 = vmatpush2.msra.mxu0 %v7581
  %8293 = vmatprep.subr.mxu0 0.0
  %8294 = vmatpush2.msra.mxu0 %v7564
  %8295 = vmatprep.subr.mxu0 0.0
  %8296 = vmatpush2.msra.mxu0 %v7547
  %8297 = vmatprep.mubr.f32.mxu0 %v7612
  %8298 = vmatmul.mubr.f32.gmra.mxu0 %v7255
  %v8299 = vpop.f32.mrf.mxu0
  %v8300 = vadd.f32 %v7604, %v8299
  %v8301 = vpop.f32.mrf.mxu0
  %8302 = vmatprep.mubr.f32.mxu0 %v7615
  %8303 = vmatmul.mubr.f32.gmra.mxu0 %v7257
  %v8304 = vpop.f32.mrf.mxu0
  %v8305 = vadd.f32 %v7609, %v8304
  %v8306 = vpop.f32.mrf.mxu0
  %8307 = vdwg.mxu0
  %v8308 = vmax.f32 %v7684, 0.0
  %v8309 = vmax.f32 %v7686, 0.0
  %v8310 = vmax.f32 %v7761, 0.0
  %v8311 = vmax.f32 %v7763, 0.0
  %v8312 = vmax.f32 %v7838, 0.0
  %v8313 = vmax.f32 %v7840, 0.0
  %v8314 = vmax.f32 %v7915, 0.0
  %v8315 = vmax.f32 %v7917, 0.0
  %v8316 = vmax.f32 %v7992, 0.0
  %v8317 = vmax.f32 %v7994, 0.0
  %v8318 = vmax.f32 %v8069, 0.0
  %v8319 = vmax.f32 %v8071, 0.0
  %v8320 = vmax.f32 %v8146, 0.0
  %v8321 = vmax.f32 %v8148, 0.0
  %v8322 = vmax.f32 %v8223, 0.0
  %v8323 = vmax.f32 %v8225, 0.0
  %v8324 = vmax.f32 %v8300, 0.0
  %v8325 = vmax.f32 %v7690, 0.0
  %v8326 = vmax.f32 %v7692, 0.0
  %v8327 = vmax.f32 %v7767, 0.0
  %v8328 = vmax.f32 %v7769, 0.0
  %v8329 = vmax.f32 %v7844, 0.0
  %v8330 = vmax.f32 %v7846, 0.0
  %v8331 = vmax.f32 %v7921, 0.0
  %v8332 = vmax.f32 %v7923, 0.0
  %v8333 = vmax.f32 %v7998, 0.0
  %v8334 = vmax.f32 %v8000, 0.0
  %v8335 = vmax.f32 %v8075, 0.0
  %v8336 = vmax.f32 %v8077, 0.0
  %v8337 = vmax.f32 %v8152, 0.0
  %v8338 = vmax.f32 %v8154, 0.0
  %v8339 = vmax.f32 %v8229, 0.0
  %v8340 = vmax.f32 %v8231, 0.0
  %v8341 = vmax.f32 %v8305, 0.0
  %8376 = vrot.lane.b32.xlu0 %v8308, 126
  %v8377 = vpop.permute.xlu0 %8376
  %8378 = vrot.lane.b32.xlu0 %v8309, 126
  %v8379 = vpop.permute.xlu0 %8378
  %8380 = vrot.lane.b32.xlu0 %v8310, 126
  %v8381 = vpop.permute.xlu0 %8380
  %8382 = vrot.lane.b32.xlu0 %v8311, 126
  %v8383 = vpop.permute.xlu0 %8382
  %8384 = vrot.lane.b32.xlu0 %v8312, 126
  %v8385 = vpop.permute.xlu0 %8384
  %8386 = vrot.lane.b32.xlu0 %v8313, 126
  %v8387 = vpop.permute.xlu0 %8386
  %8388 = vrot.lane.b32.xlu0 %v8314, 126
  %v8389 = vpop.permute.xlu0 %8388
  %8390 = vrot.lane.b32.xlu0 %v8315, 126
  %v8391 = vpop.permute.xlu0 %8390
  %8392 = vrot.lane.b32.xlu0 %v8316, 126
  %v8393 = vpop.permute.xlu0 %8392
  %8394 = vrot.lane.b32.xlu0 %v8317, 126
  %v8395 = vpop.permute.xlu0 %8394
  %8396 = vrot.lane.b32.xlu0 %v8318, 126
  %v8397 = vpop.permute.xlu0 %8396
  %8398 = vrot.lane.b32.xlu0 %v8319, 126
  %v8399 = vpop.permute.xlu0 %8398
  %8400 = vrot.lane.b32.xlu0 %v8320, 126
  %v8401 = vpop.permute.xlu0 %8400
  %8402 = vrot.lane.b32.xlu0 %v8321, 126
  %v8403 = vpop.permute.xlu0 %8402
  %8404 = vrot.lane.b32.xlu0 %v8322, 126
  %v8405 = vpop.permute.xlu0 %8404
  %8406 = vrot.lane.b32.xlu0 %v8323, 126
  %v8407 = vpop.permute.xlu0 %8406
  %8408 = vrot.lane.b32.xlu0 %v8324, 126
  %v8409 = vpop.permute.xlu0 %8408
  %8410 = vrot.lane.b32.xlu0 %v8325, 126
  %v8411 = vpop.permute.xlu0 %8410
  %8412 = vrot.lane.b32.xlu0 %v8326, 126
  %v8413 = vpop.permute.xlu0 %8412
  %8414 = vrot.lane.b32.xlu0 %v8327, 126
  %v8415 = vpop.permute.xlu0 %8414
  %8416 = vrot.lane.b32.xlu0 %v8328, 126
  %v8417 = vpop.permute.xlu0 %8416
  %8418 = vrot.lane.b32.xlu0 %v8329, 126
  %v8419 = vpop.permute.xlu0 %8418
  %8420 = vrot.lane.b32.xlu0 %v8330, 126
  %v8421 = vpop.permute.xlu0 %8420
  %8422 = vrot.lane.b32.xlu0 %v8331, 126
  %v8423 = vpop.permute.xlu0 %8422
  %8424 = vrot.lane.b32.xlu0 %v8332, 126
  %v8425 = vpop.permute.xlu0 %8424
  %8426 = vrot.lane.b32.xlu0 %v8333, 126
  %v8427 = vpop.permute.xlu0 %8426
  %8428 = vrot.lane.b32.xlu0 %v8334, 126
  %v8429 = vpop.permute.xlu0 %8428
  %8430 = vrot.lane.b32.xlu0 %v8335, 126
  %v8431 = vpop.permute.xlu0 %8430
  %8432 = vrot.lane.b32.xlu0 %v8336, 126
  %v8433 = vpop.permute.xlu0 %8432
  %8434 = vrot.lane.b32.xlu0 %v8337, 126
  %v8435 = vpop.permute.xlu0 %8434
  %8436 = vrot.lane.b32.xlu0 %v8338, 126
  %v8437 = vpop.permute.xlu0 %8436
  %8438 = vrot.lane.b32.xlu0 %v8339, 126
  %v8439 = vpop.permute.xlu0 %8438
  %8440 = vrot.lane.b32.xlu0 %v8340, 126
  %v8441 = vpop.permute.xlu0 %8440
  %8442 = vrot.lane.b32.xlu0 %v8341, 126
  %v8443 = vpop.permute.xlu0 %8442
  %v8444 = vsel %vm344, %v8377, %v8379
  %v8445 = vsel %vm344, %v8379, %v8381
  %v8446 = vsel %vm344, %v8381, %v8383
  %v8447 = vsel %vm344, %v8383, %v8385
  %v8448 = vsel %vm344, %v8385, %v8387
  %v8449 = vsel %vm344, %v8387, %v8389
  %v8450 = vsel %vm344, %v8389, %v8391
  %v8451 = vsel %vm344, %v8391, %v8393
  %v8452 = vsel %vm344, %v8393, %v8395
  %v8453 = vsel %vm344, %v8395, %v8397
  %v8454 = vsel %vm344, %v8397, %v8399
  %v8455 = vsel %vm344, %v8399, %v8401
  %v8456 = vsel %vm344, %v8401, %v8403
  %v8457 = vsel %vm344, %v8403, %v8405
  %v8458 = vsel %vm344, %v8405, %v8407
  %v8459 = vsel %vm344, %v8407, %v8409
  %v8460 = vsel %vm344, %v8411, %v8413
  %v8461 = vsel %vm344, %v8413, %v8415
  %v8462 = vsel %vm344, %v8415, %v8417
  %v8463 = vsel %vm344, %v8417, %v8419
  %v8464 = vsel %vm344, %v8419, %v8421
  %v8465 = vsel %vm344, %v8421, %v8423
  %v8466 = vsel %vm344, %v8423, %v8425
  %v8467 = vsel %vm344, %v8425, %v8427
  %v8468 = vsel %vm344, %v8427, %v8429
  %v8469 = vsel %vm344, %v8429, %v8431
  %v8470 = vsel %vm344, %v8431, %v8433
  %v8471 = vsel %vm344, %v8433, %v8435
  %v8472 = vsel %vm344, %v8435, %v8437
  %v8473 = vsel %vm344, %v8437, %v8439
  %v8474 = vsel %vm344, %v8439, %v8441
  %v8475 = vsel %vm344, %v8441, %v8443
  %v8508 = vmax.f32 %v8308, %v8444
  %v8509 = vmax.f32 %v8309, %v8445
  %v8510 = vmax.f32 %v8310, %v8446
  %v8511 = vmax.f32 %v8311, %v8447
  %v8512 = vmax.f32 %v8312, %v8448
  %v8513 = vmax.f32 %v8313, %v8449
  %v8514 = vmax.f32 %v8314, %v8450
  %v8515 = vmax.f32 %v8315, %v8451
  %v8516 = vmax.f32 %v8316, %v8452
  %v8517 = vmax.f32 %v8317, %v8453
  %v8518 = vmax.f32 %v8318, %v8454
  %v8519 = vmax.f32 %v8319, %v8455
  %v8520 = vmax.f32 %v8320, %v8456
  %v8521 = vmax.f32 %v8321, %v8457
  %v8522 = vmax.f32 %v8322, %v8458
  %v8523 = vmax.f32 %v8323, %v8459
  %v8524 = vmax.f32 %v8325, %v8460
  %v8525 = vmax.f32 %v8326, %v8461
  %v8526 = vmax.f32 %v8327, %v8462
  %v8527 = vmax.f32 %v8328, %v8463
  %v8528 = vmax.f32 %v8329, %v8464
  %v8529 = vmax.f32 %v8330, %v8465
  %v8530 = vmax.f32 %v8331, %v8466
  %v8531 = vmax.f32 %v8332, %v8467
  %v8532 = vmax.f32 %v8333, %v8468
  %v8533 = vmax.f32 %v8334, %v8469
  %v8534 = vmax.f32 %v8335, %v8470
  %v8535 = vmax.f32 %v8336, %v8471
  %v8536 = vmax.f32 %v8337, %v8472
  %v8537 = vmax.f32 %v8338, %v8473
  %v8538 = vmax.f32 %v8339, %v8474
  %v8539 = vmax.f32 %v8340, %v8475
  %v8542 = vmax.f32 %v8324, %v8409
  %v8543 = vmax.f32 %v8341, %v8443
  %8578 = vrot.lane.b32.xlu0 %v8508, 64
  %v8579 = vpop.permute.xlu0 %8578
  %8580 = vrot.lane.b32.xlu0 %v8509, 64
  %v8581 = vpop.permute.xlu0 %8580
  %8582 = vrot.lane.b32.xlu0 %v8510, 64
  %v8583 = vpop.permute.xlu0 %8582
  %8584 = vrot.lane.b32.xlu0 %v8511, 64
  %v8585 = vpop.permute.xlu0 %8584
  %8586 = vrot.lane.b32.xlu0 %v8512, 64
  %v8587 = vpop.permute.xlu0 %8586
  %8588 = vrot.lane.b32.xlu0 %v8513, 64
  %v8589 = vpop.permute.xlu0 %8588
  %8590 = vrot.lane.b32.xlu0 %v8514, 64
  %v8591 = vpop.permute.xlu0 %8590
  %8592 = vrot.lane.b32.xlu0 %v8515, 64
  %v8593 = vpop.permute.xlu0 %8592
  %8594 = vrot.lane.b32.xlu0 %v8516, 64
  %v8595 = vpop.permute.xlu0 %8594
  %8596 = vrot.lane.b32.xlu0 %v8517, 64
  %v8597 = vpop.permute.xlu0 %8596
  %8598 = vrot.lane.b32.xlu0 %v8518, 64
  %v8599 = vpop.permute.xlu0 %8598
  %8600 = vrot.lane.b32.xlu0 %v8519, 64
  %v8601 = vpop.permute.xlu0 %8600
  %8602 = vrot.lane.b32.xlu0 %v8520, 64
  %v8603 = vpop.permute.xlu0 %8602
  %8604 = vrot.lane.b32.xlu0 %v8521, 64
  %v8605 = vpop.permute.xlu0 %8604
  %8606 = vrot.lane.b32.xlu0 %v8522, 64
  %v8607 = vpop.permute.xlu0 %8606
  %8608 = vrot.lane.b32.xlu0 %v8523, 64
  %v8609 = vpop.permute.xlu0 %8608
  %8610 = vrot.lane.b32.xlu0 %v8542, 64
  %v8611 = vpop.permute.xlu0 %8610
  %8612 = vrot.lane.b32.xlu0 %v8524, 64
  %v8613 = vpop.permute.xlu0 %8612
  %8614 = vrot.lane.b32.xlu0 %v8525, 64
  %v8615 = vpop.permute.xlu0 %8614
  %8616 = vrot.lane.b32.xlu0 %v8526, 64
  %v8617 = vpop.permute.xlu0 %8616
  %8618 = vrot.lane.b32.xlu0 %v8527, 64
  %v8619 = vpop.permute.xlu0 %8618
  %8620 = vrot.lane.b32.xlu0 %v8528, 64
  %v8621 = vpop.permute.xlu0 %8620
  %8622 = vrot.lane.b32.xlu0 %v8529, 64
  %v8623 = vpop.permute.xlu0 %8622
  %8624 = vrot.lane.b32.xlu0 %v8530, 64
  %v8625 = vpop.permute.xlu0 %8624
  %8626 = vrot.lane.b32.xlu0 %v8531, 64
  %v8627 = vpop.permute.xlu0 %8626
  %8628 = vrot.lane.b32.xlu0 %v8532, 64
  %v8629 = vpop.permute.xlu0 %8628
  %8630 = vrot.lane.b32.xlu0 %v8533, 64
  %v8631 = vpop.permute.xlu0 %8630
  %8632 = vrot.lane.b32.xlu0 %v8534, 64
  %v8633 = vpop.permute.xlu0 %8632
  %8634 = vrot.lane.b32.xlu0 %v8535, 64
  %v8635 = vpop.permute.xlu0 %8634
  %8636 = vrot.lane.b32.xlu0 %v8536, 64
  %v8637 = vpop.permute.xlu0 %8636
  %8638 = vrot.lane.b32.xlu0 %v8537, 64
  %v8639 = vpop.permute.xlu0 %8638
  %8640 = vrot.lane.b32.xlu0 %v8538, 64
  %v8641 = vpop.permute.xlu0 %8640
  %8642 = vrot.lane.b32.xlu0 %v8539, 64
  %v8643 = vpop.permute.xlu0 %8642
  %8644 = vrot.lane.b32.xlu0 %v8543, 64
  %v8645 = vpop.permute.xlu0 %8644
  %v8646 = vsel %vm1646, %v8579, %v8581
  %v8647 = vsel %vm1646, %v8581, %v8583
  %v8648 = vsel %vm1646, %v8583, %v8585
  %v8649 = vsel %vm1646, %v8585, %v8587
  %v8650 = vsel %vm1646, %v8587, %v8589
  %v8651 = vsel %vm1646, %v8589, %v8591
  %v8652 = vsel %vm1646, %v8591, %v8593
  %v8653 = vsel %vm1646, %v8593, %v8595
  %v8654 = vsel %vm1646, %v8595, %v8597
  %v8655 = vsel %vm1646, %v8597, %v8599
  %v8656 = vsel %vm1646, %v8599, %v8601
  %v8657 = vsel %vm1646, %v8601, %v8603
  %v8658 = vsel %vm1646, %v8603, %v8605
  %v8659 = vsel %vm1646, %v8605, %v8607
  %v8660 = vsel %vm1646, %v8607, %v8609
  %v8661 = vsel %vm1646, %v8609, %v8611
  %v8662 = vsel %vm1646, %v8613, %v8615
  %v8663 = vsel %vm1646, %v8615, %v8617
  %v8664 = vsel %vm1646, %v8617, %v8619
  %v8665 = vsel %vm1646, %v8619, %v8621
  %v8666 = vsel %vm1646, %v8621, %v8623
  %v8667 = vsel %vm1646, %v8623, %v8625
  %v8668 = vsel %vm1646, %v8625, %v8627
  %v8669 = vsel %vm1646, %v8627, %v8629
  %v8670 = vsel %vm1646, %v8629, %v8631
  %v8671 = vsel %vm1646, %v8631, %v8633
  %v8672 = vsel %vm1646, %v8633, %v8635
  %v8673 = vsel %vm1646, %v8635, %v8637
  %v8674 = vsel %vm1646, %v8637, %v8639
  %v8675 = vsel %vm1646, %v8639, %v8641
  %v8676 = vsel %vm1646, %v8641, %v8643
  %v8677 = vsel %vm1646, %v8643, %v8645
  %v8710 = vmax.f32 %v8508, %v8646
  %v8711 = vmax.f32 %v8509, %v8647
  %v8712 = vmax.f32 %v8510, %v8648
  %v8713 = vmax.f32 %v8511, %v8649
  %v8714 = vmax.f32 %v8512, %v8650
  %v8715 = vmax.f32 %v8513, %v8651
  %v8716 = vmax.f32 %v8514, %v8652
  %v8717 = vmax.f32 %v8515, %v8653
  %v8718 = vmax.f32 %v8516, %v8654
  %v8719 = vmax.f32 %v8517, %v8655
  %v8720 = vmax.f32 %v8518, %v8656
  %v8721 = vmax.f32 %v8519, %v8657
  %v8722 = vmax.f32 %v8520, %v8658
  %v8723 = vmax.f32 %v8521, %v8659
  %v8724 = vmax.f32 %v8522, %v8660
  %v8725 = vmax.f32 %v8523, %v8661
  %v8726 = vmax.f32 %v8524, %v8662
  %v8727 = vmax.f32 %v8525, %v8663
  %v8728 = vmax.f32 %v8526, %v8664
  %v8729 = vmax.f32 %v8527, %v8665
  %v8730 = vmax.f32 %v8528, %v8666
  %v8731 = vmax.f32 %v8529, %v8667
  %v8732 = vmax.f32 %v8530, %v8668
  %v8733 = vmax.f32 %v8531, %v8669
  %v8734 = vmax.f32 %v8532, %v8670
  %v8735 = vmax.f32 %v8533, %v8671
  %v8736 = vmax.f32 %v8534, %v8672
  %v8737 = vmax.f32 %v8535, %v8673
  %v8738 = vmax.f32 %v8536, %v8674
  %v8739 = vmax.f32 %v8537, %v8675
  %v8740 = vmax.f32 %v8538, %v8676
  %v8741 = vmax.f32 %v8539, %v8677
  %8742 = vst [vmem:[%s5] sm:$0xff] %v8710
  %8743 = vst [vmem:[%s5 + $0x8] sm:$0xff] %v8711
  %8744 = vst [vmem:[%s5 + $0x10] sm:$0xff] %v8712
  %8745 = vst [vmem:[%s5 + $0x18] sm:$0xff] %v8713
  %8746 = vst [vmem:[%s5 + $0x20] sm:$0xff] %v8714
  %8747 = vst [vmem:[%s5 + $0x28] sm:$0xff] %v8715
  %8748 = vst [vmem:[%s5 + $0x30] sm:$0xff] %v8716
  %8749 = vst [vmem:[%s5 + $0x38] sm:$0xff] %v8717
  %8750 = vst [vmem:[%s5 + $0x40] sm:$0xff] %v8718
  %8751 = vst [vmem:[%s5 + $0x48] sm:$0xff] %v8719
  %8752 = vst [vmem:[%s5 + $0x50] sm:$0xff] %v8720
  %8753 = vst [vmem:[%s5 + $0x58] sm:$0xff] %v8721
  %8754 = vst [vmem:[%s5 + $0x60] sm:$0xff] %v8722
  %8755 = vst [vmem:[%s5 + $0x68] sm:$0xff] %v8723
  %8756 = vst [vmem:[%s5 + $0x70] sm:$0xff] %v8724
  %8757 = vst [vmem:[%s5 + $0x78] sm:$0xff] %v8725
  %8758 = vst [vmem:[%s5 + $0x80] sm:$0xff] %v8726
  %8759 = vst [vmem:[%s5 + $0x88] sm:$0xff] %v8727
  %8760 = vst [vmem:[%s5 + $0x90] sm:$0xff] %v8728
  %8761 = vst [vmem:[%s5 + $0x98] sm:$0xff] %v8729
  %8762 = vst [vmem:[%s5 + $0xa0] sm:$0xff] %v8730
  %8763 = vst [vmem:[%s5 + $0xa8] sm:$0xff] %v8731
  %8764 = vst [vmem:[%s5 + $0xb0] sm:$0xff] %v8732
  %8765 = vst [vmem:[%s5 + $0xb8] sm:$0xff] %v8733
  %8766 = vst [vmem:[%s5 + $0xc0] sm:$0xff] %v8734
  %8767 = vst [vmem:[%s5 + $0xc8] sm:$0xff] %v8735
  %8768 = vst [vmem:[%s5 + $0xd0] sm:$0xff] %v8736
  %8769 = vst [vmem:[%s5 + $0xd8] sm:$0xff] %v8737
  %8770 = vst [vmem:[%s5 + $0xe0] sm:$0xff] %v8738
  %8771 = vst [vmem:[%s5 + $0xe8] sm:$0xff] %v8739
  %8772 = vst [vmem:[%s5 + $0xf0] sm:$0xff] %v8740
  %8773 = vst [vmem:[%s5 + $0xf8] sm:$0xff] %v8741
  // Predicated region
  $region22: #{_lambda_.2} parent=0 // pred_check
    _
  $region23: #{_lambda_.2} parent=0 // pred_check_branch
    %8775 = sbr.rel (0) target = $region25
  $region24: #{_lambda_.2} parent=0 // pred_region
    _
  $region25: #{_lambda_.2} parent=0 // pred_fallthru
    _
  // Predicated region
  $region26: #{_lambda_.2} parent=0 // pred_check
    _
  $region27: #{_lambda_.2} parent=0 // pred_check_branch
    %8777 = sbr.rel (0) target = $region29
  $region28: #{_lambda_.2} parent=0 // pred_region
    _
  $region29: #{_lambda_.2} parent=0 // pred_fallthru
    _

</llo_original>
